<compile_context>
chip_gen: v7x
topology: tpu7x:2x2x1
jax: 0.10.0
libtpu: 0.0.40
codegen_flags: <defaults>
</compile_context>

<pallas_src>
import jax
import jax.numpy as jnp
from jax.experimental import pallas as pl
from jax.experimental.pallas import tpu as pltpu

SELU_ALPHA = 1.6732632423543772
SELU_SCALE = 1.0507009873554805

# Shapes pinned by the module: fc1 = Linear(3200, 256) forces the conv stack
# output to be 32 x 10 x 10, which with kernel=3, stride=1, padding=1 means a
# 10 x 10 spatial input throughout.
H = W = 10
PW = W + 2                  # padded width  = 12
PH = H + 2                  # padded height = 12
PAD_FLAT = PH * PW          # 144 = flattened zero-padded 12x12 plane
OFF = PW + 1                # 13  = flat index of padded position (1, 1)
WIN = PAD_FLAT - 2 * OFF    # 118 = window of flat positions that can be interior
C1, C2, C3 = 8, 16, 32
FC1_IN, FC1_OUT = C3 * H * W, 256      # 3200, 256


# ------------------------------ Pallas kernel --------------------------------
def _dcgan_fused_kernel(x_ref, mask_ref, w1_ref, b1_ref, w2_ref, b2_ref,
                        w3_ref, b3_ref, fc1w_ref, fc1b_ref, fc2w_ref, fc2b_ref,
                        o_ref):
    """Whole discriminator forward for one sample; fully VMEM resident."""
    mask = mask_ref[...]                       # (1, WIN): 1.0 at interior columns

    def conv3x3_selu(xp, w_ref, b_ref):
        # xp: (Cin, PAD_FLAT) zero-padded activation, flattened 12x12 row-major.
        # w_ref: (9, Cout, Cin) taps, t = 3*kh + kw.  b_ref: (Cout, 1).
        # Returns (Cout, WIN): conv + bias + SELU at flat positions [OFF, OFF+WIN);
        # columns that are not true interior positions hold garbage (zeroed later
        # by `mask`, or multiplied by zero fc1 weights).
        cout = w_ref.shape[1]
        acc = jnp.zeros((cout, WIN), jnp.float32)
        for kh in range(3):
            for kw in range(3):
                shift = (1 - kh) * PW + (1 - kw)
                lo = OFF - shift                        # static, in [0, 2*OFF]
                acc = acc + jnp.dot(w_ref[3 * kh + kw], xp[:, lo:lo + WIN],
                                    preferred_element_type=jnp.float32)
        y = acc + b_ref[...]                            # bias once, after all 9 taps
        # SELU (exp(y)-1 instead of expm1: expm1 lowering is not guaranteed on
        # Mosaic; |error| on the negative branch is < 1e-7 in f32).
        return SELU_SCALE * jnp.where(y > 0, y, SELU_ALPHA * (jnp.exp(y) - 1.0))

    def repad(y):
        # (Cout, WIN) -> (Cout, PAD_FLAT) zero-padded input for the next conv.
        z = jnp.zeros((y.shape[0], OFF), jnp.float32)
        return jnp.concatenate([z, y * mask, z], axis=1)

    x1 = x_ref[0]                                       # (Cin, 144)
    y1 = conv3x3_selu(x1, w1_ref, b1_ref)               # (8,  118)   layer1 (+Dropout=id)
    y2 = conv3x3_selu(repad(y1), w2_ref, b2_ref)        # (16, 118)   layer2
    y3 = conv3x3_selu(repad(y2), w3_ref, b3_ref)        # (32, 118)   layer3

    # fc1 (3200 -> 256): the NCHW flatten is folded into fc1w_ref, pre-scattered
    # to (32, WIN, 256) with zeros at non-interior columns, so y3 needs no
    # masking or reshape.  32 (1,WIN)@(WIN,256) MXU matmuls.
    h = fc1b_ref[...]                                   # (1, 256)
    for c in range(fc1w_ref.shape[0]):
        h = h + jnp.dot(y3[c:c + 1, :], fc1w_ref[c],
                        preferred_element_type=jnp.float32)
    h = jnp.where(h > 0, h, 0.2 * h)                    # LeakyReLU(0.2); Dropout = id

    # fc2 (256 -> 1) as a lane reduction, then sigmoid (f32 epilogue).
    logit = jnp.sum(h * fc2w_ref[...], axis=1, keepdims=True) + fc2b_ref[...]
    o_ref[0] = 1.0 / (1.0 + jnp.exp(-logit))


# ------------------------------ wrappers (JAX) --------------------------------
def prepare_kernel_params(params):
    """One-time repack of PyTorch-layout params into kernel layouts (at init,
    so no per-call weight transposes)."""
    def conv_taps(w):                                   # (Cout,Cin,3,3) -> (9,Cout,Cin)
        cout, cin = w.shape[0], w.shape[1]
        return jnp.transpose(w, (2, 3, 0, 1)).reshape(9, cout, cin).astype(jnp.float32)

    # fc1 weight (256, 3200) -> (32, WIN, 256), scattered into the padded-flat
    # spatial layout used inside the kernel (zeros at spatial-padding columns).
    w = params["fc1_w"].reshape(FC1_OUT, C3, H, W)
    w = jnp.pad(w, ((0, 0), (0, 0), (1, 1), (1, 1)))            # (256, 32, 12, 12)
    w = w.reshape(FC1_OUT, C3, PAD_FLAT)[:, :, OFF:OFF + WIN]   # (256, 32, 118)
    fc1w = jnp.transpose(w, (1, 2, 0)).astype(jnp.float32)      # (32, 118, 256)

    cols = (jnp.arange(WIN) + OFF) % PW
    mask = ((cols >= 1) & (cols <= W)).astype(jnp.float32).reshape(1, WIN)

    return {
        "mask": mask,
        "w1": conv_taps(params["w1"]), "b1": params["b1"].reshape(C1, 1).astype(jnp.float32),
        "w2": conv_taps(params["w2"]), "b2": params["b2"].reshape(C2, 1).astype(jnp.float32),
        "w3": conv_taps(params["w3"]), "b3": params["b3"].reshape(C3, 1).astype(jnp.float32),
        "fc1_w": fc1w,
        "fc1_b": params["fc1_b"].reshape(1, FC1_OUT).astype(jnp.float32),
        "fc2_w": params["fc2_w"].reshape(1, FC1_OUT).astype(jnp.float32),
        "fc2_b": params["fc2_b"].reshape(1, 1).astype(jnp.float32),
    }


def causal_conv_discriminator(x, kp):
    """x: (N, Cin, 10, 10) NCHW -> (N, 1) sigmoid scores. Single fused pallas_call."""
    n, cin, hi, wi = x.shape
    assert (hi, wi) == (H, W), "fc1=Linear(3200,256) pins the conv input to 10x10"
    # Tiny one-shot input prep (zero-pad + flatten the 12x12 plane); everything
    # downstream stays inside the kernel.
    xpad = jnp.pad(x.astype(jnp.float32), ((0, 0), (0, 0), (1, 1), (1, 1)))
    xpad = xpad.reshape(n, cin, PAD_FLAT)

    out = pl.pallas_call(
        _dcgan_fused_kernel,
        out_shape=jax.ShapeDtypeStruct((n, 1, 1), jnp.float32),
        grid=(n,),
        in_specs=[
            pl.BlockSpec((1, cin, PAD_FLAT), lambda i: (i, 0, 0)),   # x (per sample)
            pl.BlockSpec((1, WIN), lambda i: (0, 0)),                # interior mask
            pl.BlockSpec((9, C1, cin), lambda i: (0, 0, 0)),         # conv1 taps
            pl.BlockSpec((C1, 1), lambda i: (0, 0)),
            pl.BlockSpec((9, C2, C1), lambda i: (0, 0, 0)),          # conv2 taps
            pl.BlockSpec((C2, 1), lambda i: (0, 0)),
            pl.BlockSpec((9, C3, C2), lambda i: (0, 0, 0)),          # conv3 taps
            pl.BlockSpec((C3, 1), lambda i: (0, 0)),
            pl.BlockSpec((C3, WIN, FC1_OUT), lambda i: (0, 0, 0)),   # fc1 (repacked)
            pl.BlockSpec((1, FC1_OUT), lambda i: (0, 0)),            # fc1 bias
            pl.BlockSpec((1, FC1_OUT), lambda i: (0, 0)),            # fc2 weight row
            pl.BlockSpec((1, 1), lambda i: (0, 0)),                  # fc2 bias
        ],
        out_specs=pl.BlockSpec((1, 1, 1), lambda i: (i, 0, 0)),
        compiler_params=pltpu.CompilerParams(
            dimension_semantics=("parallel",),
            vmem_limit_bytes=32 * 1024 * 1024,
        ),
    )(xpad, kp["mask"], kp["w1"], kp["b1"], kp["w2"], kp["b2"],
      kp["w3"], kp["b3"], kp["fc1_w"], kp["fc1_b"], kp["fc2_w"], kp["fc2_b"])
    return out.reshape(n, 1)


# ------------------------- params + pure-JAX reference ------------------------
def init_params(key, input_size, kernel_size):
    ks = jax.random.split(key, 10)

    def uni(k, shape, fan_in):
        bound = 1.0 / jnp.sqrt(float(fan_in))
        return jax.random.uniform(k, shape, jnp.float32, -bound, bound)

    k2 = kernel_size * kernel_size
    return {
        "w1": uni(ks[0], (C1, input_size, kernel_size, kernel_size), input_size * k2),
        "b1": uni(ks[1], (C1,), input_size * k2),
        "w2": uni(ks[2], (C2, C1, kernel_size, kernel_size), C1 * k2),
        "b2": uni(ks[3], (C2,), C1 * k2),
        "w3": uni(ks[4], (C3, C2, kernel_size, kernel_size), C2 * k2),
        "b3": uni(ks[5], (C3,), C2 * k2),
        "fc1_w": uni(ks[6], (FC1_OUT, FC1_IN), FC1_IN),   # PyTorch Linear: (out, in)
        "fc1_b": uni(ks[7], (FC1_OUT,), FC1_IN),
        "fc2_w": uni(ks[8], (1, FC1_OUT), FC1_OUT),
        "fc2_b": uni(ks[9], (1,), FC1_OUT),
    }


def reference_forward(x, params):
    """Plain-XLA reference of the PyTorch module (f32, highest precision)."""
    hp = jax.lax.Precision.HIGHEST

    def conv(x, w, b):
        y = jax.lax.conv_general_dilated(
            x, w, window_strides=(1, 1), padding=((1, 1), (1, 1)),
            dimension_numbers=("NCHW", "OIHW", "NCHW"), precision=hp)
        return y + b.reshape(1, -1, 1, 1)

    def selu(y):
        return SELU_SCALE * jnp.where(y > 0, y, SELU_ALPHA * jnp.expm1(y))

    x = selu(conv(x, params["w1"], params["b1"]))
    x = selu(conv(x, params["w2"], params["b2"]))
    x = selu(conv(x, params["w3"], params["b3"]))
    x = x.reshape(x.shape[0], -1)
    h = jnp.dot(x, params["fc1_w"].T, precision=hp) + params["fc1_b"]
    h = jnp.where(h > 0, h, 0.2 * h)
    logit = jnp.dot(h, params["fc2_w"].T, precision=hp) + params["fc2_b"]
    return 1.0 / (1.0 + jnp.exp(-logit))


if __name__ == "__main__":
    input_size = 4
    kernel_size, stride, padding = 3, 1, 1   # pinned by fc1 = Linear(3200, 256)

    key = jax.random.PRNGKey(0)
    pkey, xkey = jax.random.split(key)
    params = init_params(pkey, input_size, kernel_size)
    kparams = prepare_kernel_params(params)

    x = jax.random.normal(xkey, (2, input_size, H, W), jnp.float32)  # NCHW, batch=2

    fwd = jax.jit(causal_conv_discriminator)
    out = jax.block_until_ready(fwd(x, kparams))

    assert out.shape == (2, 1), out.shape
    assert bool(jnp.all(jnp.isfinite(out)))
    assert bool(jnp.all((out >= 0.0) & (out <= 1.0)))  # sigmoid range

    ref = jax.block_until_ready(reference_forward(x, params))
    max_err = float(jnp.max(jnp.abs(out - ref)))
    # Loose tolerance: guards against structural/indexing bugs (errors ~0.1+)
    # while being immune to MXU precision-mode differences.
    assert max_err < 1e-2, f"mismatch vs reference: {max_err}"

    print("KERNEL_OK")
</pallas_src>

<mosaic_0001>
module attributes {stable_mosaic.version = 11 : i64} {
  func.func @_dcgan_fused_kernel(%arg0: i32, %arg1: memref<1x4x144xf32, #tpu.memory_space<vmem>>, %arg2: memref<1x118xf32, #tpu.memory_space<vmem>>, %arg3: memref<9x8x4xf32, #tpu.memory_space<vmem>>, %arg4: memref<8x1xf32, #tpu.memory_space<vmem>>, %arg5: memref<9x16x8xf32, #tpu.memory_space<vmem>>, %arg6: memref<16x1xf32, #tpu.memory_space<vmem>>, %arg7: memref<9x32x16xf32, #tpu.memory_space<vmem>>, %arg8: memref<32x1xf32, #tpu.memory_space<vmem>>, %arg9: memref<32x118x256xf32, #tpu.memory_space<vmem>>, %arg10: memref<1x256xf32, #tpu.memory_space<vmem>>, %arg11: memref<1x256xf32, #tpu.memory_space<vmem>>, %arg12: memref<1x1xf32, #tpu.memory_space<vmem>>, %arg13: memref<1x1x1xf32, #tpu.memory_space<vmem>>) attributes {dimension_semantics = [#tpu.dimension_semantics<parallel>], iteration_bounds = array<i64: 2>, scalar_prefetch = 0 : i64, scratch_operands = 0 : i64, tpu.core_type = #tpu.core_type<tc>, window_params = [{transform_indices = @transform_0, window_bounds = array<i64: 1, 4, 144>}, {pipeline_mode = #tpu.pipeline_mode<synchronous>, transform_indices = @transform_1, window_bounds = array<i64: 1, 118>}, {pipeline_mode = #tpu.pipeline_mode<synchronous>, transform_indices = @transform_2, window_bounds = array<i64: 9, 8, 4>}, {pipeline_mode = #tpu.pipeline_mode<synchronous>, transform_indices = @transform_3, window_bounds = array<i64: 8, 1>}, {pipeline_mode = #tpu.pipeline_mode<synchronous>, transform_indices = @transform_4, window_bounds = array<i64: 9, 16, 8>}, {pipeline_mode = #tpu.pipeline_mode<synchronous>, transform_indices = @transform_5, window_bounds = array<i64: 16, 1>}, {pipeline_mode = #tpu.pipeline_mode<synchronous>, transform_indices = @transform_6, window_bounds = array<i64: 9, 32, 16>}, {pipeline_mode = #tpu.pipeline_mode<synchronous>, transform_indices = @transform_7, window_bounds = array<i64: 32, 1>}, {pipeline_mode = #tpu.pipeline_mode<synchronous>, transform_indices = @transform_8, window_bounds = array<i64: 32, 118, 256>}, {pipeline_mode = #tpu.pipeline_mode<synchronous>, transform_indices = @transform_9, window_bounds = array<i64: 1, 256>}, {pipeline_mode = #tpu.pipeline_mode<synchronous>, transform_indices = @transform_10, window_bounds = array<i64: 1, 256>}, {pipeline_mode = #tpu.pipeline_mode<synchronous>, transform_indices = @transform_11, window_bounds = array<i64: 1, 1>}, {transform_indices = @transform_12, window_bounds = array<i64: 1, 1, 1>}]} {
    %c0 = arith.constant 0 : index
    %c0_0 = arith.constant 0 : index
    %0 = vector.load %arg2[%c0, %c0_0] : memref<1x118xf32, #tpu.memory_space<vmem>>, vector<1x118xf32>
    %c0_1 = arith.constant 0 : index
    %c0_2 = arith.constant 0 : index
    %c0_3 = arith.constant 0 : index
    %1 = vector.load %arg1[%c0_1, %c0_2, %c0_3] : memref<1x4x144xf32, #tpu.memory_space<vmem>>, vector<1x4x144xf32>
    %2 = vector.shape_cast %1 : vector<1x4x144xf32> to vector<4x144xf32>
    %cst = arith.constant 0.000000e+00 : f32
    %3 = vector.broadcast %cst : f32 to vector<8x118xf32>
    %c0_4 = arith.constant 0 : index
    %c0_5 = arith.constant 0 : index
    %c0_6 = arith.constant 0 : index
    %4 = vector.load %arg3[%c0_4, %c0_5, %c0_6] : memref<9x8x4xf32, #tpu.memory_space<vmem>>, vector<1x8x4xf32>
    %5 = vector.shape_cast %4 : vector<1x8x4xf32> to vector<8x4xf32>
    %6 = vector.extract_strided_slice %2 {offsets = [0, 0], sizes = [4, 118], strides = [1, 1]} : vector<4x144xf32> to vector<4x118xf32>
    %cst_7 = arith.constant dense<0.000000e+00> : vector<8x118xf32>
    %7 = tpu.matmul %5, %6, %cst_7 {dimension_numbers = #tpu.dot_dimension_numbers<[1], [0], [0], [1], [0, 0, 1, 1], [], []>} : vector<8x4xf32>, vector<4x118xf32>, vector<8x118xf32> -> vector<8x118xf32>
    %8 = arith.addf %3, %7 : vector<8x118xf32>
    %c1 = arith.constant 1 : index
    %c0_8 = arith.constant 0 : index
    %c0_9 = arith.constant 0 : index
    %9 = vector.load %arg3[%c1, %c0_8, %c0_9] : memref<9x8x4xf32, #tpu.memory_space<vmem>>, vector<1x8x4xf32>
    %10 = vector.shape_cast %9 : vector<1x8x4xf32> to vector<8x4xf32>
    %11 = vector.extract_strided_slice %2 {offsets = [0, 1], sizes = [4, 118], strides = [1, 1]} : vector<4x144xf32> to vector<4x118xf32>
    %cst_10 = arith.constant dense<0.000000e+00> : vector<8x118xf32>
    %12 = tpu.matmul %10, %11, %cst_10 {dimension_numbers = #tpu.dot_dimension_numbers<[1], [0], [0], [1], [0, 0, 1, 1], [], []>} : vector<8x4xf32>, vector<4x118xf32>, vector<8x118xf32> -> vector<8x118xf32>
    %13 = arith.addf %8, %12 : vector<8x118xf32>
    %c2 = arith.constant 2 : index
    %c0_11 = arith.constant 0 : index
    %c0_12 = arith.constant 0 : index
    %14 = vector.load %arg3[%c2, %c0_11, %c0_12] : memref<9x8x4xf32, #tpu.memory_space<vmem>>, vector<1x8x4xf32>
    %15 = vector.shape_cast %14 : vector<1x8x4xf32> to vector<8x4xf32>
    %16 = vector.extract_strided_slice %2 {offsets = [0, 2], sizes = [4, 118], strides = [1, 1]} : vector<4x144xf32> to vector<4x118xf32>
    %cst_13 = arith.constant dense<0.000000e+00> : vector<8x118xf32>
    %17 = tpu.matmul %15, %16, %cst_13 {dimension_numbers = #tpu.dot_dimension_numbers<[1], [0], [0], [1], [0, 0, 1, 1], [], []>} : vector<8x4xf32>, vector<4x118xf32>, vector<8x118xf32> -> vector<8x118xf32>
    %18 = arith.addf %13, %17 : vector<8x118xf32>
    %c3 = arith.constant 3 : index
    %c0_14 = arith.constant 0 : index
    %c0_15 = arith.constant 0 : index
    %19 = vector.load %arg3[%c3, %c0_14, %c0_15] : memref<9x8x4xf32, #tpu.memory_space<vmem>>, vector<1x8x4xf32>
    %20 = vector.shape_cast %19 : vector<1x8x4xf32> to vector<8x4xf32>
    %21 = vector.extract_strided_slice %2 {offsets = [0, 12], sizes = [4, 118], strides = [1, 1]} : vector<4x144xf32> to vector<4x118xf32>
    %cst_16 = arith.constant dense<0.000000e+00> : vector<8x118xf32>
    %22 = tpu.matmul %20, %21, %cst_16 {dimension_numbers = #tpu.dot_dimension_numbers<[1], [0], [0], [1], [0, 0, 1, 1], [], []>} : vector<8x4xf32>, vector<4x118xf32>, vector<8x118xf32> -> vector<8x118xf32>
    %23 = arith.addf %18, %22 : vector<8x118xf32>
    %c4 = arith.constant 4 : index
    %c0_17 = arith.constant 0 : index
    %c0_18 = arith.constant 0 : index
    %24 = vector.load %arg3[%c4, %c0_17, %c0_18] : memref<9x8x4xf32, #tpu.memory_space<vmem>>, vector<1x8x4xf32>
    %25 = vector.shape_cast %24 : vector<1x8x4xf32> to vector<8x4xf32>
    %26 = vector.extract_strided_slice %2 {offsets = [0, 13], sizes = [4, 118], strides = [1, 1]} : vector<4x144xf32> to vector<4x118xf32>
    %cst_19 = arith.constant dense<0.000000e+00> : vector<8x118xf32>
    %27 = tpu.matmul %25, %26, %cst_19 {dimension_numbers = #tpu.dot_dimension_numbers<[1], [0], [0], [1], [0, 0, 1, 1], [], []>} : vector<8x4xf32>, vector<4x118xf32>, vector<8x118xf32> -> vector<8x118xf32>
    %28 = arith.addf %23, %27 : vector<8x118xf32>
    %c5 = arith.constant 5 : index
    %c0_20 = arith.constant 0 : index
    %c0_21 = arith.constant 0 : index
    %29 = vector.load %arg3[%c5, %c0_20, %c0_21] : memref<9x8x4xf32, #tpu.memory_space<vmem>>, vector<1x8x4xf32>
    %30 = vector.shape_cast %29 : vector<1x8x4xf32> to vector<8x4xf32>
    %31 = vector.extract_strided_slice %2 {offsets = [0, 14], sizes = [4, 118], strides = [1, 1]} : vector<4x144xf32> to vector<4x118xf32>
    %cst_22 = arith.constant dense<0.000000e+00> : vector<8x118xf32>
    %32 = tpu.matmul %30, %31, %cst_22 {dimension_numbers = #tpu.dot_dimension_numbers<[1], [0], [0], [1], [0, 0, 1, 1], [], []>} : vector<8x4xf32>, vector<4x118xf32>, vector<8x118xf32> -> vector<8x118xf32>
    %33 = arith.addf %28, %32 : vector<8x118xf32>
    %c6 = arith.constant 6 : index
    %c0_23 = arith.constant 0 : index
    %c0_24 = arith.constant 0 : index
    %34 = vector.load %arg3[%c6, %c0_23, %c0_24] : memref<9x8x4xf32, #tpu.memory_space<vmem>>, vector<1x8x4xf32>
    %35 = vector.shape_cast %34 : vector<1x8x4xf32> to vector<8x4xf32>
    %36 = vector.extract_strided_slice %2 {offsets = [0, 24], sizes = [4, 118], strides = [1, 1]} : vector<4x144xf32> to vector<4x118xf32>
    %cst_25 = arith.constant dense<0.000000e+00> : vector<8x118xf32>
    %37 = tpu.matmul %35, %36, %cst_25 {dimension_numbers = #tpu.dot_dimension_numbers<[1], [0], [0], [1], [0, 0, 1, 1], [], []>} : vector<8x4xf32>, vector<4x118xf32>, vector<8x118xf32> -> vector<8x118xf32>
    %38 = arith.addf %33, %37 : vector<8x118xf32>
    %c7 = arith.constant 7 : index
    %c0_26 = arith.constant 0 : index
    %c0_27 = arith.constant 0 : index
    %39 = vector.load %arg3[%c7, %c0_26, %c0_27] : memref<9x8x4xf32, #tpu.memory_space<vmem>>, vector<1x8x4xf32>
    %40 = vector.shape_cast %39 : vector<1x8x4xf32> to vector<8x4xf32>
    %41 = vector.extract_strided_slice %2 {offsets = [0, 25], sizes = [4, 118], strides = [1, 1]} : vector<4x144xf32> to vector<4x118xf32>
    %cst_28 = arith.constant dense<0.000000e+00> : vector<8x118xf32>
    %42 = tpu.matmul %40, %41, %cst_28 {dimension_numbers = #tpu.dot_dimension_numbers<[1], [0], [0], [1], [0, 0, 1, 1], [], []>} : vector<8x4xf32>, vector<4x118xf32>, vector<8x118xf32> -> vector<8x118xf32>
    %43 = arith.addf %38, %42 : vector<8x118xf32>
    %c8 = arith.constant 8 : index
    %c0_29 = arith.constant 0 : index
    %c0_30 = arith.constant 0 : index
    %44 = vector.load %arg3[%c8, %c0_29, %c0_30] : memref<9x8x4xf32, #tpu.memory_space<vmem>>, vector<1x8x4xf32>
    %45 = vector.shape_cast %44 : vector<1x8x4xf32> to vector<8x4xf32>
    %46 = vector.extract_strided_slice %2 {offsets = [0, 26], sizes = [4, 118], strides = [1, 1]} : vector<4x144xf32> to vector<4x118xf32>
    %cst_31 = arith.constant dense<0.000000e+00> : vector<8x118xf32>
    %47 = tpu.matmul %45, %46, %cst_31 {dimension_numbers = #tpu.dot_dimension_numbers<[1], [0], [0], [1], [0, 0, 1, 1], [], []>} : vector<8x4xf32>, vector<4x118xf32>, vector<8x118xf32> -> vector<8x118xf32>
    %48 = arith.addf %43, %47 : vector<8x118xf32>
    %c0_32 = arith.constant 0 : index
    %c0_33 = arith.constant 0 : index
    %49 = vector.load %arg4[%c0_32, %c0_33] : memref<8x1xf32, #tpu.memory_space<vmem>>, vector<8x1xf32>
    %50 = vector.broadcast %49 : vector<8x1xf32> to vector<8x118xf32>
    %51 = arith.addf %48, %50 : vector<8x118xf32>
    %cst_34 = arith.constant 0.000000e+00 : f32
    %52 = vector.broadcast %cst_34 : f32 to vector<8x118xf32>
    %53 = arith.cmpf ogt, %51, %52 : vector<8x118xf32>
    %54 = math.exp %51 : vector<8x118xf32>
    %cst_35 = arith.constant 1.000000e+00 : f32
    %55 = vector.broadcast %cst_35 : f32 to vector<8x118xf32>
    %56 = arith.subf %54, %55 : vector<8x118xf32>
    %cst_36 = arith.constant 1.67326319 : f32
    %57 = vector.broadcast %cst_36 : f32 to vector<8x118xf32>
    %58 = arith.mulf %57, %56 : vector<8x118xf32>
    %59 = arith.select %53, %51, %58 : vector<8x118xi1>, vector<8x118xf32>
    %cst_37 = arith.constant 1.05070102 : f32
    %60 = vector.broadcast %cst_37 : f32 to vector<8x118xf32>
    %61 = arith.mulf %60, %59 : vector<8x118xf32>
    %cst_38 = arith.constant 0.000000e+00 : f32
    %62 = vector.broadcast %cst_38 : f32 to vector<8x13xf32>
    %63 = vector.broadcast %0 : vector<1x118xf32> to vector<8x118xf32>
    %64 = arith.mulf %61, %63 : vector<8x118xf32>
    %65 = tpu.concatenate %62, %64, %62 in 1 : vector<8x13xf32>, vector<8x118xf32>, vector<8x13xf32> -> vector<8x144xf32>
    %cst_39 = arith.constant 0.000000e+00 : f32
    %66 = vector.broadcast %cst_39 : f32 to vector<16x118xf32>
    %c0_40 = arith.constant 0 : index
    %c0_41 = arith.constant 0 : index
    %c0_42 = arith.constant 0 : index
    %67 = vector.load %arg5[%c0_40, %c0_41, %c0_42] : memref<9x16x8xf32, #tpu.memory_space<vmem>>, vector<1x16x8xf32>
    %68 = vector.shape_cast %67 : vector<1x16x8xf32> to vector<16x8xf32>
    %69 = vector.extract_strided_slice %65 {offsets = [0, 0], sizes = [8, 118], strides = [1, 1]} : vector<8x144xf32> to vector<8x118xf32>
    %cst_43 = arith.constant dense<0.000000e+00> : vector<16x118xf32>
    %70 = tpu.matmul %68, %69, %cst_43 {dimension_numbers = #tpu.dot_dimension_numbers<[1], [0], [0], [1], [0, 0, 1, 1], [], []>} : vector<16x8xf32>, vector<8x118xf32>, vector<16x118xf32> -> vector<16x118xf32>
    %71 = arith.addf %66, %70 : vector<16x118xf32>
    %c1_44 = arith.constant 1 : index
    %c0_45 = arith.constant 0 : index
    %c0_46 = arith.constant 0 : index
    %72 = vector.load %arg5[%c1_44, %c0_45, %c0_46] : memref<9x16x8xf32, #tpu.memory_space<vmem>>, vector<1x16x8xf32>
    %73 = vector.shape_cast %72 : vector<1x16x8xf32> to vector<16x8xf32>
    %74 = vector.extract_strided_slice %65 {offsets = [0, 1], sizes = [8, 118], strides = [1, 1]} : vector<8x144xf32> to vector<8x118xf32>
    %cst_47 = arith.constant dense<0.000000e+00> : vector<16x118xf32>
    %75 = tpu.matmul %73, %74, %cst_47 {dimension_numbers = #tpu.dot_dimension_numbers<[1], [0], [0], [1], [0, 0, 1, 1], [], []>} : vector<16x8xf32>, vector<8x118xf32>, vector<16x118xf32> -> vector<16x118xf32>
    %76 = arith.addf %71, %75 : vector<16x118xf32>
    %c2_48 = arith.constant 2 : index
    %c0_49 = arith.constant 0 : index
    %c0_50 = arith.constant 0 : index
    %77 = vector.load %arg5[%c2_48, %c0_49, %c0_50] : memref<9x16x8xf32, #tpu.memory_space<vmem>>, vector<1x16x8xf32>
    %78 = vector.shape_cast %77 : vector<1x16x8xf32> to vector<16x8xf32>
    %79 = vector.extract_strided_slice %65 {offsets = [0, 2], sizes = [8, 118], strides = [1, 1]} : vector<8x144xf32> to vector<8x118xf32>
    %cst_51 = arith.constant dense<0.000000e+00> : vector<16x118xf32>
    %80 = tpu.matmul %78, %79, %cst_51 {dimension_numbers = #tpu.dot_dimension_numbers<[1], [0], [0], [1], [0, 0, 1, 1], [], []>} : vector<16x8xf32>, vector<8x118xf32>, vector<16x118xf32> -> vector<16x118xf32>
    %81 = arith.addf %76, %80 : vector<16x118xf32>
    %c3_52 = arith.constant 3 : index
    %c0_53 = arith.constant 0 : index
    %c0_54 = arith.constant 0 : index
    %82 = vector.load %arg5[%c3_52, %c0_53, %c0_54] : memref<9x16x8xf32, #tpu.memory_space<vmem>>, vector<1x16x8xf32>
    %83 = vector.shape_cast %82 : vector<1x16x8xf32> to vector<16x8xf32>
    %84 = vector.extract_strided_slice %65 {offsets = [0, 12], sizes = [8, 118], strides = [1, 1]} : vector<8x144xf32> to vector<8x118xf32>
    %cst_55 = arith.constant dense<0.000000e+00> : vector<16x118xf32>
    %85 = tpu.matmul %83, %84, %cst_55 {dimension_numbers = #tpu.dot_dimension_numbers<[1], [0], [0], [1], [0, 0, 1, 1], [], []>} : vector<16x8xf32>, vector<8x118xf32>, vector<16x118xf32> -> vector<16x118xf32>
    %86 = arith.addf %81, %85 : vector<16x118xf32>
    %c4_56 = arith.constant 4 : index
    %c0_57 = arith.constant 0 : index
    %c0_58 = arith.constant 0 : index
    %87 = vector.load %arg5[%c4_56, %c0_57, %c0_58] : memref<9x16x8xf32, #tpu.memory_space<vmem>>, vector<1x16x8xf32>
    %88 = vector.shape_cast %87 : vector<1x16x8xf32> to vector<16x8xf32>
    %89 = vector.extract_strided_slice %65 {offsets = [0, 13], sizes = [8, 118], strides = [1, 1]} : vector<8x144xf32> to vector<8x118xf32>
    %cst_59 = arith.constant dense<0.000000e+00> : vector<16x118xf32>
    %90 = tpu.matmul %88, %89, %cst_59 {dimension_numbers = #tpu.dot_dimension_numbers<[1], [0], [0], [1], [0, 0, 1, 1], [], []>} : vector<16x8xf32>, vector<8x118xf32>, vector<16x118xf32> -> vector<16x118xf32>
    %91 = arith.addf %86, %90 : vector<16x118xf32>
    %c5_60 = arith.constant 5 : index
    %c0_61 = arith.constant 0 : index
    %c0_62 = arith.constant 0 : index
    %92 = vector.load %arg5[%c5_60, %c0_61, %c0_62] : memref<9x16x8xf32, #tpu.memory_space<vmem>>, vector<1x16x8xf32>
    %93 = vector.shape_cast %92 : vector<1x16x8xf32> to vector<16x8xf32>
    %94 = vector.extract_strided_slice %65 {offsets = [0, 14], sizes = [8, 118], strides = [1, 1]} : vector<8x144xf32> to vector<8x118xf32>
    %cst_63 = arith.constant dense<0.000000e+00> : vector<16x118xf32>
    %95 = tpu.matmul %93, %94, %cst_63 {dimension_numbers = #tpu.dot_dimension_numbers<[1], [0], [0], [1], [0, 0, 1, 1], [], []>} : vector<16x8xf32>, vector<8x118xf32>, vector<16x118xf32> -> vector<16x118xf32>
    %96 = arith.addf %91, %95 : vector<16x118xf32>
    %c6_64 = arith.constant 6 : index
    %c0_65 = arith.constant 0 : index
    %c0_66 = arith.constant 0 : index
    %97 = vector.load %arg5[%c6_64, %c0_65, %c0_66] : memref<9x16x8xf32, #tpu.memory_space<vmem>>, vector<1x16x8xf32>
    %98 = vector.shape_cast %97 : vector<1x16x8xf32> to vector<16x8xf32>
    %99 = vector.extract_strided_slice %65 {offsets = [0, 24], sizes = [8, 118], strides = [1, 1]} : vector<8x144xf32> to vector<8x118xf32>
    %cst_67 = arith.constant dense<0.000000e+00> : vector<16x118xf32>
    %100 = tpu.matmul %98, %99, %cst_67 {dimension_numbers = #tpu.dot_dimension_numbers<[1], [0], [0], [1], [0, 0, 1, 1], [], []>} : vector<16x8xf32>, vector<8x118xf32>, vector<16x118xf32> -> vector<16x118xf32>
    %101 = arith.addf %96, %100 : vector<16x118xf32>
    %c7_68 = arith.constant 7 : index
    %c0_69 = arith.constant 0 : index
    %c0_70 = arith.constant 0 : index
    %102 = vector.load %arg5[%c7_68, %c0_69, %c0_70] : memref<9x16x8xf32, #tpu.memory_space<vmem>>, vector<1x16x8xf32>
    %103 = vector.shape_cast %102 : vector<1x16x8xf32> to vector<16x8xf32>
    %104 = vector.extract_strided_slice %65 {offsets = [0, 25], sizes = [8, 118], strides = [1, 1]} : vector<8x144xf32> to vector<8x118xf32>
    %cst_71 = arith.constant dense<0.000000e+00> : vector<16x118xf32>
    %105 = tpu.matmul %103, %104, %cst_71 {dimension_numbers = #tpu.dot_dimension_numbers<[1], [0], [0], [1], [0, 0, 1, 1], [], []>} : vector<16x8xf32>, vector<8x118xf32>, vector<16x118xf32> -> vector<16x118xf32>
    %106 = arith.addf %101, %105 : vector<16x118xf32>
    %c8_72 = arith.constant 8 : index
    %c0_73 = arith.constant 0 : index
    %c0_74 = arith.constant 0 : index
    %107 = vector.load %arg5[%c8_72, %c0_73, %c0_74] : memref<9x16x8xf32, #tpu.memory_space<vmem>>, vector<1x16x8xf32>
    %108 = vector.shape_cast %107 : vector<1x16x8xf32> to vector<16x8xf32>
    %109 = vector.extract_strided_slice %65 {offsets = [0, 26], sizes = [8, 118], strides = [1, 1]} : vector<8x144xf32> to vector<8x118xf32>
    %cst_75 = arith.constant dense<0.000000e+00> : vector<16x118xf32>
    %110 = tpu.matmul %108, %109, %cst_75 {dimension_numbers = #tpu.dot_dimension_numbers<[1], [0], [0], [1], [0, 0, 1, 1], [], []>} : vector<16x8xf32>, vector<8x118xf32>, vector<16x118xf32> -> vector<16x118xf32>
    %111 = arith.addf %106, %110 : vector<16x118xf32>
    %c0_76 = arith.constant 0 : index
    %c0_77 = arith.constant 0 : index
    %112 = vector.load %arg6[%c0_76, %c0_77] : memref<16x1xf32, #tpu.memory_space<vmem>>, vector<16x1xf32>
    %113 = vector.broadcast %112 : vector<16x1xf32> to vector<16x118xf32>
    %114 = arith.addf %111, %113 : vector<16x118xf32>
    %cst_78 = arith.constant 0.000000e+00 : f32
    %115 = vector.broadcast %cst_78 : f32 to vector<16x118xf32>
    %116 = arith.cmpf ogt, %114, %115 : vector<16x118xf32>
    %117 = math.exp %114 : vector<16x118xf32>
    %cst_79 = arith.constant 1.000000e+00 : f32
    %118 = vector.broadcast %cst_79 : f32 to vector<16x118xf32>
    %119 = arith.subf %117, %118 : vector<16x118xf32>
    %cst_80 = arith.constant 1.67326319 : f32
    %120 = vector.broadcast %cst_80 : f32 to vector<16x118xf32>
    %121 = arith.mulf %120, %119 : vector<16x118xf32>
    %122 = arith.select %116, %114, %121 : vector<16x118xi1>, vector<16x118xf32>
    %cst_81 = arith.constant 1.05070102 : f32
    %123 = vector.broadcast %cst_81 : f32 to vector<16x118xf32>
    %124 = arith.mulf %123, %122 : vector<16x118xf32>
    %cst_82 = arith.constant 0.000000e+00 : f32
    %125 = vector.broadcast %cst_82 : f32 to vector<16x13xf32>
    %126 = vector.broadcast %0 : vector<1x118xf32> to vector<16x118xf32>
    %127 = arith.mulf %124, %126 : vector<16x118xf32>
    %128 = tpu.concatenate %125, %127, %125 in 1 : vector<16x13xf32>, vector<16x118xf32>, vector<16x13xf32> -> vector<16x144xf32>
    %cst_83 = arith.constant 0.000000e+00 : f32
    %129 = vector.broadcast %cst_83 : f32 to vector<32x118xf32>
    %c0_84 = arith.constant 0 : index
    %c0_85 = arith.constant 0 : index
    %c0_86 = arith.constant 0 : index
    %130 = vector.load %arg7[%c0_84, %c0_85, %c0_86] : memref<9x32x16xf32, #tpu.memory_space<vmem>>, vector<1x32x16xf32>
    %131 = vector.shape_cast %130 : vector<1x32x16xf32> to vector<32x16xf32>
    %132 = vector.extract_strided_slice %128 {offsets = [0, 0], sizes = [16, 118], strides = [1, 1]} : vector<16x144xf32> to vector<16x118xf32>
    %cst_87 = arith.constant dense<0.000000e+00> : vector<32x118xf32>
    %133 = tpu.matmul %131, %132, %cst_87 {dimension_numbers = #tpu.dot_dimension_numbers<[1], [0], [0], [1], [0, 0, 1, 1], [], []>} : vector<32x16xf32>, vector<16x118xf32>, vector<32x118xf32> -> vector<32x118xf32>
    %134 = arith.addf %129, %133 : vector<32x118xf32>
    %c1_88 = arith.constant 1 : index
    %c0_89 = arith.constant 0 : index
    %c0_90 = arith.constant 0 : index
    %135 = vector.load %arg7[%c1_88, %c0_89, %c0_90] : memref<9x32x16xf32, #tpu.memory_space<vmem>>, vector<1x32x16xf32>
    %136 = vector.shape_cast %135 : vector<1x32x16xf32> to vector<32x16xf32>
    %137 = vector.extract_strided_slice %128 {offsets = [0, 1], sizes = [16, 118], strides = [1, 1]} : vector<16x144xf32> to vector<16x118xf32>
    %cst_91 = arith.constant dense<0.000000e+00> : vector<32x118xf32>
    %138 = tpu.matmul %136, %137, %cst_91 {dimension_numbers = #tpu.dot_dimension_numbers<[1], [0], [0], [1], [0, 0, 1, 1], [], []>} : vector<32x16xf32>, vector<16x118xf32>, vector<32x118xf32> -> vector<32x118xf32>
    %139 = arith.addf %134, %138 : vector<32x118xf32>
    %c2_92 = arith.constant 2 : index
    %c0_93 = arith.constant 0 : index
    %c0_94 = arith.constant 0 : index
    %140 = vector.load %arg7[%c2_92, %c0_93, %c0_94] : memref<9x32x16xf32, #tpu.memory_space<vmem>>, vector<1x32x16xf32>
    %141 = vector.shape_cast %140 : vector<1x32x16xf32> to vector<32x16xf32>
    %142 = vector.extract_strided_slice %128 {offsets = [0, 2], sizes = [16, 118], strides = [1, 1]} : vector<16x144xf32> to vector<16x118xf32>
    %cst_95 = arith.constant dense<0.000000e+00> : vector<32x118xf32>
    %143 = tpu.matmul %141, %142, %cst_95 {dimension_numbers = #tpu.dot_dimension_numbers<[1], [0], [0], [1], [0, 0, 1, 1], [], []>} : vector<32x16xf32>, vector<16x118xf32>, vector<32x118xf32> -> vector<32x118xf32>
    %144 = arith.addf %139, %143 : vector<32x118xf32>
    %c3_96 = arith.constant 3 : index
    %c0_97 = arith.constant 0 : index
    %c0_98 = arith.constant 0 : index
    %145 = vector.load %arg7[%c3_96, %c0_97, %c0_98] : memref<9x32x16xf32, #tpu.memory_space<vmem>>, vector<1x32x16xf32>
    %146 = vector.shape_cast %145 : vector<1x32x16xf32> to vector<32x16xf32>
    %147 = vector.extract_strided_slice %128 {offsets = [0, 12], sizes = [16, 118], strides = [1, 1]} : vector<16x144xf32> to vector<16x118xf32>
    %cst_99 = arith.constant dense<0.000000e+00> : vector<32x118xf32>
    %148 = tpu.matmul %146, %147, %cst_99 {dimension_numbers = #tpu.dot_dimension_numbers<[1], [0], [0], [1], [0, 0, 1, 1], [], []>} : vector<32x16xf32>, vector<16x118xf32>, vector<32x118xf32> -> vector<32x118xf32>
    %149 = arith.addf %144, %148 : vector<32x118xf32>
    %c4_100 = arith.constant 4 : index
    %c0_101 = arith.constant 0 : index
    %c0_102 = arith.constant 0 : index
    %150 = vector.load %arg7[%c4_100, %c0_101, %c0_102] : memref<9x32x16xf32, #tpu.memory_space<vmem>>, vector<1x32x16xf32>
    %151 = vector.shape_cast %150 : vector<1x32x16xf32> to vector<32x16xf32>
    %152 = vector.extract_strided_slice %128 {offsets = [0, 13], sizes = [16, 118], strides = [1, 1]} : vector<16x144xf32> to vector<16x118xf32>
    %cst_103 = arith.constant dense<0.000000e+00> : vector<32x118xf32>
    %153 = tpu.matmul %151, %152, %cst_103 {dimension_numbers = #tpu.dot_dimension_numbers<[1], [0], [0], [1], [0, 0, 1, 1], [], []>} : vector<32x16xf32>, vector<16x118xf32>, vector<32x118xf32> -> vector<32x118xf32>
    %154 = arith.addf %149, %153 : vector<32x118xf32>
    %c5_104 = arith.constant 5 : index
    %c0_105 = arith.constant 0 : index
    %c0_106 = arith.constant 0 : index
    %155 = vector.load %arg7[%c5_104, %c0_105, %c0_106] : memref<9x32x16xf32, #tpu.memory_space<vmem>>, vector<1x32x16xf32>
    %156 = vector.shape_cast %155 : vector<1x32x16xf32> to vector<32x16xf32>
    %157 = vector.extract_strided_slice %128 {offsets = [0, 14], sizes = [16, 118], strides = [1, 1]} : vector<16x144xf32> to vector<16x118xf32>
    %cst_107 = arith.constant dense<0.000000e+00> : vector<32x118xf32>
    %158 = tpu.matmul %156, %157, %cst_107 {dimension_numbers = #tpu.dot_dimension_numbers<[1], [0], [0], [1], [0, 0, 1, 1], [], []>} : vector<32x16xf32>, vector<16x118xf32>, vector<32x118xf32> -> vector<32x118xf32>
    %159 = arith.addf %154, %158 : vector<32x118xf32>
    %c6_108 = arith.constant 6 : index
    %c0_109 = arith.constant 0 : index
    %c0_110 = arith.constant 0 : index
    %160 = vector.load %arg7[%c6_108, %c0_109, %c0_110] : memref<9x32x16xf32, #tpu.memory_space<vmem>>, vector<1x32x16xf32>
    %161 = vector.shape_cast %160 : vector<1x32x16xf32> to vector<32x16xf32>
    %162 = vector.extract_strided_slice %128 {offsets = [0, 24], sizes = [16, 118], strides = [1, 1]} : vector<16x144xf32> to vector<16x118xf32>
    %cst_111 = arith.constant dense<0.000000e+00> : vector<32x118xf32>
    %163 = tpu.matmul %161, %162, %cst_111 {dimension_numbers = #tpu.dot_dimension_numbers<[1], [0], [0], [1], [0, 0, 1, 1], [], []>} : vector<32x16xf32>, vector<16x118xf32>, vector<32x118xf32> -> vector<32x118xf32>
    %164 = arith.addf %159, %163 : vector<32x118xf32>
    %c7_112 = arith.constant 7 : index
    %c0_113 = arith.constant 0 : index
    %c0_114 = arith.constant 0 : index
    %165 = vector.load %arg7[%c7_112, %c0_113, %c0_114] : memref<9x32x16xf32, #tpu.memory_space<vmem>>, vector<1x32x16xf32>
    %166 = vector.shape_cast %165 : vector<1x32x16xf32> to vector<32x16xf32>
    %167 = vector.extract_strided_slice %128 {offsets = [0, 25], sizes = [16, 118], strides = [1, 1]} : vector<16x144xf32> to vector<16x118xf32>
    %cst_115 = arith.constant dense<0.000000e+00> : vector<32x118xf32>
    %168 = tpu.matmul %166, %167, %cst_115 {dimension_numbers = #tpu.dot_dimension_numbers<[1], [0], [0], [1], [0, 0, 1, 1], [], []>} : vector<32x16xf32>, vector<16x118xf32>, vector<32x118xf32> -> vector<32x118xf32>
    %169 = arith.addf %164, %168 : vector<32x118xf32>
    %c8_116 = arith.constant 8 : index
    %c0_117 = arith.constant 0 : index
    %c0_118 = arith.constant 0 : index
    %170 = vector.load %arg7[%c8_116, %c0_117, %c0_118] : memref<9x32x16xf32, #tpu.memory_space<vmem>>, vector<1x32x16xf32>
    %171 = vector.shape_cast %170 : vector<1x32x16xf32> to vector<32x16xf32>
    %172 = vector.extract_strided_slice %128 {offsets = [0, 26], sizes = [16, 118], strides = [1, 1]} : vector<16x144xf32> to vector<16x118xf32>
    %cst_119 = arith.constant dense<0.000000e+00> : vector<32x118xf32>
    %173 = tpu.matmul %171, %172, %cst_119 {dimension_numbers = #tpu.dot_dimension_numbers<[1], [0], [0], [1], [0, 0, 1, 1], [], []>} : vector<32x16xf32>, vector<16x118xf32>, vector<32x118xf32> -> vector<32x118xf32>
    %174 = arith.addf %169, %173 : vector<32x118xf32>
    %c0_120 = arith.constant 0 : index
    %c0_121 = arith.constant 0 : index
    %175 = vector.load %arg8[%c0_120, %c0_121] : memref<32x1xf32, #tpu.memory_space<vmem>>, vector<32x1xf32>
    %176 = vector.broadcast %175 : vector<32x1xf32> to vector<32x118xf32>
    %177 = arith.addf %174, %176 : vector<32x118xf32>
    %cst_122 = arith.constant 0.000000e+00 : f32
    %178 = vector.broadcast %cst_122 : f32 to vector<32x118xf32>
    %179 = arith.cmpf ogt, %177, %178 : vector<32x118xf32>
    %180 = math.exp %177 : vector<32x118xf32>
    %cst_123 = arith.constant 1.000000e+00 : f32
    %181 = vector.broadcast %cst_123 : f32 to vector<32x118xf32>
    %182 = arith.subf %180, %181 : vector<32x118xf32>
    %cst_124 = arith.constant 1.67326319 : f32
    %183 = vector.broadcast %cst_124 : f32 to vector<32x118xf32>
    %184 = arith.mulf %183, %182 : vector<32x118xf32>
    %185 = arith.select %179, %177, %184 : vector<32x118xi1>, vector<32x118xf32>
    %cst_125 = arith.constant 1.05070102 : f32
    %186 = vector.broadcast %cst_125 : f32 to vector<32x118xf32>
    %187 = arith.mulf %186, %185 : vector<32x118xf32>
    %c0_126 = arith.constant 0 : index
    %c0_127 = arith.constant 0 : index
    %188 = vector.load %arg10[%c0_126, %c0_127] : memref<1x256xf32, #tpu.memory_space<vmem>>, vector<1x256xf32>
    %189 = vector.extract_strided_slice %187 {offsets = [0, 0], sizes = [1, 118], strides = [1, 1]} : vector<32x118xf32> to vector<1x118xf32>
    %c0_128 = arith.constant 0 : index
    %c0_129 = arith.constant 0 : index
    %c0_130 = arith.constant 0 : index
    %190 = vector.load %arg9[%c0_128, %c0_129, %c0_130] : memref<32x118x256xf32, #tpu.memory_space<vmem>>, vector<1x118x256xf32>
    %191 = vector.shape_cast %190 : vector<1x118x256xf32> to vector<118x256xf32>
    %cst_131 = arith.constant dense<0.000000e+00> : vector<1x256xf32>
    %192 = tpu.matmul %189, %191, %cst_131 {dimension_numbers = #tpu.dot_dimension_numbers<[1], [0], [0], [1], [0, 0, 1, 1], [], []>} : vector<1x118xf32>, vector<118x256xf32>, vector<1x256xf32> -> vector<1x256xf32>
    %193 = arith.addf %188, %192 : vector<1x256xf32>
    %194 = vector.extract_strided_slice %187 {offsets = [1, 0], sizes = [1, 118], strides = [1, 1]} : vector<32x118xf32> to vector<1x118xf32>
    %c1_132 = arith.constant 1 : index
    %c0_133 = arith.constant 0 : index
    %c0_134 = arith.constant 0 : index
    %195 = vector.load %arg9[%c1_132, %c0_133, %c0_134] : memref<32x118x256xf32, #tpu.memory_space<vmem>>, vector<1x118x256xf32>
    %196 = vector.shape_cast %195 : vector<1x118x256xf32> to vector<118x256xf32>
    %cst_135 = arith.constant dense<0.000000e+00> : vector<1x256xf32>
    %197 = tpu.matmul %194, %196, %cst_135 {dimension_numbers = #tpu.dot_dimension_numbers<[1], [0], [0], [1], [0, 0, 1, 1], [], []>} : vector<1x118xf32>, vector<118x256xf32>, vector<1x256xf32> -> vector<1x256xf32>
    %198 = arith.addf %193, %197 : vector<1x256xf32>
    %199 = vector.extract_strided_slice %187 {offsets = [2, 0], sizes = [1, 118], strides = [1, 1]} : vector<32x118xf32> to vector<1x118xf32>
    %c2_136 = arith.constant 2 : index
    %c0_137 = arith.constant 0 : index
    %c0_138 = arith.constant 0 : index
    %200 = vector.load %arg9[%c2_136, %c0_137, %c0_138] : memref<32x118x256xf32, #tpu.memory_space<vmem>>, vector<1x118x256xf32>
    %201 = vector.shape_cast %200 : vector<1x118x256xf32> to vector<118x256xf32>
    %cst_139 = arith.constant dense<0.000000e+00> : vector<1x256xf32>
    %202 = tpu.matmul %199, %201, %cst_139 {dimension_numbers = #tpu.dot_dimension_numbers<[1], [0], [0], [1], [0, 0, 1, 1], [], []>} : vector<1x118xf32>, vector<118x256xf32>, vector<1x256xf32> -> vector<1x256xf32>
    %203 = arith.addf %198, %202 : vector<1x256xf32>
    %204 = vector.extract_strided_slice %187 {offsets = [3, 0], sizes = [1, 118], strides = [1, 1]} : vector<32x118xf32> to vector<1x118xf32>
    %c3_140 = arith.constant 3 : index
    %c0_141 = arith.constant 0 : index
    %c0_142 = arith.constant 0 : index
    %205 = vector.load %arg9[%c3_140, %c0_141, %c0_142] : memref<32x118x256xf32, #tpu.memory_space<vmem>>, vector<1x118x256xf32>
    %206 = vector.shape_cast %205 : vector<1x118x256xf32> to vector<118x256xf32>
    %cst_143 = arith.constant dense<0.000000e+00> : vector<1x256xf32>
    %207 = tpu.matmul %204, %206, %cst_143 {dimension_numbers = #tpu.dot_dimension_numbers<[1], [0], [0], [1], [0, 0, 1, 1], [], []>} : vector<1x118xf32>, vector<118x256xf32>, vector<1x256xf32> -> vector<1x256xf32>
    %208 = arith.addf %203, %207 : vector<1x256xf32>
    %209 = vector.extract_strided_slice %187 {offsets = [4, 0], sizes = [1, 118], strides = [1, 1]} : vector<32x118xf32> to vector<1x118xf32>
    %c4_144 = arith.constant 4 : index
    %c0_145 = arith.constant 0 : index
    %c0_146 = arith.constant 0 : index
    %210 = vector.load %arg9[%c4_144, %c0_145, %c0_146] : memref<32x118x256xf32, #tpu.memory_space<vmem>>, vector<1x118x256xf32>
    %211 = vector.shape_cast %210 : vector<1x118x256xf32> to vector<118x256xf32>
    %cst_147 = arith.constant dense<0.000000e+00> : vector<1x256xf32>
    %212 = tpu.matmul %209, %211, %cst_147 {dimension_numbers = #tpu.dot_dimension_numbers<[1], [0], [0], [1], [0, 0, 1, 1], [], []>} : vector<1x118xf32>, vector<118x256xf32>, vector<1x256xf32> -> vector<1x256xf32>
    %213 = arith.addf %208, %212 : vector<1x256xf32>
    %214 = vector.extract_strided_slice %187 {offsets = [5, 0], sizes = [1, 118], strides = [1, 1]} : vector<32x118xf32> to vector<1x118xf32>
    %c5_148 = arith.constant 5 : index
    %c0_149 = arith.constant 0 : index
    %c0_150 = arith.constant 0 : index
    %215 = vector.load %arg9[%c5_148, %c0_149, %c0_150] : memref<32x118x256xf32, #tpu.memory_space<vmem>>, vector<1x118x256xf32>
    %216 = vector.shape_cast %215 : vector<1x118x256xf32> to vector<118x256xf32>
    %cst_151 = arith.constant dense<0.000000e+00> : vector<1x256xf32>
    %217 = tpu.matmul %214, %216, %cst_151 {dimension_numbers = #tpu.dot_dimension_numbers<[1], [0], [0], [1], [0, 0, 1, 1], [], []>} : vector<1x118xf32>, vector<118x256xf32>, vector<1x256xf32> -> vector<1x256xf32>
    %218 = arith.addf %213, %217 : vector<1x256xf32>
    %219 = vector.extract_strided_slice %187 {offsets = [6, 0], sizes = [1, 118], strides = [1, 1]} : vector<32x118xf32> to vector<1x118xf32>
    %c6_152 = arith.constant 6 : index
    %c0_153 = arith.constant 0 : index
    %c0_154 = arith.constant 0 : index
    %220 = vector.load %arg9[%c6_152, %c0_153, %c0_154] : memref<32x118x256xf32, #tpu.memory_space<vmem>>, vector<1x118x256xf32>
    %221 = vector.shape_cast %220 : vector<1x118x256xf32> to vector<118x256xf32>
    %cst_155 = arith.constant dense<0.000000e+00> : vector<1x256xf32>
    %222 = tpu.matmul %219, %221, %cst_155 {dimension_numbers = #tpu.dot_dimension_numbers<[1], [0], [0], [1], [0, 0, 1, 1], [], []>} : vector<1x118xf32>, vector<118x256xf32>, vector<1x256xf32> -> vector<1x256xf32>
    %223 = arith.addf %218, %222 : vector<1x256xf32>
    %224 = vector.extract_strided_slice %187 {offsets = [7, 0], sizes = [1, 118], strides = [1, 1]} : vector<32x118xf32> to vector<1x118xf32>
    %c7_156 = arith.constant 7 : index
    %c0_157 = arith.constant 0 : index
    %c0_158 = arith.constant 0 : index
    %225 = vector.load %arg9[%c7_156, %c0_157, %c0_158] : memref<32x118x256xf32, #tpu.memory_space<vmem>>, vector<1x118x256xf32>
    %226 = vector.shape_cast %225 : vector<1x118x256xf32> to vector<118x256xf32>
    %cst_159 = arith.constant dense<0.000000e+00> : vector<1x256xf32>
    %227 = tpu.matmul %224, %226, %cst_159 {dimension_numbers = #tpu.dot_dimension_numbers<[1], [0], [0], [1], [0, 0, 1, 1], [], []>} : vector<1x118xf32>, vector<118x256xf32>, vector<1x256xf32> -> vector<1x256xf32>
    %228 = arith.addf %223, %227 : vector<1x256xf32>
    %229 = vector.extract_strided_slice %187 {offsets = [8, 0], sizes = [1, 118], strides = [1, 1]} : vector<32x118xf32> to vector<1x118xf32>
    %c8_160 = arith.constant 8 : index
    %c0_161 = arith.constant 0 : index
    %c0_162 = arith.constant 0 : index
    %230 = vector.load %arg9[%c8_160, %c0_161, %c0_162] : memref<32x118x256xf32, #tpu.memory_space<vmem>>, vector<1x118x256xf32>
    %231 = vector.shape_cast %230 : vector<1x118x256xf32> to vector<118x256xf32>
    %cst_163 = arith.constant dense<0.000000e+00> : vector<1x256xf32>
    %232 = tpu.matmul %229, %231, %cst_163 {dimension_numbers = #tpu.dot_dimension_numbers<[1], [0], [0], [1], [0, 0, 1, 1], [], []>} : vector<1x118xf32>, vector<118x256xf32>, vector<1x256xf32> -> vector<1x256xf32>
    %233 = arith.addf %228, %232 : vector<1x256xf32>
    %234 = vector.extract_strided_slice %187 {offsets = [9, 0], sizes = [1, 118], strides = [1, 1]} : vector<32x118xf32> to vector<1x118xf32>
    %c9 = arith.constant 9 : index
    %c0_164 = arith.constant 0 : index
    %c0_165 = arith.constant 0 : index
    %235 = vector.load %arg9[%c9, %c0_164, %c0_165] : memref<32x118x256xf32, #tpu.memory_space<vmem>>, vector<1x118x256xf32>
    %236 = vector.shape_cast %235 : vector<1x118x256xf32> to vector<118x256xf32>
    %cst_166 = arith.constant dense<0.000000e+00> : vector<1x256xf32>
    %237 = tpu.matmul %234, %236, %cst_166 {dimension_numbers = #tpu.dot_dimension_numbers<[1], [0], [0], [1], [0, 0, 1, 1], [], []>} : vector<1x118xf32>, vector<118x256xf32>, vector<1x256xf32> -> vector<1x256xf32>
    %238 = arith.addf %233, %237 : vector<1x256xf32>
    %239 = vector.extract_strided_slice %187 {offsets = [10, 0], sizes = [1, 118], strides = [1, 1]} : vector<32x118xf32> to vector<1x118xf32>
    %c10 = arith.constant 10 : index
    %c0_167 = arith.constant 0 : index
    %c0_168 = arith.constant 0 : index
    %240 = vector.load %arg9[%c10, %c0_167, %c0_168] : memref<32x118x256xf32, #tpu.memory_space<vmem>>, vector<1x118x256xf32>
    %241 = vector.shape_cast %240 : vector<1x118x256xf32> to vector<118x256xf32>
    %cst_169 = arith.constant dense<0.000000e+00> : vector<1x256xf32>
    %242 = tpu.matmul %239, %241, %cst_169 {dimension_numbers = #tpu.dot_dimension_numbers<[1], [0], [0], [1], [0, 0, 1, 1], [], []>} : vector<1x118xf32>, vector<118x256xf32>, vector<1x256xf32> -> vector<1x256xf32>
    %243 = arith.addf %238, %242 : vector<1x256xf32>
    %244 = vector.extract_strided_slice %187 {offsets = [11, 0], sizes = [1, 118], strides = [1, 1]} : vector<32x118xf32> to vector<1x118xf32>
    %c11 = arith.constant 11 : index
    %c0_170 = arith.constant 0 : index
    %c0_171 = arith.constant 0 : index
    %245 = vector.load %arg9[%c11, %c0_170, %c0_171] : memref<32x118x256xf32, #tpu.memory_space<vmem>>, vector<1x118x256xf32>
    %246 = vector.shape_cast %245 : vector<1x118x256xf32> to vector<118x256xf32>
    %cst_172 = arith.constant dense<0.000000e+00> : vector<1x256xf32>
    %247 = tpu.matmul %244, %246, %cst_172 {dimension_numbers = #tpu.dot_dimension_numbers<[1], [0], [0], [1], [0, 0, 1, 1], [], []>} : vector<1x118xf32>, vector<118x256xf32>, vector<1x256xf32> -> vector<1x256xf32>
    %248 = arith.addf %243, %247 : vector<1x256xf32>
    %249 = vector.extract_strided_slice %187 {offsets = [12, 0], sizes = [1, 118], strides = [1, 1]} : vector<32x118xf32> to vector<1x118xf32>
    %c12 = arith.constant 12 : index
    %c0_173 = arith.constant 0 : index
    %c0_174 = arith.constant 0 : index
    %250 = vector.load %arg9[%c12, %c0_173, %c0_174] : memref<32x118x256xf32, #tpu.memory_space<vmem>>, vector<1x118x256xf32>
    %251 = vector.shape_cast %250 : vector<1x118x256xf32> to vector<118x256xf32>
    %cst_175 = arith.constant dense<0.000000e+00> : vector<1x256xf32>
    %252 = tpu.matmul %249, %251, %cst_175 {dimension_numbers = #tpu.dot_dimension_numbers<[1], [0], [0], [1], [0, 0, 1, 1], [], []>} : vector<1x118xf32>, vector<118x256xf32>, vector<1x256xf32> -> vector<1x256xf32>
    %253 = arith.addf %248, %252 : vector<1x256xf32>
    %254 = vector.extract_strided_slice %187 {offsets = [13, 0], sizes = [1, 118], strides = [1, 1]} : vector<32x118xf32> to vector<1x118xf32>
    %c13 = arith.constant 13 : index
    %c0_176 = arith.constant 0 : index
    %c0_177 = arith.constant 0 : index
    %255 = vector.load %arg9[%c13, %c0_176, %c0_177] : memref<32x118x256xf32, #tpu.memory_space<vmem>>, vector<1x118x256xf32>
    %256 = vector.shape_cast %255 : vector<1x118x256xf32> to vector<118x256xf32>
    %cst_178 = arith.constant dense<0.000000e+00> : vector<1x256xf32>
    %257 = tpu.matmul %254, %256, %cst_178 {dimension_numbers = #tpu.dot_dimension_numbers<[1], [0], [0], [1], [0, 0, 1, 1], [], []>} : vector<1x118xf32>, vector<118x256xf32>, vector<1x256xf32> -> vector<1x256xf32>
    %258 = arith.addf %253, %257 : vector<1x256xf32>
    %259 = vector.extract_strided_slice %187 {offsets = [14, 0], sizes = [1, 118], strides = [1, 1]} : vector<32x118xf32> to vector<1x118xf32>
    %c14 = arith.constant 14 : index
    %c0_179 = arith.constant 0 : index
    %c0_180 = arith.constant 0 : index
    %260 = vector.load %arg9[%c14, %c0_179, %c0_180] : memref<32x118x256xf32, #tpu.memory_space<vmem>>, vector<1x118x256xf32>
    %261 = vector.shape_cast %260 : vector<1x118x256xf32> to vector<118x256xf32>
    %cst_181 = arith.constant dense<0.000000e+00> : vector<1x256xf32>
    %262 = tpu.matmul %259, %261, %cst_181 {dimension_numbers = #tpu.dot_dimension_numbers<[1], [0], [0], [1], [0, 0, 1, 1], [], []>} : vector<1x118xf32>, vector<118x256xf32>, vector<1x256xf32> -> vector<1x256xf32>
    %263 = arith.addf %258, %262 : vector<1x256xf32>
    %264 = vector.extract_strided_slice %187 {offsets = [15, 0], sizes = [1, 118], strides = [1, 1]} : vector<32x118xf32> to vector<1x118xf32>
    %c15 = arith.constant 15 : index
    %c0_182 = arith.constant 0 : index
    %c0_183 = arith.constant 0 : index
    %265 = vector.load %arg9[%c15, %c0_182, %c0_183] : memref<32x118x256xf32, #tpu.memory_space<vmem>>, vector<1x118x256xf32>
    %266 = vector.shape_cast %265 : vector<1x118x256xf32> to vector<118x256xf32>
    %cst_184 = arith.constant dense<0.000000e+00> : vector<1x256xf32>
    %267 = tpu.matmul %264, %266, %cst_184 {dimension_numbers = #tpu.dot_dimension_numbers<[1], [0], [0], [1], [0, 0, 1, 1], [], []>} : vector<1x118xf32>, vector<118x256xf32>, vector<1x256xf32> -> vector<1x256xf32>
    %268 = arith.addf %263, %267 : vector<1x256xf32>
    %269 = vector.extract_strided_slice %187 {offsets = [16, 0], sizes = [1, 118], strides = [1, 1]} : vector<32x118xf32> to vector<1x118xf32>
    %c16 = arith.constant 16 : index
    %c0_185 = arith.constant 0 : index
    %c0_186 = arith.constant 0 : index
    %270 = vector.load %arg9[%c16, %c0_185, %c0_186] : memref<32x118x256xf32, #tpu.memory_space<vmem>>, vector<1x118x256xf32>
    %271 = vector.shape_cast %270 : vector<1x118x256xf32> to vector<118x256xf32>
    %cst_187 = arith.constant dense<0.000000e+00> : vector<1x256xf32>
    %272 = tpu.matmul %269, %271, %cst_187 {dimension_numbers = #tpu.dot_dimension_numbers<[1], [0], [0], [1], [0, 0, 1, 1], [], []>} : vector<1x118xf32>, vector<118x256xf32>, vector<1x256xf32> -> vector<1x256xf32>
    %273 = arith.addf %268, %272 : vector<1x256xf32>
    %274 = vector.extract_strided_slice %187 {offsets = [17, 0], sizes = [1, 118], strides = [1, 1]} : vector<32x118xf32> to vector<1x118xf32>
    %c17 = arith.constant 17 : index
    %c0_188 = arith.constant 0 : index
    %c0_189 = arith.constant 0 : index
    %275 = vector.load %arg9[%c17, %c0_188, %c0_189] : memref<32x118x256xf32, #tpu.memory_space<vmem>>, vector<1x118x256xf32>
    %276 = vector.shape_cast %275 : vector<1x118x256xf32> to vector<118x256xf32>
    %cst_190 = arith.constant dense<0.000000e+00> : vector<1x256xf32>
    %277 = tpu.matmul %274, %276, %cst_190 {dimension_numbers = #tpu.dot_dimension_numbers<[1], [0], [0], [1], [0, 0, 1, 1], [], []>} : vector<1x118xf32>, vector<118x256xf32>, vector<1x256xf32> -> vector<1x256xf32>
    %278 = arith.addf %273, %277 : vector<1x256xf32>
    %279 = vector.extract_strided_slice %187 {offsets = [18, 0], sizes = [1, 118], strides = [1, 1]} : vector<32x118xf32> to vector<1x118xf32>
    %c18 = arith.constant 18 : index
    %c0_191 = arith.constant 0 : index
    %c0_192 = arith.constant 0 : index
    %280 = vector.load %arg9[%c18, %c0_191, %c0_192] : memref<32x118x256xf32, #tpu.memory_space<vmem>>, vector<1x118x256xf32>
    %281 = vector.shape_cast %280 : vector<1x118x256xf32> to vector<118x256xf32>
    %cst_193 = arith.constant dense<0.000000e+00> : vector<1x256xf32>
    %282 = tpu.matmul %279, %281, %cst_193 {dimension_numbers = #tpu.dot_dimension_numbers<[1], [0], [0], [1], [0, 0, 1, 1], [], []>} : vector<1x118xf32>, vector<118x256xf32>, vector<1x256xf32> -> vector<1x256xf32>
    %283 = arith.addf %278, %282 : vector<1x256xf32>
    %284 = vector.extract_strided_slice %187 {offsets = [19, 0], sizes = [1, 118], strides = [1, 1]} : vector<32x118xf32> to vector<1x118xf32>
    %c19 = arith.constant 19 : index
    %c0_194 = arith.constant 0 : index
    %c0_195 = arith.constant 0 : index
    %285 = vector.load %arg9[%c19, %c0_194, %c0_195] : memref<32x118x256xf32, #tpu.memory_space<vmem>>, vector<1x118x256xf32>
    %286 = vector.shape_cast %285 : vector<1x118x256xf32> to vector<118x256xf32>
    %cst_196 = arith.constant dense<0.000000e+00> : vector<1x256xf32>
    %287 = tpu.matmul %284, %286, %cst_196 {dimension_numbers = #tpu.dot_dimension_numbers<[1], [0], [0], [1], [0, 0, 1, 1], [], []>} : vector<1x118xf32>, vector<118x256xf32>, vector<1x256xf32> -> vector<1x256xf32>
    %288 = arith.addf %283, %287 : vector<1x256xf32>
    %289 = vector.extract_strided_slice %187 {offsets = [20, 0], sizes = [1, 118], strides = [1, 1]} : vector<32x118xf32> to vector<1x118xf32>
    %c20 = arith.constant 20 : index
    %c0_197 = arith.constant 0 : index
    %c0_198 = arith.constant 0 : index
    %290 = vector.load %arg9[%c20, %c0_197, %c0_198] : memref<32x118x256xf32, #tpu.memory_space<vmem>>, vector<1x118x256xf32>
    %291 = vector.shape_cast %290 : vector<1x118x256xf32> to vector<118x256xf32>
    %cst_199 = arith.constant dense<0.000000e+00> : vector<1x256xf32>
    %292 = tpu.matmul %289, %291, %cst_199 {dimension_numbers = #tpu.dot_dimension_numbers<[1], [0], [0], [1], [0, 0, 1, 1], [], []>} : vector<1x118xf32>, vector<118x256xf32>, vector<1x256xf32> -> vector<1x256xf32>
    %293 = arith.addf %288, %292 : vector<1x256xf32>
    %294 = vector.extract_strided_slice %187 {offsets = [21, 0], sizes = [1, 118], strides = [1, 1]} : vector<32x118xf32> to vector<1x118xf32>
    %c21 = arith.constant 21 : index
    %c0_200 = arith.constant 0 : index
    %c0_201 = arith.constant 0 : index
    %295 = vector.load %arg9[%c21, %c0_200, %c0_201] : memref<32x118x256xf32, #tpu.memory_space<vmem>>, vector<1x118x256xf32>
    %296 = vector.shape_cast %295 : vector<1x118x256xf32> to vector<118x256xf32>
    %cst_202 = arith.constant dense<0.000000e+00> : vector<1x256xf32>
    %297 = tpu.matmul %294, %296, %cst_202 {dimension_numbers = #tpu.dot_dimension_numbers<[1], [0], [0], [1], [0, 0, 1, 1], [], []>} : vector<1x118xf32>, vector<118x256xf32>, vector<1x256xf32> -> vector<1x256xf32>
    %298 = arith.addf %293, %297 : vector<1x256xf32>
    %299 = vector.extract_strided_slice %187 {offsets = [22, 0], sizes = [1, 118], strides = [1, 1]} : vector<32x118xf32> to vector<1x118xf32>
    %c22 = arith.constant 22 : index
    %c0_203 = arith.constant 0 : index
    %c0_204 = arith.constant 0 : index
    %300 = vector.load %arg9[%c22, %c0_203, %c0_204] : memref<32x118x256xf32, #tpu.memory_space<vmem>>, vector<1x118x256xf32>
    %301 = vector.shape_cast %300 : vector<1x118x256xf32> to vector<118x256xf32>
    %cst_205 = arith.constant dense<0.000000e+00> : vector<1x256xf32>
    %302 = tpu.matmul %299, %301, %cst_205 {dimension_numbers = #tpu.dot_dimension_numbers<[1], [0], [0], [1], [0, 0, 1, 1], [], []>} : vector<1x118xf32>, vector<118x256xf32>, vector<1x256xf32> -> vector<1x256xf32>
    %303 = arith.addf %298, %302 : vector<1x256xf32>
    %304 = vector.extract_strided_slice %187 {offsets = [23, 0], sizes = [1, 118], strides = [1, 1]} : vector<32x118xf32> to vector<1x118xf32>
    %c23 = arith.constant 23 : index
    %c0_206 = arith.constant 0 : index
    %c0_207 = arith.constant 0 : index
    %305 = vector.load %arg9[%c23, %c0_206, %c0_207] : memref<32x118x256xf32, #tpu.memory_space<vmem>>, vector<1x118x256xf32>
    %306 = vector.shape_cast %305 : vector<1x118x256xf32> to vector<118x256xf32>
    %cst_208 = arith.constant dense<0.000000e+00> : vector<1x256xf32>
    %307 = tpu.matmul %304, %306, %cst_208 {dimension_numbers = #tpu.dot_dimension_numbers<[1], [0], [0], [1], [0, 0, 1, 1], [], []>} : vector<1x118xf32>, vector<118x256xf32>, vector<1x256xf32> -> vector<1x256xf32>
    %308 = arith.addf %303, %307 : vector<1x256xf32>
    %309 = vector.extract_strided_slice %187 {offsets = [24, 0], sizes = [1, 118], strides = [1, 1]} : vector<32x118xf32> to vector<1x118xf32>
    %c24 = arith.constant 24 : index
    %c0_209 = arith.constant 0 : index
    %c0_210 = arith.constant 0 : index
    %310 = vector.load %arg9[%c24, %c0_209, %c0_210] : memref<32x118x256xf32, #tpu.memory_space<vmem>>, vector<1x118x256xf32>
    %311 = vector.shape_cast %310 : vector<1x118x256xf32> to vector<118x256xf32>
    %cst_211 = arith.constant dense<0.000000e+00> : vector<1x256xf32>
    %312 = tpu.matmul %309, %311, %cst_211 {dimension_numbers = #tpu.dot_dimension_numbers<[1], [0], [0], [1], [0, 0, 1, 1], [], []>} : vector<1x118xf32>, vector<118x256xf32>, vector<1x256xf32> -> vector<1x256xf32>
    %313 = arith.addf %308, %312 : vector<1x256xf32>
    %314 = vector.extract_strided_slice %187 {offsets = [25, 0], sizes = [1, 118], strides = [1, 1]} : vector<32x118xf32> to vector<1x118xf32>
    %c25 = arith.constant 25 : index
    %c0_212 = arith.constant 0 : index
    %c0_213 = arith.constant 0 : index
    %315 = vector.load %arg9[%c25, %c0_212, %c0_213] : memref<32x118x256xf32, #tpu.memory_space<vmem>>, vector<1x118x256xf32>
    %316 = vector.shape_cast %315 : vector<1x118x256xf32> to vector<118x256xf32>
    %cst_214 = arith.constant dense<0.000000e+00> : vector<1x256xf32>
    %317 = tpu.matmul %314, %316, %cst_214 {dimension_numbers = #tpu.dot_dimension_numbers<[1], [0], [0], [1], [0, 0, 1, 1], [], []>} : vector<1x118xf32>, vector<118x256xf32>, vector<1x256xf32> -> vector<1x256xf32>
    %318 = arith.addf %313, %317 : vector<1x256xf32>
    %319 = vector.extract_strided_slice %187 {offsets = [26, 0], sizes = [1, 118], strides = [1, 1]} : vector<32x118xf32> to vector<1x118xf32>
    %c26 = arith.constant 26 : index
    %c0_215 = arith.constant 0 : index
    %c0_216 = arith.constant 0 : index
    %320 = vector.load %arg9[%c26, %c0_215, %c0_216] : memref<32x118x256xf32, #tpu.memory_space<vmem>>, vector<1x118x256xf32>
    %321 = vector.shape_cast %320 : vector<1x118x256xf32> to vector<118x256xf32>
    %cst_217 = arith.constant dense<0.000000e+00> : vector<1x256xf32>
    %322 = tpu.matmul %319, %321, %cst_217 {dimension_numbers = #tpu.dot_dimension_numbers<[1], [0], [0], [1], [0, 0, 1, 1], [], []>} : vector<1x118xf32>, vector<118x256xf32>, vector<1x256xf32> -> vector<1x256xf32>
    %323 = arith.addf %318, %322 : vector<1x256xf32>
    %324 = vector.extract_strided_slice %187 {offsets = [27, 0], sizes = [1, 118], strides = [1, 1]} : vector<32x118xf32> to vector<1x118xf32>
    %c27 = arith.constant 27 : index
    %c0_218 = arith.constant 0 : index
    %c0_219 = arith.constant 0 : index
    %325 = vector.load %arg9[%c27, %c0_218, %c0_219] : memref<32x118x256xf32, #tpu.memory_space<vmem>>, vector<1x118x256xf32>
    %326 = vector.shape_cast %325 : vector<1x118x256xf32> to vector<118x256xf32>
    %cst_220 = arith.constant dense<0.000000e+00> : vector<1x256xf32>
    %327 = tpu.matmul %324, %326, %cst_220 {dimension_numbers = #tpu.dot_dimension_numbers<[1], [0], [0], [1], [0, 0, 1, 1], [], []>} : vector<1x118xf32>, vector<118x256xf32>, vector<1x256xf32> -> vector<1x256xf32>
    %328 = arith.addf %323, %327 : vector<1x256xf32>
    %329 = vector.extract_strided_slice %187 {offsets = [28, 0], sizes = [1, 118], strides = [1, 1]} : vector<32x118xf32> to vector<1x118xf32>
    %c28 = arith.constant 28 : index
    %c0_221 = arith.constant 0 : index
    %c0_222 = arith.constant 0 : index
    %330 = vector.load %arg9[%c28, %c0_221, %c0_222] : memref<32x118x256xf32, #tpu.memory_space<vmem>>, vector<1x118x256xf32>
    %331 = vector.shape_cast %330 : vector<1x118x256xf32> to vector<118x256xf32>
    %cst_223 = arith.constant dense<0.000000e+00> : vector<1x256xf32>
    %332 = tpu.matmul %329, %331, %cst_223 {dimension_numbers = #tpu.dot_dimension_numbers<[1], [0], [0], [1], [0, 0, 1, 1], [], []>} : vector<1x118xf32>, vector<118x256xf32>, vector<1x256xf32> -> vector<1x256xf32>
    %333 = arith.addf %328, %332 : vector<1x256xf32>
    %334 = vector.extract_strided_slice %187 {offsets = [29, 0], sizes = [1, 118], strides = [1, 1]} : vector<32x118xf32> to vector<1x118xf32>
    %c29 = arith.constant 29 : index
    %c0_224 = arith.constant 0 : index
    %c0_225 = arith.constant 0 : index
    %335 = vector.load %arg9[%c29, %c0_224, %c0_225] : memref<32x118x256xf32, #tpu.memory_space<vmem>>, vector<1x118x256xf32>
    %336 = vector.shape_cast %335 : vector<1x118x256xf32> to vector<118x256xf32>
    %cst_226 = arith.constant dense<0.000000e+00> : vector<1x256xf32>
    %337 = tpu.matmul %334, %336, %cst_226 {dimension_numbers = #tpu.dot_dimension_numbers<[1], [0], [0], [1], [0, 0, 1, 1], [], []>} : vector<1x118xf32>, vector<118x256xf32>, vector<1x256xf32> -> vector<1x256xf32>
    %338 = arith.addf %333, %337 : vector<1x256xf32>
    %339 = vector.extract_strided_slice %187 {offsets = [30, 0], sizes = [1, 118], strides = [1, 1]} : vector<32x118xf32> to vector<1x118xf32>
    %c30 = arith.constant 30 : index
    %c0_227 = arith.constant 0 : index
    %c0_228 = arith.constant 0 : index
    %340 = vector.load %arg9[%c30, %c0_227, %c0_228] : memref<32x118x256xf32, #tpu.memory_space<vmem>>, vector<1x118x256xf32>
    %341 = vector.shape_cast %340 : vector<1x118x256xf32> to vector<118x256xf32>
    %cst_229 = arith.constant dense<0.000000e+00> : vector<1x256xf32>
    %342 = tpu.matmul %339, %341, %cst_229 {dimension_numbers = #tpu.dot_dimension_numbers<[1], [0], [0], [1], [0, 0, 1, 1], [], []>} : vector<1x118xf32>, vector<118x256xf32>, vector<1x256xf32> -> vector<1x256xf32>
    %343 = arith.addf %338, %342 : vector<1x256xf32>
    %344 = vector.extract_strided_slice %187 {offsets = [31, 0], sizes = [1, 118], strides = [1, 1]} : vector<32x118xf32> to vector<1x118xf32>
    %c31 = arith.constant 31 : index
    %c0_230 = arith.constant 0 : index
    %c0_231 = arith.constant 0 : index
    %345 = vector.load %arg9[%c31, %c0_230, %c0_231] : memref<32x118x256xf32, #tpu.memory_space<vmem>>, vector<1x118x256xf32>
    %346 = vector.shape_cast %345 : vector<1x118x256xf32> to vector<118x256xf32>
    %cst_232 = arith.constant dense<0.000000e+00> : vector<1x256xf32>
    %347 = tpu.matmul %344, %346, %cst_232 {dimension_numbers = #tpu.dot_dimension_numbers<[1], [0], [0], [1], [0, 0, 1, 1], [], []>} : vector<1x118xf32>, vector<118x256xf32>, vector<1x256xf32> -> vector<1x256xf32>
    %348 = arith.addf %343, %347 : vector<1x256xf32>
    %cst_233 = arith.constant 0.000000e+00 : f32
    %349 = vector.broadcast %cst_233 : f32 to vector<1x256xf32>
    %350 = arith.cmpf ogt, %348, %349 : vector<1x256xf32>
    %cst_234 = arith.constant 2.000000e-01 : f32
    %351 = vector.broadcast %cst_234 : f32 to vector<1x256xf32>
    %352 = arith.mulf %351, %348 : vector<1x256xf32>
    %353 = arith.select %350, %348, %352 : vector<1x256xi1>, vector<1x256xf32>
    %c0_235 = arith.constant 0 : index
    %c0_236 = arith.constant 0 : index
    %354 = vector.load %arg11[%c0_235, %c0_236] : memref<1x256xf32, #tpu.memory_space<vmem>>, vector<1x256xf32>
    %355 = arith.mulf %353, %354 : vector<1x256xf32>
    %cst_237 = arith.constant dense<0.000000e+00> : vector<1xf32>
    %356 = vector.multi_reduction <add>, %355, %cst_237 [1] : vector<1x256xf32> to vector<1xf32>
    %357 = vector.shape_cast %356 : vector<1xf32> to vector<1x1xf32>
    %c0_238 = arith.constant 0 : index
    %c0_239 = arith.constant 0 : index
    %358 = vector.load %arg12[%c0_238, %c0_239] : memref<1x1xf32, #tpu.memory_space<vmem>>, vector<1x1xf32>
    %359 = arith.addf %357, %358 : vector<1x1xf32>
    %cst_240 = arith.constant 0.000000e+00 : f32
    %360 = vector.broadcast %cst_240 : f32 to vector<1x1xf32>
    %361 = arith.subf %360, %359 : vector<1x1xf32>
    %362 = math.exp %361 : vector<1x1xf32>
    %cst_241 = arith.constant 1.000000e+00 : f32
    %363 = vector.broadcast %cst_241 : f32 to vector<1x1xf32>
    %364 = arith.addf %363, %362 : vector<1x1xf32>
    %cst_242 = arith.constant 1.000000e+00 : f32
    %365 = vector.broadcast %cst_242 : f32 to vector<1x1xf32>
    %366 = arith.divf %365, %364 : vector<1x1xf32>
    %c0_243 = arith.constant 0 : index
    %c0_244 = arith.constant 0 : index
    %c0_245 = arith.constant 0 : index
    %367 = vector.load %arg13[%c0_243, %c0_244, %c0_245] : memref<1x1x1xf32, #tpu.memory_space<vmem>>, vector<1x1x1xf32>
    %368 = vector.shape_cast %367 : vector<1x1x1xf32> to vector<1x1xf32>
    %369 = vector.shape_cast %366 : vector<1x1xf32> to vector<1x1x1xf32>
    tpu.vector_store %arg13[%c0_243, %c0_244, %c0_245], %369 {strides = array<i32>} : memref<1x1x1xf32, #tpu.memory_space<vmem>>, vector<1x1x1xf32>,
    return
  }
  func.func @transform_0(%arg0: i32) -> (i32, i32, i32) {
    %c0_i32 = arith.constant 0 : i32
    %c0_i32_0 = arith.constant 0 : i32
    %c0_i32_1 = arith.constant 0 : i32
    return %arg0, %c0_i32, %c0_i32_0 : i32, i32, i32
  }
  func.func @transform_1(%arg0: i32) -> (i32, i32) {
    %c0_i32 = arith.constant 0 : i32
    %c0_i32_0 = arith.constant 0 : i32
    %c0_i32_1 = arith.constant 0 : i32
    return %c0_i32, %c0_i32_0 : i32, i32
  }
  func.func @transform_2(%arg0: i32) -> (i32, i32, i32) {
    %c0_i32 = arith.constant 0 : i32
    %c0_i32_0 = arith.constant 0 : i32
    %c0_i32_1 = arith.constant 0 : i32
    %c0_i32_2 = arith.constant 0 : i32
    return %c0_i32, %c0_i32_0, %c0_i32_1 : i32, i32, i32
  }
  func.func @transform_3(%arg0: i32) -> (i32, i32) {
    %c0_i32 = arith.constant 0 : i32
    %c0_i32_0 = arith.constant 0 : i32
    %c0_i32_1 = arith.constant 0 : i32
    return %c0_i32, %c0_i32_0 : i32, i32
  }
  func.func @transform_4(%arg0: i32) -> (i32, i32, i32) {
    %c0_i32 = arith.constant 0 : i32
    %c0_i32_0 = arith.constant 0 : i32
    %c0_i32_1 = arith.constant 0 : i32
    %c0_i32_2 = arith.constant 0 : i32
    return %c0_i32, %c0_i32_0, %c0_i32_1 : i32, i32, i32
  }
  func.func @transform_5(%arg0: i32) -> (i32, i32) {
    %c0_i32 = arith.constant 0 : i32
    %c0_i32_0 = arith.constant 0 : i32
    %c0_i32_1 = arith.constant 0 : i32
    return %c0_i32, %c0_i32_0 : i32, i32
  }
  func.func @transform_6(%arg0: i32) -> (i32, i32, i32) {
    %c0_i32 = arith.constant 0 : i32
    %c0_i32_0 = arith.constant 0 : i32
    %c0_i32_1 = arith.constant 0 : i32
    %c0_i32_2 = arith.constant 0 : i32
    return %c0_i32, %c0_i32_0, %c0_i32_1 : i32, i32, i32
  }
  func.func @transform_7(%arg0: i32) -> (i32, i32) {
    %c0_i32 = arith.constant 0 : i32
    %c0_i32_0 = arith.constant 0 : i32
    %c0_i32_1 = arith.constant 0 : i32
    return %c0_i32, %c0_i32_0 : i32, i32
  }
  func.func @transform_8(%arg0: i32) -> (i32, i32, i32) {
    %c0_i32 = arith.constant 0 : i32
    %c0_i32_0 = arith.constant 0 : i32
    %c0_i32_1 = arith.constant 0 : i32
    %c0_i32_2 = arith.constant 0 : i32
    return %c0_i32, %c0_i32_0, %c0_i32_1 : i32, i32, i32
  }
  func.func @transform_9(%arg0: i32) -> (i32, i32) {
    %c0_i32 = arith.constant 0 : i32
    %c0_i32_0 = arith.constant 0 : i32
    %c0_i32_1 = arith.constant 0 : i32
    return %c0_i32, %c0_i32_0 : i32, i32
  }
  func.func @transform_10(%arg0: i32) -> (i32, i32) {
    %c0_i32 = arith.constant 0 : i32
    %c0_i32_0 = arith.constant 0 : i32
    %c0_i32_1 = arith.constant 0 : i32
    return %c0_i32, %c0_i32_0 : i32, i32
  }
  func.func @transform_11(%arg0: i32) -> (i32, i32) {
    %c0_i32 = arith.constant 0 : i32
    %c0_i32_0 = arith.constant 0 : i32
    %c0_i32_1 = arith.constant 0 : i32
    return %c0_i32, %c0_i32_0 : i32, i32
  }
  func.func @transform_12(%arg0: i32) -> (i32, i32, i32) {
    %c0_i32 = arith.constant 0 : i32
    %c0_i32_0 = arith.constant 0 : i32
    %c0_i32_1 = arith.constant 0 : i32
    return %arg0, %c0_i32, %c0_i32_0 : i32, i32, i32
  }
}

</mosaic_0001>

<llo_original>
// kernel: causal_conv_discriminator.1
$region0: #{causal_conv_discriminator.1}
  #allocation0 [shape = 'u32[]', space=smem, size = 0x4, offset = 0x4, fixed_abs, tag = 'smem constant byte address 0x4 - core index']
  #allocation1 [shape = 'u32[144,128]{1,0:T(1,128)}', space=vmem, size = 0x12000, scoped, tag = 'internal scratch']
  #allocation2 [shape = 'f32[1,1]{1,0:T(1,128)S(1)}', space=vmem, size = 0x200, scoped, tag = 'scoped memory for causal_conv_discriminator.1']
  %s0 = inlined_call_operand.vmem [shape: f32[2,4,144], index: 0, kind: input, shape index: {}]
  %s1 = inlined_call_operand.vmem [shape: f32[1,118], index: 1, kind: input, shape index: {}]
  %s2 = inlined_call_operand.vmem [shape: f32[9,8,4], index: 2, kind: input, shape index: {}]
  %s3 = inlined_call_operand.vmem [shape: f32[8,1], index: 3, kind: input, shape index: {}]
  %s4 = inlined_call_operand.vmem [shape: f32[9,16,8], index: 4, kind: input, shape index: {}]
  %s5 = inlined_call_operand.vmem [shape: f32[16,1], index: 5, kind: input, shape index: {}]
  %s6 = inlined_call_operand.vmem [shape: f32[9,32,16], index: 6, kind: input, shape index: {}]
  %s7 = inlined_call_operand.vmem [shape: f32[32,1], index: 7, kind: input, shape index: {}]
  %s8 = inlined_call_operand.vmem [shape: f32[32,118,256], index: 8, kind: input, shape index: {}]
  %s9 = inlined_call_operand.vmem [shape: f32[1,256], index: 9, kind: input, shape index: {}]
  %s10 = inlined_call_operand.vmem [shape: f32[1,256], index: 10, kind: input, shape index: {}]
  %s11 = inlined_call_operand.<no memory space> [shape: f32[1,1], index: 11, kind: input, shape index: {}]
  %s12 = inlined_call_operand.vmem [shape: f32[2,1,1], index: 12, kind: output, shape index: {}]
  %s13 = sld [smem:[#allocation0]]
  $region81: #{causal_conv_discriminator.1} parent=0
    _
  %s15 = ssub.s32 1, %s13
  %s16 = scalar_select 0, %s15, %s13
  %v17 = vstv %s11
  %18 = vst [vmem:[#allocation2] sm:$0x1] %v17
  loop: start=0, step=1, limit=4
  $region2: #{causal_conv_discriminator.1} parent=0 // loop_pre_header
    _
  $region3: #{causal_conv_discriminator.1} parent=0 // loop_header
    %s20 = sphi 0, %s24
    %p21 = scmp.ge.s32.totalorder %s20, 4
    %s30 = sphi 0, %s32
    %s33 = sphi 0, %s30
    %s34 = sphi 0, %s33
    %s50 = sphi 0, %s34
    %s54 = sphi 0, %s54
    %s56 = sphi 0, %s54
    %s57 = sphi 0, %s56
    %s71 = sphi 0, %s57
    %s75 = sphi 0, %s75
    %s77 = sphi 0, %s75
    %s78 = sphi 0, %s77
    %s92 = sphi 0, %s78
    %s96 = sphi 0, %s96
    %s98 = sphi 0, %s96
    %s99 = sphi 0, %s98
    %s113 = sphi 0, %s99
    %s117 = sphi 0, %s117
    %s119 = sphi 0, %s117
    %s120 = sphi 0, %s119
    %s134 = sphi 0, %s120
    %s138 = sphi 0, %s138
    %s140 = sphi 0, %s138
    %s141 = sphi 0, %s140
    %s155 = sphi 0, %s141
    %s159 = sphi 0, %s159
    %s161 = sphi 0, %s159
    %s162 = sphi 0, %s161
    %s176 = sphi 0, %s162
    %s180 = sphi 0, %s180
    %s182 = sphi 0, %s180
    %s183 = sphi 0, %s182
    %s197 = sphi 0, %s183
    %s201 = sphi 0, %s201
    %s203 = sphi 0, %s201
    %s204 = sphi 0, %s203
    %s218 = sphi 0, %s204
    %s222 = sphi 0, %s222
    %s224 = sphi 0, %s222
    %s225 = sphi 0, %s224
    %s239 = sphi 0, %s225
    %s243 = sphi 0, %s243
    %s245 = sphi 0, %s243
    %s246 = sphi 0, %s245
    %s260 = sphi 0, %s246
    %s264 = sphi 0, %s264
    %s266 = sphi 0, %s264
    %s267 = sphi 0, %s266
    %s281 = sphi 0, %s267
    %s287 = sphi 0, %s289
    %s290 = sphi 0, %s287
    %s291 = sphi 0, %s290
    %s307 = sphi 0, %s291
  $region4: #{causal_conv_discriminator.1} parent=0 // loop_header_branch
    %23 = sbr.rel (%p21) target = $region8
  $region5: #{causal_conv_discriminator.1} parent=0 // loop_body
    %s25 = ssub.s32 %s20, 1
    %s26 = ssub.s32 %s20, 2
    %s27 = sadd.s32 %s20, 1
    %s28 = ssub.s32 %s20, %s27
    %p29 = scmp.eq.s32.totalorder %s28, 0
    %s31 = sadd.s32 %s30, 1
    %s32 = scalar_select %p29, %s30, %s31
    %p35 = pneg %p29
    %p36 = scmp.eq.s32.totalorder %s20, 1
    %p37 = por %p35, %p36
    %p38 = scmp.ne.s32.totalorder %s30, %s33
    %p39 = scmp.eq.s32.totalorder %s20, 0
    %p40 = por %p38, %p39
    %p41 = scmp.ne.s32.totalorder %s30, %s33
    %p42 = scmp.eq.s32.totalorder %s25, 1
    %p43 = por %p41, %p42
    %p44 = scmp.ne.s32.totalorder %s33, %s34
    %p45 = scmp.eq.s32.totalorder %s25, 0
    %p46 = por %p44, %p45
    %p47 = scmp.ne.s32.totalorder %s33, %s34
    %p48 = scmp.eq.s32.totalorder %s26, 1
    %p49 = por %p47, %p48
    %p51 = scmp.ne.s32.totalorder %s34, %s50
    %p52 = scmp.eq.s32.totalorder %s26, 0
    %p53 = por %p51, %p52
    %s55 = sadd.s32 %s54, 1
    %p58 = scmp.eq.s32.totalorder %s20, 1
    %p59 = scmp.ne.s32.totalorder %s54, %s56
    %p60 = scmp.eq.s32.totalorder %s20, 0
    %p61 = por %p59, %p60
    %p62 = scmp.ne.s32.totalorder %s54, %s56
    %p63 = scmp.eq.s32.totalorder %s25, 1
    %p64 = por %p62, %p63
    %p65 = scmp.ne.s32.totalorder %s56, %s57
    %p66 = scmp.eq.s32.totalorder %s25, 0
    %p67 = por %p65, %p66
    %p68 = scmp.ne.s32.totalorder %s56, %s57
    %p69 = scmp.eq.s32.totalorder %s26, 1
    %p70 = por %p68, %p69
    %p72 = scmp.ne.s32.totalorder %s57, %s71
    %p73 = scmp.eq.s32.totalorder %s26, 0
    %p74 = por %p72, %p73
    %s76 = sadd.s32 %s75, 1
    %p79 = scmp.eq.s32.totalorder %s20, 1
    %p80 = scmp.ne.s32.totalorder %s75, %s77
    %p81 = scmp.eq.s32.totalorder %s20, 0
    %p82 = por %p80, %p81
    %p83 = scmp.ne.s32.totalorder %s75, %s77
    %p84 = scmp.eq.s32.totalorder %s25, 1
    %p85 = por %p83, %p84
    %p86 = scmp.ne.s32.totalorder %s77, %s78
    %p87 = scmp.eq.s32.totalorder %s25, 0
    %p88 = por %p86, %p87
    %p89 = scmp.ne.s32.totalorder %s77, %s78
    %p90 = scmp.eq.s32.totalorder %s26, 1
    %p91 = por %p89, %p90
    %p93 = scmp.ne.s32.totalorder %s78, %s92
    %p94 = scmp.eq.s32.totalorder %s26, 0
    %p95 = por %p93, %p94
    %s97 = sadd.s32 %s96, 1
    %p100 = scmp.eq.s32.totalorder %s20, 1
    %p101 = scmp.ne.s32.totalorder %s96, %s98
    %p102 = scmp.eq.s32.totalorder %s20, 0
    %p103 = por %p101, %p102
    %p104 = scmp.ne.s32.totalorder %s96, %s98
    %p105 = scmp.eq.s32.totalorder %s25, 1
    %p106 = por %p104, %p105
    %p107 = scmp.ne.s32.totalorder %s98, %s99
    %p108 = scmp.eq.s32.totalorder %s25, 0
    %p109 = por %p107, %p108
    %p110 = scmp.ne.s32.totalorder %s98, %s99
    %p111 = scmp.eq.s32.totalorder %s26, 1
    %p112 = por %p110, %p111
    %p114 = scmp.ne.s32.totalorder %s99, %s113
    %p115 = scmp.eq.s32.totalorder %s26, 0
    %p116 = por %p114, %p115
    %s118 = sadd.s32 %s117, 1
    %p121 = scmp.eq.s32.totalorder %s20, 1
    %p122 = scmp.ne.s32.totalorder %s117, %s119
    %p123 = scmp.eq.s32.totalorder %s20, 0
    %p124 = por %p122, %p123
    %p125 = scmp.ne.s32.totalorder %s117, %s119
    %p126 = scmp.eq.s32.totalorder %s25, 1
    %p127 = por %p125, %p126
    %p128 = scmp.ne.s32.totalorder %s119, %s120
    %p129 = scmp.eq.s32.totalorder %s25, 0
    %p130 = por %p128, %p129
    %p131 = scmp.ne.s32.totalorder %s119, %s120
    %p132 = scmp.eq.s32.totalorder %s26, 1
    %p133 = por %p131, %p132
    %p135 = scmp.ne.s32.totalorder %s120, %s134
    %p136 = scmp.eq.s32.totalorder %s26, 0
    %p137 = por %p135, %p136
    %s139 = sadd.s32 %s138, 1
    %p142 = scmp.eq.s32.totalorder %s20, 1
    %p143 = scmp.ne.s32.totalorder %s138, %s140
    %p144 = scmp.eq.s32.totalorder %s20, 0
    %p145 = por %p143, %p144
    %p146 = scmp.ne.s32.totalorder %s138, %s140
    %p147 = scmp.eq.s32.totalorder %s25, 1
    %p148 = por %p146, %p147
    %p149 = scmp.ne.s32.totalorder %s140, %s141
    %p150 = scmp.eq.s32.totalorder %s25, 0
    %p151 = por %p149, %p150
    %p152 = scmp.ne.s32.totalorder %s140, %s141
    %p153 = scmp.eq.s32.totalorder %s26, 1
    %p154 = por %p152, %p153
    %p156 = scmp.ne.s32.totalorder %s141, %s155
    %p157 = scmp.eq.s32.totalorder %s26, 0
    %p158 = por %p156, %p157
    %s160 = sadd.s32 %s159, 1
    %p163 = scmp.eq.s32.totalorder %s20, 1
    %p164 = scmp.ne.s32.totalorder %s159, %s161
    %p165 = scmp.eq.s32.totalorder %s20, 0
    %p166 = por %p164, %p165
    %p167 = scmp.ne.s32.totalorder %s159, %s161
    %p168 = scmp.eq.s32.totalorder %s25, 1
    %p169 = por %p167, %p168
    %p170 = scmp.ne.s32.totalorder %s161, %s162
    %p171 = scmp.eq.s32.totalorder %s25, 0
    %p172 = por %p170, %p171
    %p173 = scmp.ne.s32.totalorder %s161, %s162
    %p174 = scmp.eq.s32.totalorder %s26, 1
    %p175 = por %p173, %p174
    %p177 = scmp.ne.s32.totalorder %s162, %s176
    %p178 = scmp.eq.s32.totalorder %s26, 0
    %p179 = por %p177, %p178
    %s181 = sadd.s32 %s180, 1
    %p184 = scmp.eq.s32.totalorder %s20, 1
    %p185 = scmp.ne.s32.totalorder %s180, %s182
    %p186 = scmp.eq.s32.totalorder %s20, 0
    %p187 = por %p185, %p186
    %p188 = scmp.ne.s32.totalorder %s180, %s182
    %p189 = scmp.eq.s32.totalorder %s25, 1
    %p190 = por %p188, %p189
    %p191 = scmp.ne.s32.totalorder %s182, %s183
    %p192 = scmp.eq.s32.totalorder %s25, 0
    %p193 = por %p191, %p192
    %p194 = scmp.ne.s32.totalorder %s182, %s183
    %p195 = scmp.eq.s32.totalorder %s26, 1
    %p196 = por %p194, %p195
    %p198 = scmp.ne.s32.totalorder %s183, %s197
    %p199 = scmp.eq.s32.totalorder %s26, 0
    %p200 = por %p198, %p199
    %s202 = sadd.s32 %s201, 1
    %p205 = scmp.eq.s32.totalorder %s20, 1
    %p206 = scmp.ne.s32.totalorder %s201, %s203
    %p207 = scmp.eq.s32.totalorder %s20, 0
    %p208 = por %p206, %p207
    %p209 = scmp.ne.s32.totalorder %s201, %s203
    %p210 = scmp.eq.s32.totalorder %s25, 1
    %p211 = por %p209, %p210
    %p212 = scmp.ne.s32.totalorder %s203, %s204
    %p213 = scmp.eq.s32.totalorder %s25, 0
    %p214 = por %p212, %p213
    %p215 = scmp.ne.s32.totalorder %s203, %s204
    %p216 = scmp.eq.s32.totalorder %s26, 1
    %p217 = por %p215, %p216
    %p219 = scmp.ne.s32.totalorder %s204, %s218
    %p220 = scmp.eq.s32.totalorder %s26, 0
    %p221 = por %p219, %p220
    %s223 = sadd.s32 %s222, 1
    %p226 = scmp.eq.s32.totalorder %s20, 1
    %p227 = scmp.ne.s32.totalorder %s222, %s224
    %p228 = scmp.eq.s32.totalorder %s20, 0
    %p229 = por %p227, %p228
    %p230 = scmp.ne.s32.totalorder %s222, %s224
    %p231 = scmp.eq.s32.totalorder %s25, 1
    %p232 = por %p230, %p231
    %p233 = scmp.ne.s32.totalorder %s224, %s225
    %p234 = scmp.eq.s32.totalorder %s25, 0
    %p235 = por %p233, %p234
    %p236 = scmp.ne.s32.totalorder %s224, %s225
    %p237 = scmp.eq.s32.totalorder %s26, 1
    %p238 = por %p236, %p237
    %p240 = scmp.ne.s32.totalorder %s225, %s239
    %p241 = scmp.eq.s32.totalorder %s26, 0
    %p242 = por %p240, %p241
    %s244 = sadd.s32 %s243, 1
    %p247 = scmp.eq.s32.totalorder %s20, 1
    %p248 = scmp.ne.s32.totalorder %s243, %s245
    %p249 = scmp.eq.s32.totalorder %s20, 0
    %p250 = por %p248, %p249
    %p251 = scmp.ne.s32.totalorder %s243, %s245
    %p252 = scmp.eq.s32.totalorder %s25, 1
    %p253 = por %p251, %p252
    %p254 = scmp.ne.s32.totalorder %s245, %s246
    %p255 = scmp.eq.s32.totalorder %s25, 0
    %p256 = por %p254, %p255
    %p257 = scmp.ne.s32.totalorder %s245, %s246
    %p258 = scmp.eq.s32.totalorder %s26, 1
    %p259 = por %p257, %p258
    %p261 = scmp.ne.s32.totalorder %s246, %s260
    %p262 = scmp.eq.s32.totalorder %s26, 0
    %p263 = por %p261, %p262
    %s265 = sadd.s32 %s264, 1
    %p268 = scmp.eq.s32.totalorder %s20, 1
    %p269 = scmp.ne.s32.totalorder %s264, %s266
    %p270 = scmp.eq.s32.totalorder %s20, 0
    %p271 = por %p269, %p270
    %p272 = scmp.ne.s32.totalorder %s264, %s266
    %p273 = scmp.eq.s32.totalorder %s25, 1
    %p274 = por %p272, %p273
    %p275 = scmp.ne.s32.totalorder %s266, %s267
    %p276 = scmp.eq.s32.totalorder %s25, 0
    %p277 = por %p275, %p276
    %p278 = scmp.ne.s32.totalorder %s266, %s267
    %p279 = scmp.eq.s32.totalorder %s26, 1
    %p280 = por %p278, %p279
    %p282 = scmp.ne.s32.totalorder %s267, %s281
    %p283 = scmp.eq.s32.totalorder %s26, 0
    %p284 = por %p282, %p283
    %s285 = ssub.s32 %s20, %s27
    %p286 = scmp.eq.s32.totalorder %s285, 0
    %s288 = sadd.s32 %s287, 1
    %s289 = scalar_select %p286, %s287, %s288
    %p292 = pneg %p286
    %p293 = scmp.eq.s32.totalorder %s20, 1
    %p294 = por %p292, %p293
    %p295 = scmp.ne.s32.totalorder %s287, %s290
    %p296 = scmp.eq.s32.totalorder %s20, 0
    %p297 = por %p295, %p296
    %p298 = scmp.ne.s32.totalorder %s287, %s290
    %p299 = scmp.eq.s32.totalorder %s25, 1
    %p300 = por %p298, %p299
    %p301 = scmp.ne.s32.totalorder %s290, %s291
    %p302 = scmp.eq.s32.totalorder %s25, 0
    %p303 = por %p301, %p302
    %p304 = scmp.ne.s32.totalorder %s290, %s291
    %p305 = scmp.eq.s32.totalorder %s26, 1
    %p306 = por %p304, %p305
    %p308 = scmp.ne.s32.totalorder %s291, %s307
    %p309 = scmp.eq.s32.totalorder %s26, 0
    %p310 = por %p308, %p309
    %p311 = scmp.le.s32.totalorder 1, %s20
    %p312 = scmp.lt.s32.totalorder %s20, 3
    %p313 = pnand %p311, %p312
    %p314 = pneg %p313
    // Predicated region
    $region9: #{causal_conv_discriminator.1} parent=5 // pred_check
      _
    $region10: #{causal_conv_discriminator.1} parent=5 // pred_check_branch
      %316 = sbr.rel (%p313) target = $region12
    $region11: #{causal_conv_discriminator.1} parent=5 // pred_region
      %s317 = ssub.s32 %s20, 1
      // Predicated region
      $region13: #{causal_conv_discriminator.1} parent=11 // pred_check
        %p318 = pneg %p67
      $region14: #{causal_conv_discriminator.1} parent=11 // pred_check_branch
        %320 = sbr.rel (%p318) target = $region16
      $region15: #{causal_conv_discriminator.1} parent=11 // pred_region
        _
      $region16: #{causal_conv_discriminator.1} parent=11 // pred_fallthru
        _
      // Predicated region
      $region17: #{causal_conv_discriminator.1} parent=11 // pred_check
        %p321 = pneg %p88
      $region18: #{causal_conv_discriminator.1} parent=11 // pred_check_branch
        %323 = sbr.rel (%p321) target = $region20
      $region19: #{causal_conv_discriminator.1} parent=11 // pred_region
        _
      $region20: #{causal_conv_discriminator.1} parent=11 // pred_fallthru
        _
      // Predicated region
      $region21: #{causal_conv_discriminator.1} parent=11 // pred_check
        %p324 = pneg %p109
      $region22: #{causal_conv_discriminator.1} parent=11 // pred_check_branch
        %326 = sbr.rel (%p324) target = $region24
      $region23: #{causal_conv_discriminator.1} parent=11 // pred_region
        _
      $region24: #{causal_conv_discriminator.1} parent=11 // pred_fallthru
        _
      // Predicated region
      $region25: #{causal_conv_discriminator.1} parent=11 // pred_check
        %p327 = pneg %p130
      $region26: #{causal_conv_discriminator.1} parent=11 // pred_check_branch
        %329 = sbr.rel (%p327) target = $region28
      $region27: #{causal_conv_discriminator.1} parent=11 // pred_region
        _
      $region28: #{causal_conv_discriminator.1} parent=11 // pred_fallthru
        _
      // Predicated region
      $region29: #{causal_conv_discriminator.1} parent=11 // pred_check
        %p330 = pneg %p151
      $region30: #{causal_conv_discriminator.1} parent=11 // pred_check_branch
        %332 = sbr.rel (%p330) target = $region32
      $region31: #{causal_conv_discriminator.1} parent=11 // pred_region
        _
      $region32: #{causal_conv_discriminator.1} parent=11 // pred_fallthru
        _
      // Predicated region
      $region33: #{causal_conv_discriminator.1} parent=11 // pred_check
        %p333 = pneg %p172
      $region34: #{causal_conv_discriminator.1} parent=11 // pred_check_branch
        %335 = sbr.rel (%p333) target = $region36
      $region35: #{causal_conv_discriminator.1} parent=11 // pred_region
        _
      $region36: #{causal_conv_discriminator.1} parent=11 // pred_fallthru
        _
      // Predicated region
      $region37: #{causal_conv_discriminator.1} parent=11 // pred_check
        %p336 = pneg %p193
      $region38: #{causal_conv_discriminator.1} parent=11 // pred_check_branch
        %338 = sbr.rel (%p336) target = $region40
      $region39: #{causal_conv_discriminator.1} parent=11 // pred_region
        _
      $region40: #{causal_conv_discriminator.1} parent=11 // pred_fallthru
        _
      // Predicated region
      $region41: #{causal_conv_discriminator.1} parent=11 // pred_check
        %p339 = pneg %p214
      $region42: #{causal_conv_discriminator.1} parent=11 // pred_check_branch
        %341 = sbr.rel (%p339) target = $region44
      $region43: #{causal_conv_discriminator.1} parent=11 // pred_region
        _
      $region44: #{causal_conv_discriminator.1} parent=11 // pred_fallthru
        _
      // Predicated region
      $region45: #{causal_conv_discriminator.1} parent=11 // pred_check
        %p342 = pneg %p235
      $region46: #{causal_conv_discriminator.1} parent=11 // pred_check_branch
        %344 = sbr.rel (%p342) target = $region48
      $region47: #{causal_conv_discriminator.1} parent=11 // pred_region
        _
      $region48: #{causal_conv_discriminator.1} parent=11 // pred_fallthru
        _
      // Predicated region
      $region49: #{causal_conv_discriminator.1} parent=11 // pred_check
        %p345 = pneg %p256
      $region50: #{causal_conv_discriminator.1} parent=11 // pred_check_branch
        %347 = sbr.rel (%p345) target = $region52
      $region51: #{causal_conv_discriminator.1} parent=11 // pred_region
        _
      $region52: #{causal_conv_discriminator.1} parent=11 // pred_fallthru
        _
      // Predicated region
      $region53: #{causal_conv_discriminator.1} parent=11 // pred_check
        %p348 = pneg %p277
      $region54: #{causal_conv_discriminator.1} parent=11 // pred_check_branch
        %350 = sbr.rel (%p348) target = $region56
      $region55: #{causal_conv_discriminator.1} parent=11 // pred_region
        _
      $region56: #{causal_conv_discriminator.1} parent=11 // pred_fallthru
        _
    $region12: #{causal_conv_discriminator.1} parent=5 // pred_fallthru
      _
    %p351 = scmp.lt.s32.totalorder %s20, 2
    // Predicated region
    $region57: #{causal_conv_discriminator.1} parent=5 // pred_check
      %p352 = pneg %p351
    $region58: #{causal_conv_discriminator.1} parent=5 // pred_check_branch
      %354 = sbr.rel (%p352) target = $region60
    $region59: #{causal_conv_discriminator.1} parent=5 // pred_region
      // Predicated region
      $region61: #{causal_conv_discriminator.1} parent=59 // pred_check
        %p355 = pneg %p40
      $region62: #{causal_conv_discriminator.1} parent=59 // pred_check_branch
        %357 = sbr.rel (%p355) target = $region64
      $region63: #{causal_conv_discriminator.1} parent=59 // pred_region
        %p358 = scmp.lt.s32.totalorder %s20, 1
        %s359 = scalar_select %p358, %s20, 1
        %s360 = smul.addr %s359, 2
        %s361 = smul.addr %s360, 4
        %s362 = scalar_lea.vmem %s0, %s361
      $region64: #{causal_conv_discriminator.1} parent=59 // pred_fallthru
        _
    $region60: #{causal_conv_discriminator.1} parent=5 // pred_fallthru
      _
    %p363 = scmp.le.s32.totalorder 1, %s20
    %p364 = scmp.lt.s32.totalorder %s20, 3
    %p365 = pnand %p363, %p364
    %p366 = pneg %p365
    // Predicated region
    $region65: #{causal_conv_discriminator.1} parent=5 // pred_check
      _
    $region66: #{causal_conv_discriminator.1} parent=5 // pred_check_branch
      %368 = sbr.rel (%p365) target = $region68
    $region67: #{causal_conv_discriminator.1} parent=5 // pred_region
      %s369 = ssub.s32 %s20, 1
      %p370 = scmp.lt.s32.totalorder %s25, 1
      %s371 = scalar_select %p370, %s25, 1
      %s372 = smul.addr %s371, 2
      %s373 = smul.addr %s372, 4
      %s374 = scalar_lea.vmem %s0, %s373
      %p375 = pneg %p46
      %p376 = pneg %p43
      %p377 = pneg %p67
      %p378 = pneg %p64
      %p379 = pneg %p88
      %p380 = pneg %p85
      %p381 = pneg %p109
      %p382 = pneg %p106
      %p383 = pneg %p130
      %p384 = pneg %p127
      %p385 = pneg %p151
      %p386 = pneg %p148
      %p387 = pneg %p172
      %p388 = pneg %p169
      %p389 = pneg %p193
      %p390 = pneg %p190
      %p391 = pneg %p214
      %p392 = pneg %p211
      %p393 = pneg %p235
      %p394 = pneg %p232
      %p395 = pneg %p256
      %p396 = pneg %p253
      %p397 = pneg %p277
      %p398 = pneg %p274
      %p399 = pneg %p303
      %p400 = pneg %p300
      %p401 = scmp.lt.s32.totalorder %s25, 1
      %s402 = scalar_select %p401, %s25, 1
      %s403 = scalar_lea.vmem %s12, %s402
      %p404 = scmp.lt.s32.totalorder %s25, 1
      %s405 = scalar_select %p404, %s25, 1
      %s406 = smul.addr %s405, 2
      %s407 = smul.addr %s406, 4
      %s408 = scalar_lea.vmem %s0, %s407
      %p409 = scmp.lt.s32.totalorder %s25, 1
      %s410 = scalar_select %p409, %s25, 1
      %s411 = scalar_lea.vmem %s12, %s410
      %v412 = vld [vmem:[%s1] sm:$0x1]
      %v413 = vld [vmem:[%s408] sm:$0xff]
      %v414 = vld [vmem:[%s2] sm:$0xff]
      %s415 = scalar_lea.vmem %s2, 8
      %v416 = vld [vmem:[%s415] sm:$0xff]
      %418 = vrot.lane.b32.xlu0 %v413, 127
      %v419 = vpop.permute.xlu0 %418
      %vm420 = vcmask 31744
      %v422 = vsel %vm420, %v416, 0
      %vm424 = vcmask 1043456
      %v425 = vsel %vm424, %v419, 0
      %427 = vmatprep.subr.mxu0 0.0
      %428 = vmatpush1.msra.mxu0 %v425
      %429 = vmatprep.subr.mxu0 0.0
      %430 = vmatpush1.msra.mxu0 0.0
      %431 = vmatprep.subr.mxu0 0.0
      %432 = vmatpush1.msra.mxu0 0.0
      %433 = vmatprep.subr.mxu0 0.0
      %434 = vmatpush1.msra.mxu0 0.0
      %435 = vmatprep.subr.mxu0 0.0
      %436 = vmatpush1.msra.mxu0 0.0
      %437 = vmatprep.subr.mxu0 0.0
      %438 = vmatpush1.msra.mxu0 0.0
      %439 = vmatprep.subr.mxu0 0.0
      %440 = vmatpush1.msra.mxu0 0.0
      %441 = vmatprep.subr.mxu0 0.0
      %442 = vmatpush1.msra.mxu0 0.0
      %443 = vmatprep.subr.mxu0 0.0
      %444 = vmatpush1.msra.mxu0 0.0
      %445 = vmatprep.subr.mxu0 0.0
      %446 = vmatpush1.msra.mxu0 0.0
      %447 = vmatprep.subr.mxu0 0.0
      %448 = vmatpush1.msra.mxu0 0.0
      %449 = vmatprep.subr.mxu0 0.0
      %450 = vmatpush1.msra.mxu0 0.0
      %451 = vmatprep.subr.mxu0 0.0
      %452 = vmatpush1.msra.mxu0 0.0
      %453 = vmatprep.subr.mxu0 0.0
      %454 = vmatpush1.msra.mxu0 0.0
      %455 = vmatprep.subr.mxu0 0.0
      %456 = vmatpush1.msra.mxu0 0.0
      %457 = vmatprep.subr.mxu0 0.0
      %458 = vmatpush1.msra.mxu0 0.0
      %459 = vmatprep.subr.mxu0 0.0
      %460 = vmatpush1.msra.mxu0 0.0
      %461 = vmatprep.subr.mxu0 0.0
      %462 = vmatpush1.msra.mxu0 0.0
      %463 = vmatprep.subr.mxu0 0.0
      %464 = vmatpush1.msra.mxu0 0.0
      %465 = vmatprep.subr.mxu0 0.0
      %466 = vmatpush1.msra.mxu0 0.0
      %467 = vmatprep.subr.mxu0 0.0
      %468 = vmatpush1.msra.mxu0 0.0
      %469 = vmatprep.subr.mxu0 0.0
      %470 = vmatpush1.msra.mxu0 0.0
      %471 = vmatprep.subr.mxu0 0.0
      %472 = vmatpush1.msra.mxu0 0.0
      %473 = vmatprep.subr.mxu0 0.0
      %474 = vmatpush1.msra.mxu0 0.0
      %475 = vmatprep.subr.mxu0 0.0
      %476 = vmatpush1.msra.mxu0 0.0
      %477 = vmatprep.subr.mxu0 0.0
      %478 = vmatpush1.msra.mxu0 0.0
      %479 = vmatprep.subr.mxu0 0.0
      %480 = vmatpush1.msra.mxu0 0.0
      %481 = vmatprep.subr.mxu0 0.0
      %482 = vmatpush1.msra.mxu0 0.0
      %483 = vmatprep.subr.mxu0 0.0
      %484 = vmatpush1.msra.mxu0 0.0
      %485 = vmatprep.subr.mxu0 0.0
      %486 = vmatpush1.msra.mxu0 0.0
      %487 = vmatprep.subr.mxu0 0.0
      %488 = vmatpush1.msra.mxu0 0.0
      %489 = vmatprep.subr.mxu0 0.0
      %490 = vmatpush1.msra.mxu0 0.0
      %491 = vmatprep.mubr.f32.mxu0 0.0
      %492 = vmatmul.mubr.f32.gmra.mrb[0].mxu0 %v422
      %v493 = vpop.f32.mrb[0].mxu0
      %v494 = vadd.f32 0.0, %v493
      %v495 = vpop.f32.mrb[0].mxu0
      %496 = vdwg.mxu0
      %v498 = vsel %vm420, %v414, 0
      %v500 = vsel %vm424, %v413, 0
      %502 = vmatprep.subr.mxu0 0.0
      %503 = vmatpush1.msra.mxu0 %v500
      %504 = vmatprep.subr.mxu0 0.0
      %505 = vmatpush1.msra.mxu0 0.0
      %506 = vmatprep.subr.mxu0 0.0
      %507 = vmatpush1.msra.mxu0 0.0
      %508 = vmatprep.subr.mxu0 0.0
      %509 = vmatpush1.msra.mxu0 0.0
      %510 = vmatprep.subr.mxu0 0.0
      %511 = vmatpush1.msra.mxu0 0.0
      %512 = vmatprep.subr.mxu0 0.0
      %513 = vmatpush1.msra.mxu0 0.0
      %514 = vmatprep.subr.mxu0 0.0
      %515 = vmatpush1.msra.mxu0 0.0
      %516 = vmatprep.subr.mxu0 0.0
      %517 = vmatpush1.msra.mxu0 0.0
      %518 = vmatprep.subr.mxu0 0.0
      %519 = vmatpush1.msra.mxu0 0.0
      %520 = vmatprep.subr.mxu0 0.0
      %521 = vmatpush1.msra.mxu0 0.0
      %522 = vmatprep.subr.mxu0 0.0
      %523 = vmatpush1.msra.mxu0 0.0
      %524 = vmatprep.subr.mxu0 0.0
      %525 = vmatpush1.msra.mxu0 0.0
      %526 = vmatprep.subr.mxu0 0.0
      %527 = vmatpush1.msra.mxu0 0.0
      %528 = vmatprep.subr.mxu0 0.0
      %529 = vmatpush1.msra.mxu0 0.0
      %530 = vmatprep.subr.mxu0 0.0
      %531 = vmatpush1.msra.mxu0 0.0
      %532 = vmatprep.subr.mxu0 0.0
      %533 = vmatpush1.msra.mxu0 0.0
      %534 = vmatprep.subr.mxu0 0.0
      %535 = vmatpush1.msra.mxu0 0.0
      %536 = vmatprep.subr.mxu0 0.0
      %537 = vmatpush1.msra.mxu0 0.0
      %538 = vmatprep.subr.mxu0 0.0
      %539 = vmatpush1.msra.mxu0 0.0
      %540 = vmatprep.subr.mxu0 0.0
      %541 = vmatpush1.msra.mxu0 0.0
      %542 = vmatprep.subr.mxu0 0.0
      %543 = vmatpush1.msra.mxu0 0.0
      %544 = vmatprep.subr.mxu0 0.0
      %545 = vmatpush1.msra.mxu0 0.0
      %546 = vmatprep.subr.mxu0 0.0
      %547 = vmatpush1.msra.mxu0 0.0
      %548 = vmatprep.subr.mxu0 0.0
      %549 = vmatpush1.msra.mxu0 0.0
      %550 = vmatprep.subr.mxu0 0.0
      %551 = vmatpush1.msra.mxu0 0.0
      %552 = vmatprep.subr.mxu0 0.0
      %553 = vmatpush1.msra.mxu0 0.0
      %554 = vmatprep.subr.mxu0 0.0
      %555 = vmatpush1.msra.mxu0 0.0
      %556 = vmatprep.subr.mxu0 0.0
      %557 = vmatpush1.msra.mxu0 0.0
      %558 = vmatprep.subr.mxu0 0.0
      %559 = vmatpush1.msra.mxu0 0.0
      %560 = vmatprep.subr.mxu0 0.0
      %561 = vmatpush1.msra.mxu0 0.0
      %562 = vmatprep.subr.mxu0 0.0
      %563 = vmatpush1.msra.mxu0 0.0
      %564 = vmatprep.subr.mxu0 0.0
      %565 = vmatpush1.msra.mxu0 0.0
      %566 = vmatprep.mubr.f32.mxu0 0.0
      %567 = vmatmul.mubr.f32.gmra.mrb[0].mxu0 %v498
      %v568 = vpop.f32.mrb[0].mxu0
      %v569 = vadd.f32 %v494, %v568
      %v570 = vpop.f32.mrb[0].mxu0
      %571 = vdwg.mxu0
      %s572 = scalar_lea.vmem %s2, 16
      %v573 = vld [vmem:[%s572] sm:$0xff]
      %574 = vrot.lane.b32.xlu0 %v413, 126
      %v575 = vpop.permute.xlu0 %574
      %v577 = vsel %vm420, %v573, 0
      %v579 = vsel %vm424, %v575, 0
      %581 = vmatprep.subr.mxu0 0.0
      %582 = vmatpush1.msra.mxu0 %v579
      %583 = vmatprep.subr.mxu0 0.0
      %584 = vmatpush1.msra.mxu0 0.0
      %585 = vmatprep.subr.mxu0 0.0
      %586 = vmatpush1.msra.mxu0 0.0
      %587 = vmatprep.subr.mxu0 0.0
      %588 = vmatpush1.msra.mxu0 0.0
      %589 = vmatprep.subr.mxu0 0.0
      %590 = vmatpush1.msra.mxu0 0.0
      %591 = vmatprep.subr.mxu0 0.0
      %592 = vmatpush1.msra.mxu0 0.0
      %593 = vmatprep.subr.mxu0 0.0
      %594 = vmatpush1.msra.mxu0 0.0
      %595 = vmatprep.subr.mxu0 0.0
      %596 = vmatpush1.msra.mxu0 0.0
      %597 = vmatprep.subr.mxu0 0.0
      %598 = vmatpush1.msra.mxu0 0.0
      %599 = vmatprep.subr.mxu0 0.0
      %600 = vmatpush1.msra.mxu0 0.0
      %601 = vmatprep.subr.mxu0 0.0
      %602 = vmatpush1.msra.mxu0 0.0
      %603 = vmatprep.subr.mxu0 0.0
      %604 = vmatpush1.msra.mxu0 0.0
      %605 = vmatprep.subr.mxu0 0.0
      %606 = vmatpush1.msra.mxu0 0.0
      %607 = vmatprep.subr.mxu0 0.0
      %608 = vmatpush1.msra.mxu0 0.0
      %609 = vmatprep.subr.mxu0 0.0
      %610 = vmatpush1.msra.mxu0 0.0
      %611 = vmatprep.subr.mxu0 0.0
      %612 = vmatpush1.msra.mxu0 0.0
      %613 = vmatprep.subr.mxu0 0.0
      %614 = vmatpush1.msra.mxu0 0.0
      %615 = vmatprep.subr.mxu0 0.0
      %616 = vmatpush1.msra.mxu0 0.0
      %617 = vmatprep.subr.mxu0 0.0
      %618 = vmatpush1.msra.mxu0 0.0
      %619 = vmatprep.subr.mxu0 0.0
      %620 = vmatpush1.msra.mxu0 0.0
      %621 = vmatprep.subr.mxu0 0.0
      %622 = vmatpush1.msra.mxu0 0.0
      %623 = vmatprep.subr.mxu0 0.0
      %624 = vmatpush1.msra.mxu0 0.0
      %625 = vmatprep.subr.mxu0 0.0
      %626 = vmatpush1.msra.mxu0 0.0
      %627 = vmatprep.subr.mxu0 0.0
      %628 = vmatpush1.msra.mxu0 0.0
      %629 = vmatprep.subr.mxu0 0.0
      %630 = vmatpush1.msra.mxu0 0.0
      %631 = vmatprep.subr.mxu0 0.0
      %632 = vmatpush1.msra.mxu0 0.0
      %633 = vmatprep.subr.mxu0 0.0
      %634 = vmatpush1.msra.mxu0 0.0
      %635 = vmatprep.subr.mxu0 0.0
      %636 = vmatpush1.msra.mxu0 0.0
      %637 = vmatprep.subr.mxu0 0.0
      %638 = vmatpush1.msra.mxu0 0.0
      %639 = vmatprep.subr.mxu0 0.0
      %640 = vmatpush1.msra.mxu0 0.0
      %641 = vmatprep.subr.mxu0 0.0
      %642 = vmatpush1.msra.mxu0 0.0
      %643 = vmatprep.subr.mxu0 0.0
      %644 = vmatpush1.msra.mxu0 0.0
      %645 = vmatprep.mubr.f32.mxu0 0.0
      %646 = vmatmul.mubr.f32.gmra.mrb[0].mxu0 %v577
      %v647 = vpop.f32.mrb[0].mxu0
      %v648 = vadd.f32 0.0, %v647
      %v649 = vpop.f32.mrb[0].mxu0
      %650 = vdwg.mxu0
      %v651 = vadd.f32 %v569, %v648
      %s652 = scalar_lea.vmem %s2, 24
      %v653 = vld [vmem:[%s652] sm:$0xff]
      %v654 = vcombine.high %v413, %v413
      %655 = vrot.lane.b32.xlu0 %v413, 116
      %v656 = vpop.permute.xlu0 %655
      %657 = vrot.lane.b32.xlu0 %v654, 116
      %v658 = vpop.permute.xlu0 %657
      %vm659 = vcmask 949248
      %v660 = vsel %vm659, %v656, %v658
      %v662 = vsel %vm420, %v653, 0
      %v664 = vsel %vm424, %v660, 0
      %666 = vmatprep.subr.mxu0 0.0
      %667 = vmatpush1.msra.mxu0 %v664
      %668 = vmatprep.subr.mxu0 0.0
      %669 = vmatpush1.msra.mxu0 0.0
      %670 = vmatprep.subr.mxu0 0.0
      %671 = vmatpush1.msra.mxu0 0.0
      %672 = vmatprep.subr.mxu0 0.0
      %673 = vmatpush1.msra.mxu0 0.0
      %674 = vmatprep.subr.mxu0 0.0
      %675 = vmatpush1.msra.mxu0 0.0
      %676 = vmatprep.subr.mxu0 0.0
      %677 = vmatpush1.msra.mxu0 0.0
      %678 = vmatprep.subr.mxu0 0.0
      %679 = vmatpush1.msra.mxu0 0.0
      %680 = vmatprep.subr.mxu0 0.0
      %681 = vmatpush1.msra.mxu0 0.0
      %682 = vmatprep.subr.mxu0 0.0
      %683 = vmatpush1.msra.mxu0 0.0
      %684 = vmatprep.subr.mxu0 0.0
      %685 = vmatpush1.msra.mxu0 0.0
      %686 = vmatprep.subr.mxu0 0.0
      %687 = vmatpush1.msra.mxu0 0.0
      %688 = vmatprep.subr.mxu0 0.0
      %689 = vmatpush1.msra.mxu0 0.0
      %690 = vmatprep.subr.mxu0 0.0
      %691 = vmatpush1.msra.mxu0 0.0
      %692 = vmatprep.subr.mxu0 0.0
      %693 = vmatpush1.msra.mxu0 0.0
      %694 = vmatprep.subr.mxu0 0.0
      %695 = vmatpush1.msra.mxu0 0.0
      %696 = vmatprep.subr.mxu0 0.0
      %697 = vmatpush1.msra.mxu0 0.0
      %698 = vmatprep.subr.mxu0 0.0
      %699 = vmatpush1.msra.mxu0 0.0
      %700 = vmatprep.subr.mxu0 0.0
      %701 = vmatpush1.msra.mxu0 0.0
      %702 = vmatprep.subr.mxu0 0.0
      %703 = vmatpush1.msra.mxu0 0.0
      %704 = vmatprep.subr.mxu0 0.0
      %705 = vmatpush1.msra.mxu0 0.0
      %706 = vmatprep.subr.mxu0 0.0
      %707 = vmatpush1.msra.mxu0 0.0
      %708 = vmatprep.subr.mxu0 0.0
      %709 = vmatpush1.msra.mxu0 0.0
      %710 = vmatprep.subr.mxu0 0.0
      %711 = vmatpush1.msra.mxu0 0.0
      %712 = vmatprep.subr.mxu0 0.0
      %713 = vmatpush1.msra.mxu0 0.0
      %714 = vmatprep.subr.mxu0 0.0
      %715 = vmatpush1.msra.mxu0 0.0
      %716 = vmatprep.subr.mxu0 0.0
      %717 = vmatpush1.msra.mxu0 0.0
      %718 = vmatprep.subr.mxu0 0.0
      %719 = vmatpush1.msra.mxu0 0.0
      %720 = vmatprep.subr.mxu0 0.0
      %721 = vmatpush1.msra.mxu0 0.0
      %722 = vmatprep.subr.mxu0 0.0
      %723 = vmatpush1.msra.mxu0 0.0
      %724 = vmatprep.subr.mxu0 0.0
      %725 = vmatpush1.msra.mxu0 0.0
      %726 = vmatprep.subr.mxu0 0.0
      %727 = vmatpush1.msra.mxu0 0.0
      %728 = vmatprep.subr.mxu0 0.0
      %729 = vmatpush1.msra.mxu0 0.0
      %730 = vmatprep.mubr.f32.mxu0 0.0
      %731 = vmatmul.mubr.f32.gmra.mrb[0].mxu0 %v662
      %v732 = vpop.f32.mrb[0].mxu0
      %v733 = vadd.f32 0.0, %v732
      %v734 = vpop.f32.mrb[0].mxu0
      %735 = vdwg.mxu0
      %v736 = vadd.f32 %v651, %v733
      %s737 = scalar_lea.vmem %s2, 32
      %v738 = vld [vmem:[%s737] sm:$0xff]
      %739 = vrot.lane.b32.xlu0 %v413, 115
      %v740 = vpop.permute.xlu0 %739
      %741 = vrot.lane.b32.xlu0 %v654, 115
      %v742 = vpop.permute.xlu0 %741
      %vm743 = vcmask 941056
      %v744 = vsel %vm743, %v740, %v742
      %v746 = vsel %vm420, %v738, 0
      %v748 = vsel %vm424, %v744, 0
      %750 = vmatprep.subr.mxu0 0.0
      %751 = vmatpush1.msra.mxu0 %v748
      %752 = vmatprep.subr.mxu0 0.0
      %753 = vmatpush1.msra.mxu0 0.0
      %754 = vmatprep.subr.mxu0 0.0
      %755 = vmatpush1.msra.mxu0 0.0
      %756 = vmatprep.subr.mxu0 0.0
      %757 = vmatpush1.msra.mxu0 0.0
      %758 = vmatprep.subr.mxu0 0.0
      %759 = vmatpush1.msra.mxu0 0.0
      %760 = vmatprep.subr.mxu0 0.0
      %761 = vmatpush1.msra.mxu0 0.0
      %762 = vmatprep.subr.mxu0 0.0
      %763 = vmatpush1.msra.mxu0 0.0
      %764 = vmatprep.subr.mxu0 0.0
      %765 = vmatpush1.msra.mxu0 0.0
      %766 = vmatprep.subr.mxu0 0.0
      %767 = vmatpush1.msra.mxu0 0.0
      %768 = vmatprep.subr.mxu0 0.0
      %769 = vmatpush1.msra.mxu0 0.0
      %770 = vmatprep.subr.mxu0 0.0
      %771 = vmatpush1.msra.mxu0 0.0
      %772 = vmatprep.subr.mxu0 0.0
      %773 = vmatpush1.msra.mxu0 0.0
      %774 = vmatprep.subr.mxu0 0.0
      %775 = vmatpush1.msra.mxu0 0.0
      %776 = vmatprep.subr.mxu0 0.0
      %777 = vmatpush1.msra.mxu0 0.0
      %778 = vmatprep.subr.mxu0 0.0
      %779 = vmatpush1.msra.mxu0 0.0
      %780 = vmatprep.subr.mxu0 0.0
      %781 = vmatpush1.msra.mxu0 0.0
      %782 = vmatprep.subr.mxu0 0.0
      %783 = vmatpush1.msra.mxu0 0.0
      %784 = vmatprep.subr.mxu0 0.0
      %785 = vmatpush1.msra.mxu0 0.0
      %786 = vmatprep.subr.mxu0 0.0
      %787 = vmatpush1.msra.mxu0 0.0
      %788 = vmatprep.subr.mxu0 0.0
      %789 = vmatpush1.msra.mxu0 0.0
      %790 = vmatprep.subr.mxu0 0.0
      %791 = vmatpush1.msra.mxu0 0.0
      %792 = vmatprep.subr.mxu0 0.0
      %793 = vmatpush1.msra.mxu0 0.0
      %794 = vmatprep.subr.mxu0 0.0
      %795 = vmatpush1.msra.mxu0 0.0
      %796 = vmatprep.subr.mxu0 0.0
      %797 = vmatpush1.msra.mxu0 0.0
      %798 = vmatprep.subr.mxu0 0.0
      %799 = vmatpush1.msra.mxu0 0.0
      %800 = vmatprep.subr.mxu0 0.0
      %801 = vmatpush1.msra.mxu0 0.0
      %802 = vmatprep.subr.mxu0 0.0
      %803 = vmatpush1.msra.mxu0 0.0
      %804 = vmatprep.subr.mxu0 0.0
      %805 = vmatpush1.msra.mxu0 0.0
      %806 = vmatprep.subr.mxu0 0.0
      %807 = vmatpush1.msra.mxu0 0.0
      %808 = vmatprep.subr.mxu0 0.0
      %809 = vmatpush1.msra.mxu0 0.0
      %810 = vmatprep.subr.mxu0 0.0
      %811 = vmatpush1.msra.mxu0 0.0
      %812 = vmatprep.subr.mxu0 0.0
      %813 = vmatpush1.msra.mxu0 0.0
      %814 = vmatprep.mubr.f32.mxu0 0.0
      %815 = vmatmul.mubr.f32.gmra.mrb[0].mxu0 %v746
      %v816 = vpop.f32.mrb[0].mxu0
      %v817 = vadd.f32 0.0, %v816
      %v818 = vpop.f32.mrb[0].mxu0
      %819 = vdwg.mxu0
      %v820 = vadd.f32 %v736, %v817
      %s821 = scalar_lea.vmem %s2, 40
      %v822 = vld [vmem:[%s821] sm:$0xff]
      %823 = vrot.lane.b32.xlu0 %v413, 114
      %v824 = vpop.permute.xlu0 %823
      %825 = vrot.lane.b32.xlu0 %v654, 114
      %v826 = vpop.permute.xlu0 %825
      %vm827 = vcmask 932864
      %v828 = vsel %vm827, %v824, %v826
      %v830 = vsel %vm420, %v822, 0
      %v832 = vsel %vm424, %v828, 0
      %834 = vmatprep.subr.mxu0 0.0
      %835 = vmatpush1.msra.mxu0 %v832
      %836 = vmatprep.subr.mxu0 0.0
      %837 = vmatpush1.msra.mxu0 0.0
      %838 = vmatprep.subr.mxu0 0.0
      %839 = vmatpush1.msra.mxu0 0.0
      %840 = vmatprep.subr.mxu0 0.0
      %841 = vmatpush1.msra.mxu0 0.0
      %842 = vmatprep.subr.mxu0 0.0
      %843 = vmatpush1.msra.mxu0 0.0
      %844 = vmatprep.subr.mxu0 0.0
      %845 = vmatpush1.msra.mxu0 0.0
      %846 = vmatprep.subr.mxu0 0.0
      %847 = vmatpush1.msra.mxu0 0.0
      %848 = vmatprep.subr.mxu0 0.0
      %849 = vmatpush1.msra.mxu0 0.0
      %850 = vmatprep.subr.mxu0 0.0
      %851 = vmatpush1.msra.mxu0 0.0
      %852 = vmatprep.subr.mxu0 0.0
      %853 = vmatpush1.msra.mxu0 0.0
      %854 = vmatprep.subr.mxu0 0.0
      %855 = vmatpush1.msra.mxu0 0.0
      %856 = vmatprep.subr.mxu0 0.0
      %857 = vmatpush1.msra.mxu0 0.0
      %858 = vmatprep.subr.mxu0 0.0
      %859 = vmatpush1.msra.mxu0 0.0
      %860 = vmatprep.subr.mxu0 0.0
      %861 = vmatpush1.msra.mxu0 0.0
      %862 = vmatprep.subr.mxu0 0.0
      %863 = vmatpush1.msra.mxu0 0.0
      %864 = vmatprep.subr.mxu0 0.0
      %865 = vmatpush1.msra.mxu0 0.0
      %866 = vmatprep.subr.mxu0 0.0
      %867 = vmatpush1.msra.mxu0 0.0
      %868 = vmatprep.subr.mxu0 0.0
      %869 = vmatpush1.msra.mxu0 0.0
      %870 = vmatprep.subr.mxu0 0.0
      %871 = vmatpush1.msra.mxu0 0.0
      %872 = vmatprep.subr.mxu0 0.0
      %873 = vmatpush1.msra.mxu0 0.0
      %874 = vmatprep.subr.mxu0 0.0
      %875 = vmatpush1.msra.mxu0 0.0
      %876 = vmatprep.subr.mxu0 0.0
      %877 = vmatpush1.msra.mxu0 0.0
      %878 = vmatprep.subr.mxu0 0.0
      %879 = vmatpush1.msra.mxu0 0.0
      %880 = vmatprep.subr.mxu0 0.0
      %881 = vmatpush1.msra.mxu0 0.0
      %882 = vmatprep.subr.mxu0 0.0
      %883 = vmatpush1.msra.mxu0 0.0
      %884 = vmatprep.subr.mxu0 0.0
      %885 = vmatpush1.msra.mxu0 0.0
      %886 = vmatprep.subr.mxu0 0.0
      %887 = vmatpush1.msra.mxu0 0.0
      %888 = vmatprep.subr.mxu0 0.0
      %889 = vmatpush1.msra.mxu0 0.0
      %890 = vmatprep.subr.mxu0 0.0
      %891 = vmatpush1.msra.mxu0 0.0
      %892 = vmatprep.subr.mxu0 0.0
      %893 = vmatpush1.msra.mxu0 0.0
      %894 = vmatprep.subr.mxu0 0.0
      %895 = vmatpush1.msra.mxu0 0.0
      %896 = vmatprep.subr.mxu0 0.0
      %897 = vmatpush1.msra.mxu0 0.0
      %898 = vmatprep.mubr.f32.mxu0 0.0
      %899 = vmatmul.mubr.f32.gmra.mrb[0].mxu0 %v830
      %v900 = vpop.f32.mrb[0].mxu0
      %v901 = vadd.f32 0.0, %v900
      %v902 = vpop.f32.mrb[0].mxu0
      %903 = vdwg.mxu0
      %v904 = vadd.f32 %v820, %v901
      %s905 = scalar_lea.vmem %s2, 48
      %v906 = vld [vmem:[%s905] sm:$0xff]
      %907 = vrot.lane.b32.xlu0 %v413, 104
      %v908 = vpop.permute.xlu0 %907
      %909 = vrot.lane.b32.xlu0 %v654, 104
      %v910 = vpop.permute.xlu0 %909
      %vm911 = vcmask 850944
      %v912 = vsel %vm911, %v908, %v910
      %v914 = vsel %vm420, %v906, 0
      %v916 = vsel %vm424, %v912, 0
      %918 = vmatprep.subr.mxu0 0.0
      %919 = vmatpush1.msra.mxu0 %v916
      %920 = vmatprep.subr.mxu0 0.0
      %921 = vmatpush1.msra.mxu0 0.0
      %922 = vmatprep.subr.mxu0 0.0
      %923 = vmatpush1.msra.mxu0 0.0
      %924 = vmatprep.subr.mxu0 0.0
      %925 = vmatpush1.msra.mxu0 0.0
      %926 = vmatprep.subr.mxu0 0.0
      %927 = vmatpush1.msra.mxu0 0.0
      %928 = vmatprep.subr.mxu0 0.0
      %929 = vmatpush1.msra.mxu0 0.0
      %930 = vmatprep.subr.mxu0 0.0
      %931 = vmatpush1.msra.mxu0 0.0
      %932 = vmatprep.subr.mxu0 0.0
      %933 = vmatpush1.msra.mxu0 0.0
      %934 = vmatprep.subr.mxu0 0.0
      %935 = vmatpush1.msra.mxu0 0.0
      %936 = vmatprep.subr.mxu0 0.0
      %937 = vmatpush1.msra.mxu0 0.0
      %938 = vmatprep.subr.mxu0 0.0
      %939 = vmatpush1.msra.mxu0 0.0
      %940 = vmatprep.subr.mxu0 0.0
      %941 = vmatpush1.msra.mxu0 0.0
      %942 = vmatprep.subr.mxu0 0.0
      %943 = vmatpush1.msra.mxu0 0.0
      %944 = vmatprep.subr.mxu0 0.0
      %945 = vmatpush1.msra.mxu0 0.0
      %946 = vmatprep.subr.mxu0 0.0
      %947 = vmatpush1.msra.mxu0 0.0
      %948 = vmatprep.subr.mxu0 0.0
      %949 = vmatpush1.msra.mxu0 0.0
      %950 = vmatprep.subr.mxu0 0.0
      %951 = vmatpush1.msra.mxu0 0.0
      %952 = vmatprep.subr.mxu0 0.0
      %953 = vmatpush1.msra.mxu0 0.0
      %954 = vmatprep.subr.mxu0 0.0
      %955 = vmatpush1.msra.mxu0 0.0
      %956 = vmatprep.subr.mxu0 0.0
      %957 = vmatpush1.msra.mxu0 0.0
      %958 = vmatprep.subr.mxu0 0.0
      %959 = vmatpush1.msra.mxu0 0.0
      %960 = vmatprep.subr.mxu0 0.0
      %961 = vmatpush1.msra.mxu0 0.0
      %962 = vmatprep.subr.mxu0 0.0
      %963 = vmatpush1.msra.mxu0 0.0
      %964 = vmatprep.subr.mxu0 0.0
      %965 = vmatpush1.msra.mxu0 0.0
      %966 = vmatprep.subr.mxu0 0.0
      %967 = vmatpush1.msra.mxu0 0.0
      %968 = vmatprep.subr.mxu0 0.0
      %969 = vmatpush1.msra.mxu0 0.0
      %970 = vmatprep.subr.mxu0 0.0
      %971 = vmatpush1.msra.mxu0 0.0
      %972 = vmatprep.subr.mxu0 0.0
      %973 = vmatpush1.msra.mxu0 0.0
      %974 = vmatprep.subr.mxu0 0.0
      %975 = vmatpush1.msra.mxu0 0.0
      %976 = vmatprep.subr.mxu0 0.0
      %977 = vmatpush1.msra.mxu0 0.0
      %978 = vmatprep.subr.mxu0 0.0
      %979 = vmatpush1.msra.mxu0 0.0
      %980 = vmatprep.subr.mxu0 0.0
      %981 = vmatpush1.msra.mxu0 0.0
      %982 = vmatprep.mubr.f32.mxu0 0.0
      %983 = vmatmul.mubr.f32.gmra.mrb[0].mxu0 %v914
      %v984 = vpop.f32.mrb[0].mxu0
      %v985 = vadd.f32 0.0, %v984
      %v986 = vpop.f32.mrb[0].mxu0
      %987 = vdwg.mxu0
      %v988 = vadd.f32 %v904, %v985
      %s989 = scalar_lea.vmem %s2, 56
      %v990 = vld [vmem:[%s989] sm:$0xff]
      %991 = vrot.lane.b32.xlu0 %v413, 103
      %v992 = vpop.permute.xlu0 %991
      %993 = vrot.lane.b32.xlu0 %v654, 103
      %v994 = vpop.permute.xlu0 %993
      %vm995 = vcmask 842752
      %v996 = vsel %vm995, %v992, %v994
      %v998 = vsel %vm420, %v990, 0
      %v1000 = vsel %vm424, %v996, 0
      %1002 = vmatprep.subr.mxu0 0.0
      %1003 = vmatpush1.msra.mxu0 %v1000
      %1004 = vmatprep.subr.mxu0 0.0
      %1005 = vmatpush1.msra.mxu0 0.0
      %1006 = vmatprep.subr.mxu0 0.0
      %1007 = vmatpush1.msra.mxu0 0.0
      %1008 = vmatprep.subr.mxu0 0.0
      %1009 = vmatpush1.msra.mxu0 0.0
      %1010 = vmatprep.subr.mxu0 0.0
      %1011 = vmatpush1.msra.mxu0 0.0
      %1012 = vmatprep.subr.mxu0 0.0
      %1013 = vmatpush1.msra.mxu0 0.0
      %1014 = vmatprep.subr.mxu0 0.0
      %1015 = vmatpush1.msra.mxu0 0.0
      %1016 = vmatprep.subr.mxu0 0.0
      %1017 = vmatpush1.msra.mxu0 0.0
      %1018 = vmatprep.subr.mxu0 0.0
      %1019 = vmatpush1.msra.mxu0 0.0
      %1020 = vmatprep.subr.mxu0 0.0
      %1021 = vmatpush1.msra.mxu0 0.0
      %1022 = vmatprep.subr.mxu0 0.0
      %1023 = vmatpush1.msra.mxu0 0.0
      %1024 = vmatprep.subr.mxu0 0.0
      %1025 = vmatpush1.msra.mxu0 0.0
      %1026 = vmatprep.subr.mxu0 0.0
      %1027 = vmatpush1.msra.mxu0 0.0
      %1028 = vmatprep.subr.mxu0 0.0
      %1029 = vmatpush1.msra.mxu0 0.0
      %1030 = vmatprep.subr.mxu0 0.0
      %1031 = vmatpush1.msra.mxu0 0.0
      %1032 = vmatprep.subr.mxu0 0.0
      %1033 = vmatpush1.msra.mxu0 0.0
      %1034 = vmatprep.subr.mxu0 0.0
      %1035 = vmatpush1.msra.mxu0 0.0
      %1036 = vmatprep.subr.mxu0 0.0
      %1037 = vmatpush1.msra.mxu0 0.0
      %1038 = vmatprep.subr.mxu0 0.0
      %1039 = vmatpush1.msra.mxu0 0.0
      %1040 = vmatprep.subr.mxu0 0.0
      %1041 = vmatpush1.msra.mxu0 0.0
      %1042 = vmatprep.subr.mxu0 0.0
      %1043 = vmatpush1.msra.mxu0 0.0
      %1044 = vmatprep.subr.mxu0 0.0
      %1045 = vmatpush1.msra.mxu0 0.0
      %1046 = vmatprep.subr.mxu0 0.0
      %1047 = vmatpush1.msra.mxu0 0.0
      %1048 = vmatprep.subr.mxu0 0.0
      %1049 = vmatpush1.msra.mxu0 0.0
      %1050 = vmatprep.subr.mxu0 0.0
      %1051 = vmatpush1.msra.mxu0 0.0
      %1052 = vmatprep.subr.mxu0 0.0
      %1053 = vmatpush1.msra.mxu0 0.0
      %1054 = vmatprep.subr.mxu0 0.0
      %1055 = vmatpush1.msra.mxu0 0.0
      %1056 = vmatprep.subr.mxu0 0.0
      %1057 = vmatpush1.msra.mxu0 0.0
      %1058 = vmatprep.subr.mxu0 0.0
      %1059 = vmatpush1.msra.mxu0 0.0
      %1060 = vmatprep.subr.mxu0 0.0
      %1061 = vmatpush1.msra.mxu0 0.0
      %1062 = vmatprep.subr.mxu0 0.0
      %1063 = vmatpush1.msra.mxu0 0.0
      %1064 = vmatprep.subr.mxu0 0.0
      %1065 = vmatpush1.msra.mxu0 0.0
      %1066 = vmatprep.mubr.f32.mxu0 0.0
      %1067 = vmatmul.mubr.f32.gmra.mrb[0].mxu0 %v998
      %v1068 = vpop.f32.mrb[0].mxu0
      %v1069 = vadd.f32 0.0, %v1068
      %v1070 = vpop.f32.mrb[0].mxu0
      %1071 = vdwg.mxu0
      %v1072 = vadd.f32 %v988, %v1069
      %s1073 = scalar_lea.vmem %s2, 64
      %v1074 = vld [vmem:[%s1073] sm:$0xff]
      %1075 = vrot.lane.b32.xlu0 %v413, 102
      %v1076 = vpop.permute.xlu0 %1075
      %1077 = vrot.lane.b32.xlu0 %v654, 102
      %v1078 = vpop.permute.xlu0 %1077
      %vm1079 = vcmask 834560
      %v1080 = vsel %vm1079, %v1076, %v1078
      %v1082 = vsel %vm420, %v1074, 0
      %v1084 = vsel %vm424, %v1080, 0
      %1086 = vmatprep.subr.mxu0 0.0
      %1087 = vmatpush1.msra.mxu0 %v1084
      %1088 = vmatprep.subr.mxu0 0.0
      %1089 = vmatpush1.msra.mxu0 0.0
      %1090 = vmatprep.subr.mxu0 0.0
      %1091 = vmatpush1.msra.mxu0 0.0
      %1092 = vmatprep.subr.mxu0 0.0
      %1093 = vmatpush1.msra.mxu0 0.0
      %1094 = vmatprep.subr.mxu0 0.0
      %1095 = vmatpush1.msra.mxu0 0.0
      %1096 = vmatprep.subr.mxu0 0.0
      %1097 = vmatpush1.msra.mxu0 0.0
      %1098 = vmatprep.subr.mxu0 0.0
      %1099 = vmatpush1.msra.mxu0 0.0
      %1100 = vmatprep.subr.mxu0 0.0
      %1101 = vmatpush1.msra.mxu0 0.0
      %1102 = vmatprep.subr.mxu0 0.0
      %1103 = vmatpush1.msra.mxu0 0.0
      %1104 = vmatprep.subr.mxu0 0.0
      %1105 = vmatpush1.msra.mxu0 0.0
      %1106 = vmatprep.subr.mxu0 0.0
      %1107 = vmatpush1.msra.mxu0 0.0
      %1108 = vmatprep.subr.mxu0 0.0
      %1109 = vmatpush1.msra.mxu0 0.0
      %1110 = vmatprep.subr.mxu0 0.0
      %1111 = vmatpush1.msra.mxu0 0.0
      %1112 = vmatprep.subr.mxu0 0.0
      %1113 = vmatpush1.msra.mxu0 0.0
      %1114 = vmatprep.subr.mxu0 0.0
      %1115 = vmatpush1.msra.mxu0 0.0
      %1116 = vmatprep.subr.mxu0 0.0
      %1117 = vmatpush1.msra.mxu0 0.0
      %1118 = vmatprep.subr.mxu0 0.0
      %1119 = vmatpush1.msra.mxu0 0.0
      %1120 = vmatprep.subr.mxu0 0.0
      %1121 = vmatpush1.msra.mxu0 0.0
      %1122 = vmatprep.subr.mxu0 0.0
      %1123 = vmatpush1.msra.mxu0 0.0
      %1124 = vmatprep.subr.mxu0 0.0
      %1125 = vmatpush1.msra.mxu0 0.0
      %1126 = vmatprep.subr.mxu0 0.0
      %1127 = vmatpush1.msra.mxu0 0.0
      %1128 = vmatprep.subr.mxu0 0.0
      %1129 = vmatpush1.msra.mxu0 0.0
      %1130 = vmatprep.subr.mxu0 0.0
      %1131 = vmatpush1.msra.mxu0 0.0
      %1132 = vmatprep.subr.mxu0 0.0
      %1133 = vmatpush1.msra.mxu0 0.0
      %1134 = vmatprep.subr.mxu0 0.0
      %1135 = vmatpush1.msra.mxu0 0.0
      %1136 = vmatprep.subr.mxu0 0.0
      %1137 = vmatpush1.msra.mxu0 0.0
      %1138 = vmatprep.subr.mxu0 0.0
      %1139 = vmatpush1.msra.mxu0 0.0
      %1140 = vmatprep.subr.mxu0 0.0
      %1141 = vmatpush1.msra.mxu0 0.0
      %1142 = vmatprep.subr.mxu0 0.0
      %1143 = vmatpush1.msra.mxu0 0.0
      %1144 = vmatprep.subr.mxu0 0.0
      %1145 = vmatpush1.msra.mxu0 0.0
      %1146 = vmatprep.subr.mxu0 0.0
      %1147 = vmatpush1.msra.mxu0 0.0
      %1148 = vmatprep.subr.mxu0 0.0
      %1149 = vmatpush1.msra.mxu0 0.0
      %1150 = vmatprep.mubr.f32.mxu0 0.0
      %1151 = vmatmul.mubr.f32.gmra.mrb[0].mxu0 %v1082
      %v1152 = vpop.f32.mrb[0].mxu0
      %v1153 = vadd.f32 0.0, %v1152
      %v1154 = vpop.f32.mrb[0].mxu0
      %1155 = vdwg.mxu0
      %v1156 = vadd.f32 %v1072, %v1153
      %v1157 = vld [vmem:[%s3] sm:$0xff]
      %1159 = vset.pattern.permute.xlu0 0
      %1160 = vperm.xlu0 %1159, %v1157
      %v1161 = vpop.permute.xlu0 %1160
      %v1163 = vadd.f32 %v1156, %v1161
      %vm1164 = vcmp.gt.f32.partialorder %v1163, 0.0
      %v1165 = vmul.f32 %v1163, 1.442695
      %v1166 = vpow.pop %v1165
      %v1167 = vsub.f32 %v1166, 1.0
      %v1168 = vmul.f32 %v1167, 1.6732632
      %v1169 = vsel %vm1164, %v1163, %v1168
      %v1170 = vmul.f32 %v1169, 1.050701
      %v1172 = vlaneseq
      %v1173 = vshrl.u32 %v1172, 7
      %v1174 = vsub.s32 0, %v1173
      %v1175 = vrot.slane %v412, %v1174
      %v1177 = vmul.f32 %v1170, %v1175
      %1179 = vrot.lane.b32.xlu0 %v1177, 13
      %v1180 = vpop.permute.xlu0 %1179
      %vm1182 = vcmask 105472
      %v1183 = vsel %vm1182, 0.0, %v1180
      %vm1184 = vcmask 23552
      %v1185 = vsel %vm1184, %v1180, 0.0
      %v1186 = vld [vmem:[%s4] sm:$0xff]
      %v1187 = vld [vmem:[%s4 + $0x8] sm:$0xff]
      %s1188 = scalar_lea.vmem %s4, 16
      %v1189 = vld [vmem:[%s1188] sm:$0xff]
      %v1190 = vld [vmem:[%s1188 + $0x8] sm:$0xff]
      %1192 = vrot.lane.b32.xlu0 %v1183, 127
      %v1193 = vpop.permute.xlu0 %1192
      %vm1195 = vcmask 64512
      %v1197 = vsel %vm1195, %v1189, 0
      %v1200 = vsel %vm1195, %v1190, 0
      %1202 = vmatprep.subr.mxu0 0.0
      %1203 = vmatpush1.msra.mxu0 %v1193
      %1204 = vmatprep.subr.mxu0 0.0
      %1205 = vmatpush1.msra.mxu0 0.0
      %1206 = vmatprep.subr.mxu0 0.0
      %1207 = vmatpush1.msra.mxu0 0.0
      %1208 = vmatprep.subr.mxu0 0.0
      %1209 = vmatpush1.msra.mxu0 0.0
      %1210 = vmatprep.subr.mxu0 0.0
      %1211 = vmatpush1.msra.mxu0 0.0
      %1212 = vmatprep.subr.mxu0 0.0
      %1213 = vmatpush1.msra.mxu0 0.0
      %1214 = vmatprep.subr.mxu0 0.0
      %1215 = vmatpush1.msra.mxu0 0.0
      %1216 = vmatprep.subr.mxu0 0.0
      %1217 = vmatpush1.msra.mxu0 0.0
      %1218 = vmatprep.subr.mxu0 0.0
      %1219 = vmatpush1.msra.mxu0 0.0
      %1220 = vmatprep.subr.mxu0 0.0
      %1221 = vmatpush1.msra.mxu0 0.0
      %1222 = vmatprep.subr.mxu0 0.0
      %1223 = vmatpush1.msra.mxu0 0.0
      %1224 = vmatprep.subr.mxu0 0.0
      %1225 = vmatpush1.msra.mxu0 0.0
      %1226 = vmatprep.subr.mxu0 0.0
      %1227 = vmatpush1.msra.mxu0 0.0
      %1228 = vmatprep.subr.mxu0 0.0
      %1229 = vmatpush1.msra.mxu0 0.0
      %1230 = vmatprep.subr.mxu0 0.0
      %1231 = vmatpush1.msra.mxu0 0.0
      %1232 = vmatprep.subr.mxu0 0.0
      %1233 = vmatpush1.msra.mxu0 0.0
      %1234 = vmatprep.subr.mxu0 0.0
      %1235 = vmatpush1.msra.mxu0 0.0
      %1236 = vmatprep.subr.mxu0 0.0
      %1237 = vmatpush1.msra.mxu0 0.0
      %1238 = vmatprep.subr.mxu0 0.0
      %1239 = vmatpush1.msra.mxu0 0.0
      %1240 = vmatprep.subr.mxu0 0.0
      %1241 = vmatpush1.msra.mxu0 0.0
      %1242 = vmatprep.subr.mxu0 0.0
      %1243 = vmatpush1.msra.mxu0 0.0
      %1244 = vmatprep.subr.mxu0 0.0
      %1245 = vmatpush1.msra.mxu0 0.0
      %1246 = vmatprep.subr.mxu0 0.0
      %1247 = vmatpush1.msra.mxu0 0.0
      %1248 = vmatprep.subr.mxu0 0.0
      %1249 = vmatpush1.msra.mxu0 0.0
      %1250 = vmatprep.subr.mxu0 0.0
      %1251 = vmatpush1.msra.mxu0 0.0
      %1252 = vmatprep.subr.mxu0 0.0
      %1253 = vmatpush1.msra.mxu0 0.0
      %1254 = vmatprep.subr.mxu0 0.0
      %1255 = vmatpush1.msra.mxu0 0.0
      %1256 = vmatprep.subr.mxu0 0.0
      %1257 = vmatpush1.msra.mxu0 0.0
      %1258 = vmatprep.subr.mxu0 0.0
      %1259 = vmatpush1.msra.mxu0 0.0
      %1260 = vmatprep.subr.mxu0 0.0
      %1261 = vmatpush1.msra.mxu0 0.0
      %1262 = vmatprep.subr.mxu0 0.0
      %1263 = vmatpush1.msra.mxu0 0.0
      %1264 = vmatprep.subr.mxu0 0.0
      %1265 = vmatpush1.msra.mxu0 0.0
      %1266 = vmatprep.mubr.f32.mxu0 0.0
      %1267 = vmatmul.mubr.f32.gmra.mrb[0].mxu0 %v1197
      %v1268 = vpop.f32.mrb[0].mxu0
      %v1269 = vadd.f32 0.0, %v1268
      %v1270 = vpop.f32.mrb[0].mxu0
      %1271 = vmatprep.mubr.f32.mxu0 0.0
      %1272 = vmatmul.mubr.f32.gmra.mrb[0].mxu0 %v1200
      %v1273 = vpop.f32.mrb[0].mxu0
      %v1274 = vadd.f32 0.0, %v1273
      %v1275 = vpop.f32.mrb[0].mxu0
      %1276 = vdwg.mxu0
      %v1278 = vsel %vm1195, %v1186, 0
      %v1281 = vsel %vm1195, %v1187, 0
      %1283 = vmatprep.subr.mxu0 0.0
      %1284 = vmatpush1.msra.mxu0 %v1183
      %1285 = vmatprep.subr.mxu0 0.0
      %1286 = vmatpush1.msra.mxu0 0.0
      %1287 = vmatprep.subr.mxu0 0.0
      %1288 = vmatpush1.msra.mxu0 0.0
      %1289 = vmatprep.subr.mxu0 0.0
      %1290 = vmatpush1.msra.mxu0 0.0
      %1291 = vmatprep.subr.mxu0 0.0
      %1292 = vmatpush1.msra.mxu0 0.0
      %1293 = vmatprep.subr.mxu0 0.0
      %1294 = vmatpush1.msra.mxu0 0.0
      %1295 = vmatprep.subr.mxu0 0.0
      %1296 = vmatpush1.msra.mxu0 0.0
      %1297 = vmatprep.subr.mxu0 0.0
      %1298 = vmatpush1.msra.mxu0 0.0
      %1299 = vmatprep.subr.mxu0 0.0
      %1300 = vmatpush1.msra.mxu0 0.0
      %1301 = vmatprep.subr.mxu0 0.0
      %1302 = vmatpush1.msra.mxu0 0.0
      %1303 = vmatprep.subr.mxu0 0.0
      %1304 = vmatpush1.msra.mxu0 0.0
      %1305 = vmatprep.subr.mxu0 0.0
      %1306 = vmatpush1.msra.mxu0 0.0
      %1307 = vmatprep.subr.mxu0 0.0
      %1308 = vmatpush1.msra.mxu0 0.0
      %1309 = vmatprep.subr.mxu0 0.0
      %1310 = vmatpush1.msra.mxu0 0.0
      %1311 = vmatprep.subr.mxu0 0.0
      %1312 = vmatpush1.msra.mxu0 0.0
      %1313 = vmatprep.subr.mxu0 0.0
      %1314 = vmatpush1.msra.mxu0 0.0
      %1315 = vmatprep.subr.mxu0 0.0
      %1316 = vmatpush1.msra.mxu0 0.0
      %1317 = vmatprep.subr.mxu0 0.0
      %1318 = vmatpush1.msra.mxu0 0.0
      %1319 = vmatprep.subr.mxu0 0.0
      %1320 = vmatpush1.msra.mxu0 0.0
      %1321 = vmatprep.subr.mxu0 0.0
      %1322 = vmatpush1.msra.mxu0 0.0
      %1323 = vmatprep.subr.mxu0 0.0
      %1324 = vmatpush1.msra.mxu0 0.0
      %1325 = vmatprep.subr.mxu0 0.0
      %1326 = vmatpush1.msra.mxu0 0.0
      %1327 = vmatprep.subr.mxu0 0.0
      %1328 = vmatpush1.msra.mxu0 0.0
      %1329 = vmatprep.subr.mxu0 0.0
      %1330 = vmatpush1.msra.mxu0 0.0
      %1331 = vmatprep.subr.mxu0 0.0
      %1332 = vmatpush1.msra.mxu0 0.0
      %1333 = vmatprep.subr.mxu0 0.0
      %1334 = vmatpush1.msra.mxu0 0.0
      %1335 = vmatprep.subr.mxu0 0.0
      %1336 = vmatpush1.msra.mxu0 0.0
      %1337 = vmatprep.subr.mxu0 0.0
      %1338 = vmatpush1.msra.mxu0 0.0
      %1339 = vmatprep.subr.mxu0 0.0
      %1340 = vmatpush1.msra.mxu0 0.0
      %1341 = vmatprep.subr.mxu0 0.0
      %1342 = vmatpush1.msra.mxu0 0.0
      %1343 = vmatprep.subr.mxu0 0.0
      %1344 = vmatpush1.msra.mxu0 0.0
      %1345 = vmatprep.subr.mxu0 0.0
      %1346 = vmatpush1.msra.mxu0 0.0
      %1347 = vmatprep.mubr.f32.mxu0 0.0
      %1348 = vmatmul.mubr.f32.gmra.mrb[0].mxu0 %v1278
      %v1349 = vpop.f32.mrb[0].mxu0
      %v1350 = vadd.f32 %v1269, %v1349
      %v1351 = vpop.f32.mrb[0].mxu0
      %1352 = vmatprep.mubr.f32.mxu0 0.0
      %1353 = vmatmul.mubr.f32.gmra.mrb[0].mxu0 %v1281
      %v1354 = vpop.f32.mrb[0].mxu0
      %v1355 = vadd.f32 %v1274, %v1354
      %v1356 = vpop.f32.mrb[0].mxu0
      %1357 = vdwg.mxu0
      %s1358 = scalar_lea.vmem %s4, 32
      %v1359 = vld [vmem:[%s1358] sm:$0xff]
      %v1360 = vld [vmem:[%s1358 + $0x8] sm:$0xff]
      %1361 = vrot.lane.b32.xlu0 %v1183, 126
      %v1362 = vpop.permute.xlu0 %1361
      %v1365 = vsel %vm1195, %v1359, 0
      %v1368 = vsel %vm1195, %v1360, 0
      %1370 = vmatprep.subr.mxu0 0.0
      %1371 = vmatpush1.msra.mxu0 %v1362
      %1372 = vmatprep.subr.mxu0 0.0
      %1373 = vmatpush1.msra.mxu0 0.0
      %1374 = vmatprep.subr.mxu0 0.0
      %1375 = vmatpush1.msra.mxu0 0.0
      %1376 = vmatprep.subr.mxu0 0.0
      %1377 = vmatpush1.msra.mxu0 0.0
      %1378 = vmatprep.subr.mxu0 0.0
      %1379 = vmatpush1.msra.mxu0 0.0
      %1380 = vmatprep.subr.mxu0 0.0
      %1381 = vmatpush1.msra.mxu0 0.0
      %1382 = vmatprep.subr.mxu0 0.0
      %1383 = vmatpush1.msra.mxu0 0.0
      %1384 = vmatprep.subr.mxu0 0.0
      %1385 = vmatpush1.msra.mxu0 0.0
      %1386 = vmatprep.subr.mxu0 0.0
      %1387 = vmatpush1.msra.mxu0 0.0
      %1388 = vmatprep.subr.mxu0 0.0
      %1389 = vmatpush1.msra.mxu0 0.0
      %1390 = vmatprep.subr.mxu0 0.0
      %1391 = vmatpush1.msra.mxu0 0.0
      %1392 = vmatprep.subr.mxu0 0.0
      %1393 = vmatpush1.msra.mxu0 0.0
      %1394 = vmatprep.subr.mxu0 0.0
      %1395 = vmatpush1.msra.mxu0 0.0
      %1396 = vmatprep.subr.mxu0 0.0
      %1397 = vmatpush1.msra.mxu0 0.0
      %1398 = vmatprep.subr.mxu0 0.0
      %1399 = vmatpush1.msra.mxu0 0.0
      %1400 = vmatprep.subr.mxu0 0.0
      %1401 = vmatpush1.msra.mxu0 0.0
      %1402 = vmatprep.subr.mxu0 0.0
      %1403 = vmatpush1.msra.mxu0 0.0
      %1404 = vmatprep.subr.mxu0 0.0
      %1405 = vmatpush1.msra.mxu0 0.0
      %1406 = vmatprep.subr.mxu0 0.0
      %1407 = vmatpush1.msra.mxu0 0.0
      %1408 = vmatprep.subr.mxu0 0.0
      %1409 = vmatpush1.msra.mxu0 0.0
      %1410 = vmatprep.subr.mxu0 0.0
      %1411 = vmatpush1.msra.mxu0 0.0
      %1412 = vmatprep.subr.mxu0 0.0
      %1413 = vmatpush1.msra.mxu0 0.0
      %1414 = vmatprep.subr.mxu0 0.0
      %1415 = vmatpush1.msra.mxu0 0.0
      %1416 = vmatprep.subr.mxu0 0.0
      %1417 = vmatpush1.msra.mxu0 0.0
      %1418 = vmatprep.subr.mxu0 0.0
      %1419 = vmatpush1.msra.mxu0 0.0
      %1420 = vmatprep.subr.mxu0 0.0
      %1421 = vmatpush1.msra.mxu0 0.0
      %1422 = vmatprep.subr.mxu0 0.0
      %1423 = vmatpush1.msra.mxu0 0.0
      %1424 = vmatprep.subr.mxu0 0.0
      %1425 = vmatpush1.msra.mxu0 0.0
      %1426 = vmatprep.subr.mxu0 0.0
      %1427 = vmatpush1.msra.mxu0 0.0
      %1428 = vmatprep.subr.mxu0 0.0
      %1429 = vmatpush1.msra.mxu0 0.0
      %1430 = vmatprep.subr.mxu0 0.0
      %1431 = vmatpush1.msra.mxu0 0.0
      %1432 = vmatprep.subr.mxu0 0.0
      %1433 = vmatpush1.msra.mxu0 0.0
      %1434 = vmatprep.mubr.f32.mxu0 0.0
      %1435 = vmatmul.mubr.f32.gmra.mrb[0].mxu0 %v1365
      %v1436 = vpop.f32.mrb[0].mxu0
      %v1437 = vadd.f32 0.0, %v1436
      %v1438 = vpop.f32.mrb[0].mxu0
      %1439 = vmatprep.mubr.f32.mxu0 0.0
      %1440 = vmatmul.mubr.f32.gmra.mrb[0].mxu0 %v1368
      %v1441 = vpop.f32.mrb[0].mxu0
      %v1442 = vadd.f32 0.0, %v1441
      %v1443 = vpop.f32.mrb[0].mxu0
      %1444 = vdwg.mxu0
      %v1445 = vadd.f32 %v1350, %v1437
      %v1446 = vadd.f32 %v1355, %v1442
      %s1447 = scalar_lea.vmem %s4, 48
      %v1448 = vld [vmem:[%s1447] sm:$0xff]
      %v1449 = vld [vmem:[%s1447 + $0x8] sm:$0xff]
      %1451 = vrot.lane.b32.xlu0 %v1183, 116
      %v1452 = vpop.permute.xlu0 %1451
      %1453 = vrot.lane.b32.xlu0 %v1185, 116
      %v1454 = vpop.permute.xlu0 %1453
      %v1455 = vsel %vm659, %v1452, %v1454
      %v1458 = vsel %vm1195, %v1448, 0
      %v1461 = vsel %vm1195, %v1449, 0
      %1463 = vmatprep.subr.mxu0 0.0
      %1464 = vmatpush1.msra.mxu0 %v1455
      %1465 = vmatprep.subr.mxu0 0.0
      %1466 = vmatpush1.msra.mxu0 0.0
      %1467 = vmatprep.subr.mxu0 0.0
      %1468 = vmatpush1.msra.mxu0 0.0
      %1469 = vmatprep.subr.mxu0 0.0
      %1470 = vmatpush1.msra.mxu0 0.0
      %1471 = vmatprep.subr.mxu0 0.0
      %1472 = vmatpush1.msra.mxu0 0.0
      %1473 = vmatprep.subr.mxu0 0.0
      %1474 = vmatpush1.msra.mxu0 0.0
      %1475 = vmatprep.subr.mxu0 0.0
      %1476 = vmatpush1.msra.mxu0 0.0
      %1477 = vmatprep.subr.mxu0 0.0
      %1478 = vmatpush1.msra.mxu0 0.0
      %1479 = vmatprep.subr.mxu0 0.0
      %1480 = vmatpush1.msra.mxu0 0.0
      %1481 = vmatprep.subr.mxu0 0.0
      %1482 = vmatpush1.msra.mxu0 0.0
      %1483 = vmatprep.subr.mxu0 0.0
      %1484 = vmatpush1.msra.mxu0 0.0
      %1485 = vmatprep.subr.mxu0 0.0
      %1486 = vmatpush1.msra.mxu0 0.0
      %1487 = vmatprep.subr.mxu0 0.0
      %1488 = vmatpush1.msra.mxu0 0.0
      %1489 = vmatprep.subr.mxu0 0.0
      %1490 = vmatpush1.msra.mxu0 0.0
      %1491 = vmatprep.subr.mxu0 0.0
      %1492 = vmatpush1.msra.mxu0 0.0
      %1493 = vmatprep.subr.mxu0 0.0
      %1494 = vmatpush1.msra.mxu0 0.0
      %1495 = vmatprep.subr.mxu0 0.0
      %1496 = vmatpush1.msra.mxu0 0.0
      %1497 = vmatprep.subr.mxu0 0.0
      %1498 = vmatpush1.msra.mxu0 0.0
      %1499 = vmatprep.subr.mxu0 0.0
      %1500 = vmatpush1.msra.mxu0 0.0
      %1501 = vmatprep.subr.mxu0 0.0
      %1502 = vmatpush1.msra.mxu0 0.0
      %1503 = vmatprep.subr.mxu0 0.0
      %1504 = vmatpush1.msra.mxu0 0.0
      %1505 = vmatprep.subr.mxu0 0.0
      %1506 = vmatpush1.msra.mxu0 0.0
      %1507 = vmatprep.subr.mxu0 0.0
      %1508 = vmatpush1.msra.mxu0 0.0
      %1509 = vmatprep.subr.mxu0 0.0
      %1510 = vmatpush1.msra.mxu0 0.0
      %1511 = vmatprep.subr.mxu0 0.0
      %1512 = vmatpush1.msra.mxu0 0.0
      %1513 = vmatprep.subr.mxu0 0.0
      %1514 = vmatpush1.msra.mxu0 0.0
      %1515 = vmatprep.subr.mxu0 0.0
      %1516 = vmatpush1.msra.mxu0 0.0
      %1517 = vmatprep.subr.mxu0 0.0
      %1518 = vmatpush1.msra.mxu0 0.0
      %1519 = vmatprep.subr.mxu0 0.0
      %1520 = vmatpush1.msra.mxu0 0.0
      %1521 = vmatprep.subr.mxu0 0.0
      %1522 = vmatpush1.msra.mxu0 0.0
      %1523 = vmatprep.subr.mxu0 0.0
      %1524 = vmatpush1.msra.mxu0 0.0
      %1525 = vmatprep.subr.mxu0 0.0
      %1526 = vmatpush1.msra.mxu0 0.0
      %1527 = vmatprep.mubr.f32.mxu0 0.0
      %1528 = vmatmul.mubr.f32.gmra.mrb[0].mxu0 %v1458
      %v1529 = vpop.f32.mrb[0].mxu0
      %v1530 = vadd.f32 0.0, %v1529
      %v1531 = vpop.f32.mrb[0].mxu0
      %1532 = vmatprep.mubr.f32.mxu0 0.0
      %1533 = vmatmul.mubr.f32.gmra.mrb[0].mxu0 %v1461
      %v1534 = vpop.f32.mrb[0].mxu0
      %v1535 = vadd.f32 0.0, %v1534
      %v1536 = vpop.f32.mrb[0].mxu0
      %1537 = vdwg.mxu0
      %v1538 = vadd.f32 %v1445, %v1530
      %v1539 = vadd.f32 %v1446, %v1535
      %s1540 = scalar_lea.vmem %s4, 64
      %v1541 = vld [vmem:[%s1540] sm:$0xff]
      %v1542 = vld [vmem:[%s1540 + $0x8] sm:$0xff]
      %1543 = vrot.lane.b32.xlu0 %v1183, 115
      %v1544 = vpop.permute.xlu0 %1543
      %1545 = vrot.lane.b32.xlu0 %v1185, 115
      %v1546 = vpop.permute.xlu0 %1545
      %v1547 = vsel %vm743, %v1544, %v1546
      %v1550 = vsel %vm1195, %v1541, 0
      %v1553 = vsel %vm1195, %v1542, 0
      %1555 = vmatprep.subr.mxu0 0.0
      %1556 = vmatpush1.msra.mxu0 %v1547
      %1557 = vmatprep.subr.mxu0 0.0
      %1558 = vmatpush1.msra.mxu0 0.0
      %1559 = vmatprep.subr.mxu0 0.0
      %1560 = vmatpush1.msra.mxu0 0.0
      %1561 = vmatprep.subr.mxu0 0.0
      %1562 = vmatpush1.msra.mxu0 0.0
      %1563 = vmatprep.subr.mxu0 0.0
      %1564 = vmatpush1.msra.mxu0 0.0
      %1565 = vmatprep.subr.mxu0 0.0
      %1566 = vmatpush1.msra.mxu0 0.0
      %1567 = vmatprep.subr.mxu0 0.0
      %1568 = vmatpush1.msra.mxu0 0.0
      %1569 = vmatprep.subr.mxu0 0.0
      %1570 = vmatpush1.msra.mxu0 0.0
      %1571 = vmatprep.subr.mxu0 0.0
      %1572 = vmatpush1.msra.mxu0 0.0
      %1573 = vmatprep.subr.mxu0 0.0
      %1574 = vmatpush1.msra.mxu0 0.0
      %1575 = vmatprep.subr.mxu0 0.0
      %1576 = vmatpush1.msra.mxu0 0.0
      %1577 = vmatprep.subr.mxu0 0.0
      %1578 = vmatpush1.msra.mxu0 0.0
      %1579 = vmatprep.subr.mxu0 0.0
      %1580 = vmatpush1.msra.mxu0 0.0
      %1581 = vmatprep.subr.mxu0 0.0
      %1582 = vmatpush1.msra.mxu0 0.0
      %1583 = vmatprep.subr.mxu0 0.0
      %1584 = vmatpush1.msra.mxu0 0.0
      %1585 = vmatprep.subr.mxu0 0.0
      %1586 = vmatpush1.msra.mxu0 0.0
      %1587 = vmatprep.subr.mxu0 0.0
      %1588 = vmatpush1.msra.mxu0 0.0
      %1589 = vmatprep.subr.mxu0 0.0
      %1590 = vmatpush1.msra.mxu0 0.0
      %1591 = vmatprep.subr.mxu0 0.0
      %1592 = vmatpush1.msra.mxu0 0.0
      %1593 = vmatprep.subr.mxu0 0.0
      %1594 = vmatpush1.msra.mxu0 0.0
      %1595 = vmatprep.subr.mxu0 0.0
      %1596 = vmatpush1.msra.mxu0 0.0
      %1597 = vmatprep.subr.mxu0 0.0
      %1598 = vmatpush1.msra.mxu0 0.0
      %1599 = vmatprep.subr.mxu0 0.0
      %1600 = vmatpush1.msra.mxu0 0.0
      %1601 = vmatprep.subr.mxu0 0.0
      %1602 = vmatpush1.msra.mxu0 0.0
      %1603 = vmatprep.subr.mxu0 0.0
      %1604 = vmatpush1.msra.mxu0 0.0
      %1605 = vmatprep.subr.mxu0 0.0
      %1606 = vmatpush1.msra.mxu0 0.0
      %1607 = vmatprep.subr.mxu0 0.0
      %1608 = vmatpush1.msra.mxu0 0.0
      %1609 = vmatprep.subr.mxu0 0.0
      %1610 = vmatpush1.msra.mxu0 0.0
      %1611 = vmatprep.subr.mxu0 0.0
      %1612 = vmatpush1.msra.mxu0 0.0
      %1613 = vmatprep.subr.mxu0 0.0
      %1614 = vmatpush1.msra.mxu0 0.0
      %1615 = vmatprep.subr.mxu0 0.0
      %1616 = vmatpush1.msra.mxu0 0.0
      %1617 = vmatprep.subr.mxu0 0.0
      %1618 = vmatpush1.msra.mxu0 0.0
      %1619 = vmatprep.mubr.f32.mxu0 0.0
      %1620 = vmatmul.mubr.f32.gmra.mrb[0].mxu0 %v1550
      %v1621 = vpop.f32.mrb[0].mxu0
      %v1622 = vadd.f32 0.0, %v1621
      %v1623 = vpop.f32.mrb[0].mxu0
      %1624 = vmatprep.mubr.f32.mxu0 0.0
      %1625 = vmatmul.mubr.f32.gmra.mrb[0].mxu0 %v1553
      %v1626 = vpop.f32.mrb[0].mxu0
      %v1627 = vadd.f32 0.0, %v1626
      %v1628 = vpop.f32.mrb[0].mxu0
      %1629 = vdwg.mxu0
      %v1630 = vadd.f32 %v1538, %v1622
      %v1631 = vadd.f32 %v1539, %v1627
      %s1632 = scalar_lea.vmem %s4, 80
      %v1633 = vld [vmem:[%s1632] sm:$0xff]
      %v1634 = vld [vmem:[%s1632 + $0x8] sm:$0xff]
      %1635 = vrot.lane.b32.xlu0 %v1183, 114
      %v1636 = vpop.permute.xlu0 %1635
      %1637 = vrot.lane.b32.xlu0 %v1185, 114
      %v1638 = vpop.permute.xlu0 %1637
      %v1639 = vsel %vm827, %v1636, %v1638
      %v1642 = vsel %vm1195, %v1633, 0
      %v1645 = vsel %vm1195, %v1634, 0
      %1647 = vmatprep.subr.mxu0 0.0
      %1648 = vmatpush1.msra.mxu0 %v1639
      %1649 = vmatprep.subr.mxu0 0.0
      %1650 = vmatpush1.msra.mxu0 0.0
      %1651 = vmatprep.subr.mxu0 0.0
      %1652 = vmatpush1.msra.mxu0 0.0
      %1653 = vmatprep.subr.mxu0 0.0
      %1654 = vmatpush1.msra.mxu0 0.0
      %1655 = vmatprep.subr.mxu0 0.0
      %1656 = vmatpush1.msra.mxu0 0.0
      %1657 = vmatprep.subr.mxu0 0.0
      %1658 = vmatpush1.msra.mxu0 0.0
      %1659 = vmatprep.subr.mxu0 0.0
      %1660 = vmatpush1.msra.mxu0 0.0
      %1661 = vmatprep.subr.mxu0 0.0
      %1662 = vmatpush1.msra.mxu0 0.0
      %1663 = vmatprep.subr.mxu0 0.0
      %1664 = vmatpush1.msra.mxu0 0.0
      %1665 = vmatprep.subr.mxu0 0.0
      %1666 = vmatpush1.msra.mxu0 0.0
      %1667 = vmatprep.subr.mxu0 0.0
      %1668 = vmatpush1.msra.mxu0 0.0
      %1669 = vmatprep.subr.mxu0 0.0
      %1670 = vmatpush1.msra.mxu0 0.0
      %1671 = vmatprep.subr.mxu0 0.0
      %1672 = vmatpush1.msra.mxu0 0.0
      %1673 = vmatprep.subr.mxu0 0.0
      %1674 = vmatpush1.msra.mxu0 0.0
      %1675 = vmatprep.subr.mxu0 0.0
      %1676 = vmatpush1.msra.mxu0 0.0
      %1677 = vmatprep.subr.mxu0 0.0
      %1678 = vmatpush1.msra.mxu0 0.0
      %1679 = vmatprep.subr.mxu0 0.0
      %1680 = vmatpush1.msra.mxu0 0.0
      %1681 = vmatprep.subr.mxu0 0.0
      %1682 = vmatpush1.msra.mxu0 0.0
      %1683 = vmatprep.subr.mxu0 0.0
      %1684 = vmatpush1.msra.mxu0 0.0
      %1685 = vmatprep.subr.mxu0 0.0
      %1686 = vmatpush1.msra.mxu0 0.0
      %1687 = vmatprep.subr.mxu0 0.0
      %1688 = vmatpush1.msra.mxu0 0.0
      %1689 = vmatprep.subr.mxu0 0.0
      %1690 = vmatpush1.msra.mxu0 0.0
      %1691 = vmatprep.subr.mxu0 0.0
      %1692 = vmatpush1.msra.mxu0 0.0
      %1693 = vmatprep.subr.mxu0 0.0
      %1694 = vmatpush1.msra.mxu0 0.0
      %1695 = vmatprep.subr.mxu0 0.0
      %1696 = vmatpush1.msra.mxu0 0.0
      %1697 = vmatprep.subr.mxu0 0.0
      %1698 = vmatpush1.msra.mxu0 0.0
      %1699 = vmatprep.subr.mxu0 0.0
      %1700 = vmatpush1.msra.mxu0 0.0
      %1701 = vmatprep.subr.mxu0 0.0
      %1702 = vmatpush1.msra.mxu0 0.0
      %1703 = vmatprep.subr.mxu0 0.0
      %1704 = vmatpush1.msra.mxu0 0.0
      %1705 = vmatprep.subr.mxu0 0.0
      %1706 = vmatpush1.msra.mxu0 0.0
      %1707 = vmatprep.subr.mxu0 0.0
      %1708 = vmatpush1.msra.mxu0 0.0
      %1709 = vmatprep.subr.mxu0 0.0
      %1710 = vmatpush1.msra.mxu0 0.0
      %1711 = vmatprep.mubr.f32.mxu0 0.0
      %1712 = vmatmul.mubr.f32.gmra.mrb[0].mxu0 %v1642
      %v1713 = vpop.f32.mrb[0].mxu0
      %v1714 = vadd.f32 0.0, %v1713
      %v1715 = vpop.f32.mrb[0].mxu0
      %1716 = vmatprep.mubr.f32.mxu0 0.0
      %1717 = vmatmul.mubr.f32.gmra.mrb[0].mxu0 %v1645
      %v1718 = vpop.f32.mrb[0].mxu0
      %v1719 = vadd.f32 0.0, %v1718
      %v1720 = vpop.f32.mrb[0].mxu0
      %1721 = vdwg.mxu0
      %v1722 = vadd.f32 %v1630, %v1714
      %v1723 = vadd.f32 %v1631, %v1719
      %s1724 = scalar_lea.vmem %s4, 96
      %v1725 = vld [vmem:[%s1724] sm:$0xff]
      %v1726 = vld [vmem:[%s1724 + $0x8] sm:$0xff]
      %1727 = vrot.lane.b32.xlu0 %v1183, 104
      %v1728 = vpop.permute.xlu0 %1727
      %1729 = vrot.lane.b32.xlu0 %v1185, 104
      %v1730 = vpop.permute.xlu0 %1729
      %v1731 = vsel %vm911, %v1728, %v1730
      %v1734 = vsel %vm1195, %v1725, 0
      %v1737 = vsel %vm1195, %v1726, 0
      %1739 = vmatprep.subr.mxu0 0.0
      %1740 = vmatpush1.msra.mxu0 %v1731
      %1741 = vmatprep.subr.mxu0 0.0
      %1742 = vmatpush1.msra.mxu0 0.0
      %1743 = vmatprep.subr.mxu0 0.0
      %1744 = vmatpush1.msra.mxu0 0.0
      %1745 = vmatprep.subr.mxu0 0.0
      %1746 = vmatpush1.msra.mxu0 0.0
      %1747 = vmatprep.subr.mxu0 0.0
      %1748 = vmatpush1.msra.mxu0 0.0
      %1749 = vmatprep.subr.mxu0 0.0
      %1750 = vmatpush1.msra.mxu0 0.0
      %1751 = vmatprep.subr.mxu0 0.0
      %1752 = vmatpush1.msra.mxu0 0.0
      %1753 = vmatprep.subr.mxu0 0.0
      %1754 = vmatpush1.msra.mxu0 0.0
      %1755 = vmatprep.subr.mxu0 0.0
      %1756 = vmatpush1.msra.mxu0 0.0
      %1757 = vmatprep.subr.mxu0 0.0
      %1758 = vmatpush1.msra.mxu0 0.0
      %1759 = vmatprep.subr.mxu0 0.0
      %1760 = vmatpush1.msra.mxu0 0.0
      %1761 = vmatprep.subr.mxu0 0.0
      %1762 = vmatpush1.msra.mxu0 0.0
      %1763 = vmatprep.subr.mxu0 0.0
      %1764 = vmatpush1.msra.mxu0 0.0
      %1765 = vmatprep.subr.mxu0 0.0
      %1766 = vmatpush1.msra.mxu0 0.0
      %1767 = vmatprep.subr.mxu0 0.0
      %1768 = vmatpush1.msra.mxu0 0.0
      %1769 = vmatprep.subr.mxu0 0.0
      %1770 = vmatpush1.msra.mxu0 0.0
      %1771 = vmatprep.subr.mxu0 0.0
      %1772 = vmatpush1.msra.mxu0 0.0
      %1773 = vmatprep.subr.mxu0 0.0
      %1774 = vmatpush1.msra.mxu0 0.0
      %1775 = vmatprep.subr.mxu0 0.0
      %1776 = vmatpush1.msra.mxu0 0.0
      %1777 = vmatprep.subr.mxu0 0.0
      %1778 = vmatpush1.msra.mxu0 0.0
      %1779 = vmatprep.subr.mxu0 0.0
      %1780 = vmatpush1.msra.mxu0 0.0
      %1781 = vmatprep.subr.mxu0 0.0
      %1782 = vmatpush1.msra.mxu0 0.0
      %1783 = vmatprep.subr.mxu0 0.0
      %1784 = vmatpush1.msra.mxu0 0.0
      %1785 = vmatprep.subr.mxu0 0.0
      %1786 = vmatpush1.msra.mxu0 0.0
      %1787 = vmatprep.subr.mxu0 0.0
      %1788 = vmatpush1.msra.mxu0 0.0
      %1789 = vmatprep.subr.mxu0 0.0
      %1790 = vmatpush1.msra.mxu0 0.0
      %1791 = vmatprep.subr.mxu0 0.0
      %1792 = vmatpush1.msra.mxu0 0.0
      %1793 = vmatprep.subr.mxu0 0.0
      %1794 = vmatpush1.msra.mxu0 0.0
      %1795 = vmatprep.subr.mxu0 0.0
      %1796 = vmatpush1.msra.mxu0 0.0
      %1797 = vmatprep.subr.mxu0 0.0
      %1798 = vmatpush1.msra.mxu0 0.0
      %1799 = vmatprep.subr.mxu0 0.0
      %1800 = vmatpush1.msra.mxu0 0.0
      %1801 = vmatprep.subr.mxu0 0.0
      %1802 = vmatpush1.msra.mxu0 0.0
      %1803 = vmatprep.mubr.f32.mxu0 0.0
      %1804 = vmatmul.mubr.f32.gmra.mrb[0].mxu0 %v1734
      %v1805 = vpop.f32.mrb[0].mxu0
      %v1806 = vadd.f32 0.0, %v1805
      %v1807 = vpop.f32.mrb[0].mxu0
      %1808 = vmatprep.mubr.f32.mxu0 0.0
      %1809 = vmatmul.mubr.f32.gmra.mrb[0].mxu0 %v1737
      %v1810 = vpop.f32.mrb[0].mxu0
      %v1811 = vadd.f32 0.0, %v1810
      %v1812 = vpop.f32.mrb[0].mxu0
      %1813 = vdwg.mxu0
      %v1814 = vadd.f32 %v1722, %v1806
      %v1815 = vadd.f32 %v1723, %v1811
      %s1816 = scalar_lea.vmem %s4, 112
      %v1817 = vld [vmem:[%s1816] sm:$0xff]
      %v1818 = vld [vmem:[%s1816 + $0x8] sm:$0xff]
      %1819 = vrot.lane.b32.xlu0 %v1183, 103
      %v1820 = vpop.permute.xlu0 %1819
      %1821 = vrot.lane.b32.xlu0 %v1185, 103
      %v1822 = vpop.permute.xlu0 %1821
      %v1823 = vsel %vm995, %v1820, %v1822
      %v1826 = vsel %vm1195, %v1817, 0
      %v1829 = vsel %vm1195, %v1818, 0
      %1831 = vmatprep.subr.mxu0 0.0
      %1832 = vmatpush1.msra.mxu0 %v1823
      %1833 = vmatprep.subr.mxu0 0.0
      %1834 = vmatpush1.msra.mxu0 0.0
      %1835 = vmatprep.subr.mxu0 0.0
      %1836 = vmatpush1.msra.mxu0 0.0
      %1837 = vmatprep.subr.mxu0 0.0
      %1838 = vmatpush1.msra.mxu0 0.0
      %1839 = vmatprep.subr.mxu0 0.0
      %1840 = vmatpush1.msra.mxu0 0.0
      %1841 = vmatprep.subr.mxu0 0.0
      %1842 = vmatpush1.msra.mxu0 0.0
      %1843 = vmatprep.subr.mxu0 0.0
      %1844 = vmatpush1.msra.mxu0 0.0
      %1845 = vmatprep.subr.mxu0 0.0
      %1846 = vmatpush1.msra.mxu0 0.0
      %1847 = vmatprep.subr.mxu0 0.0
      %1848 = vmatpush1.msra.mxu0 0.0
      %1849 = vmatprep.subr.mxu0 0.0
      %1850 = vmatpush1.msra.mxu0 0.0
      %1851 = vmatprep.subr.mxu0 0.0
      %1852 = vmatpush1.msra.mxu0 0.0
      %1853 = vmatprep.subr.mxu0 0.0
      %1854 = vmatpush1.msra.mxu0 0.0
      %1855 = vmatprep.subr.mxu0 0.0
      %1856 = vmatpush1.msra.mxu0 0.0
      %1857 = vmatprep.subr.mxu0 0.0
      %1858 = vmatpush1.msra.mxu0 0.0
      %1859 = vmatprep.subr.mxu0 0.0
      %1860 = vmatpush1.msra.mxu0 0.0
      %1861 = vmatprep.subr.mxu0 0.0
      %1862 = vmatpush1.msra.mxu0 0.0
      %1863 = vmatprep.subr.mxu0 0.0
      %1864 = vmatpush1.msra.mxu0 0.0
      %1865 = vmatprep.subr.mxu0 0.0
      %1866 = vmatpush1.msra.mxu0 0.0
      %1867 = vmatprep.subr.mxu0 0.0
      %1868 = vmatpush1.msra.mxu0 0.0
      %1869 = vmatprep.subr.mxu0 0.0
      %1870 = vmatpush1.msra.mxu0 0.0
      %1871 = vmatprep.subr.mxu0 0.0
      %1872 = vmatpush1.msra.mxu0 0.0
      %1873 = vmatprep.subr.mxu0 0.0
      %1874 = vmatpush1.msra.mxu0 0.0
      %1875 = vmatprep.subr.mxu0 0.0
      %1876 = vmatpush1.msra.mxu0 0.0
      %1877 = vmatprep.subr.mxu0 0.0
      %1878 = vmatpush1.msra.mxu0 0.0
      %1879 = vmatprep.subr.mxu0 0.0
      %1880 = vmatpush1.msra.mxu0 0.0
      %1881 = vmatprep.subr.mxu0 0.0
      %1882 = vmatpush1.msra.mxu0 0.0
      %1883 = vmatprep.subr.mxu0 0.0
      %1884 = vmatpush1.msra.mxu0 0.0
      %1885 = vmatprep.subr.mxu0 0.0
      %1886 = vmatpush1.msra.mxu0 0.0
      %1887 = vmatprep.subr.mxu0 0.0
      %1888 = vmatpush1.msra.mxu0 0.0
      %1889 = vmatprep.subr.mxu0 0.0
      %1890 = vmatpush1.msra.mxu0 0.0
      %1891 = vmatprep.subr.mxu0 0.0
      %1892 = vmatpush1.msra.mxu0 0.0
      %1893 = vmatprep.subr.mxu0 0.0
      %1894 = vmatpush1.msra.mxu0 0.0
      %1895 = vmatprep.mubr.f32.mxu0 0.0
      %1896 = vmatmul.mubr.f32.gmra.mrb[0].mxu0 %v1826
      %v1897 = vpop.f32.mrb[0].mxu0
      %v1898 = vadd.f32 0.0, %v1897
      %v1899 = vpop.f32.mrb[0].mxu0
      %1900 = vmatprep.mubr.f32.mxu0 0.0
      %1901 = vmatmul.mubr.f32.gmra.mrb[0].mxu0 %v1829
      %v1902 = vpop.f32.mrb[0].mxu0
      %v1903 = vadd.f32 0.0, %v1902
      %v1904 = vpop.f32.mrb[0].mxu0
      %1905 = vdwg.mxu0
      %v1906 = vadd.f32 %v1814, %v1898
      %v1907 = vadd.f32 %v1815, %v1903
      %s1908 = scalar_lea.vmem %s4, 128
      %v1909 = vld [vmem:[%s1908] sm:$0xff]
      %v1910 = vld [vmem:[%s1908 + $0x8] sm:$0xff]
      %1911 = vrot.lane.b32.xlu0 %v1183, 102
      %v1912 = vpop.permute.xlu0 %1911
      %1913 = vrot.lane.b32.xlu0 %v1185, 102
      %v1914 = vpop.permute.xlu0 %1913
      %v1915 = vsel %vm1079, %v1912, %v1914
      %v1918 = vsel %vm1195, %v1909, 0
      %v1921 = vsel %vm1195, %v1910, 0
      %1923 = vmatprep.subr.mxu0 0.0
      %1924 = vmatpush1.msra.mxu0 %v1915
      %1925 = vmatprep.subr.mxu0 0.0
      %1926 = vmatpush1.msra.mxu0 0.0
      %1927 = vmatprep.subr.mxu0 0.0
      %1928 = vmatpush1.msra.mxu0 0.0
      %1929 = vmatprep.subr.mxu0 0.0
      %1930 = vmatpush1.msra.mxu0 0.0
      %1931 = vmatprep.subr.mxu0 0.0
      %1932 = vmatpush1.msra.mxu0 0.0
      %1933 = vmatprep.subr.mxu0 0.0
      %1934 = vmatpush1.msra.mxu0 0.0
      %1935 = vmatprep.subr.mxu0 0.0
      %1936 = vmatpush1.msra.mxu0 0.0
      %1937 = vmatprep.subr.mxu0 0.0
      %1938 = vmatpush1.msra.mxu0 0.0
      %1939 = vmatprep.subr.mxu0 0.0
      %1940 = vmatpush1.msra.mxu0 0.0
      %1941 = vmatprep.subr.mxu0 0.0
      %1942 = vmatpush1.msra.mxu0 0.0
      %1943 = vmatprep.subr.mxu0 0.0
      %1944 = vmatpush1.msra.mxu0 0.0
      %1945 = vmatprep.subr.mxu0 0.0
      %1946 = vmatpush1.msra.mxu0 0.0
      %1947 = vmatprep.subr.mxu0 0.0
      %1948 = vmatpush1.msra.mxu0 0.0
      %1949 = vmatprep.subr.mxu0 0.0
      %1950 = vmatpush1.msra.mxu0 0.0
      %1951 = vmatprep.subr.mxu0 0.0
      %1952 = vmatpush1.msra.mxu0 0.0
      %1953 = vmatprep.subr.mxu0 0.0
      %1954 = vmatpush1.msra.mxu0 0.0
      %1955 = vmatprep.subr.mxu0 0.0
      %1956 = vmatpush1.msra.mxu0 0.0
      %1957 = vmatprep.subr.mxu0 0.0
      %1958 = vmatpush1.msra.mxu0 0.0
      %1959 = vmatprep.subr.mxu0 0.0
      %1960 = vmatpush1.msra.mxu0 0.0
      %1961 = vmatprep.subr.mxu0 0.0
      %1962 = vmatpush1.msra.mxu0 0.0
      %1963 = vmatprep.subr.mxu0 0.0
      %1964 = vmatpush1.msra.mxu0 0.0
      %1965 = vmatprep.subr.mxu0 0.0
      %1966 = vmatpush1.msra.mxu0 0.0
      %1967 = vmatprep.subr.mxu0 0.0
      %1968 = vmatpush1.msra.mxu0 0.0
      %1969 = vmatprep.subr.mxu0 0.0
      %1970 = vmatpush1.msra.mxu0 0.0
      %1971 = vmatprep.subr.mxu0 0.0
      %1972 = vmatpush1.msra.mxu0 0.0
      %1973 = vmatprep.subr.mxu0 0.0
      %1974 = vmatpush1.msra.mxu0 0.0
      %1975 = vmatprep.subr.mxu0 0.0
      %1976 = vmatpush1.msra.mxu0 0.0
      %1977 = vmatprep.subr.mxu0 0.0
      %1978 = vmatpush1.msra.mxu0 0.0
      %1979 = vmatprep.subr.mxu0 0.0
      %1980 = vmatpush1.msra.mxu0 0.0
      %1981 = vmatprep.subr.mxu0 0.0
      %1982 = vmatpush1.msra.mxu0 0.0
      %1983 = vmatprep.subr.mxu0 0.0
      %1984 = vmatpush1.msra.mxu0 0.0
      %1985 = vmatprep.subr.mxu0 0.0
      %1986 = vmatpush1.msra.mxu0 0.0
      %1987 = vmatprep.mubr.f32.mxu0 0.0
      %1988 = vmatmul.mubr.f32.gmra.mrb[0].mxu0 %v1918
      %v1989 = vpop.f32.mrb[0].mxu0
      %v1990 = vadd.f32 0.0, %v1989
      %v1991 = vpop.f32.mrb[0].mxu0
      %1992 = vmatprep.mubr.f32.mxu0 0.0
      %1993 = vmatmul.mubr.f32.gmra.mrb[0].mxu0 %v1921
      %v1994 = vpop.f32.mrb[0].mxu0
      %v1995 = vadd.f32 0.0, %v1994
      %v1996 = vpop.f32.mrb[0].mxu0
      %1997 = vdwg.mxu0
      %v1998 = vadd.f32 %v1906, %v1990
      %v1999 = vadd.f32 %v1907, %v1995
      %v2000 = vld [vmem:[%s5] sm:$0xff]
      %v2001 = vld [vmem:[%s5 + $0x8] sm:$0xff]
      %2003 = vset.pattern.permute.xlu0 0
      %2004 = vperm.xlu0 %2003, %v2000
      %v2005 = vpop.permute.xlu0 %2004
      %2008 = vset.pattern.permute.xlu0 0
      %2009 = vperm.xlu0 %2008, %v2001
      %v2010 = vpop.permute.xlu0 %2009
      %v2012 = vadd.f32 %v1998, %v2005
      %v2013 = vadd.f32 %v1999, %v2010
      %vm2014 = vcmp.gt.f32.partialorder %v2012, 0.0
      %vm2015 = vcmp.gt.f32.partialorder %v2013, 0.0
      %v2016 = vmul.f32 %v2012, 1.442695
      %v2017 = vpow.pop %v2016
      %v2018 = vmul.f32 %v2013, 1.442695
      %v2019 = vpow.pop %v2018
      %v2020 = vsub.f32 %v2017, 1.0
      %v2021 = vsub.f32 %v2019, 1.0
      %v2022 = vmul.f32 %v2020, 1.6732632
      %v2023 = vmul.f32 %v2021, 1.6732632
      %v2024 = vsel %vm2014, %v2012, %v2022
      %v2025 = vsel %vm2015, %v2013, %v2023
      %v2026 = vmul.f32 %v2024, 1.050701
      %v2027 = vmul.f32 %v2025, 1.050701
      %v2028 = vmul.f32 %v2026, %v1175
      %v2029 = vmul.f32 %v2027, %v1175
      %2032 = vrot.lane.b32.xlu0 %v2028, 13
      %v2033 = vpop.permute.xlu0 %2032
      %2034 = vrot.lane.b32.xlu0 %v2029, 13
      %v2035 = vpop.permute.xlu0 %2034
      %v2038 = vsel %vm1182, 0.0, %v2033
      %v2039 = vsel %vm1182, 0.0, %v2035
      %v2040 = vsel %vm1184, %v2033, 0.0
      %v2041 = vsel %vm1184, %v2035, 0.0
      %v2042 = vld [vmem:[%s6] sm:$0xff]
      %v2043 = vld [vmem:[%s6 + $0x8] sm:$0xff]
      %v2044 = vld [vmem:[%s6 + $0x10] sm:$0xff]
      %v2045 = vld [vmem:[%s6 + $0x18] sm:$0xff]
      %s2046 = scalar_lea.vmem %s6, 32
      %v2047 = vld [vmem:[%s2046] sm:$0xff]
      %v2048 = vld [vmem:[%s2046 + $0x8] sm:$0xff]
      %v2049 = vld [vmem:[%s2046 + $0x10] sm:$0xff]
      %v2050 = vld [vmem:[%s2046 + $0x18] sm:$0xff]
      %2053 = vrot.lane.b32.xlu0 %v2038, 127
      %v2054 = vpop.permute.xlu0 %2053
      %2055 = vrot.lane.b32.xlu0 %v2039, 127
      %v2056 = vpop.permute.xlu0 %2055
      %vm2059 = vcmask 130048
      %v2061 = vsel %vm2059, %v2047, 0
      %v2064 = vsel %vm2059, %v2048, 0
      %v2067 = vsel %vm2059, %v2049, 0
      %v2070 = vsel %vm2059, %v2050, 0
      %2072 = vmatprep.subr.mxu0 0.0
      %2073 = vmatpush1.msra.mxu0 %v2054
      %2074 = vmatprep.subr.mxu0 0.0
      %2075 = vmatpush1.msra.mxu0 %v2056
      %2076 = vmatprep.subr.mxu0 0.0
      %2077 = vmatpush1.msra.mxu0 0.0
      %2078 = vmatprep.subr.mxu0 0.0
      %2079 = vmatpush1.msra.mxu0 0.0
      %2080 = vmatprep.subr.mxu0 0.0
      %2081 = vmatpush1.msra.mxu0 0.0
      %2082 = vmatprep.subr.mxu0 0.0
      %2083 = vmatpush1.msra.mxu0 0.0
      %2084 = vmatprep.subr.mxu0 0.0
      %2085 = vmatpush1.msra.mxu0 0.0
      %2086 = vmatprep.subr.mxu0 0.0
      %2087 = vmatpush1.msra.mxu0 0.0
      %2088 = vmatprep.subr.mxu0 0.0
      %2089 = vmatpush1.msra.mxu0 0.0
      %2090 = vmatprep.subr.mxu0 0.0
      %2091 = vmatpush1.msra.mxu0 0.0
      %2092 = vmatprep.subr.mxu0 0.0
      %2093 = vmatpush1.msra.mxu0 0.0
      %2094 = vmatprep.subr.mxu0 0.0
      %2095 = vmatpush1.msra.mxu0 0.0
      %2096 = vmatprep.subr.mxu0 0.0
      %2097 = vmatpush1.msra.mxu0 0.0
      %2098 = vmatprep.subr.mxu0 0.0
      %2099 = vmatpush1.msra.mxu0 0.0
      %2100 = vmatprep.subr.mxu0 0.0
      %2101 = vmatpush1.msra.mxu0 0.0
      %2102 = vmatprep.subr.mxu0 0.0
      %2103 = vmatpush1.msra.mxu0 0.0
      %2104 = vmatprep.subr.mxu0 0.0
      %2105 = vmatpush1.msra.mxu0 0.0
      %2106 = vmatprep.subr.mxu0 0.0
      %2107 = vmatpush1.msra.mxu0 0.0
      %2108 = vmatprep.subr.mxu0 0.0
      %2109 = vmatpush1.msra.mxu0 0.0
      %2110 = vmatprep.subr.mxu0 0.0
      %2111 = vmatpush1.msra.mxu0 0.0
      %2112 = vmatprep.subr.mxu0 0.0
      %2113 = vmatpush1.msra.mxu0 0.0
      %2114 = vmatprep.subr.mxu0 0.0
      %2115 = vmatpush1.msra.mxu0 0.0
      %2116 = vmatprep.subr.mxu0 0.0
      %2117 = vmatpush1.msra.mxu0 0.0
      %2118 = vmatprep.subr.mxu0 0.0
      %2119 = vmatpush1.msra.mxu0 0.0
      %2120 = vmatprep.subr.mxu0 0.0
      %2121 = vmatpush1.msra.mxu0 0.0
      %2122 = vmatprep.subr.mxu0 0.0
      %2123 = vmatpush1.msra.mxu0 0.0
      %2124 = vmatprep.subr.mxu0 0.0
      %2125 = vmatpush1.msra.mxu0 0.0
      %2126 = vmatprep.subr.mxu0 0.0
      %2127 = vmatpush1.msra.mxu0 0.0
      %2128 = vmatprep.subr.mxu0 0.0
      %2129 = vmatpush1.msra.mxu0 0.0
      %2130 = vmatprep.subr.mxu0 0.0
      %2131 = vmatpush1.msra.mxu0 0.0
      %2132 = vmatprep.subr.mxu0 0.0
      %2133 = vmatpush1.msra.mxu0 0.0
      %2134 = vmatprep.subr.mxu0 0.0
      %2135 = vmatpush1.msra.mxu0 0.0
      %2136 = vmatprep.mubr.f32.mxu0 0.0
      %2137 = vmatmul.mubr.f32.gmra.mrb[0].mxu0 %v2061
      %v2138 = vpop.f32.mrb[0].mxu0
      %v2139 = vadd.f32 0.0, %v2138
      %v2140 = vpop.f32.mrb[0].mxu0
      %2141 = vmatprep.mubr.f32.mxu0 0.0
      %2142 = vmatmul.mubr.f32.gmra.mrb[0].mxu0 %v2064
      %v2143 = vpop.f32.mrb[0].mxu0
      %v2144 = vadd.f32 0.0, %v2143
      %v2145 = vpop.f32.mrb[0].mxu0
      %2146 = vmatprep.mubr.f32.mxu0 0.0
      %2147 = vmatmul.mubr.f32.gmra.mrb[0].mxu0 %v2067
      %v2148 = vpop.f32.mrb[0].mxu0
      %v2149 = vadd.f32 0.0, %v2148
      %v2150 = vpop.f32.mrb[0].mxu0
      %2151 = vmatprep.mubr.f32.mxu0 0.0
      %2152 = vmatmul.mubr.f32.gmra.mrb[0].mxu0 %v2070
      %v2153 = vpop.f32.mrb[0].mxu0
      %v2154 = vadd.f32 0.0, %v2153
      %v2155 = vpop.f32.mrb[0].mxu0
      %2156 = vdwg.mxu0
      %v2158 = vsel %vm2059, %v2042, 0
      %v2161 = vsel %vm2059, %v2043, 0
      %v2164 = vsel %vm2059, %v2044, 0
      %v2167 = vsel %vm2059, %v2045, 0
      %2169 = vmatprep.subr.mxu0 0.0
      %2170 = vmatpush1.msra.mxu0 %v2038
      %2171 = vmatprep.subr.mxu0 0.0
      %2172 = vmatpush1.msra.mxu0 %v2039
      %2173 = vmatprep.subr.mxu0 0.0
      %2174 = vmatpush1.msra.mxu0 0.0
      %2175 = vmatprep.subr.mxu0 0.0
      %2176 = vmatpush1.msra.mxu0 0.0
      %2177 = vmatprep.subr.mxu0 0.0
      %2178 = vmatpush1.msra.mxu0 0.0
      %2179 = vmatprep.subr.mxu0 0.0
      %2180 = vmatpush1.msra.mxu0 0.0
      %2181 = vmatprep.subr.mxu0 0.0
      %2182 = vmatpush1.msra.mxu0 0.0
      %2183 = vmatprep.subr.mxu0 0.0
      %2184 = vmatpush1.msra.mxu0 0.0
      %2185 = vmatprep.subr.mxu0 0.0
      %2186 = vmatpush1.msra.mxu0 0.0
      %2187 = vmatprep.subr.mxu0 0.0
      %2188 = vmatpush1.msra.mxu0 0.0
      %2189 = vmatprep.subr.mxu0 0.0
      %2190 = vmatpush1.msra.mxu0 0.0
      %2191 = vmatprep.subr.mxu0 0.0
      %2192 = vmatpush1.msra.mxu0 0.0
      %2193 = vmatprep.subr.mxu0 0.0
      %2194 = vmatpush1.msra.mxu0 0.0
      %2195 = vmatprep.subr.mxu0 0.0
      %2196 = vmatpush1.msra.mxu0 0.0
      %2197 = vmatprep.subr.mxu0 0.0
      %2198 = vmatpush1.msra.mxu0 0.0
      %2199 = vmatprep.subr.mxu0 0.0
      %2200 = vmatpush1.msra.mxu0 0.0
      %2201 = vmatprep.subr.mxu0 0.0
      %2202 = vmatpush1.msra.mxu0 0.0
      %2203 = vmatprep.subr.mxu0 0.0
      %2204 = vmatpush1.msra.mxu0 0.0
      %2205 = vmatprep.subr.mxu0 0.0
      %2206 = vmatpush1.msra.mxu0 0.0
      %2207 = vmatprep.subr.mxu0 0.0
      %2208 = vmatpush1.msra.mxu0 0.0
      %2209 = vmatprep.subr.mxu0 0.0
      %2210 = vmatpush1.msra.mxu0 0.0
      %2211 = vmatprep.subr.mxu0 0.0
      %2212 = vmatpush1.msra.mxu0 0.0
      %2213 = vmatprep.subr.mxu0 0.0
      %2214 = vmatpush1.msra.mxu0 0.0
      %2215 = vmatprep.subr.mxu0 0.0
      %2216 = vmatpush1.msra.mxu0 0.0
      %2217 = vmatprep.subr.mxu0 0.0
      %2218 = vmatpush1.msra.mxu0 0.0
      %2219 = vmatprep.subr.mxu0 0.0
      %2220 = vmatpush1.msra.mxu0 0.0
      %2221 = vmatprep.subr.mxu0 0.0
      %2222 = vmatpush1.msra.mxu0 0.0
      %2223 = vmatprep.subr.mxu0 0.0
      %2224 = vmatpush1.msra.mxu0 0.0
      %2225 = vmatprep.subr.mxu0 0.0
      %2226 = vmatpush1.msra.mxu0 0.0
      %2227 = vmatprep.subr.mxu0 0.0
      %2228 = vmatpush1.msra.mxu0 0.0
      %2229 = vmatprep.subr.mxu0 0.0
      %2230 = vmatpush1.msra.mxu0 0.0
      %2231 = vmatprep.subr.mxu0 0.0
      %2232 = vmatpush1.msra.mxu0 0.0
      %2233 = vmatprep.mubr.f32.mxu0 0.0
      %2234 = vmatmul.mubr.f32.gmra.mrb[0].mxu0 %v2158
      %v2235 = vpop.f32.mrb[0].mxu0
      %v2236 = vadd.f32 %v2139, %v2235
      %v2237 = vpop.f32.mrb[0].mxu0
      %2238 = vmatprep.mubr.f32.mxu0 0.0
      %2239 = vmatmul.mubr.f32.gmra.mrb[0].mxu0 %v2161
      %v2240 = vpop.f32.mrb[0].mxu0
      %v2241 = vadd.f32 %v2144, %v2240
      %v2242 = vpop.f32.mrb[0].mxu0
      %2243 = vmatprep.mubr.f32.mxu0 0.0
      %2244 = vmatmul.mubr.f32.gmra.mrb[0].mxu0 %v2164
      %v2245 = vpop.f32.mrb[0].mxu0
      %v2246 = vadd.f32 %v2149, %v2245
      %v2247 = vpop.f32.mrb[0].mxu0
      %2248 = vmatprep.mubr.f32.mxu0 0.0
      %2249 = vmatmul.mubr.f32.gmra.mrb[0].mxu0 %v2167
      %v2250 = vpop.f32.mrb[0].mxu0
      %v2251 = vadd.f32 %v2154, %v2250
      %v2252 = vpop.f32.mrb[0].mxu0
      %2253 = vdwg.mxu0
      %s2254 = scalar_lea.vmem %s6, 64
      %v2255 = vld [vmem:[%s2254] sm:$0xff]
      %v2256 = vld [vmem:[%s2254 + $0x8] sm:$0xff]
      %v2257 = vld [vmem:[%s2254 + $0x10] sm:$0xff]
      %v2258 = vld [vmem:[%s2254 + $0x18] sm:$0xff]
      %2259 = vrot.lane.b32.xlu0 %v2038, 126
      %v2260 = vpop.permute.xlu0 %2259
      %2261 = vrot.lane.b32.xlu0 %v2039, 126
      %v2262 = vpop.permute.xlu0 %2261
      %v2266 = vsel %vm2059, %v2255, 0
      %v2269 = vsel %vm2059, %v2256, 0
      %v2272 = vsel %vm2059, %v2257, 0
      %v2275 = vsel %vm2059, %v2258, 0
      %2277 = vmatprep.subr.mxu0 0.0
      %2278 = vmatpush1.msra.mxu0 %v2260
      %2279 = vmatprep.subr.mxu0 0.0
      %2280 = vmatpush1.msra.mxu0 %v2262
      %2281 = vmatprep.subr.mxu0 0.0
      %2282 = vmatpush1.msra.mxu0 0.0
      %2283 = vmatprep.subr.mxu0 0.0
      %2284 = vmatpush1.msra.mxu0 0.0
      %2285 = vmatprep.subr.mxu0 0.0
      %2286 = vmatpush1.msra.mxu0 0.0
      %2287 = vmatprep.subr.mxu0 0.0
      %2288 = vmatpush1.msra.mxu0 0.0
      %2289 = vmatprep.subr.mxu0 0.0
      %2290 = vmatpush1.msra.mxu0 0.0
      %2291 = vmatprep.subr.mxu0 0.0
      %2292 = vmatpush1.msra.mxu0 0.0
      %2293 = vmatprep.subr.mxu0 0.0
      %2294 = vmatpush1.msra.mxu0 0.0
      %2295 = vmatprep.subr.mxu0 0.0
      %2296 = vmatpush1.msra.mxu0 0.0
      %2297 = vmatprep.subr.mxu0 0.0
      %2298 = vmatpush1.msra.mxu0 0.0
      %2299 = vmatprep.subr.mxu0 0.0
      %2300 = vmatpush1.msra.mxu0 0.0
      %2301 = vmatprep.subr.mxu0 0.0
      %2302 = vmatpush1.msra.mxu0 0.0
      %2303 = vmatprep.subr.mxu0 0.0
      %2304 = vmatpush1.msra.mxu0 0.0
      %2305 = vmatprep.subr.mxu0 0.0
      %2306 = vmatpush1.msra.mxu0 0.0
      %2307 = vmatprep.subr.mxu0 0.0
      %2308 = vmatpush1.msra.mxu0 0.0
      %2309 = vmatprep.subr.mxu0 0.0
      %2310 = vmatpush1.msra.mxu0 0.0
      %2311 = vmatprep.subr.mxu0 0.0
      %2312 = vmatpush1.msra.mxu0 0.0
      %2313 = vmatprep.subr.mxu0 0.0
      %2314 = vmatpush1.msra.mxu0 0.0
      %2315 = vmatprep.subr.mxu0 0.0
      %2316 = vmatpush1.msra.mxu0 0.0
      %2317 = vmatprep.subr.mxu0 0.0
      %2318 = vmatpush1.msra.mxu0 0.0
      %2319 = vmatprep.subr.mxu0 0.0
      %2320 = vmatpush1.msra.mxu0 0.0
      %2321 = vmatprep.subr.mxu0 0.0
      %2322 = vmatpush1.msra.mxu0 0.0
      %2323 = vmatprep.subr.mxu0 0.0
      %2324 = vmatpush1.msra.mxu0 0.0
      %2325 = vmatprep.subr.mxu0 0.0
      %2326 = vmatpush1.msra.mxu0 0.0
      %2327 = vmatprep.subr.mxu0 0.0
      %2328 = vmatpush1.msra.mxu0 0.0
      %2329 = vmatprep.subr.mxu0 0.0
      %2330 = vmatpush1.msra.mxu0 0.0
      %2331 = vmatprep.subr.mxu0 0.0
      %2332 = vmatpush1.msra.mxu0 0.0
      %2333 = vmatprep.subr.mxu0 0.0
      %2334 = vmatpush1.msra.mxu0 0.0
      %2335 = vmatprep.subr.mxu0 0.0
      %2336 = vmatpush1.msra.mxu0 0.0
      %2337 = vmatprep.subr.mxu0 0.0
      %2338 = vmatpush1.msra.mxu0 0.0
      %2339 = vmatprep.subr.mxu0 0.0
      %2340 = vmatpush1.msra.mxu0 0.0
      %2341 = vmatprep.mubr.f32.mxu0 0.0
      %2342 = vmatmul.mubr.f32.gmra.mrb[0].mxu0 %v2266
      %v2343 = vpop.f32.mrb[0].mxu0
      %v2344 = vadd.f32 0.0, %v2343
      %v2345 = vpop.f32.mrb[0].mxu0
      %2346 = vmatprep.mubr.f32.mxu0 0.0
      %2347 = vmatmul.mubr.f32.gmra.mrb[0].mxu0 %v2269
      %v2348 = vpop.f32.mrb[0].mxu0
      %v2349 = vadd.f32 0.0, %v2348
      %v2350 = vpop.f32.mrb[0].mxu0
      %2351 = vmatprep.mubr.f32.mxu0 0.0
      %2352 = vmatmul.mubr.f32.gmra.mrb[0].mxu0 %v2272
      %v2353 = vpop.f32.mrb[0].mxu0
      %v2354 = vadd.f32 0.0, %v2353
      %v2355 = vpop.f32.mrb[0].mxu0
      %2356 = vmatprep.mubr.f32.mxu0 0.0
      %2357 = vmatmul.mubr.f32.gmra.mrb[0].mxu0 %v2275
      %v2358 = vpop.f32.mrb[0].mxu0
      %v2359 = vadd.f32 0.0, %v2358
      %v2360 = vpop.f32.mrb[0].mxu0
      %2361 = vdwg.mxu0
      %v2362 = vadd.f32 %v2236, %v2344
      %v2363 = vadd.f32 %v2241, %v2349
      %v2364 = vadd.f32 %v2246, %v2354
      %v2365 = vadd.f32 %v2251, %v2359
      %s2366 = scalar_lea.vmem %s6, 96
      %v2367 = vld [vmem:[%s2366] sm:$0xff]
      %v2368 = vld [vmem:[%s2366 + $0x8] sm:$0xff]
      %v2369 = vld [vmem:[%s2366 + $0x10] sm:$0xff]
      %v2370 = vld [vmem:[%s2366 + $0x18] sm:$0xff]
      %2373 = vrot.lane.b32.xlu0 %v2038, 116
      %v2374 = vpop.permute.xlu0 %2373
      %2375 = vrot.lane.b32.xlu0 %v2040, 116
      %v2376 = vpop.permute.xlu0 %2375
      %2377 = vrot.lane.b32.xlu0 %v2039, 116
      %v2378 = vpop.permute.xlu0 %2377
      %2379 = vrot.lane.b32.xlu0 %v2041, 116
      %v2380 = vpop.permute.xlu0 %2379
      %v2381 = vsel %vm659, %v2374, %v2376
      %v2382 = vsel %vm659, %v2378, %v2380
      %v2386 = vsel %vm2059, %v2367, 0
      %v2389 = vsel %vm2059, %v2368, 0
      %v2392 = vsel %vm2059, %v2369, 0
      %v2395 = vsel %vm2059, %v2370, 0
      %2397 = vmatprep.subr.mxu0 0.0
      %2398 = vmatpush1.msra.mxu0 %v2381
      %2399 = vmatprep.subr.mxu0 0.0
      %2400 = vmatpush1.msra.mxu0 %v2382
      %2401 = vmatprep.subr.mxu0 0.0
      %2402 = vmatpush1.msra.mxu0 0.0
      %2403 = vmatprep.subr.mxu0 0.0
      %2404 = vmatpush1.msra.mxu0 0.0
      %2405 = vmatprep.subr.mxu0 0.0
      %2406 = vmatpush1.msra.mxu0 0.0
      %2407 = vmatprep.subr.mxu0 0.0
      %2408 = vmatpush1.msra.mxu0 0.0
      %2409 = vmatprep.subr.mxu0 0.0
      %2410 = vmatpush1.msra.mxu0 0.0
      %2411 = vmatprep.subr.mxu0 0.0
      %2412 = vmatpush1.msra.mxu0 0.0
      %2413 = vmatprep.subr.mxu0 0.0
      %2414 = vmatpush1.msra.mxu0 0.0
      %2415 = vmatprep.subr.mxu0 0.0
      %2416 = vmatpush1.msra.mxu0 0.0
      %2417 = vmatprep.subr.mxu0 0.0
      %2418 = vmatpush1.msra.mxu0 0.0
      %2419 = vmatprep.subr.mxu0 0.0
      %2420 = vmatpush1.msra.mxu0 0.0
      %2421 = vmatprep.subr.mxu0 0.0
      %2422 = vmatpush1.msra.mxu0 0.0
      %2423 = vmatprep.subr.mxu0 0.0
      %2424 = vmatpush1.msra.mxu0 0.0
      %2425 = vmatprep.subr.mxu0 0.0
      %2426 = vmatpush1.msra.mxu0 0.0
      %2427 = vmatprep.subr.mxu0 0.0
      %2428 = vmatpush1.msra.mxu0 0.0
      %2429 = vmatprep.subr.mxu0 0.0
      %2430 = vmatpush1.msra.mxu0 0.0
      %2431 = vmatprep.subr.mxu0 0.0
      %2432 = vmatpush1.msra.mxu0 0.0
      %2433 = vmatprep.subr.mxu0 0.0
      %2434 = vmatpush1.msra.mxu0 0.0
      %2435 = vmatprep.subr.mxu0 0.0
      %2436 = vmatpush1.msra.mxu0 0.0
      %2437 = vmatprep.subr.mxu0 0.0
      %2438 = vmatpush1.msra.mxu0 0.0
      %2439 = vmatprep.subr.mxu0 0.0
      %2440 = vmatpush1.msra.mxu0 0.0
      %2441 = vmatprep.subr.mxu0 0.0
      %2442 = vmatpush1.msra.mxu0 0.0
      %2443 = vmatprep.subr.mxu0 0.0
      %2444 = vmatpush1.msra.mxu0 0.0
      %2445 = vmatprep.subr.mxu0 0.0
      %2446 = vmatpush1.msra.mxu0 0.0
      %2447 = vmatprep.subr.mxu0 0.0
      %2448 = vmatpush1.msra.mxu0 0.0
      %2449 = vmatprep.subr.mxu0 0.0
      %2450 = vmatpush1.msra.mxu0 0.0
      %2451 = vmatprep.subr.mxu0 0.0
      %2452 = vmatpush1.msra.mxu0 0.0
      %2453 = vmatprep.subr.mxu0 0.0
      %2454 = vmatpush1.msra.mxu0 0.0
      %2455 = vmatprep.subr.mxu0 0.0
      %2456 = vmatpush1.msra.mxu0 0.0
      %2457 = vmatprep.subr.mxu0 0.0
      %2458 = vmatpush1.msra.mxu0 0.0
      %2459 = vmatprep.subr.mxu0 0.0
      %2460 = vmatpush1.msra.mxu0 0.0
      %2461 = vmatprep.mubr.f32.mxu0 0.0
      %2462 = vmatmul.mubr.f32.gmra.mrb[0].mxu0 %v2386
      %v2463 = vpop.f32.mrb[0].mxu0
      %v2464 = vadd.f32 0.0, %v2463
      %v2465 = vpop.f32.mrb[0].mxu0
      %2466 = vmatprep.mubr.f32.mxu0 0.0
      %2467 = vmatmul.mubr.f32.gmra.mrb[0].mxu0 %v2389
      %v2468 = vpop.f32.mrb[0].mxu0
      %v2469 = vadd.f32 0.0, %v2468
      %v2470 = vpop.f32.mrb[0].mxu0
      %2471 = vmatprep.mubr.f32.mxu0 0.0
      %2472 = vmatmul.mubr.f32.gmra.mrb[0].mxu0 %v2392
      %v2473 = vpop.f32.mrb[0].mxu0
      %v2474 = vadd.f32 0.0, %v2473
      %v2475 = vpop.f32.mrb[0].mxu0
      %2476 = vmatprep.mubr.f32.mxu0 0.0
      %2477 = vmatmul.mubr.f32.gmra.mrb[0].mxu0 %v2395
      %v2478 = vpop.f32.mrb[0].mxu0
      %v2479 = vadd.f32 0.0, %v2478
      %v2480 = vpop.f32.mrb[0].mxu0
      %2481 = vdwg.mxu0
      %v2482 = vadd.f32 %v2362, %v2464
      %v2483 = vadd.f32 %v2363, %v2469
      %v2484 = vadd.f32 %v2364, %v2474
      %v2485 = vadd.f32 %v2365, %v2479
      %s2486 = scalar_lea.vmem %s6, 128
      %v2487 = vld [vmem:[%s2486] sm:$0xff]
      %v2488 = vld [vmem:[%s2486 + $0x8] sm:$0xff]
      %v2489 = vld [vmem:[%s2486 + $0x10] sm:$0xff]
      %v2490 = vld [vmem:[%s2486 + $0x18] sm:$0xff]
      %2491 = vrot.lane.b32.xlu0 %v2038, 115
      %v2492 = vpop.permute.xlu0 %2491
      %2493 = vrot.lane.b32.xlu0 %v2040, 115
      %v2494 = vpop.permute.xlu0 %2493
      %2495 = vrot.lane.b32.xlu0 %v2039, 115
      %v2496 = vpop.permute.xlu0 %2495
      %2497 = vrot.lane.b32.xlu0 %v2041, 115
      %v2498 = vpop.permute.xlu0 %2497
      %v2499 = vsel %vm743, %v2492, %v2494
      %v2500 = vsel %vm743, %v2496, %v2498
      %v2504 = vsel %vm2059, %v2487, 0
      %v2507 = vsel %vm2059, %v2488, 0
      %v2510 = vsel %vm2059, %v2489, 0
      %v2513 = vsel %vm2059, %v2490, 0
      %2515 = vmatprep.subr.mxu0 0.0
      %2516 = vmatpush1.msra.mxu0 %v2499
      %2517 = vmatprep.subr.mxu0 0.0
      %2518 = vmatpush1.msra.mxu0 %v2500
      %2519 = vmatprep.subr.mxu0 0.0
      %2520 = vmatpush1.msra.mxu0 0.0
      %2521 = vmatprep.subr.mxu0 0.0
      %2522 = vmatpush1.msra.mxu0 0.0
      %2523 = vmatprep.subr.mxu0 0.0
      %2524 = vmatpush1.msra.mxu0 0.0
      %2525 = vmatprep.subr.mxu0 0.0
      %2526 = vmatpush1.msra.mxu0 0.0
      %2527 = vmatprep.subr.mxu0 0.0
      %2528 = vmatpush1.msra.mxu0 0.0
      %2529 = vmatprep.subr.mxu0 0.0
      %2530 = vmatpush1.msra.mxu0 0.0
      %2531 = vmatprep.subr.mxu0 0.0
      %2532 = vmatpush1.msra.mxu0 0.0
      %2533 = vmatprep.subr.mxu0 0.0
      %2534 = vmatpush1.msra.mxu0 0.0
      %2535 = vmatprep.subr.mxu0 0.0
      %2536 = vmatpush1.msra.mxu0 0.0
      %2537 = vmatprep.subr.mxu0 0.0
      %2538 = vmatpush1.msra.mxu0 0.0
      %2539 = vmatprep.subr.mxu0 0.0
      %2540 = vmatpush1.msra.mxu0 0.0
      %2541 = vmatprep.subr.mxu0 0.0
      %2542 = vmatpush1.msra.mxu0 0.0
      %2543 = vmatprep.subr.mxu0 0.0
      %2544 = vmatpush1.msra.mxu0 0.0
      %2545 = vmatprep.subr.mxu0 0.0
      %2546 = vmatpush1.msra.mxu0 0.0
      %2547 = vmatprep.subr.mxu0 0.0
      %2548 = vmatpush1.msra.mxu0 0.0
      %2549 = vmatprep.subr.mxu0 0.0
      %2550 = vmatpush1.msra.mxu0 0.0
      %2551 = vmatprep.subr.mxu0 0.0
      %2552 = vmatpush1.msra.mxu0 0.0
      %2553 = vmatprep.subr.mxu0 0.0
      %2554 = vmatpush1.msra.mxu0 0.0
      %2555 = vmatprep.subr.mxu0 0.0
      %2556 = vmatpush1.msra.mxu0 0.0
      %2557 = vmatprep.subr.mxu0 0.0
      %2558 = vmatpush1.msra.mxu0 0.0
      %2559 = vmatprep.subr.mxu0 0.0
      %2560 = vmatpush1.msra.mxu0 0.0
      %2561 = vmatprep.subr.mxu0 0.0
      %2562 = vmatpush1.msra.mxu0 0.0
      %2563 = vmatprep.subr.mxu0 0.0
      %2564 = vmatpush1.msra.mxu0 0.0
      %2565 = vmatprep.subr.mxu0 0.0
      %2566 = vmatpush1.msra.mxu0 0.0
      %2567 = vmatprep.subr.mxu0 0.0
      %2568 = vmatpush1.msra.mxu0 0.0
      %2569 = vmatprep.subr.mxu0 0.0
      %2570 = vmatpush1.msra.mxu0 0.0
      %2571 = vmatprep.subr.mxu0 0.0
      %2572 = vmatpush1.msra.mxu0 0.0
      %2573 = vmatprep.subr.mxu0 0.0
      %2574 = vmatpush1.msra.mxu0 0.0
      %2575 = vmatprep.subr.mxu0 0.0
      %2576 = vmatpush1.msra.mxu0 0.0
      %2577 = vmatprep.subr.mxu0 0.0
      %2578 = vmatpush1.msra.mxu0 0.0
      %2579 = vmatprep.mubr.f32.mxu0 0.0
      %2580 = vmatmul.mubr.f32.gmra.mrb[0].mxu0 %v2504
      %v2581 = vpop.f32.mrb[0].mxu0
      %v2582 = vadd.f32 0.0, %v2581
      %v2583 = vpop.f32.mrb[0].mxu0
      %2584 = vmatprep.mubr.f32.mxu0 0.0
      %2585 = vmatmul.mubr.f32.gmra.mrb[0].mxu0 %v2507
      %v2586 = vpop.f32.mrb[0].mxu0
      %v2587 = vadd.f32 0.0, %v2586
      %v2588 = vpop.f32.mrb[0].mxu0
      %2589 = vmatprep.mubr.f32.mxu0 0.0
      %2590 = vmatmul.mubr.f32.gmra.mrb[0].mxu0 %v2510
      %v2591 = vpop.f32.mrb[0].mxu0
      %v2592 = vadd.f32 0.0, %v2591
      %v2593 = vpop.f32.mrb[0].mxu0
      %2594 = vmatprep.mubr.f32.mxu0 0.0
      %2595 = vmatmul.mubr.f32.gmra.mrb[0].mxu0 %v2513
      %v2596 = vpop.f32.mrb[0].mxu0
      %v2597 = vadd.f32 0.0, %v2596
      %v2598 = vpop.f32.mrb[0].mxu0
      %2599 = vdwg.mxu0
      %v2600 = vadd.f32 %v2482, %v2582
      %v2601 = vadd.f32 %v2483, %v2587
      %v2602 = vadd.f32 %v2484, %v2592
      %v2603 = vadd.f32 %v2485, %v2597
      %s2604 = scalar_lea.vmem %s6, 160
      %v2605 = vld [vmem:[%s2604] sm:$0xff]
      %v2606 = vld [vmem:[%s2604 + $0x8] sm:$0xff]
      %v2607 = vld [vmem:[%s2604 + $0x10] sm:$0xff]
      %v2608 = vld [vmem:[%s2604 + $0x18] sm:$0xff]
      %2609 = vrot.lane.b32.xlu0 %v2038, 114
      %v2610 = vpop.permute.xlu0 %2609
      %2611 = vrot.lane.b32.xlu0 %v2040, 114
      %v2612 = vpop.permute.xlu0 %2611
      %2613 = vrot.lane.b32.xlu0 %v2039, 114
      %v2614 = vpop.permute.xlu0 %2613
      %2615 = vrot.lane.b32.xlu0 %v2041, 114
      %v2616 = vpop.permute.xlu0 %2615
      %v2617 = vsel %vm827, %v2610, %v2612
      %v2618 = vsel %vm827, %v2614, %v2616
      %v2622 = vsel %vm2059, %v2605, 0
      %v2625 = vsel %vm2059, %v2606, 0
      %v2628 = vsel %vm2059, %v2607, 0
      %v2631 = vsel %vm2059, %v2608, 0
      %2633 = vmatprep.subr.mxu0 0.0
      %2634 = vmatpush1.msra.mxu0 %v2617
      %2635 = vmatprep.subr.mxu0 0.0
      %2636 = vmatpush1.msra.mxu0 %v2618
      %2637 = vmatprep.subr.mxu0 0.0
      %2638 = vmatpush1.msra.mxu0 0.0
      %2639 = vmatprep.subr.mxu0 0.0
      %2640 = vmatpush1.msra.mxu0 0.0
      %2641 = vmatprep.subr.mxu0 0.0
      %2642 = vmatpush1.msra.mxu0 0.0
      %2643 = vmatprep.subr.mxu0 0.0
      %2644 = vmatpush1.msra.mxu0 0.0
      %2645 = vmatprep.subr.mxu0 0.0
      %2646 = vmatpush1.msra.mxu0 0.0
      %2647 = vmatprep.subr.mxu0 0.0
      %2648 = vmatpush1.msra.mxu0 0.0
      %2649 = vmatprep.subr.mxu0 0.0
      %2650 = vmatpush1.msra.mxu0 0.0
      %2651 = vmatprep.subr.mxu0 0.0
      %2652 = vmatpush1.msra.mxu0 0.0
      %2653 = vmatprep.subr.mxu0 0.0
      %2654 = vmatpush1.msra.mxu0 0.0
      %2655 = vmatprep.subr.mxu0 0.0
      %2656 = vmatpush1.msra.mxu0 0.0
      %2657 = vmatprep.subr.mxu0 0.0
      %2658 = vmatpush1.msra.mxu0 0.0
      %2659 = vmatprep.subr.mxu0 0.0
      %2660 = vmatpush1.msra.mxu0 0.0
      %2661 = vmatprep.subr.mxu0 0.0
      %2662 = vmatpush1.msra.mxu0 0.0
      %2663 = vmatprep.subr.mxu0 0.0
      %2664 = vmatpush1.msra.mxu0 0.0
      %2665 = vmatprep.subr.mxu0 0.0
      %2666 = vmatpush1.msra.mxu0 0.0
      %2667 = vmatprep.subr.mxu0 0.0
      %2668 = vmatpush1.msra.mxu0 0.0
      %2669 = vmatprep.subr.mxu0 0.0
      %2670 = vmatpush1.msra.mxu0 0.0
      %2671 = vmatprep.subr.mxu0 0.0
      %2672 = vmatpush1.msra.mxu0 0.0
      %2673 = vmatprep.subr.mxu0 0.0
      %2674 = vmatpush1.msra.mxu0 0.0
      %2675 = vmatprep.subr.mxu0 0.0
      %2676 = vmatpush1.msra.mxu0 0.0
      %2677 = vmatprep.subr.mxu0 0.0
      %2678 = vmatpush1.msra.mxu0 0.0
      %2679 = vmatprep.subr.mxu0 0.0
      %2680 = vmatpush1.msra.mxu0 0.0
      %2681 = vmatprep.subr.mxu0 0.0
      %2682 = vmatpush1.msra.mxu0 0.0
      %2683 = vmatprep.subr.mxu0 0.0
      %2684 = vmatpush1.msra.mxu0 0.0
      %2685 = vmatprep.subr.mxu0 0.0
      %2686 = vmatpush1.msra.mxu0 0.0
      %2687 = vmatprep.subr.mxu0 0.0
      %2688 = vmatpush1.msra.mxu0 0.0
      %2689 = vmatprep.subr.mxu0 0.0
      %2690 = vmatpush1.msra.mxu0 0.0
      %2691 = vmatprep.subr.mxu0 0.0
      %2692 = vmatpush1.msra.mxu0 0.0
      %2693 = vmatprep.subr.mxu0 0.0
      %2694 = vmatpush1.msra.mxu0 0.0
      %2695 = vmatprep.subr.mxu0 0.0
      %2696 = vmatpush1.msra.mxu0 0.0
      %2697 = vmatprep.mubr.f32.mxu0 0.0
      %2698 = vmatmul.mubr.f32.gmra.mrb[0].mxu0 %v2622
      %v2699 = vpop.f32.mrb[0].mxu0
      %v2700 = vadd.f32 0.0, %v2699
      %v2701 = vpop.f32.mrb[0].mxu0
      %2702 = vmatprep.mubr.f32.mxu0 0.0
      %2703 = vmatmul.mubr.f32.gmra.mrb[0].mxu0 %v2625
      %v2704 = vpop.f32.mrb[0].mxu0
      %v2705 = vadd.f32 0.0, %v2704
      %v2706 = vpop.f32.mrb[0].mxu0
      %2707 = vmatprep.mubr.f32.mxu0 0.0
      %2708 = vmatmul.mubr.f32.gmra.mrb[0].mxu0 %v2628
      %v2709 = vpop.f32.mrb[0].mxu0
      %v2710 = vadd.f32 0.0, %v2709
      %v2711 = vpop.f32.mrb[0].mxu0
      %2712 = vmatprep.mubr.f32.mxu0 0.0
      %2713 = vmatmul.mubr.f32.gmra.mrb[0].mxu0 %v2631
      %v2714 = vpop.f32.mrb[0].mxu0
      %v2715 = vadd.f32 0.0, %v2714
      %v2716 = vpop.f32.mrb[0].mxu0
      %2717 = vdwg.mxu0
      %v2718 = vadd.f32 %v2600, %v2700
      %v2719 = vadd.f32 %v2601, %v2705
      %v2720 = vadd.f32 %v2602, %v2710
      %v2721 = vadd.f32 %v2603, %v2715
      %s2722 = scalar_lea.vmem %s6, 192
      %v2723 = vld [vmem:[%s2722] sm:$0xff]
      %v2724 = vld [vmem:[%s2722 + $0x8] sm:$0xff]
      %v2725 = vld [vmem:[%s2722 + $0x10] sm:$0xff]
      %v2726 = vld [vmem:[%s2722 + $0x18] sm:$0xff]
      %2727 = vrot.lane.b32.xlu0 %v2038, 104
      %v2728 = vpop.permute.xlu0 %2727
      %2729 = vrot.lane.b32.xlu0 %v2040, 104
      %v2730 = vpop.permute.xlu0 %2729
      %2731 = vrot.lane.b32.xlu0 %v2039, 104
      %v2732 = vpop.permute.xlu0 %2731
      %2733 = vrot.lane.b32.xlu0 %v2041, 104
      %v2734 = vpop.permute.xlu0 %2733
      %v2735 = vsel %vm911, %v2728, %v2730
      %v2736 = vsel %vm911, %v2732, %v2734
      %v2740 = vsel %vm2059, %v2723, 0
      %v2743 = vsel %vm2059, %v2724, 0
      %v2746 = vsel %vm2059, %v2725, 0
      %v2749 = vsel %vm2059, %v2726, 0
      %2751 = vmatprep.subr.mxu0 0.0
      %2752 = vmatpush1.msra.mxu0 %v2735
      %2753 = vmatprep.subr.mxu0 0.0
      %2754 = vmatpush1.msra.mxu0 %v2736
      %2755 = vmatprep.subr.mxu0 0.0
      %2756 = vmatpush1.msra.mxu0 0.0
      %2757 = vmatprep.subr.mxu0 0.0
      %2758 = vmatpush1.msra.mxu0 0.0
      %2759 = vmatprep.subr.mxu0 0.0
      %2760 = vmatpush1.msra.mxu0 0.0
      %2761 = vmatprep.subr.mxu0 0.0
      %2762 = vmatpush1.msra.mxu0 0.0
      %2763 = vmatprep.subr.mxu0 0.0
      %2764 = vmatpush1.msra.mxu0 0.0
      %2765 = vmatprep.subr.mxu0 0.0
      %2766 = vmatpush1.msra.mxu0 0.0
      %2767 = vmatprep.subr.mxu0 0.0
      %2768 = vmatpush1.msra.mxu0 0.0
      %2769 = vmatprep.subr.mxu0 0.0
      %2770 = vmatpush1.msra.mxu0 0.0
      %2771 = vmatprep.subr.mxu0 0.0
      %2772 = vmatpush1.msra.mxu0 0.0
      %2773 = vmatprep.subr.mxu0 0.0
      %2774 = vmatpush1.msra.mxu0 0.0
      %2775 = vmatprep.subr.mxu0 0.0
      %2776 = vmatpush1.msra.mxu0 0.0
      %2777 = vmatprep.subr.mxu0 0.0
      %2778 = vmatpush1.msra.mxu0 0.0
      %2779 = vmatprep.subr.mxu0 0.0
      %2780 = vmatpush1.msra.mxu0 0.0
      %2781 = vmatprep.subr.mxu0 0.0
      %2782 = vmatpush1.msra.mxu0 0.0
      %2783 = vmatprep.subr.mxu0 0.0
      %2784 = vmatpush1.msra.mxu0 0.0
      %2785 = vmatprep.subr.mxu0 0.0
      %2786 = vmatpush1.msra.mxu0 0.0
      %2787 = vmatprep.subr.mxu0 0.0
      %2788 = vmatpush1.msra.mxu0 0.0
      %2789 = vmatprep.subr.mxu0 0.0
      %2790 = vmatpush1.msra.mxu0 0.0
      %2791 = vmatprep.subr.mxu0 0.0
      %2792 = vmatpush1.msra.mxu0 0.0
      %2793 = vmatprep.subr.mxu0 0.0
      %2794 = vmatpush1.msra.mxu0 0.0
      %2795 = vmatprep.subr.mxu0 0.0
      %2796 = vmatpush1.msra.mxu0 0.0
      %2797 = vmatprep.subr.mxu0 0.0
      %2798 = vmatpush1.msra.mxu0 0.0
      %2799 = vmatprep.subr.mxu0 0.0
      %2800 = vmatpush1.msra.mxu0 0.0
      %2801 = vmatprep.subr.mxu0 0.0
      %2802 = vmatpush1.msra.mxu0 0.0
      %2803 = vmatprep.subr.mxu0 0.0
      %2804 = vmatpush1.msra.mxu0 0.0
      %2805 = vmatprep.subr.mxu0 0.0
      %2806 = vmatpush1.msra.mxu0 0.0
      %2807 = vmatprep.subr.mxu0 0.0
      %2808 = vmatpush1.msra.mxu0 0.0
      %2809 = vmatprep.subr.mxu0 0.0
      %2810 = vmatpush1.msra.mxu0 0.0
      %2811 = vmatprep.subr.mxu0 0.0
      %2812 = vmatpush1.msra.mxu0 0.0
      %2813 = vmatprep.subr.mxu0 0.0
      %2814 = vmatpush1.msra.mxu0 0.0
      %2815 = vmatprep.mubr.f32.mxu0 0.0
      %2816 = vmatmul.mubr.f32.gmra.mrb[0].mxu0 %v2740
      %v2817 = vpop.f32.mrb[0].mxu0
      %v2818 = vadd.f32 0.0, %v2817
      %v2819 = vpop.f32.mrb[0].mxu0
      %2820 = vmatprep.mubr.f32.mxu0 0.0
      %2821 = vmatmul.mubr.f32.gmra.mrb[0].mxu0 %v2743
      %v2822 = vpop.f32.mrb[0].mxu0
      %v2823 = vadd.f32 0.0, %v2822
      %v2824 = vpop.f32.mrb[0].mxu0
      %2825 = vmatprep.mubr.f32.mxu0 0.0
      %2826 = vmatmul.mubr.f32.gmra.mrb[0].mxu0 %v2746
      %v2827 = vpop.f32.mrb[0].mxu0
      %v2828 = vadd.f32 0.0, %v2827
      %v2829 = vpop.f32.mrb[0].mxu0
      %2830 = vmatprep.mubr.f32.mxu0 0.0
      %2831 = vmatmul.mubr.f32.gmra.mrb[0].mxu0 %v2749
      %v2832 = vpop.f32.mrb[0].mxu0
      %v2833 = vadd.f32 0.0, %v2832
      %v2834 = vpop.f32.mrb[0].mxu0
      %2835 = vdwg.mxu0
      %v2836 = vadd.f32 %v2718, %v2818
      %v2837 = vadd.f32 %v2719, %v2823
      %v2838 = vadd.f32 %v2720, %v2828
      %v2839 = vadd.f32 %v2721, %v2833
      %s2840 = scalar_lea.vmem %s6, 224
      %v2841 = vld [vmem:[%s2840] sm:$0xff]
      %v2842 = vld [vmem:[%s2840 + $0x8] sm:$0xff]
      %v2843 = vld [vmem:[%s2840 + $0x10] sm:$0xff]
      %v2844 = vld [vmem:[%s2840 + $0x18] sm:$0xff]
      %2845 = vrot.lane.b32.xlu0 %v2038, 103
      %v2846 = vpop.permute.xlu0 %2845
      %2847 = vrot.lane.b32.xlu0 %v2040, 103
      %v2848 = vpop.permute.xlu0 %2847
      %2849 = vrot.lane.b32.xlu0 %v2039, 103
      %v2850 = vpop.permute.xlu0 %2849
      %2851 = vrot.lane.b32.xlu0 %v2041, 103
      %v2852 = vpop.permute.xlu0 %2851
      %v2853 = vsel %vm995, %v2846, %v2848
      %v2854 = vsel %vm995, %v2850, %v2852
      %v2858 = vsel %vm2059, %v2841, 0
      %v2861 = vsel %vm2059, %v2842, 0
      %v2864 = vsel %vm2059, %v2843, 0
      %v2867 = vsel %vm2059, %v2844, 0
      %2869 = vmatprep.subr.mxu0 0.0
      %2870 = vmatpush1.msra.mxu0 %v2853
      %2871 = vmatprep.subr.mxu0 0.0
      %2872 = vmatpush1.msra.mxu0 %v2854
      %2873 = vmatprep.subr.mxu0 0.0
      %2874 = vmatpush1.msra.mxu0 0.0
      %2875 = vmatprep.subr.mxu0 0.0
      %2876 = vmatpush1.msra.mxu0 0.0
      %2877 = vmatprep.subr.mxu0 0.0
      %2878 = vmatpush1.msra.mxu0 0.0
      %2879 = vmatprep.subr.mxu0 0.0
      %2880 = vmatpush1.msra.mxu0 0.0
      %2881 = vmatprep.subr.mxu0 0.0
      %2882 = vmatpush1.msra.mxu0 0.0
      %2883 = vmatprep.subr.mxu0 0.0
      %2884 = vmatpush1.msra.mxu0 0.0
      %2885 = vmatprep.subr.mxu0 0.0
      %2886 = vmatpush1.msra.mxu0 0.0
      %2887 = vmatprep.subr.mxu0 0.0
      %2888 = vmatpush1.msra.mxu0 0.0
      %2889 = vmatprep.subr.mxu0 0.0
      %2890 = vmatpush1.msra.mxu0 0.0
      %2891 = vmatprep.subr.mxu0 0.0
      %2892 = vmatpush1.msra.mxu0 0.0
      %2893 = vmatprep.subr.mxu0 0.0
      %2894 = vmatpush1.msra.mxu0 0.0
      %2895 = vmatprep.subr.mxu0 0.0
      %2896 = vmatpush1.msra.mxu0 0.0
      %2897 = vmatprep.subr.mxu0 0.0
      %2898 = vmatpush1.msra.mxu0 0.0
      %2899 = vmatprep.subr.mxu0 0.0
      %2900 = vmatpush1.msra.mxu0 0.0
      %2901 = vmatprep.subr.mxu0 0.0
      %2902 = vmatpush1.msra.mxu0 0.0
      %2903 = vmatprep.subr.mxu0 0.0
      %2904 = vmatpush1.msra.mxu0 0.0
      %2905 = vmatprep.subr.mxu0 0.0
      %2906 = vmatpush1.msra.mxu0 0.0
      %2907 = vmatprep.subr.mxu0 0.0
      %2908 = vmatpush1.msra.mxu0 0.0
      %2909 = vmatprep.subr.mxu0 0.0
      %2910 = vmatpush1.msra.mxu0 0.0
      %2911 = vmatprep.subr.mxu0 0.0
      %2912 = vmatpush1.msra.mxu0 0.0
      %2913 = vmatprep.subr.mxu0 0.0
      %2914 = vmatpush1.msra.mxu0 0.0
      %2915 = vmatprep.subr.mxu0 0.0
      %2916 = vmatpush1.msra.mxu0 0.0
      %2917 = vmatprep.subr.mxu0 0.0
      %2918 = vmatpush1.msra.mxu0 0.0
      %2919 = vmatprep.subr.mxu0 0.0
      %2920 = vmatpush1.msra.mxu0 0.0
      %2921 = vmatprep.subr.mxu0 0.0
      %2922 = vmatpush1.msra.mxu0 0.0
      %2923 = vmatprep.subr.mxu0 0.0
      %2924 = vmatpush1.msra.mxu0 0.0
      %2925 = vmatprep.subr.mxu0 0.0
      %2926 = vmatpush1.msra.mxu0 0.0
      %2927 = vmatprep.subr.mxu0 0.0
      %2928 = vmatpush1.msra.mxu0 0.0
      %2929 = vmatprep.subr.mxu0 0.0
      %2930 = vmatpush1.msra.mxu0 0.0
      %2931 = vmatprep.subr.mxu0 0.0
      %2932 = vmatpush1.msra.mxu0 0.0
      %2933 = vmatprep.mubr.f32.mxu0 0.0
      %2934 = vmatmul.mubr.f32.gmra.mrb[0].mxu0 %v2858
      %v2935 = vpop.f32.mrb[0].mxu0
      %v2936 = vadd.f32 0.0, %v2935
      %v2937 = vpop.f32.mrb[0].mxu0
      %2938 = vmatprep.mubr.f32.mxu0 0.0
      %2939 = vmatmul.mubr.f32.gmra.mrb[0].mxu0 %v2861
      %v2940 = vpop.f32.mrb[0].mxu0
      %v2941 = vadd.f32 0.0, %v2940
      %v2942 = vpop.f32.mrb[0].mxu0
      %2943 = vmatprep.mubr.f32.mxu0 0.0
      %2944 = vmatmul.mubr.f32.gmra.mrb[0].mxu0 %v2864
      %v2945 = vpop.f32.mrb[0].mxu0
      %v2946 = vadd.f32 0.0, %v2945
      %v2947 = vpop.f32.mrb[0].mxu0
      %2948 = vmatprep.mubr.f32.mxu0 0.0
      %2949 = vmatmul.mubr.f32.gmra.mrb[0].mxu0 %v2867
      %v2950 = vpop.f32.mrb[0].mxu0
      %v2951 = vadd.f32 0.0, %v2950
      %v2952 = vpop.f32.mrb[0].mxu0
      %2953 = vdwg.mxu0
      %v2954 = vadd.f32 %v2836, %v2936
      %v2955 = vadd.f32 %v2837, %v2941
      %v2956 = vadd.f32 %v2838, %v2946
      %v2957 = vadd.f32 %v2839, %v2951
      %s2958 = scalar_lea.vmem %s6, 256
      %v2959 = vld [vmem:[%s2958] sm:$0xff]
      %v2960 = vld [vmem:[%s2958 + $0x8] sm:$0xff]
      %v2961 = vld [vmem:[%s2958 + $0x10] sm:$0xff]
      %v2962 = vld [vmem:[%s2958 + $0x18] sm:$0xff]
      %2963 = vrot.lane.b32.xlu0 %v2038, 102
      %v2964 = vpop.permute.xlu0 %2963
      %2965 = vrot.lane.b32.xlu0 %v2040, 102
      %v2966 = vpop.permute.xlu0 %2965
      %2967 = vrot.lane.b32.xlu0 %v2039, 102
      %v2968 = vpop.permute.xlu0 %2967
      %2969 = vrot.lane.b32.xlu0 %v2041, 102
      %v2970 = vpop.permute.xlu0 %2969
      %v2971 = vsel %vm1079, %v2964, %v2966
      %v2972 = vsel %vm1079, %v2968, %v2970
      %v2976 = vsel %vm2059, %v2959, 0
      %v2979 = vsel %vm2059, %v2960, 0
      %v2982 = vsel %vm2059, %v2961, 0
      %v2985 = vsel %vm2059, %v2962, 0
      %2987 = vmatprep.subr.mxu0 0.0
      %2988 = vmatpush1.msra.mxu0 %v2971
      %2989 = vmatprep.subr.mxu0 0.0
      %2990 = vmatpush1.msra.mxu0 %v2972
      %2991 = vmatprep.subr.mxu0 0.0
      %2992 = vmatpush1.msra.mxu0 0.0
      %2993 = vmatprep.subr.mxu0 0.0
      %2994 = vmatpush1.msra.mxu0 0.0
      %2995 = vmatprep.subr.mxu0 0.0
      %2996 = vmatpush1.msra.mxu0 0.0
      %2997 = vmatprep.subr.mxu0 0.0
      %2998 = vmatpush1.msra.mxu0 0.0
      %2999 = vmatprep.subr.mxu0 0.0
      %3000 = vmatpush1.msra.mxu0 0.0
      %3001 = vmatprep.subr.mxu0 0.0
      %3002 = vmatpush1.msra.mxu0 0.0
      %3003 = vmatprep.subr.mxu0 0.0
      %3004 = vmatpush1.msra.mxu0 0.0
      %3005 = vmatprep.subr.mxu0 0.0
      %3006 = vmatpush1.msra.mxu0 0.0
      %3007 = vmatprep.subr.mxu0 0.0
      %3008 = vmatpush1.msra.mxu0 0.0
      %3009 = vmatprep.subr.mxu0 0.0
      %3010 = vmatpush1.msra.mxu0 0.0
      %3011 = vmatprep.subr.mxu0 0.0
      %3012 = vmatpush1.msra.mxu0 0.0
      %3013 = vmatprep.subr.mxu0 0.0
      %3014 = vmatpush1.msra.mxu0 0.0
      %3015 = vmatprep.subr.mxu0 0.0
      %3016 = vmatpush1.msra.mxu0 0.0
      %3017 = vmatprep.subr.mxu0 0.0
      %3018 = vmatpush1.msra.mxu0 0.0
      %3019 = vmatprep.subr.mxu0 0.0
      %3020 = vmatpush1.msra.mxu0 0.0
      %3021 = vmatprep.subr.mxu0 0.0
      %3022 = vmatpush1.msra.mxu0 0.0
      %3023 = vmatprep.subr.mxu0 0.0
      %3024 = vmatpush1.msra.mxu0 0.0
      %3025 = vmatprep.subr.mxu0 0.0
      %3026 = vmatpush1.msra.mxu0 0.0
      %3027 = vmatprep.subr.mxu0 0.0
      %3028 = vmatpush1.msra.mxu0 0.0
      %3029 = vmatprep.subr.mxu0 0.0
      %3030 = vmatpush1.msra.mxu0 0.0
      %3031 = vmatprep.subr.mxu0 0.0
      %3032 = vmatpush1.msra.mxu0 0.0
      %3033 = vmatprep.subr.mxu0 0.0
      %3034 = vmatpush1.msra.mxu0 0.0
      %3035 = vmatprep.subr.mxu0 0.0
      %3036 = vmatpush1.msra.mxu0 0.0
      %3037 = vmatprep.subr.mxu0 0.0
      %3038 = vmatpush1.msra.mxu0 0.0
      %3039 = vmatprep.subr.mxu0 0.0
      %3040 = vmatpush1.msra.mxu0 0.0
      %3041 = vmatprep.subr.mxu0 0.0
      %3042 = vmatpush1.msra.mxu0 0.0
      %3043 = vmatprep.subr.mxu0 0.0
      %3044 = vmatpush1.msra.mxu0 0.0
      %3045 = vmatprep.subr.mxu0 0.0
      %3046 = vmatpush1.msra.mxu0 0.0
      %3047 = vmatprep.subr.mxu0 0.0
      %3048 = vmatpush1.msra.mxu0 0.0
      %3049 = vmatprep.subr.mxu0 0.0
      %3050 = vmatpush1.msra.mxu0 0.0
      %3051 = vmatprep.mubr.f32.mxu0 0.0
      %3052 = vmatmul.mubr.f32.gmra.mrb[0].mxu0 %v2976
      %v3053 = vpop.f32.mrb[0].mxu0
      %v3054 = vadd.f32 0.0, %v3053
      %v3055 = vpop.f32.mrb[0].mxu0
      %3056 = vmatprep.mubr.f32.mxu0 0.0
      %3057 = vmatmul.mubr.f32.gmra.mrb[0].mxu0 %v2979
      %v3058 = vpop.f32.mrb[0].mxu0
      %v3059 = vadd.f32 0.0, %v3058
      %v3060 = vpop.f32.mrb[0].mxu0
      %3061 = vmatprep.mubr.f32.mxu0 0.0
      %3062 = vmatmul.mubr.f32.gmra.mrb[0].mxu0 %v2982
      %v3063 = vpop.f32.mrb[0].mxu0
      %v3064 = vadd.f32 0.0, %v3063
      %v3065 = vpop.f32.mrb[0].mxu0
      %3066 = vmatprep.mubr.f32.mxu0 0.0
      %3067 = vmatmul.mubr.f32.gmra.mrb[0].mxu0 %v2985
      %v3068 = vpop.f32.mrb[0].mxu0
      %v3069 = vadd.f32 0.0, %v3068
      %v3070 = vpop.f32.mrb[0].mxu0
      %3071 = vdwg.mxu0
      %v3072 = vadd.f32 %v2954, %v3054
      %v3073 = vadd.f32 %v2955, %v3059
      %v3074 = vadd.f32 %v2956, %v3064
      %v3075 = vadd.f32 %v2957, %v3069
      %v3076 = vld [vmem:[%s7] sm:$0xff]
      %v3077 = vld [vmem:[%s7 + $0x8] sm:$0xff]
      %v3078 = vld [vmem:[%s7 + $0x10] sm:$0xff]
      %v3079 = vld [vmem:[%s7 + $0x18] sm:$0xff]
      %3081 = vset.pattern.permute.xlu0 0
      %3082 = vperm.xlu0 %3081, %v3076
      %v3083 = vpop.permute.xlu0 %3082
      %3086 = vset.pattern.permute.xlu0 0
      %3087 = vperm.xlu0 %3086, %v3077
      %v3088 = vpop.permute.xlu0 %3087
      %3091 = vset.pattern.permute.xlu0 0
      %3092 = vperm.xlu0 %3091, %v3078
      %v3093 = vpop.permute.xlu0 %3092
      %3096 = vset.pattern.permute.xlu0 0
      %3097 = vperm.xlu0 %3096, %v3079
      %v3098 = vpop.permute.xlu0 %3097
      %v3100 = vadd.f32 %v3072, %v3083
      %v3101 = vadd.f32 %v3073, %v3088
      %v3102 = vadd.f32 %v3074, %v3093
      %v3103 = vadd.f32 %v3075, %v3098
      %vm3104 = vcmp.gt.f32.partialorder %v3100, 0.0
      %vm3105 = vcmp.gt.f32.partialorder %v3101, 0.0
      %vm3106 = vcmp.gt.f32.partialorder %v3102, 0.0
      %vm3107 = vcmp.gt.f32.partialorder %v3103, 0.0
      %v3108 = vmul.f32 %v3100, 1.442695
      %v3109 = vpow.pop %v3108
      %v3110 = vmul.f32 %v3101, 1.442695
      %v3111 = vpow.pop %v3110
      %v3112 = vmul.f32 %v3102, 1.442695
      %v3113 = vpow.pop %v3112
      %v3114 = vmul.f32 %v3103, 1.442695
      %v3115 = vpow.pop %v3114
      %v3116 = vsub.f32 %v3109, 1.0
      %v3117 = vsub.f32 %v3111, 1.0
      %v3118 = vsub.f32 %v3113, 1.0
      %v3119 = vsub.f32 %v3115, 1.0
      %v3120 = vmul.f32 %v3116, 1.6732632
      %v3121 = vmul.f32 %v3117, 1.6732632
      %v3122 = vmul.f32 %v3118, 1.6732632
      %v3123 = vmul.f32 %v3119, 1.6732632
      %v3124 = vsel %vm3104, %v3100, %v3120
      %v3125 = vsel %vm3105, %v3101, %v3121
      %v3126 = vsel %vm3106, %v3102, %v3122
      %v3127 = vsel %vm3107, %v3103, %v3123
      %v3128 = vmul.f32 %v3124, 1.050701
      %v3129 = vmul.f32 %v3125, 1.050701
      %v3130 = vmul.f32 %v3126, 1.050701
      %v3131 = vmul.f32 %v3127, 1.050701
      %v3132 = vld [vmem:[%s9] sm:$0x3]
      %v3133 = vld [vmem:[%s8] sm:$0xff]
      %v3134 = vld [vmem:[%s8 + $0x8] sm:$0xff]
      %v3135 = vld [vmem:[%s8 + $0x10] sm:$0xff]
      %v3136 = vld [vmem:[%s8 + $0x18] sm:$0xff]
      %v3137 = vld [vmem:[%s8 + $0x20] sm:$0xff]
      %v3138 = vld [vmem:[%s8 + $0x28] sm:$0xff]
      %v3139 = vld [vmem:[%s8 + $0x30] sm:$0xff]
      %v3140 = vld [vmem:[%s8 + $0x38] sm:$0xff]
      %v3141 = vld [vmem:[%s8 + $0x40] sm:$0xff]
      %v3142 = vld [vmem:[%s8 + $0x48] sm:$0xff]
      %v3143 = vld [vmem:[%s8 + $0x50] sm:$0xff]
      %v3144 = vld [vmem:[%s8 + $0x58] sm:$0xff]
      %v3145 = vld [vmem:[%s8 + $0x60] sm:$0xff]
      %v3146 = vld [vmem:[%s8 + $0x68] sm:$0xff]
      %v3147 = vld [vmem:[%s8 + $0x70] sm:$0xff]
      %v3148 = vld [vmem:[%s8 + $0x78] sm:$0xff]
      %v3149 = vld [vmem:[%s8 + $0x80] sm:$0xff]
      %v3150 = vld [vmem:[%s8 + $0x88] sm:$0xff]
      %v3151 = vld [vmem:[%s8 + $0x90] sm:$0xff]
      %v3152 = vld [vmem:[%s8 + $0x98] sm:$0xff]
      %v3153 = vld [vmem:[%s8 + $0xa0] sm:$0xff]
      %v3154 = vld [vmem:[%s8 + $0xa8] sm:$0xff]
      %v3155 = vld [vmem:[%s8 + $0xb0] sm:$0xff]
      %v3156 = vld [vmem:[%s8 + $0xb8] sm:$0xff]
      %v3157 = vld [vmem:[%s8 + $0xc0] sm:$0xff]
      %v3158 = vld [vmem:[%s8 + $0xc8] sm:$0xff]
      %v3159 = vld [vmem:[%s8 + $0xd0] sm:$0xff]
      %v3160 = vld [vmem:[%s8 + $0xd8] sm:$0xff]
      %v3161 = vld [vmem:[%s8 + $0xe0] sm:$0x3f]
      %v3162 = vld [vmem:[%s8 + $0xe8] sm:$0x3f]
      %vm3163 = vcmask 965632
      %v3165 = vsel %vm3163, %v3128, 0
      %vm3167 = vcmask 1045504
      %v3169 = vsel %vm3167, %v3161, 0
      %v3172 = vsel %vm3167, %v3162, 0
      %3174 = vmatprep.subr.mxu0 %v3134
      %3175 = vmatpush1.msra.mxu0 %v3133
      %3176 = vmatprep.subr.mxu0 %v3136
      %3177 = vmatpush1.msra.mxu0 %v3135
      %3178 = vmatprep.subr.mxu0 %v3138
      %3179 = vmatpush1.msra.mxu0 %v3137
      %3180 = vmatprep.subr.mxu0 %v3140
      %3181 = vmatpush1.msra.mxu0 %v3139
      %3182 = vmatprep.subr.mxu0 %v3142
      %3183 = vmatpush1.msra.mxu0 %v3141
      %3184 = vmatprep.subr.mxu0 %v3144
      %3185 = vmatpush1.msra.mxu0 %v3143
      %3186 = vmatprep.subr.mxu0 %v3146
      %3187 = vmatpush1.msra.mxu0 %v3145
      %3188 = vmatprep.subr.mxu0 %v3148
      %3189 = vmatpush1.msra.mxu0 %v3147
      %3190 = vmatprep.subr.mxu0 %v3150
      %3191 = vmatpush1.msra.mxu0 %v3149
      %3192 = vmatprep.subr.mxu0 %v3152
      %3193 = vmatpush1.msra.mxu0 %v3151
      %3194 = vmatprep.subr.mxu0 %v3154
      %3195 = vmatpush1.msra.mxu0 %v3153
      %3196 = vmatprep.subr.mxu0 %v3156
      %3197 = vmatpush1.msra.mxu0 %v3155
      %3198 = vmatprep.subr.mxu0 %v3158
      %3199 = vmatpush1.msra.mxu0 %v3157
      %3200 = vmatprep.subr.mxu0 %v3160
      %3201 = vmatpush1.msra.mxu0 %v3159
      %3202 = vmatprep.subr.mxu0 %v3172
      %3203 = vmatpush1.msra.mxu0 %v3169
      %3204 = vmatprep.subr.mxu0 0.0
      %3205 = vmatpush1.msra.mxu0 0.0
      %3206 = vmatprep.subr.mxu0 0.0
      %3207 = vmatpush1.msra.mxu0 0.0
      %3208 = vmatprep.subr.mxu0 0.0
      %3209 = vmatpush1.msra.mxu0 0.0
      %3210 = vmatprep.subr.mxu0 0.0
      %3211 = vmatpush1.msra.mxu0 0.0
      %3212 = vmatprep.subr.mxu0 0.0
      %3213 = vmatpush1.msra.mxu0 0.0
      %3214 = vmatprep.subr.mxu0 0.0
      %3215 = vmatpush1.msra.mxu0 0.0
      %3216 = vmatprep.subr.mxu0 0.0
      %3217 = vmatpush1.msra.mxu0 0.0
      %3218 = vmatprep.subr.mxu0 0.0
      %3219 = vmatpush1.msra.mxu0 0.0
      %3220 = vmatprep.subr.mxu0 0.0
      %3221 = vmatpush1.msra.mxu0 0.0
      %3222 = vmatprep.subr.mxu0 0.0
      %3223 = vmatpush1.msra.mxu0 0.0
      %3224 = vmatprep.subr.mxu0 0.0
      %3225 = vmatpush1.msra.mxu0 0.0
      %3226 = vmatprep.subr.mxu0 0.0
      %3227 = vmatpush1.msra.mxu0 0.0
      %3228 = vmatprep.subr.mxu0 0.0
      %3229 = vmatpush1.msra.mxu0 0.0
      %3230 = vmatprep.subr.mxu0 0.0
      %3231 = vmatpush1.msra.mxu0 0.0
      %3232 = vmatprep.subr.mxu0 0.0
      %3233 = vmatpush1.msra.mxu0 0.0
      %3234 = vmatprep.subr.mxu0 0.0
      %3235 = vmatpush1.msra.mxu0 0.0
      %3236 = vmatprep.subr.mxu0 0.0
      %3237 = vmatpush1.msra.mxu0 0.0
      %3238 = vmatprep.mubr.f32.mxu0 0.0
      %3239 = vmatmul.mubr.f32.gmra.mrb[0].mxu0 %v3165
      %v3240 = vpop.f32.mrb[0].mxu0
      %v3241 = vadd.f32 0.0, %v3240
      %v3242 = vpop.f32.mrb[0].mxu0
      %v3243 = vadd.f32 0.0, %v3242
      %3244 = vdwg.mxu0
      %v3247 = vcombine.low %v3241, %v3243
      %v3249 = vunpack.c.l.s4 1966171168
      %v3250 = vunpack.c.0.s8 %v3249
      %v3251 = vlaneseq
      %v3252 = vshrl.u32 %v3251, 7
      %v3253 = vsub.s32 %v3250, %v3252
      %v3254 = vrot.slane %v3247, %v3253
      %v3256 = vunpack.c.l.s4 1966171168
      %v3257 = vunpack.c.0.s8 %v3256
      %v3258 = vlaneseq
      %v3259 = vshrl.u32 %v3258, 7
      %v3260 = vsub.s32 %v3257, %v3259
      %v3261 = vrot.slane %v3254, %v3260
      %v3263 = vadd.f32 %v3132, %v3261
      %s3264 = scalar_lea.vmem %s8, 240
      %v3265 = vld [vmem:[%s3264] sm:$0xff]
      %v3266 = vld [vmem:[%s3264 + $0x8] sm:$0xff]
      %v3267 = vld [vmem:[%s3264 + $0x10] sm:$0xff]
      %v3268 = vld [vmem:[%s3264 + $0x18] sm:$0xff]
      %v3269 = vld [vmem:[%s3264 + $0x20] sm:$0xff]
      %v3270 = vld [vmem:[%s3264 + $0x28] sm:$0xff]
      %v3271 = vld [vmem:[%s3264 + $0x30] sm:$0xff]
      %v3272 = vld [vmem:[%s3264 + $0x38] sm:$0xff]
      %v3273 = vld [vmem:[%s3264 + $0x40] sm:$0xff]
      %v3274 = vld [vmem:[%s3264 + $0x48] sm:$0xff]
      %v3275 = vld [vmem:[%s3264 + $0x50] sm:$0xff]
      %v3276 = vld [vmem:[%s3264 + $0x58] sm:$0xff]
      %v3277 = vld [vmem:[%s3264 + $0x60] sm:$0xff]
      %v3278 = vld [vmem:[%s3264 + $0x68] sm:$0xff]
      %v3279 = vld [vmem:[%s3264 + $0x70] sm:$0xff]
      %v3280 = vld [vmem:[%s3264 + $0x78] sm:$0xff]
      %v3281 = vld [vmem:[%s3264 + $0x80] sm:$0xff]
      %v3282 = vld [vmem:[%s3264 + $0x88] sm:$0xff]
      %v3283 = vld [vmem:[%s3264 + $0x90] sm:$0xff]
      %v3284 = vld [vmem:[%s3264 + $0x98] sm:$0xff]
      %v3285 = vld [vmem:[%s3264 + $0xa0] sm:$0xff]
      %v3286 = vld [vmem:[%s3264 + $0xa8] sm:$0xff]
      %v3287 = vld [vmem:[%s3264 + $0xb0] sm:$0xff]
      %v3288 = vld [vmem:[%s3264 + $0xb8] sm:$0xff]
      %v3289 = vld [vmem:[%s3264 + $0xc0] sm:$0xff]
      %v3290 = vld [vmem:[%s3264 + $0xc8] sm:$0xff]
      %v3291 = vld [vmem:[%s3264 + $0xd0] sm:$0xff]
      %v3292 = vld [vmem:[%s3264 + $0xd8] sm:$0xff]
      %v3293 = vld [vmem:[%s3264 + $0xe0] sm:$0x3f]
      %v3294 = vld [vmem:[%s3264 + $0xe8] sm:$0x3f]
      %v3295 = vrot.slane %v3128, 1
      %v3296 = vsel %vm3163, %v3295, 0
      %v3299 = vsel %vm3167, %v3293, 0
      %v3302 = vsel %vm3167, %v3294, 0
      %3304 = vmatprep.subr.mxu0 %v3266
      %3305 = vmatpush1.msra.mxu0 %v3265
      %3306 = vmatprep.subr.mxu0 %v3268
      %3307 = vmatpush1.msra.mxu0 %v3267
      %3308 = vmatprep.subr.mxu0 %v3270
      %3309 = vmatpush1.msra.mxu0 %v3269
      %3310 = vmatprep.subr.mxu0 %v3272
      %3311 = vmatpush1.msra.mxu0 %v3271
      %3312 = vmatprep.subr.mxu0 %v3274
      %3313 = vmatpush1.msra.mxu0 %v3273
      %3314 = vmatprep.subr.mxu0 %v3276
      %3315 = vmatpush1.msra.mxu0 %v3275
      %3316 = vmatprep.subr.mxu0 %v3278
      %3317 = vmatpush1.msra.mxu0 %v3277
      %3318 = vmatprep.subr.mxu0 %v3280
      %3319 = vmatpush1.msra.mxu0 %v3279
      %3320 = vmatprep.subr.mxu0 %v3282
      %3321 = vmatpush1.msra.mxu0 %v3281
      %3322 = vmatprep.subr.mxu0 %v3284
      %3323 = vmatpush1.msra.mxu0 %v3283
      %3324 = vmatprep.subr.mxu0 %v3286
      %3325 = vmatpush1.msra.mxu0 %v3285
      %3326 = vmatprep.subr.mxu0 %v3288
      %3327 = vmatpush1.msra.mxu0 %v3287
      %3328 = vmatprep.subr.mxu0 %v3290
      %3329 = vmatpush1.msra.mxu0 %v3289
      %3330 = vmatprep.subr.mxu0 %v3292
      %3331 = vmatpush1.msra.mxu0 %v3291
      %3332 = vmatprep.subr.mxu0 %v3302
      %3333 = vmatpush1.msra.mxu0 %v3299
      %3334 = vmatprep.subr.mxu0 0.0
      %3335 = vmatpush1.msra.mxu0 0.0
      %3336 = vmatprep.subr.mxu0 0.0
      %3337 = vmatpush1.msra.mxu0 0.0
      %3338 = vmatprep.subr.mxu0 0.0
      %3339 = vmatpush1.msra.mxu0 0.0
      %3340 = vmatprep.subr.mxu0 0.0
      %3341 = vmatpush1.msra.mxu0 0.0
      %3342 = vmatprep.subr.mxu0 0.0
      %3343 = vmatpush1.msra.mxu0 0.0
      %3344 = vmatprep.subr.mxu0 0.0
      %3345 = vmatpush1.msra.mxu0 0.0
      %3346 = vmatprep.subr.mxu0 0.0
      %3347 = vmatpush1.msra.mxu0 0.0
      %3348 = vmatprep.subr.mxu0 0.0
      %3349 = vmatpush1.msra.mxu0 0.0
      %3350 = vmatprep.subr.mxu0 0.0
      %3351 = vmatpush1.msra.mxu0 0.0
      %3352 = vmatprep.subr.mxu0 0.0
      %3353 = vmatpush1.msra.mxu0 0.0
      %3354 = vmatprep.subr.mxu0 0.0
      %3355 = vmatpush1.msra.mxu0 0.0
      %3356 = vmatprep.subr.mxu0 0.0
      %3357 = vmatpush1.msra.mxu0 0.0
      %3358 = vmatprep.subr.mxu0 0.0
      %3359 = vmatpush1.msra.mxu0 0.0
      %3360 = vmatprep.subr.mxu0 0.0
      %3361 = vmatpush1.msra.mxu0 0.0
      %3362 = vmatprep.subr.mxu0 0.0
      %3363 = vmatpush1.msra.mxu0 0.0
      %3364 = vmatprep.subr.mxu0 0.0
      %3365 = vmatpush1.msra.mxu0 0.0
      %3366 = vmatprep.subr.mxu0 0.0
      %3367 = vmatpush1.msra.mxu0 0.0
      %3368 = vmatprep.mubr.f32.mxu0 0.0
      %3369 = vmatmul.mubr.f32.gmra.mrb[0].mxu0 %v3296
      %v3370 = vpop.f32.mrb[0].mxu0
      %v3371 = vadd.f32 0.0, %v3370
      %v3372 = vpop.f32.mrb[0].mxu0
      %v3373 = vadd.f32 0.0, %v3372
      %3374 = vdwg.mxu0
      %v3377 = vcombine.low %v3371, %v3373
      %v3379 = vunpack.c.l.s4 1966171168
      %v3380 = vunpack.c.0.s8 %v3379
      %v3381 = vlaneseq
      %v3382 = vshrl.u32 %v3381, 7
      %v3383 = vsub.s32 %v3380, %v3382
      %v3384 = vrot.slane %v3377, %v3383
      %v3386 = vunpack.c.l.s4 1966171168
      %v3387 = vunpack.c.0.s8 %v3386
      %v3388 = vlaneseq
      %v3389 = vshrl.u32 %v3388, 7
      %v3390 = vsub.s32 %v3387, %v3389
      %v3391 = vrot.slane %v3384, %v3390
      %v3393 = vadd.f32 %v3263, %v3391
      %s3394 = scalar_lea.vmem %s8, 480
      %v3395 = vld [vmem:[%s3394] sm:$0xff]
      %v3396 = vld [vmem:[%s3394 + $0x8] sm:$0xff]
      %v3397 = vld [vmem:[%s3394 + $0x10] sm:$0xff]
      %v3398 = vld [vmem:[%s3394 + $0x18] sm:$0xff]
      %v3399 = vld [vmem:[%s3394 + $0x20] sm:$0xff]
      %v3400 = vld [vmem:[%s3394 + $0x28] sm:$0xff]
      %v3401 = vld [vmem:[%s3394 + $0x30] sm:$0xff]
      %v3402 = vld [vmem:[%s3394 + $0x38] sm:$0xff]
      %v3403 = vld [vmem:[%s3394 + $0x40] sm:$0xff]
      %v3404 = vld [vmem:[%s3394 + $0x48] sm:$0xff]
      %v3405 = vld [vmem:[%s3394 + $0x50] sm:$0xff]
      %v3406 = vld [vmem:[%s3394 + $0x58] sm:$0xff]
      %v3407 = vld [vmem:[%s3394 + $0x60] sm:$0xff]
      %v3408 = vld [vmem:[%s3394 + $0x68] sm:$0xff]
      %v3409 = vld [vmem:[%s3394 + $0x70] sm:$0xff]
      %v3410 = vld [vmem:[%s3394 + $0x78] sm:$0xff]
      %v3411 = vld [vmem:[%s3394 + $0x80] sm:$0xff]
      %v3412 = vld [vmem:[%s3394 + $0x88] sm:$0xff]
      %v3413 = vld [vmem:[%s3394 + $0x90] sm:$0xff]
      %v3414 = vld [vmem:[%s3394 + $0x98] sm:$0xff]
      %v3415 = vld [vmem:[%s3394 + $0xa0] sm:$0xff]
      %v3416 = vld [vmem:[%s3394 + $0xa8] sm:$0xff]
      %v3417 = vld [vmem:[%s3394 + $0xb0] sm:$0xff]
      %v3418 = vld [vmem:[%s3394 + $0xb8] sm:$0xff]
      %v3419 = vld [vmem:[%s3394 + $0xc0] sm:$0xff]
      %v3420 = vld [vmem:[%s3394 + $0xc8] sm:$0xff]
      %v3421 = vld [vmem:[%s3394 + $0xd0] sm:$0xff]
      %v3422 = vld [vmem:[%s3394 + $0xd8] sm:$0xff]
      %v3423 = vld [vmem:[%s3394 + $0xe0] sm:$0x3f]
      %v3424 = vld [vmem:[%s3394 + $0xe8] sm:$0x3f]
      %v3425 = vrot.slane %v3128, 2
      %v3426 = vsel %vm3163, %v3425, 0
      %v3429 = vsel %vm3167, %v3423, 0
      %v3432 = vsel %vm3167, %v3424, 0
      %3434 = vmatprep.subr.mxu0 %v3396
      %3435 = vmatpush1.msra.mxu0 %v3395
      %3436 = vmatprep.subr.mxu0 %v3398
      %3437 = vmatpush1.msra.mxu0 %v3397
      %3438 = vmatprep.subr.mxu0 %v3400
      %3439 = vmatpush1.msra.mxu0 %v3399
      %3440 = vmatprep.subr.mxu0 %v3402
      %3441 = vmatpush1.msra.mxu0 %v3401
      %3442 = vmatprep.subr.mxu0 %v3404
      %3443 = vmatpush1.msra.mxu0 %v3403
      %3444 = vmatprep.subr.mxu0 %v3406
      %3445 = vmatpush1.msra.mxu0 %v3405
      %3446 = vmatprep.subr.mxu0 %v3408
      %3447 = vmatpush1.msra.mxu0 %v3407
      %3448 = vmatprep.subr.mxu0 %v3410
      %3449 = vmatpush1.msra.mxu0 %v3409
      %3450 = vmatprep.subr.mxu0 %v3412
      %3451 = vmatpush1.msra.mxu0 %v3411
      %3452 = vmatprep.subr.mxu0 %v3414
      %3453 = vmatpush1.msra.mxu0 %v3413
      %3454 = vmatprep.subr.mxu0 %v3416
      %3455 = vmatpush1.msra.mxu0 %v3415
      %3456 = vmatprep.subr.mxu0 %v3418
      %3457 = vmatpush1.msra.mxu0 %v3417
      %3458 = vmatprep.subr.mxu0 %v3420
      %3459 = vmatpush1.msra.mxu0 %v3419
      %3460 = vmatprep.subr.mxu0 %v3422
      %3461 = vmatpush1.msra.mxu0 %v3421
      %3462 = vmatprep.subr.mxu0 %v3432
      %3463 = vmatpush1.msra.mxu0 %v3429
      %3464 = vmatprep.subr.mxu0 0.0
      %3465 = vmatpush1.msra.mxu0 0.0
      %3466 = vmatprep.subr.mxu0 0.0
      %3467 = vmatpush1.msra.mxu0 0.0
      %3468 = vmatprep.subr.mxu0 0.0
      %3469 = vmatpush1.msra.mxu0 0.0
      %3470 = vmatprep.subr.mxu0 0.0
      %3471 = vmatpush1.msra.mxu0 0.0
      %3472 = vmatprep.subr.mxu0 0.0
      %3473 = vmatpush1.msra.mxu0 0.0
      %3474 = vmatprep.subr.mxu0 0.0
      %3475 = vmatpush1.msra.mxu0 0.0
      %3476 = vmatprep.subr.mxu0 0.0
      %3477 = vmatpush1.msra.mxu0 0.0
      %3478 = vmatprep.subr.mxu0 0.0
      %3479 = vmatpush1.msra.mxu0 0.0
      %3480 = vmatprep.subr.mxu0 0.0
      %3481 = vmatpush1.msra.mxu0 0.0
      %3482 = vmatprep.subr.mxu0 0.0
      %3483 = vmatpush1.msra.mxu0 0.0
      %3484 = vmatprep.subr.mxu0 0.0
      %3485 = vmatpush1.msra.mxu0 0.0
      %3486 = vmatprep.subr.mxu0 0.0
      %3487 = vmatpush1.msra.mxu0 0.0
      %3488 = vmatprep.subr.mxu0 0.0
      %3489 = vmatpush1.msra.mxu0 0.0
      %3490 = vmatprep.subr.mxu0 0.0
      %3491 = vmatpush1.msra.mxu0 0.0
      %3492 = vmatprep.subr.mxu0 0.0
      %3493 = vmatpush1.msra.mxu0 0.0
      %3494 = vmatprep.subr.mxu0 0.0
      %3495 = vmatpush1.msra.mxu0 0.0
      %3496 = vmatprep.subr.mxu0 0.0
      %3497 = vmatpush1.msra.mxu0 0.0
      %3498 = vmatprep.mubr.f32.mxu0 0.0
      %3499 = vmatmul.mubr.f32.gmra.mrb[0].mxu0 %v3426
      %v3500 = vpop.f32.mrb[0].mxu0
      %v3501 = vadd.f32 0.0, %v3500
      %v3502 = vpop.f32.mrb[0].mxu0
      %v3503 = vadd.f32 0.0, %v3502
      %3504 = vdwg.mxu0
      %v3507 = vcombine.low %v3501, %v3503
      %v3509 = vunpack.c.l.s4 1966171168
      %v3510 = vunpack.c.0.s8 %v3509
      %v3511 = vlaneseq
      %v3512 = vshrl.u32 %v3511, 7
      %v3513 = vsub.s32 %v3510, %v3512
      %v3514 = vrot.slane %v3507, %v3513
      %v3516 = vunpack.c.l.s4 1966171168
      %v3517 = vunpack.c.0.s8 %v3516
      %v3518 = vlaneseq
      %v3519 = vshrl.u32 %v3518, 7
      %v3520 = vsub.s32 %v3517, %v3519
      %v3521 = vrot.slane %v3514, %v3520
      %v3523 = vadd.f32 %v3393, %v3521
      %s3524 = scalar_lea.vmem %s8, 720
      %v3525 = vld [vmem:[%s3524] sm:$0xff]
      %v3526 = vld [vmem:[%s3524 + $0x8] sm:$0xff]
      %v3527 = vld [vmem:[%s3524 + $0x10] sm:$0xff]
      %v3528 = vld [vmem:[%s3524 + $0x18] sm:$0xff]
      %v3529 = vld [vmem:[%s3524 + $0x20] sm:$0xff]
      %v3530 = vld [vmem:[%s3524 + $0x28] sm:$0xff]
      %v3531 = vld [vmem:[%s3524 + $0x30] sm:$0xff]
      %v3532 = vld [vmem:[%s3524 + $0x38] sm:$0xff]
      %v3533 = vld [vmem:[%s3524 + $0x40] sm:$0xff]
      %v3534 = vld [vmem:[%s3524 + $0x48] sm:$0xff]
      %v3535 = vld [vmem:[%s3524 + $0x50] sm:$0xff]
      %v3536 = vld [vmem:[%s3524 + $0x58] sm:$0xff]
      %v3537 = vld [vmem:[%s3524 + $0x60] sm:$0xff]
      %v3538 = vld [vmem:[%s3524 + $0x68] sm:$0xff]
      %v3539 = vld [vmem:[%s3524 + $0x70] sm:$0xff]
      %v3540 = vld [vmem:[%s3524 + $0x78] sm:$0xff]
      %v3541 = vld [vmem:[%s3524 + $0x80] sm:$0xff]
      %v3542 = vld [vmem:[%s3524 + $0x88] sm:$0xff]
      %v3543 = vld [vmem:[%s3524 + $0x90] sm:$0xff]
      %v3544 = vld [vmem:[%s3524 + $0x98] sm:$0xff]
      %v3545 = vld [vmem:[%s3524 + $0xa0] sm:$0xff]
      %v3546 = vld [vmem:[%s3524 + $0xa8] sm:$0xff]
      %v3547 = vld [vmem:[%s3524 + $0xb0] sm:$0xff]
      %v3548 = vld [vmem:[%s3524 + $0xb8] sm:$0xff]
      %v3549 = vld [vmem:[%s3524 + $0xc0] sm:$0xff]
      %v3550 = vld [vmem:[%s3524 + $0xc8] sm:$0xff]
      %v3551 = vld [vmem:[%s3524 + $0xd0] sm:$0xff]
      %v3552 = vld [vmem:[%s3524 + $0xd8] sm:$0xff]
      %v3553 = vld [vmem:[%s3524 + $0xe0] sm:$0x3f]
      %v3554 = vld [vmem:[%s3524 + $0xe8] sm:$0x3f]
      %v3555 = vrot.slane %v3128, 3
      %v3556 = vsel %vm3163, %v3555, 0
      %v3559 = vsel %vm3167, %v3553, 0
      %v3562 = vsel %vm3167, %v3554, 0
      %3564 = vmatprep.subr.mxu0 %v3526
      %3565 = vmatpush1.msra.mxu0 %v3525
      %3566 = vmatprep.subr.mxu0 %v3528
      %3567 = vmatpush1.msra.mxu0 %v3527
      %3568 = vmatprep.subr.mxu0 %v3530
      %3569 = vmatpush1.msra.mxu0 %v3529
      %3570 = vmatprep.subr.mxu0 %v3532
      %3571 = vmatpush1.msra.mxu0 %v3531
      %3572 = vmatprep.subr.mxu0 %v3534
      %3573 = vmatpush1.msra.mxu0 %v3533
      %3574 = vmatprep.subr.mxu0 %v3536
      %3575 = vmatpush1.msra.mxu0 %v3535
      %3576 = vmatprep.subr.mxu0 %v3538
      %3577 = vmatpush1.msra.mxu0 %v3537
      %3578 = vmatprep.subr.mxu0 %v3540
      %3579 = vmatpush1.msra.mxu0 %v3539
      %3580 = vmatprep.subr.mxu0 %v3542
      %3581 = vmatpush1.msra.mxu0 %v3541
      %3582 = vmatprep.subr.mxu0 %v3544
      %3583 = vmatpush1.msra.mxu0 %v3543
      %3584 = vmatprep.subr.mxu0 %v3546
      %3585 = vmatpush1.msra.mxu0 %v3545
      %3586 = vmatprep.subr.mxu0 %v3548
      %3587 = vmatpush1.msra.mxu0 %v3547
      %3588 = vmatprep.subr.mxu0 %v3550
      %3589 = vmatpush1.msra.mxu0 %v3549
      %3590 = vmatprep.subr.mxu0 %v3552
      %3591 = vmatpush1.msra.mxu0 %v3551
      %3592 = vmatprep.subr.mxu0 %v3562
      %3593 = vmatpush1.msra.mxu0 %v3559
      %3594 = vmatprep.subr.mxu0 0.0
      %3595 = vmatpush1.msra.mxu0 0.0
      %3596 = vmatprep.subr.mxu0 0.0
      %3597 = vmatpush1.msra.mxu0 0.0
      %3598 = vmatprep.subr.mxu0 0.0
      %3599 = vmatpush1.msra.mxu0 0.0
      %3600 = vmatprep.subr.mxu0 0.0
      %3601 = vmatpush1.msra.mxu0 0.0
      %3602 = vmatprep.subr.mxu0 0.0
      %3603 = vmatpush1.msra.mxu0 0.0
      %3604 = vmatprep.subr.mxu0 0.0
      %3605 = vmatpush1.msra.mxu0 0.0
      %3606 = vmatprep.subr.mxu0 0.0
      %3607 = vmatpush1.msra.mxu0 0.0
      %3608 = vmatprep.subr.mxu0 0.0
      %3609 = vmatpush1.msra.mxu0 0.0
      %3610 = vmatprep.subr.mxu0 0.0
      %3611 = vmatpush1.msra.mxu0 0.0
      %3612 = vmatprep.subr.mxu0 0.0
      %3613 = vmatpush1.msra.mxu0 0.0
      %3614 = vmatprep.subr.mxu0 0.0
      %3615 = vmatpush1.msra.mxu0 0.0
      %3616 = vmatprep.subr.mxu0 0.0
      %3617 = vmatpush1.msra.mxu0 0.0
      %3618 = vmatprep.subr.mxu0 0.0
      %3619 = vmatpush1.msra.mxu0 0.0
      %3620 = vmatprep.subr.mxu0 0.0
      %3621 = vmatpush1.msra.mxu0 0.0
      %3622 = vmatprep.subr.mxu0 0.0
      %3623 = vmatpush1.msra.mxu0 0.0
      %3624 = vmatprep.subr.mxu0 0.0
      %3625 = vmatpush1.msra.mxu0 0.0
      %3626 = vmatprep.subr.mxu0 0.0
      %3627 = vmatpush1.msra.mxu0 0.0
      %3628 = vmatprep.mubr.f32.mxu0 0.0
      %3629 = vmatmul.mubr.f32.gmra.mrb[0].mxu0 %v3556
      %v3630 = vpop.f32.mrb[0].mxu0
      %v3631 = vadd.f32 0.0, %v3630
      %v3632 = vpop.f32.mrb[0].mxu0
      %v3633 = vadd.f32 0.0, %v3632
      %3634 = vdwg.mxu0
      %v3637 = vcombine.low %v3631, %v3633
      %v3639 = vunpack.c.l.s4 1966171168
      %v3640 = vunpack.c.0.s8 %v3639
      %v3641 = vlaneseq
      %v3642 = vshrl.u32 %v3641, 7
      %v3643 = vsub.s32 %v3640, %v3642
      %v3644 = vrot.slane %v3637, %v3643
      %v3646 = vunpack.c.l.s4 1966171168
      %v3647 = vunpack.c.0.s8 %v3646
      %v3648 = vlaneseq
      %v3649 = vshrl.u32 %v3648, 7
      %v3650 = vsub.s32 %v3647, %v3649
      %v3651 = vrot.slane %v3644, %v3650
      %v3653 = vadd.f32 %v3523, %v3651
      %s3654 = scalar_lea.vmem %s8, 960
      %v3655 = vld [vmem:[%s3654] sm:$0xff]
      %v3656 = vld [vmem:[%s3654 + $0x8] sm:$0xff]
      %v3657 = vld [vmem:[%s3654 + $0x10] sm:$0xff]
      %v3658 = vld [vmem:[%s3654 + $0x18] sm:$0xff]
      %v3659 = vld [vmem:[%s3654 + $0x20] sm:$0xff]
      %v3660 = vld [vmem:[%s3654 + $0x28] sm:$0xff]
      %v3661 = vld [vmem:[%s3654 + $0x30] sm:$0xff]
      %v3662 = vld [vmem:[%s3654 + $0x38] sm:$0xff]
      %v3663 = vld [vmem:[%s3654 + $0x40] sm:$0xff]
      %v3664 = vld [vmem:[%s3654 + $0x48] sm:$0xff]
      %v3665 = vld [vmem:[%s3654 + $0x50] sm:$0xff]
      %v3666 = vld [vmem:[%s3654 + $0x58] sm:$0xff]
      %v3667 = vld [vmem:[%s3654 + $0x60] sm:$0xff]
      %v3668 = vld [vmem:[%s3654 + $0x68] sm:$0xff]
      %v3669 = vld [vmem:[%s3654 + $0x70] sm:$0xff]
      %v3670 = vld [vmem:[%s3654 + $0x78] sm:$0xff]
      %v3671 = vld [vmem:[%s3654 + $0x80] sm:$0xff]
      %v3672 = vld [vmem:[%s3654 + $0x88] sm:$0xff]
      %v3673 = vld [vmem:[%s3654 + $0x90] sm:$0xff]
      %v3674 = vld [vmem:[%s3654 + $0x98] sm:$0xff]
      %v3675 = vld [vmem:[%s3654 + $0xa0] sm:$0xff]
      %v3676 = vld [vmem:[%s3654 + $0xa8] sm:$0xff]
      %v3677 = vld [vmem:[%s3654 + $0xb0] sm:$0xff]
      %v3678 = vld [vmem:[%s3654 + $0xb8] sm:$0xff]
      %v3679 = vld [vmem:[%s3654 + $0xc0] sm:$0xff]
      %v3680 = vld [vmem:[%s3654 + $0xc8] sm:$0xff]
      %v3681 = vld [vmem:[%s3654 + $0xd0] sm:$0xff]
      %v3682 = vld [vmem:[%s3654 + $0xd8] sm:$0xff]
      %v3683 = vld [vmem:[%s3654 + $0xe0] sm:$0x3f]
      %v3684 = vld [vmem:[%s3654 + $0xe8] sm:$0x3f]
      %v3685 = vrot.slane %v3128, 4
      %v3686 = vsel %vm3163, %v3685, 0
      %v3689 = vsel %vm3167, %v3683, 0
      %v3692 = vsel %vm3167, %v3684, 0
      %3694 = vmatprep.subr.mxu0 %v3656
      %3695 = vmatpush1.msra.mxu0 %v3655
      %3696 = vmatprep.subr.mxu0 %v3658
      %3697 = vmatpush1.msra.mxu0 %v3657
      %3698 = vmatprep.subr.mxu0 %v3660
      %3699 = vmatpush1.msra.mxu0 %v3659
      %3700 = vmatprep.subr.mxu0 %v3662
      %3701 = vmatpush1.msra.mxu0 %v3661
      %3702 = vmatprep.subr.mxu0 %v3664
      %3703 = vmatpush1.msra.mxu0 %v3663
      %3704 = vmatprep.subr.mxu0 %v3666
      %3705 = vmatpush1.msra.mxu0 %v3665
      %3706 = vmatprep.subr.mxu0 %v3668
      %3707 = vmatpush1.msra.mxu0 %v3667
      %3708 = vmatprep.subr.mxu0 %v3670
      %3709 = vmatpush1.msra.mxu0 %v3669
      %3710 = vmatprep.subr.mxu0 %v3672
      %3711 = vmatpush1.msra.mxu0 %v3671
      %3712 = vmatprep.subr.mxu0 %v3674
      %3713 = vmatpush1.msra.mxu0 %v3673
      %3714 = vmatprep.subr.mxu0 %v3676
      %3715 = vmatpush1.msra.mxu0 %v3675
      %3716 = vmatprep.subr.mxu0 %v3678
      %3717 = vmatpush1.msra.mxu0 %v3677
      %3718 = vmatprep.subr.mxu0 %v3680
      %3719 = vmatpush1.msra.mxu0 %v3679
      %3720 = vmatprep.subr.mxu0 %v3682
      %3721 = vmatpush1.msra.mxu0 %v3681
      %3722 = vmatprep.subr.mxu0 %v3692
      %3723 = vmatpush1.msra.mxu0 %v3689
      %3724 = vmatprep.subr.mxu0 0.0
      %3725 = vmatpush1.msra.mxu0 0.0
      %3726 = vmatprep.subr.mxu0 0.0
      %3727 = vmatpush1.msra.mxu0 0.0
      %3728 = vmatprep.subr.mxu0 0.0
      %3729 = vmatpush1.msra.mxu0 0.0
      %3730 = vmatprep.subr.mxu0 0.0
      %3731 = vmatpush1.msra.mxu0 0.0
      %3732 = vmatprep.subr.mxu0 0.0
      %3733 = vmatpush1.msra.mxu0 0.0
      %3734 = vmatprep.subr.mxu0 0.0
      %3735 = vmatpush1.msra.mxu0 0.0
      %3736 = vmatprep.subr.mxu0 0.0
      %3737 = vmatpush1.msra.mxu0 0.0
      %3738 = vmatprep.subr.mxu0 0.0
      %3739 = vmatpush1.msra.mxu0 0.0
      %3740 = vmatprep.subr.mxu0 0.0
      %3741 = vmatpush1.msra.mxu0 0.0
      %3742 = vmatprep.subr.mxu0 0.0
      %3743 = vmatpush1.msra.mxu0 0.0
      %3744 = vmatprep.subr.mxu0 0.0
      %3745 = vmatpush1.msra.mxu0 0.0
      %3746 = vmatprep.subr.mxu0 0.0
      %3747 = vmatpush1.msra.mxu0 0.0
      %3748 = vmatprep.subr.mxu0 0.0
      %3749 = vmatpush1.msra.mxu0 0.0
      %3750 = vmatprep.subr.mxu0 0.0
      %3751 = vmatpush1.msra.mxu0 0.0
      %3752 = vmatprep.subr.mxu0 0.0
      %3753 = vmatpush1.msra.mxu0 0.0
      %3754 = vmatprep.subr.mxu0 0.0
      %3755 = vmatpush1.msra.mxu0 0.0
      %3756 = vmatprep.subr.mxu0 0.0
      %3757 = vmatpush1.msra.mxu0 0.0
      %3758 = vmatprep.mubr.f32.mxu0 0.0
      %3759 = vmatmul.mubr.f32.gmra.mrb[0].mxu0 %v3686
      %v3760 = vpop.f32.mrb[0].mxu0
      %v3761 = vadd.f32 0.0, %v3760
      %v3762 = vpop.f32.mrb[0].mxu0
      %v3763 = vadd.f32 0.0, %v3762
      %3764 = vdwg.mxu0
      %v3767 = vcombine.low %v3761, %v3763
      %v3769 = vunpack.c.l.s4 1966171168
      %v3770 = vunpack.c.0.s8 %v3769
      %v3771 = vlaneseq
      %v3772 = vshrl.u32 %v3771, 7
      %v3773 = vsub.s32 %v3770, %v3772
      %v3774 = vrot.slane %v3767, %v3773
      %v3776 = vunpack.c.l.s4 1966171168
      %v3777 = vunpack.c.0.s8 %v3776
      %v3778 = vlaneseq
      %v3779 = vshrl.u32 %v3778, 7
      %v3780 = vsub.s32 %v3777, %v3779
      %v3781 = vrot.slane %v3774, %v3780
      %v3783 = vadd.f32 %v3653, %v3781
      %s3784 = scalar_lea.vmem %s8, 1200
      %v3785 = vld [vmem:[%s3784] sm:$0xff]
      %v3786 = vld [vmem:[%s3784 + $0x8] sm:$0xff]
      %v3787 = vld [vmem:[%s3784 + $0x10] sm:$0xff]
      %v3788 = vld [vmem:[%s3784 + $0x18] sm:$0xff]
      %v3789 = vld [vmem:[%s3784 + $0x20] sm:$0xff]
      %v3790 = vld [vmem:[%s3784 + $0x28] sm:$0xff]
      %v3791 = vld [vmem:[%s3784 + $0x30] sm:$0xff]
      %v3792 = vld [vmem:[%s3784 + $0x38] sm:$0xff]
      %v3793 = vld [vmem:[%s3784 + $0x40] sm:$0xff]
      %v3794 = vld [vmem:[%s3784 + $0x48] sm:$0xff]
      %v3795 = vld [vmem:[%s3784 + $0x50] sm:$0xff]
      %v3796 = vld [vmem:[%s3784 + $0x58] sm:$0xff]
      %v3797 = vld [vmem:[%s3784 + $0x60] sm:$0xff]
      %v3798 = vld [vmem:[%s3784 + $0x68] sm:$0xff]
      %v3799 = vld [vmem:[%s3784 + $0x70] sm:$0xff]
      %v3800 = vld [vmem:[%s3784 + $0x78] sm:$0xff]
      %v3801 = vld [vmem:[%s3784 + $0x80] sm:$0xff]
      %v3802 = vld [vmem:[%s3784 + $0x88] sm:$0xff]
      %v3803 = vld [vmem:[%s3784 + $0x90] sm:$0xff]
      %v3804 = vld [vmem:[%s3784 + $0x98] sm:$0xff]
      %v3805 = vld [vmem:[%s3784 + $0xa0] sm:$0xff]
      %v3806 = vld [vmem:[%s3784 + $0xa8] sm:$0xff]
      %v3807 = vld [vmem:[%s3784 + $0xb0] sm:$0xff]
      %v3808 = vld [vmem:[%s3784 + $0xb8] sm:$0xff]
      %v3809 = vld [vmem:[%s3784 + $0xc0] sm:$0xff]
      %v3810 = vld [vmem:[%s3784 + $0xc8] sm:$0xff]
      %v3811 = vld [vmem:[%s3784 + $0xd0] sm:$0xff]
      %v3812 = vld [vmem:[%s3784 + $0xd8] sm:$0xff]
      %v3813 = vld [vmem:[%s3784 + $0xe0] sm:$0x3f]
      %v3814 = vld [vmem:[%s3784 + $0xe8] sm:$0x3f]
      %v3815 = vrot.slane %v3128, 5
      %v3816 = vsel %vm3163, %v3815, 0
      %v3819 = vsel %vm3167, %v3813, 0
      %v3822 = vsel %vm3167, %v3814, 0
      %3824 = vmatprep.subr.mxu0 %v3786
      %3825 = vmatpush1.msra.mxu0 %v3785
      %3826 = vmatprep.subr.mxu0 %v3788
      %3827 = vmatpush1.msra.mxu0 %v3787
      %3828 = vmatprep.subr.mxu0 %v3790
      %3829 = vmatpush1.msra.mxu0 %v3789
      %3830 = vmatprep.subr.mxu0 %v3792
      %3831 = vmatpush1.msra.mxu0 %v3791
      %3832 = vmatprep.subr.mxu0 %v3794
      %3833 = vmatpush1.msra.mxu0 %v3793
      %3834 = vmatprep.subr.mxu0 %v3796
      %3835 = vmatpush1.msra.mxu0 %v3795
      %3836 = vmatprep.subr.mxu0 %v3798
      %3837 = vmatpush1.msra.mxu0 %v3797
      %3838 = vmatprep.subr.mxu0 %v3800
      %3839 = vmatpush1.msra.mxu0 %v3799
      %3840 = vmatprep.subr.mxu0 %v3802
      %3841 = vmatpush1.msra.mxu0 %v3801
      %3842 = vmatprep.subr.mxu0 %v3804
      %3843 = vmatpush1.msra.mxu0 %v3803
      %3844 = vmatprep.subr.mxu0 %v3806
      %3845 = vmatpush1.msra.mxu0 %v3805
      %3846 = vmatprep.subr.mxu0 %v3808
      %3847 = vmatpush1.msra.mxu0 %v3807
      %3848 = vmatprep.subr.mxu0 %v3810
      %3849 = vmatpush1.msra.mxu0 %v3809
      %3850 = vmatprep.subr.mxu0 %v3812
      %3851 = vmatpush1.msra.mxu0 %v3811
      %3852 = vmatprep.subr.mxu0 %v3822
      %3853 = vmatpush1.msra.mxu0 %v3819
      %3854 = vmatprep.subr.mxu0 0.0
      %3855 = vmatpush1.msra.mxu0 0.0
      %3856 = vmatprep.subr.mxu0 0.0
      %3857 = vmatpush1.msra.mxu0 0.0
      %3858 = vmatprep.subr.mxu0 0.0
      %3859 = vmatpush1.msra.mxu0 0.0
      %3860 = vmatprep.subr.mxu0 0.0
      %3861 = vmatpush1.msra.mxu0 0.0
      %3862 = vmatprep.subr.mxu0 0.0
      %3863 = vmatpush1.msra.mxu0 0.0
      %3864 = vmatprep.subr.mxu0 0.0
      %3865 = vmatpush1.msra.mxu0 0.0
      %3866 = vmatprep.subr.mxu0 0.0
      %3867 = vmatpush1.msra.mxu0 0.0
      %3868 = vmatprep.subr.mxu0 0.0
      %3869 = vmatpush1.msra.mxu0 0.0
      %3870 = vmatprep.subr.mxu0 0.0
      %3871 = vmatpush1.msra.mxu0 0.0
      %3872 = vmatprep.subr.mxu0 0.0
      %3873 = vmatpush1.msra.mxu0 0.0
      %3874 = vmatprep.subr.mxu0 0.0
      %3875 = vmatpush1.msra.mxu0 0.0
      %3876 = vmatprep.subr.mxu0 0.0
      %3877 = vmatpush1.msra.mxu0 0.0
      %3878 = vmatprep.subr.mxu0 0.0
      %3879 = vmatpush1.msra.mxu0 0.0
      %3880 = vmatprep.subr.mxu0 0.0
      %3881 = vmatpush1.msra.mxu0 0.0
      %3882 = vmatprep.subr.mxu0 0.0
      %3883 = vmatpush1.msra.mxu0 0.0
      %3884 = vmatprep.subr.mxu0 0.0
      %3885 = vmatpush1.msra.mxu0 0.0
      %3886 = vmatprep.subr.mxu0 0.0
      %3887 = vmatpush1.msra.mxu0 0.0
      %3888 = vmatprep.mubr.f32.mxu0 0.0
      %3889 = vmatmul.mubr.f32.gmra.mrb[0].mxu0 %v3816
      %v3890 = vpop.f32.mrb[0].mxu0
      %v3891 = vadd.f32 0.0, %v3890
      %v3892 = vpop.f32.mrb[0].mxu0
      %v3893 = vadd.f32 0.0, %v3892
      %3894 = vdwg.mxu0
      %v3897 = vcombine.low %v3891, %v3893
      %v3899 = vunpack.c.l.s4 1966171168
      %v3900 = vunpack.c.0.s8 %v3899
      %v3901 = vlaneseq
      %v3902 = vshrl.u32 %v3901, 7
      %v3903 = vsub.s32 %v3900, %v3902
      %v3904 = vrot.slane %v3897, %v3903
      %v3906 = vunpack.c.l.s4 1966171168
      %v3907 = vunpack.c.0.s8 %v3906
      %v3908 = vlaneseq
      %v3909 = vshrl.u32 %v3908, 7
      %v3910 = vsub.s32 %v3907, %v3909
      %v3911 = vrot.slane %v3904, %v3910
      %v3913 = vadd.f32 %v3783, %v3911
      %s3914 = scalar_lea.vmem %s8, 1440
      %v3915 = vld [vmem:[%s3914] sm:$0xff]
      %v3916 = vld [vmem:[%s3914 + $0x8] sm:$0xff]
      %v3917 = vld [vmem:[%s3914 + $0x10] sm:$0xff]
      %v3918 = vld [vmem:[%s3914 + $0x18] sm:$0xff]
      %v3919 = vld [vmem:[%s3914 + $0x20] sm:$0xff]
      %v3920 = vld [vmem:[%s3914 + $0x28] sm:$0xff]
      %v3921 = vld [vmem:[%s3914 + $0x30] sm:$0xff]
      %v3922 = vld [vmem:[%s3914 + $0x38] sm:$0xff]
      %v3923 = vld [vmem:[%s3914 + $0x40] sm:$0xff]
      %v3924 = vld [vmem:[%s3914 + $0x48] sm:$0xff]
      %v3925 = vld [vmem:[%s3914 + $0x50] sm:$0xff]
      %v3926 = vld [vmem:[%s3914 + $0x58] sm:$0xff]
      %v3927 = vld [vmem:[%s3914 + $0x60] sm:$0xff]
      %v3928 = vld [vmem:[%s3914 + $0x68] sm:$0xff]
      %v3929 = vld [vmem:[%s3914 + $0x70] sm:$0xff]
      %v3930 = vld [vmem:[%s3914 + $0x78] sm:$0xff]
      %v3931 = vld [vmem:[%s3914 + $0x80] sm:$0xff]
      %v3932 = vld [vmem:[%s3914 + $0x88] sm:$0xff]
      %v3933 = vld [vmem:[%s3914 + $0x90] sm:$0xff]
      %v3934 = vld [vmem:[%s3914 + $0x98] sm:$0xff]
      %v3935 = vld [vmem:[%s3914 + $0xa0] sm:$0xff]
      %v3936 = vld [vmem:[%s3914 + $0xa8] sm:$0xff]
      %v3937 = vld [vmem:[%s3914 + $0xb0] sm:$0xff]
      %v3938 = vld [vmem:[%s3914 + $0xb8] sm:$0xff]
      %v3939 = vld [vmem:[%s3914 + $0xc0] sm:$0xff]
      %v3940 = vld [vmem:[%s3914 + $0xc8] sm:$0xff]
      %v3941 = vld [vmem:[%s3914 + $0xd0] sm:$0xff]
      %v3942 = vld [vmem:[%s3914 + $0xd8] sm:$0xff]
      %v3943 = vld [vmem:[%s3914 + $0xe0] sm:$0x3f]
      %v3944 = vld [vmem:[%s3914 + $0xe8] sm:$0x3f]
      %v3945 = vrot.slane %v3128, 6
      %v3946 = vsel %vm3163, %v3945, 0
      %v3949 = vsel %vm3167, %v3943, 0
      %v3952 = vsel %vm3167, %v3944, 0
      %3954 = vmatprep.subr.mxu0 %v3916
      %3955 = vmatpush1.msra.mxu0 %v3915
      %3956 = vmatprep.subr.mxu0 %v3918
      %3957 = vmatpush1.msra.mxu0 %v3917
      %3958 = vmatprep.subr.mxu0 %v3920
      %3959 = vmatpush1.msra.mxu0 %v3919
      %3960 = vmatprep.subr.mxu0 %v3922
      %3961 = vmatpush1.msra.mxu0 %v3921
      %3962 = vmatprep.subr.mxu0 %v3924
      %3963 = vmatpush1.msra.mxu0 %v3923
      %3964 = vmatprep.subr.mxu0 %v3926
      %3965 = vmatpush1.msra.mxu0 %v3925
      %3966 = vmatprep.subr.mxu0 %v3928
      %3967 = vmatpush1.msra.mxu0 %v3927
      %3968 = vmatprep.subr.mxu0 %v3930
      %3969 = vmatpush1.msra.mxu0 %v3929
      %3970 = vmatprep.subr.mxu0 %v3932
      %3971 = vmatpush1.msra.mxu0 %v3931
      %3972 = vmatprep.subr.mxu0 %v3934
      %3973 = vmatpush1.msra.mxu0 %v3933
      %3974 = vmatprep.subr.mxu0 %v3936
      %3975 = vmatpush1.msra.mxu0 %v3935
      %3976 = vmatprep.subr.mxu0 %v3938
      %3977 = vmatpush1.msra.mxu0 %v3937
      %3978 = vmatprep.subr.mxu0 %v3940
      %3979 = vmatpush1.msra.mxu0 %v3939
      %3980 = vmatprep.subr.mxu0 %v3942
      %3981 = vmatpush1.msra.mxu0 %v3941
      %3982 = vmatprep.subr.mxu0 %v3952
      %3983 = vmatpush1.msra.mxu0 %v3949
      %3984 = vmatprep.subr.mxu0 0.0
      %3985 = vmatpush1.msra.mxu0 0.0
      %3986 = vmatprep.subr.mxu0 0.0
      %3987 = vmatpush1.msra.mxu0 0.0
      %3988 = vmatprep.subr.mxu0 0.0
      %3989 = vmatpush1.msra.mxu0 0.0
      %3990 = vmatprep.subr.mxu0 0.0
      %3991 = vmatpush1.msra.mxu0 0.0
      %3992 = vmatprep.subr.mxu0 0.0
      %3993 = vmatpush1.msra.mxu0 0.0
      %3994 = vmatprep.subr.mxu0 0.0
      %3995 = vmatpush1.msra.mxu0 0.0
      %3996 = vmatprep.subr.mxu0 0.0
      %3997 = vmatpush1.msra.mxu0 0.0
      %3998 = vmatprep.subr.mxu0 0.0
      %3999 = vmatpush1.msra.mxu0 0.0
      %4000 = vmatprep.subr.mxu0 0.0
      %4001 = vmatpush1.msra.mxu0 0.0
      %4002 = vmatprep.subr.mxu0 0.0
      %4003 = vmatpush1.msra.mxu0 0.0
      %4004 = vmatprep.subr.mxu0 0.0
      %4005 = vmatpush1.msra.mxu0 0.0
      %4006 = vmatprep.subr.mxu0 0.0
      %4007 = vmatpush1.msra.mxu0 0.0
      %4008 = vmatprep.subr.mxu0 0.0
      %4009 = vmatpush1.msra.mxu0 0.0
      %4010 = vmatprep.subr.mxu0 0.0
      %4011 = vmatpush1.msra.mxu0 0.0
      %4012 = vmatprep.subr.mxu0 0.0
      %4013 = vmatpush1.msra.mxu0 0.0
      %4014 = vmatprep.subr.mxu0 0.0
      %4015 = vmatpush1.msra.mxu0 0.0
      %4016 = vmatprep.subr.mxu0 0.0
      %4017 = vmatpush1.msra.mxu0 0.0
      %4018 = vmatprep.mubr.f32.mxu0 0.0
      %4019 = vmatmul.mubr.f32.gmra.mrb[0].mxu0 %v3946
      %v4020 = vpop.f32.mrb[0].mxu0
      %v4021 = vadd.f32 0.0, %v4020
      %v4022 = vpop.f32.mrb[0].mxu0
      %v4023 = vadd.f32 0.0, %v4022
      %4024 = vdwg.mxu0
      %v4027 = vcombine.low %v4021, %v4023
      %v4029 = vunpack.c.l.s4 1966171168
      %v4030 = vunpack.c.0.s8 %v4029
      %v4031 = vlaneseq
      %v4032 = vshrl.u32 %v4031, 7
      %v4033 = vsub.s32 %v4030, %v4032
      %v4034 = vrot.slane %v4027, %v4033
      %v4036 = vunpack.c.l.s4 1966171168
      %v4037 = vunpack.c.0.s8 %v4036
      %v4038 = vlaneseq
      %v4039 = vshrl.u32 %v4038, 7
      %v4040 = vsub.s32 %v4037, %v4039
      %v4041 = vrot.slane %v4034, %v4040
      %v4043 = vadd.f32 %v3913, %v4041
      %s4044 = scalar_lea.vmem %s8, 1680
      %v4045 = vld [vmem:[%s4044] sm:$0xff]
      %v4046 = vld [vmem:[%s4044 + $0x8] sm:$0xff]
      %v4047 = vld [vmem:[%s4044 + $0x10] sm:$0xff]
      %v4048 = vld [vmem:[%s4044 + $0x18] sm:$0xff]
      %v4049 = vld [vmem:[%s4044 + $0x20] sm:$0xff]
      %v4050 = vld [vmem:[%s4044 + $0x28] sm:$0xff]
      %v4051 = vld [vmem:[%s4044 + $0x30] sm:$0xff]
      %v4052 = vld [vmem:[%s4044 + $0x38] sm:$0xff]
      %v4053 = vld [vmem:[%s4044 + $0x40] sm:$0xff]
      %v4054 = vld [vmem:[%s4044 + $0x48] sm:$0xff]
      %v4055 = vld [vmem:[%s4044 + $0x50] sm:$0xff]
      %v4056 = vld [vmem:[%s4044 + $0x58] sm:$0xff]
      %v4057 = vld [vmem:[%s4044 + $0x60] sm:$0xff]
      %v4058 = vld [vmem:[%s4044 + $0x68] sm:$0xff]
      %v4059 = vld [vmem:[%s4044 + $0x70] sm:$0xff]
      %v4060 = vld [vmem:[%s4044 + $0x78] sm:$0xff]
      %v4061 = vld [vmem:[%s4044 + $0x80] sm:$0xff]
      %v4062 = vld [vmem:[%s4044 + $0x88] sm:$0xff]
      %v4063 = vld [vmem:[%s4044 + $0x90] sm:$0xff]
      %v4064 = vld [vmem:[%s4044 + $0x98] sm:$0xff]
      %v4065 = vld [vmem:[%s4044 + $0xa0] sm:$0xff]
      %v4066 = vld [vmem:[%s4044 + $0xa8] sm:$0xff]
      %v4067 = vld [vmem:[%s4044 + $0xb0] sm:$0xff]
      %v4068 = vld [vmem:[%s4044 + $0xb8] sm:$0xff]
      %v4069 = vld [vmem:[%s4044 + $0xc0] sm:$0xff]
      %v4070 = vld [vmem:[%s4044 + $0xc8] sm:$0xff]
      %v4071 = vld [vmem:[%s4044 + $0xd0] sm:$0xff]
      %v4072 = vld [vmem:[%s4044 + $0xd8] sm:$0xff]
      %v4073 = vld [vmem:[%s4044 + $0xe0] sm:$0x3f]
      %v4074 = vld [vmem:[%s4044 + $0xe8] sm:$0x3f]
      %v4075 = vrot.slane %v3128, 7
      %v4076 = vsel %vm3163, %v4075, 0
      %v4079 = vsel %vm3167, %v4073, 0
      %v4082 = vsel %vm3167, %v4074, 0
      %4084 = vmatprep.subr.mxu0 %v4046
      %4085 = vmatpush1.msra.mxu0 %v4045
      %4086 = vmatprep.subr.mxu0 %v4048
      %4087 = vmatpush1.msra.mxu0 %v4047
      %4088 = vmatprep.subr.mxu0 %v4050
      %4089 = vmatpush1.msra.mxu0 %v4049
      %4090 = vmatprep.subr.mxu0 %v4052
      %4091 = vmatpush1.msra.mxu0 %v4051
      %4092 = vmatprep.subr.mxu0 %v4054
      %4093 = vmatpush1.msra.mxu0 %v4053
      %4094 = vmatprep.subr.mxu0 %v4056
      %4095 = vmatpush1.msra.mxu0 %v4055
      %4096 = vmatprep.subr.mxu0 %v4058
      %4097 = vmatpush1.msra.mxu0 %v4057
      %4098 = vmatprep.subr.mxu0 %v4060
      %4099 = vmatpush1.msra.mxu0 %v4059
      %4100 = vmatprep.subr.mxu0 %v4062
      %4101 = vmatpush1.msra.mxu0 %v4061
      %4102 = vmatprep.subr.mxu0 %v4064
      %4103 = vmatpush1.msra.mxu0 %v4063
      %4104 = vmatprep.subr.mxu0 %v4066
      %4105 = vmatpush1.msra.mxu0 %v4065
      %4106 = vmatprep.subr.mxu0 %v4068
      %4107 = vmatpush1.msra.mxu0 %v4067
      %4108 = vmatprep.subr.mxu0 %v4070
      %4109 = vmatpush1.msra.mxu0 %v4069
      %4110 = vmatprep.subr.mxu0 %v4072
      %4111 = vmatpush1.msra.mxu0 %v4071
      %4112 = vmatprep.subr.mxu0 %v4082
      %4113 = vmatpush1.msra.mxu0 %v4079
      %4114 = vmatprep.subr.mxu0 0.0
      %4115 = vmatpush1.msra.mxu0 0.0
      %4116 = vmatprep.subr.mxu0 0.0
      %4117 = vmatpush1.msra.mxu0 0.0
      %4118 = vmatprep.subr.mxu0 0.0
      %4119 = vmatpush1.msra.mxu0 0.0
      %4120 = vmatprep.subr.mxu0 0.0
      %4121 = vmatpush1.msra.mxu0 0.0
      %4122 = vmatprep.subr.mxu0 0.0
      %4123 = vmatpush1.msra.mxu0 0.0
      %4124 = vmatprep.subr.mxu0 0.0
      %4125 = vmatpush1.msra.mxu0 0.0
      %4126 = vmatprep.subr.mxu0 0.0
      %4127 = vmatpush1.msra.mxu0 0.0
      %4128 = vmatprep.subr.mxu0 0.0
      %4129 = vmatpush1.msra.mxu0 0.0
      %4130 = vmatprep.subr.mxu0 0.0
      %4131 = vmatpush1.msra.mxu0 0.0
      %4132 = vmatprep.subr.mxu0 0.0
      %4133 = vmatpush1.msra.mxu0 0.0
      %4134 = vmatprep.subr.mxu0 0.0
      %4135 = vmatpush1.msra.mxu0 0.0
      %4136 = vmatprep.subr.mxu0 0.0
      %4137 = vmatpush1.msra.mxu0 0.0
      %4138 = vmatprep.subr.mxu0 0.0
      %4139 = vmatpush1.msra.mxu0 0.0
      %4140 = vmatprep.subr.mxu0 0.0
      %4141 = vmatpush1.msra.mxu0 0.0
      %4142 = vmatprep.subr.mxu0 0.0
      %4143 = vmatpush1.msra.mxu0 0.0
      %4144 = vmatprep.subr.mxu0 0.0
      %4145 = vmatpush1.msra.mxu0 0.0
      %4146 = vmatprep.subr.mxu0 0.0
      %4147 = vmatpush1.msra.mxu0 0.0
      %4148 = vmatprep.mubr.f32.mxu0 0.0
      %4149 = vmatmul.mubr.f32.gmra.mrb[0].mxu0 %v4076
      %v4150 = vpop.f32.mrb[0].mxu0
      %v4151 = vadd.f32 0.0, %v4150
      %v4152 = vpop.f32.mrb[0].mxu0
      %v4153 = vadd.f32 0.0, %v4152
      %4154 = vdwg.mxu0
      %v4157 = vcombine.low %v4151, %v4153
      %v4159 = vunpack.c.l.s4 1966171168
      %v4160 = vunpack.c.0.s8 %v4159
      %v4161 = vlaneseq
      %v4162 = vshrl.u32 %v4161, 7
      %v4163 = vsub.s32 %v4160, %v4162
      %v4164 = vrot.slane %v4157, %v4163
      %v4166 = vunpack.c.l.s4 1966171168
      %v4167 = vunpack.c.0.s8 %v4166
      %v4168 = vlaneseq
      %v4169 = vshrl.u32 %v4168, 7
      %v4170 = vsub.s32 %v4167, %v4169
      %v4171 = vrot.slane %v4164, %v4170
      %v4173 = vadd.f32 %v4043, %v4171
      %s4174 = scalar_lea.vmem %s8, 1920
      %v4175 = vld [vmem:[%s4174] sm:$0xff]
      %v4176 = vld [vmem:[%s4174 + $0x8] sm:$0xff]
      %v4177 = vld [vmem:[%s4174 + $0x10] sm:$0xff]
      %v4178 = vld [vmem:[%s4174 + $0x18] sm:$0xff]
      %v4179 = vld [vmem:[%s4174 + $0x20] sm:$0xff]
      %v4180 = vld [vmem:[%s4174 + $0x28] sm:$0xff]
      %v4181 = vld [vmem:[%s4174 + $0x30] sm:$0xff]
      %v4182 = vld [vmem:[%s4174 + $0x38] sm:$0xff]
      %v4183 = vld [vmem:[%s4174 + $0x40] sm:$0xff]
      %v4184 = vld [vmem:[%s4174 + $0x48] sm:$0xff]
      %v4185 = vld [vmem:[%s4174 + $0x50] sm:$0xff]
      %v4186 = vld [vmem:[%s4174 + $0x58] sm:$0xff]
      %v4187 = vld [vmem:[%s4174 + $0x60] sm:$0xff]
      %v4188 = vld [vmem:[%s4174 + $0x68] sm:$0xff]
      %v4189 = vld [vmem:[%s4174 + $0x70] sm:$0xff]
      %v4190 = vld [vmem:[%s4174 + $0x78] sm:$0xff]
      %v4191 = vld [vmem:[%s4174 + $0x80] sm:$0xff]
      %v4192 = vld [vmem:[%s4174 + $0x88] sm:$0xff]
      %v4193 = vld [vmem:[%s4174 + $0x90] sm:$0xff]
      %v4194 = vld [vmem:[%s4174 + $0x98] sm:$0xff]
      %v4195 = vld [vmem:[%s4174 + $0xa0] sm:$0xff]
      %v4196 = vld [vmem:[%s4174 + $0xa8] sm:$0xff]
      %v4197 = vld [vmem:[%s4174 + $0xb0] sm:$0xff]
      %v4198 = vld [vmem:[%s4174 + $0xb8] sm:$0xff]
      %v4199 = vld [vmem:[%s4174 + $0xc0] sm:$0xff]
      %v4200 = vld [vmem:[%s4174 + $0xc8] sm:$0xff]
      %v4201 = vld [vmem:[%s4174 + $0xd0] sm:$0xff]
      %v4202 = vld [vmem:[%s4174 + $0xd8] sm:$0xff]
      %v4203 = vld [vmem:[%s4174 + $0xe0] sm:$0x3f]
      %v4204 = vld [vmem:[%s4174 + $0xe8] sm:$0x3f]
      %v4206 = vsel %vm3163, %v3129, 0
      %v4209 = vsel %vm3167, %v4203, 0
      %v4212 = vsel %vm3167, %v4204, 0
      %4214 = vmatprep.subr.mxu0 %v4176
      %4215 = vmatpush1.msra.mxu0 %v4175
      %4216 = vmatprep.subr.mxu0 %v4178
      %4217 = vmatpush1.msra.mxu0 %v4177
      %4218 = vmatprep.subr.mxu0 %v4180
      %4219 = vmatpush1.msra.mxu0 %v4179
      %4220 = vmatprep.subr.mxu0 %v4182
      %4221 = vmatpush1.msra.mxu0 %v4181
      %4222 = vmatprep.subr.mxu0 %v4184
      %4223 = vmatpush1.msra.mxu0 %v4183
      %4224 = vmatprep.subr.mxu0 %v4186
      %4225 = vmatpush1.msra.mxu0 %v4185
      %4226 = vmatprep.subr.mxu0 %v4188
      %4227 = vmatpush1.msra.mxu0 %v4187
      %4228 = vmatprep.subr.mxu0 %v4190
      %4229 = vmatpush1.msra.mxu0 %v4189
      %4230 = vmatprep.subr.mxu0 %v4192
      %4231 = vmatpush1.msra.mxu0 %v4191
      %4232 = vmatprep.subr.mxu0 %v4194
      %4233 = vmatpush1.msra.mxu0 %v4193
      %4234 = vmatprep.subr.mxu0 %v4196
      %4235 = vmatpush1.msra.mxu0 %v4195
      %4236 = vmatprep.subr.mxu0 %v4198
      %4237 = vmatpush1.msra.mxu0 %v4197
      %4238 = vmatprep.subr.mxu0 %v4200
      %4239 = vmatpush1.msra.mxu0 %v4199
      %4240 = vmatprep.subr.mxu0 %v4202
      %4241 = vmatpush1.msra.mxu0 %v4201
      %4242 = vmatprep.subr.mxu0 %v4212
      %4243 = vmatpush1.msra.mxu0 %v4209
      %4244 = vmatprep.subr.mxu0 0.0
      %4245 = vmatpush1.msra.mxu0 0.0
      %4246 = vmatprep.subr.mxu0 0.0
      %4247 = vmatpush1.msra.mxu0 0.0
      %4248 = vmatprep.subr.mxu0 0.0
      %4249 = vmatpush1.msra.mxu0 0.0
      %4250 = vmatprep.subr.mxu0 0.0
      %4251 = vmatpush1.msra.mxu0 0.0
      %4252 = vmatprep.subr.mxu0 0.0
      %4253 = vmatpush1.msra.mxu0 0.0
      %4254 = vmatprep.subr.mxu0 0.0
      %4255 = vmatpush1.msra.mxu0 0.0
      %4256 = vmatprep.subr.mxu0 0.0
      %4257 = vmatpush1.msra.mxu0 0.0
      %4258 = vmatprep.subr.mxu0 0.0
      %4259 = vmatpush1.msra.mxu0 0.0
      %4260 = vmatprep.subr.mxu0 0.0
      %4261 = vmatpush1.msra.mxu0 0.0
      %4262 = vmatprep.subr.mxu0 0.0
      %4263 = vmatpush1.msra.mxu0 0.0
      %4264 = vmatprep.subr.mxu0 0.0
      %4265 = vmatpush1.msra.mxu0 0.0
      %4266 = vmatprep.subr.mxu0 0.0
      %4267 = vmatpush1.msra.mxu0 0.0
      %4268 = vmatprep.subr.mxu0 0.0
      %4269 = vmatpush1.msra.mxu0 0.0
      %4270 = vmatprep.subr.mxu0 0.0
      %4271 = vmatpush1.msra.mxu0 0.0
      %4272 = vmatprep.subr.mxu0 0.0
      %4273 = vmatpush1.msra.mxu0 0.0
      %4274 = vmatprep.subr.mxu0 0.0
      %4275 = vmatpush1.msra.mxu0 0.0
      %4276 = vmatprep.subr.mxu0 0.0
      %4277 = vmatpush1.msra.mxu0 0.0
      %4278 = vmatprep.mubr.f32.mxu0 0.0
      %4279 = vmatmul.mubr.f32.gmra.mrb[0].mxu0 %v4206
      %v4280 = vpop.f32.mrb[0].mxu0
      %v4281 = vadd.f32 0.0, %v4280
      %v4282 = vpop.f32.mrb[0].mxu0
      %v4283 = vadd.f32 0.0, %v4282
      %4284 = vdwg.mxu0
      %v4287 = vcombine.low %v4281, %v4283
      %v4289 = vunpack.c.l.s4 1966171168
      %v4290 = vunpack.c.0.s8 %v4289
      %v4291 = vlaneseq
      %v4292 = vshrl.u32 %v4291, 7
      %v4293 = vsub.s32 %v4290, %v4292
      %v4294 = vrot.slane %v4287, %v4293
      %v4296 = vunpack.c.l.s4 1966171168
      %v4297 = vunpack.c.0.s8 %v4296
      %v4298 = vlaneseq
      %v4299 = vshrl.u32 %v4298, 7
      %v4300 = vsub.s32 %v4297, %v4299
      %v4301 = vrot.slane %v4294, %v4300
      %v4303 = vadd.f32 %v4173, %v4301
      %s4304 = scalar_lea.vmem %s8, 2160
      %v4305 = vld [vmem:[%s4304] sm:$0xff]
      %v4306 = vld [vmem:[%s4304 + $0x8] sm:$0xff]
      %v4307 = vld [vmem:[%s4304 + $0x10] sm:$0xff]
      %v4308 = vld [vmem:[%s4304 + $0x18] sm:$0xff]
      %v4309 = vld [vmem:[%s4304 + $0x20] sm:$0xff]
      %v4310 = vld [vmem:[%s4304 + $0x28] sm:$0xff]
      %v4311 = vld [vmem:[%s4304 + $0x30] sm:$0xff]
      %v4312 = vld [vmem:[%s4304 + $0x38] sm:$0xff]
      %v4313 = vld [vmem:[%s4304 + $0x40] sm:$0xff]
      %v4314 = vld [vmem:[%s4304 + $0x48] sm:$0xff]
      %v4315 = vld [vmem:[%s4304 + $0x50] sm:$0xff]
      %v4316 = vld [vmem:[%s4304 + $0x58] sm:$0xff]
      %v4317 = vld [vmem:[%s4304 + $0x60] sm:$0xff]
      %v4318 = vld [vmem:[%s4304 + $0x68] sm:$0xff]
      %v4319 = vld [vmem:[%s4304 + $0x70] sm:$0xff]
      %v4320 = vld [vmem:[%s4304 + $0x78] sm:$0xff]
      %v4321 = vld [vmem:[%s4304 + $0x80] sm:$0xff]
      %v4322 = vld [vmem:[%s4304 + $0x88] sm:$0xff]
      %v4323 = vld [vmem:[%s4304 + $0x90] sm:$0xff]
      %v4324 = vld [vmem:[%s4304 + $0x98] sm:$0xff]
      %v4325 = vld [vmem:[%s4304 + $0xa0] sm:$0xff]
      %v4326 = vld [vmem:[%s4304 + $0xa8] sm:$0xff]
      %v4327 = vld [vmem:[%s4304 + $0xb0] sm:$0xff]
      %v4328 = vld [vmem:[%s4304 + $0xb8] sm:$0xff]
      %v4329 = vld [vmem:[%s4304 + $0xc0] sm:$0xff]
      %v4330 = vld [vmem:[%s4304 + $0xc8] sm:$0xff]
      %v4331 = vld [vmem:[%s4304 + $0xd0] sm:$0xff]
      %v4332 = vld [vmem:[%s4304 + $0xd8] sm:$0xff]
      %v4333 = vld [vmem:[%s4304 + $0xe0] sm:$0x3f]
      %v4334 = vld [vmem:[%s4304 + $0xe8] sm:$0x3f]
      %v4335 = vrot.slane %v3129, 1
      %v4336 = vsel %vm3163, %v4335, 0
      %v4339 = vsel %vm3167, %v4333, 0
      %v4342 = vsel %vm3167, %v4334, 0
      %4344 = vmatprep.subr.mxu0 %v4306
      %4345 = vmatpush1.msra.mxu0 %v4305
      %4346 = vmatprep.subr.mxu0 %v4308
      %4347 = vmatpush1.msra.mxu0 %v4307
      %4348 = vmatprep.subr.mxu0 %v4310
      %4349 = vmatpush1.msra.mxu0 %v4309
      %4350 = vmatprep.subr.mxu0 %v4312
      %4351 = vmatpush1.msra.mxu0 %v4311
      %4352 = vmatprep.subr.mxu0 %v4314
      %4353 = vmatpush1.msra.mxu0 %v4313
      %4354 = vmatprep.subr.mxu0 %v4316
      %4355 = vmatpush1.msra.mxu0 %v4315
      %4356 = vmatprep.subr.mxu0 %v4318
      %4357 = vmatpush1.msra.mxu0 %v4317
      %4358 = vmatprep.subr.mxu0 %v4320
      %4359 = vmatpush1.msra.mxu0 %v4319
      %4360 = vmatprep.subr.mxu0 %v4322
      %4361 = vmatpush1.msra.mxu0 %v4321
      %4362 = vmatprep.subr.mxu0 %v4324
      %4363 = vmatpush1.msra.mxu0 %v4323
      %4364 = vmatprep.subr.mxu0 %v4326
      %4365 = vmatpush1.msra.mxu0 %v4325
      %4366 = vmatprep.subr.mxu0 %v4328
      %4367 = vmatpush1.msra.mxu0 %v4327
      %4368 = vmatprep.subr.mxu0 %v4330
      %4369 = vmatpush1.msra.mxu0 %v4329
      %4370 = vmatprep.subr.mxu0 %v4332
      %4371 = vmatpush1.msra.mxu0 %v4331
      %4372 = vmatprep.subr.mxu0 %v4342
      %4373 = vmatpush1.msra.mxu0 %v4339
      %4374 = vmatprep.subr.mxu0 0.0
      %4375 = vmatpush1.msra.mxu0 0.0
      %4376 = vmatprep.subr.mxu0 0.0
      %4377 = vmatpush1.msra.mxu0 0.0
      %4378 = vmatprep.subr.mxu0 0.0
      %4379 = vmatpush1.msra.mxu0 0.0
      %4380 = vmatprep.subr.mxu0 0.0
      %4381 = vmatpush1.msra.mxu0 0.0
      %4382 = vmatprep.subr.mxu0 0.0
      %4383 = vmatpush1.msra.mxu0 0.0
      %4384 = vmatprep.subr.mxu0 0.0
      %4385 = vmatpush1.msra.mxu0 0.0
      %4386 = vmatprep.subr.mxu0 0.0
      %4387 = vmatpush1.msra.mxu0 0.0
      %4388 = vmatprep.subr.mxu0 0.0
      %4389 = vmatpush1.msra.mxu0 0.0
      %4390 = vmatprep.subr.mxu0 0.0
      %4391 = vmatpush1.msra.mxu0 0.0
      %4392 = vmatprep.subr.mxu0 0.0
      %4393 = vmatpush1.msra.mxu0 0.0
      %4394 = vmatprep.subr.mxu0 0.0
      %4395 = vmatpush1.msra.mxu0 0.0
      %4396 = vmatprep.subr.mxu0 0.0
      %4397 = vmatpush1.msra.mxu0 0.0
      %4398 = vmatprep.subr.mxu0 0.0
      %4399 = vmatpush1.msra.mxu0 0.0
      %4400 = vmatprep.subr.mxu0 0.0
      %4401 = vmatpush1.msra.mxu0 0.0
      %4402 = vmatprep.subr.mxu0 0.0
      %4403 = vmatpush1.msra.mxu0 0.0
      %4404 = vmatprep.subr.mxu0 0.0
      %4405 = vmatpush1.msra.mxu0 0.0
      %4406 = vmatprep.subr.mxu0 0.0
      %4407 = vmatpush1.msra.mxu0 0.0
      %4408 = vmatprep.mubr.f32.mxu0 0.0
      %4409 = vmatmul.mubr.f32.gmra.mrb[0].mxu0 %v4336
      %v4410 = vpop.f32.mrb[0].mxu0
      %v4411 = vadd.f32 0.0, %v4410
      %v4412 = vpop.f32.mrb[0].mxu0
      %v4413 = vadd.f32 0.0, %v4412
      %4414 = vdwg.mxu0
      %v4417 = vcombine.low %v4411, %v4413
      %v4419 = vunpack.c.l.s4 1966171168
      %v4420 = vunpack.c.0.s8 %v4419
      %v4421 = vlaneseq
      %v4422 = vshrl.u32 %v4421, 7
      %v4423 = vsub.s32 %v4420, %v4422
      %v4424 = vrot.slane %v4417, %v4423
      %v4426 = vunpack.c.l.s4 1966171168
      %v4427 = vunpack.c.0.s8 %v4426
      %v4428 = vlaneseq
      %v4429 = vshrl.u32 %v4428, 7
      %v4430 = vsub.s32 %v4427, %v4429
      %v4431 = vrot.slane %v4424, %v4430
      %v4433 = vadd.f32 %v4303, %v4431
      %s4434 = scalar_lea.vmem %s8, 2400
      %v4435 = vld [vmem:[%s4434] sm:$0xff]
      %v4436 = vld [vmem:[%s4434 + $0x8] sm:$0xff]
      %v4437 = vld [vmem:[%s4434 + $0x10] sm:$0xff]
      %v4438 = vld [vmem:[%s4434 + $0x18] sm:$0xff]
      %v4439 = vld [vmem:[%s4434 + $0x20] sm:$0xff]
      %v4440 = vld [vmem:[%s4434 + $0x28] sm:$0xff]
      %v4441 = vld [vmem:[%s4434 + $0x30] sm:$0xff]
      %v4442 = vld [vmem:[%s4434 + $0x38] sm:$0xff]
      %v4443 = vld [vmem:[%s4434 + $0x40] sm:$0xff]
      %v4444 = vld [vmem:[%s4434 + $0x48] sm:$0xff]
      %v4445 = vld [vmem:[%s4434 + $0x50] sm:$0xff]
      %v4446 = vld [vmem:[%s4434 + $0x58] sm:$0xff]
      %v4447 = vld [vmem:[%s4434 + $0x60] sm:$0xff]
      %v4448 = vld [vmem:[%s4434 + $0x68] sm:$0xff]
      %v4449 = vld [vmem:[%s4434 + $0x70] sm:$0xff]
      %v4450 = vld [vmem:[%s4434 + $0x78] sm:$0xff]
      %v4451 = vld [vmem:[%s4434 + $0x80] sm:$0xff]
      %v4452 = vld [vmem:[%s4434 + $0x88] sm:$0xff]
      %v4453 = vld [vmem:[%s4434 + $0x90] sm:$0xff]
      %v4454 = vld [vmem:[%s4434 + $0x98] sm:$0xff]
      %v4455 = vld [vmem:[%s4434 + $0xa0] sm:$0xff]
      %v4456 = vld [vmem:[%s4434 + $0xa8] sm:$0xff]
      %v4457 = vld [vmem:[%s4434 + $0xb0] sm:$0xff]
      %v4458 = vld [vmem:[%s4434 + $0xb8] sm:$0xff]
      %v4459 = vld [vmem:[%s4434 + $0xc0] sm:$0xff]
      %v4460 = vld [vmem:[%s4434 + $0xc8] sm:$0xff]
      %v4461 = vld [vmem:[%s4434 + $0xd0] sm:$0xff]
      %v4462 = vld [vmem:[%s4434 + $0xd8] sm:$0xff]
      %v4463 = vld [vmem:[%s4434 + $0xe0] sm:$0x3f]
      %v4464 = vld [vmem:[%s4434 + $0xe8] sm:$0x3f]
      %v4465 = vrot.slane %v3129, 2
      %v4466 = vsel %vm3163, %v4465, 0
      %v4469 = vsel %vm3167, %v4463, 0
      %v4472 = vsel %vm3167, %v4464, 0
      %4474 = vmatprep.subr.mxu0 %v4436
      %4475 = vmatpush1.msra.mxu0 %v4435
      %4476 = vmatprep.subr.mxu0 %v4438
      %4477 = vmatpush1.msra.mxu0 %v4437
      %4478 = vmatprep.subr.mxu0 %v4440
      %4479 = vmatpush1.msra.mxu0 %v4439
      %4480 = vmatprep.subr.mxu0 %v4442
      %4481 = vmatpush1.msra.mxu0 %v4441
      %4482 = vmatprep.subr.mxu0 %v4444
      %4483 = vmatpush1.msra.mxu0 %v4443
      %4484 = vmatprep.subr.mxu0 %v4446
      %4485 = vmatpush1.msra.mxu0 %v4445
      %4486 = vmatprep.subr.mxu0 %v4448
      %4487 = vmatpush1.msra.mxu0 %v4447
      %4488 = vmatprep.subr.mxu0 %v4450
      %4489 = vmatpush1.msra.mxu0 %v4449
      %4490 = vmatprep.subr.mxu0 %v4452
      %4491 = vmatpush1.msra.mxu0 %v4451
      %4492 = vmatprep.subr.mxu0 %v4454
      %4493 = vmatpush1.msra.mxu0 %v4453
      %4494 = vmatprep.subr.mxu0 %v4456
      %4495 = vmatpush1.msra.mxu0 %v4455
      %4496 = vmatprep.subr.mxu0 %v4458
      %4497 = vmatpush1.msra.mxu0 %v4457
      %4498 = vmatprep.subr.mxu0 %v4460
      %4499 = vmatpush1.msra.mxu0 %v4459
      %4500 = vmatprep.subr.mxu0 %v4462
      %4501 = vmatpush1.msra.mxu0 %v4461
      %4502 = vmatprep.subr.mxu0 %v4472
      %4503 = vmatpush1.msra.mxu0 %v4469
      %4504 = vmatprep.subr.mxu0 0.0
      %4505 = vmatpush1.msra.mxu0 0.0
      %4506 = vmatprep.subr.mxu0 0.0
      %4507 = vmatpush1.msra.mxu0 0.0
      %4508 = vmatprep.subr.mxu0 0.0
      %4509 = vmatpush1.msra.mxu0 0.0
      %4510 = vmatprep.subr.mxu0 0.0
      %4511 = vmatpush1.msra.mxu0 0.0
      %4512 = vmatprep.subr.mxu0 0.0
      %4513 = vmatpush1.msra.mxu0 0.0
      %4514 = vmatprep.subr.mxu0 0.0
      %4515 = vmatpush1.msra.mxu0 0.0
      %4516 = vmatprep.subr.mxu0 0.0
      %4517 = vmatpush1.msra.mxu0 0.0
      %4518 = vmatprep.subr.mxu0 0.0
      %4519 = vmatpush1.msra.mxu0 0.0
      %4520 = vmatprep.subr.mxu0 0.0
      %4521 = vmatpush1.msra.mxu0 0.0
      %4522 = vmatprep.subr.mxu0 0.0
      %4523 = vmatpush1.msra.mxu0 0.0
      %4524 = vmatprep.subr.mxu0 0.0
      %4525 = vmatpush1.msra.mxu0 0.0
      %4526 = vmatprep.subr.mxu0 0.0
      %4527 = vmatpush1.msra.mxu0 0.0
      %4528 = vmatprep.subr.mxu0 0.0
      %4529 = vmatpush1.msra.mxu0 0.0
      %4530 = vmatprep.subr.mxu0 0.0
      %4531 = vmatpush1.msra.mxu0 0.0
      %4532 = vmatprep.subr.mxu0 0.0
      %4533 = vmatpush1.msra.mxu0 0.0
      %4534 = vmatprep.subr.mxu0 0.0
      %4535 = vmatpush1.msra.mxu0 0.0
      %4536 = vmatprep.subr.mxu0 0.0
      %4537 = vmatpush1.msra.mxu0 0.0
      %4538 = vmatprep.mubr.f32.mxu0 0.0
      %4539 = vmatmul.mubr.f32.gmra.mrb[0].mxu0 %v4466
      %v4540 = vpop.f32.mrb[0].mxu0
      %v4541 = vadd.f32 0.0, %v4540
      %v4542 = vpop.f32.mrb[0].mxu0
      %v4543 = vadd.f32 0.0, %v4542
      %4544 = vdwg.mxu0
      %v4547 = vcombine.low %v4541, %v4543
      %v4549 = vunpack.c.l.s4 1966171168
      %v4550 = vunpack.c.0.s8 %v4549
      %v4551 = vlaneseq
      %v4552 = vshrl.u32 %v4551, 7
      %v4553 = vsub.s32 %v4550, %v4552
      %v4554 = vrot.slane %v4547, %v4553
      %v4556 = vunpack.c.l.s4 1966171168
      %v4557 = vunpack.c.0.s8 %v4556
      %v4558 = vlaneseq
      %v4559 = vshrl.u32 %v4558, 7
      %v4560 = vsub.s32 %v4557, %v4559
      %v4561 = vrot.slane %v4554, %v4560
      %v4563 = vadd.f32 %v4433, %v4561
      %s4564 = scalar_lea.vmem %s8, 2640
      %v4565 = vld [vmem:[%s4564] sm:$0xff]
      %v4566 = vld [vmem:[%s4564 + $0x8] sm:$0xff]
      %v4567 = vld [vmem:[%s4564 + $0x10] sm:$0xff]
      %v4568 = vld [vmem:[%s4564 + $0x18] sm:$0xff]
      %v4569 = vld [vmem:[%s4564 + $0x20] sm:$0xff]
      %v4570 = vld [vmem:[%s4564 + $0x28] sm:$0xff]
      %v4571 = vld [vmem:[%s4564 + $0x30] sm:$0xff]
      %v4572 = vld [vmem:[%s4564 + $0x38] sm:$0xff]
      %v4573 = vld [vmem:[%s4564 + $0x40] sm:$0xff]
      %v4574 = vld [vmem:[%s4564 + $0x48] sm:$0xff]
      %v4575 = vld [vmem:[%s4564 + $0x50] sm:$0xff]
      %v4576 = vld [vmem:[%s4564 + $0x58] sm:$0xff]
      %v4577 = vld [vmem:[%s4564 + $0x60] sm:$0xff]
      %v4578 = vld [vmem:[%s4564 + $0x68] sm:$0xff]
      %v4579 = vld [vmem:[%s4564 + $0x70] sm:$0xff]
      %v4580 = vld [vmem:[%s4564 + $0x78] sm:$0xff]
      %v4581 = vld [vmem:[%s4564 + $0x80] sm:$0xff]
      %v4582 = vld [vmem:[%s4564 + $0x88] sm:$0xff]
      %v4583 = vld [vmem:[%s4564 + $0x90] sm:$0xff]
      %v4584 = vld [vmem:[%s4564 + $0x98] sm:$0xff]
      %v4585 = vld [vmem:[%s4564 + $0xa0] sm:$0xff]
      %v4586 = vld [vmem:[%s4564 + $0xa8] sm:$0xff]
      %v4587 = vld [vmem:[%s4564 + $0xb0] sm:$0xff]
      %v4588 = vld [vmem:[%s4564 + $0xb8] sm:$0xff]
      %v4589 = vld [vmem:[%s4564 + $0xc0] sm:$0xff]
      %v4590 = vld [vmem:[%s4564 + $0xc8] sm:$0xff]
      %v4591 = vld [vmem:[%s4564 + $0xd0] sm:$0xff]
      %v4592 = vld [vmem:[%s4564 + $0xd8] sm:$0xff]
      %v4593 = vld [vmem:[%s4564 + $0xe0] sm:$0x3f]
      %v4594 = vld [vmem:[%s4564 + $0xe8] sm:$0x3f]
      %v4595 = vrot.slane %v3129, 3
      %v4596 = vsel %vm3163, %v4595, 0
      %v4599 = vsel %vm3167, %v4593, 0
      %v4602 = vsel %vm3167, %v4594, 0
      %4604 = vmatprep.subr.mxu0 %v4566
      %4605 = vmatpush1.msra.mxu0 %v4565
      %4606 = vmatprep.subr.mxu0 %v4568
      %4607 = vmatpush1.msra.mxu0 %v4567
      %4608 = vmatprep.subr.mxu0 %v4570
      %4609 = vmatpush1.msra.mxu0 %v4569
      %4610 = vmatprep.subr.mxu0 %v4572
      %4611 = vmatpush1.msra.mxu0 %v4571
      %4612 = vmatprep.subr.mxu0 %v4574
      %4613 = vmatpush1.msra.mxu0 %v4573
      %4614 = vmatprep.subr.mxu0 %v4576
      %4615 = vmatpush1.msra.mxu0 %v4575
      %4616 = vmatprep.subr.mxu0 %v4578
      %4617 = vmatpush1.msra.mxu0 %v4577
      %4618 = vmatprep.subr.mxu0 %v4580
      %4619 = vmatpush1.msra.mxu0 %v4579
      %4620 = vmatprep.subr.mxu0 %v4582
      %4621 = vmatpush1.msra.mxu0 %v4581
      %4622 = vmatprep.subr.mxu0 %v4584
      %4623 = vmatpush1.msra.mxu0 %v4583
      %4624 = vmatprep.subr.mxu0 %v4586
      %4625 = vmatpush1.msra.mxu0 %v4585
      %4626 = vmatprep.subr.mxu0 %v4588
      %4627 = vmatpush1.msra.mxu0 %v4587
      %4628 = vmatprep.subr.mxu0 %v4590
      %4629 = vmatpush1.msra.mxu0 %v4589
      %4630 = vmatprep.subr.mxu0 %v4592
      %4631 = vmatpush1.msra.mxu0 %v4591
      %4632 = vmatprep.subr.mxu0 %v4602
      %4633 = vmatpush1.msra.mxu0 %v4599
      %4634 = vmatprep.subr.mxu0 0.0
      %4635 = vmatpush1.msra.mxu0 0.0
      %4636 = vmatprep.subr.mxu0 0.0
      %4637 = vmatpush1.msra.mxu0 0.0
      %4638 = vmatprep.subr.mxu0 0.0
      %4639 = vmatpush1.msra.mxu0 0.0
      %4640 = vmatprep.subr.mxu0 0.0
      %4641 = vmatpush1.msra.mxu0 0.0
      %4642 = vmatprep.subr.mxu0 0.0
      %4643 = vmatpush1.msra.mxu0 0.0
      %4644 = vmatprep.subr.mxu0 0.0
      %4645 = vmatpush1.msra.mxu0 0.0
      %4646 = vmatprep.subr.mxu0 0.0
      %4647 = vmatpush1.msra.mxu0 0.0
      %4648 = vmatprep.subr.mxu0 0.0
      %4649 = vmatpush1.msra.mxu0 0.0
      %4650 = vmatprep.subr.mxu0 0.0
      %4651 = vmatpush1.msra.mxu0 0.0
      %4652 = vmatprep.subr.mxu0 0.0
      %4653 = vmatpush1.msra.mxu0 0.0
      %4654 = vmatprep.subr.mxu0 0.0
      %4655 = vmatpush1.msra.mxu0 0.0
      %4656 = vmatprep.subr.mxu0 0.0
      %4657 = vmatpush1.msra.mxu0 0.0
      %4658 = vmatprep.subr.mxu0 0.0
      %4659 = vmatpush1.msra.mxu0 0.0
      %4660 = vmatprep.subr.mxu0 0.0
      %4661 = vmatpush1.msra.mxu0 0.0
      %4662 = vmatprep.subr.mxu0 0.0
      %4663 = vmatpush1.msra.mxu0 0.0
      %4664 = vmatprep.subr.mxu0 0.0
      %4665 = vmatpush1.msra.mxu0 0.0
      %4666 = vmatprep.subr.mxu0 0.0
      %4667 = vmatpush1.msra.mxu0 0.0
      %4668 = vmatprep.mubr.f32.mxu0 0.0
      %4669 = vmatmul.mubr.f32.gmra.mrb[0].mxu0 %v4596
      %v4670 = vpop.f32.mrb[0].mxu0
      %v4671 = vadd.f32 0.0, %v4670
      %v4672 = vpop.f32.mrb[0].mxu0
      %v4673 = vadd.f32 0.0, %v4672
      %4674 = vdwg.mxu0
      %v4677 = vcombine.low %v4671, %v4673
      %v4679 = vunpack.c.l.s4 1966171168
      %v4680 = vunpack.c.0.s8 %v4679
      %v4681 = vlaneseq
      %v4682 = vshrl.u32 %v4681, 7
      %v4683 = vsub.s32 %v4680, %v4682
      %v4684 = vrot.slane %v4677, %v4683
      %v4686 = vunpack.c.l.s4 1966171168
      %v4687 = vunpack.c.0.s8 %v4686
      %v4688 = vlaneseq
      %v4689 = vshrl.u32 %v4688, 7
      %v4690 = vsub.s32 %v4687, %v4689
      %v4691 = vrot.slane %v4684, %v4690
      %v4693 = vadd.f32 %v4563, %v4691
      %s4694 = scalar_lea.vmem %s8, 2880
      %v4695 = vld [vmem:[%s4694] sm:$0xff]
      %v4696 = vld [vmem:[%s4694 + $0x8] sm:$0xff]
      %v4697 = vld [vmem:[%s4694 + $0x10] sm:$0xff]
      %v4698 = vld [vmem:[%s4694 + $0x18] sm:$0xff]
      %v4699 = vld [vmem:[%s4694 + $0x20] sm:$0xff]
      %v4700 = vld [vmem:[%s4694 + $0x28] sm:$0xff]
      %v4701 = vld [vmem:[%s4694 + $0x30] sm:$0xff]
      %v4702 = vld [vmem:[%s4694 + $0x38] sm:$0xff]
      %v4703 = vld [vmem:[%s4694 + $0x40] sm:$0xff]
      %v4704 = vld [vmem:[%s4694 + $0x48] sm:$0xff]
      %v4705 = vld [vmem:[%s4694 + $0x50] sm:$0xff]
      %v4706 = vld [vmem:[%s4694 + $0x58] sm:$0xff]
      %v4707 = vld [vmem:[%s4694 + $0x60] sm:$0xff]
      %v4708 = vld [vmem:[%s4694 + $0x68] sm:$0xff]
      %v4709 = vld [vmem:[%s4694 + $0x70] sm:$0xff]
      %v4710 = vld [vmem:[%s4694 + $0x78] sm:$0xff]
      %v4711 = vld [vmem:[%s4694 + $0x80] sm:$0xff]
      %v4712 = vld [vmem:[%s4694 + $0x88] sm:$0xff]
      %v4713 = vld [vmem:[%s4694 + $0x90] sm:$0xff]
      %v4714 = vld [vmem:[%s4694 + $0x98] sm:$0xff]
      %v4715 = vld [vmem:[%s4694 + $0xa0] sm:$0xff]
      %v4716 = vld [vmem:[%s4694 + $0xa8] sm:$0xff]
      %v4717 = vld [vmem:[%s4694 + $0xb0] sm:$0xff]
      %v4718 = vld [vmem:[%s4694 + $0xb8] sm:$0xff]
      %v4719 = vld [vmem:[%s4694 + $0xc0] sm:$0xff]
      %v4720 = vld [vmem:[%s4694 + $0xc8] sm:$0xff]
      %v4721 = vld [vmem:[%s4694 + $0xd0] sm:$0xff]
      %v4722 = vld [vmem:[%s4694 + $0xd8] sm:$0xff]
      %v4723 = vld [vmem:[%s4694 + $0xe0] sm:$0x3f]
      %v4724 = vld [vmem:[%s4694 + $0xe8] sm:$0x3f]
      %v4725 = vrot.slane %v3129, 4
      %v4726 = vsel %vm3163, %v4725, 0
      %v4729 = vsel %vm3167, %v4723, 0
      %v4732 = vsel %vm3167, %v4724, 0
      %4734 = vmatprep.subr.mxu0 %v4696
      %4735 = vmatpush1.msra.mxu0 %v4695
      %4736 = vmatprep.subr.mxu0 %v4698
      %4737 = vmatpush1.msra.mxu0 %v4697
      %4738 = vmatprep.subr.mxu0 %v4700
      %4739 = vmatpush1.msra.mxu0 %v4699
      %4740 = vmatprep.subr.mxu0 %v4702
      %4741 = vmatpush1.msra.mxu0 %v4701
      %4742 = vmatprep.subr.mxu0 %v4704
      %4743 = vmatpush1.msra.mxu0 %v4703
      %4744 = vmatprep.subr.mxu0 %v4706
      %4745 = vmatpush1.msra.mxu0 %v4705
      %4746 = vmatprep.subr.mxu0 %v4708
      %4747 = vmatpush1.msra.mxu0 %v4707
      %4748 = vmatprep.subr.mxu0 %v4710
      %4749 = vmatpush1.msra.mxu0 %v4709
      %4750 = vmatprep.subr.mxu0 %v4712
      %4751 = vmatpush1.msra.mxu0 %v4711
      %4752 = vmatprep.subr.mxu0 %v4714
      %4753 = vmatpush1.msra.mxu0 %v4713
      %4754 = vmatprep.subr.mxu0 %v4716
      %4755 = vmatpush1.msra.mxu0 %v4715
      %4756 = vmatprep.subr.mxu0 %v4718
      %4757 = vmatpush1.msra.mxu0 %v4717
      %4758 = vmatprep.subr.mxu0 %v4720
      %4759 = vmatpush1.msra.mxu0 %v4719
      %4760 = vmatprep.subr.mxu0 %v4722
      %4761 = vmatpush1.msra.mxu0 %v4721
      %4762 = vmatprep.subr.mxu0 %v4732
      %4763 = vmatpush1.msra.mxu0 %v4729
      %4764 = vmatprep.subr.mxu0 0.0
      %4765 = vmatpush1.msra.mxu0 0.0
      %4766 = vmatprep.subr.mxu0 0.0
      %4767 = vmatpush1.msra.mxu0 0.0
      %4768 = vmatprep.subr.mxu0 0.0
      %4769 = vmatpush1.msra.mxu0 0.0
      %4770 = vmatprep.subr.mxu0 0.0
      %4771 = vmatpush1.msra.mxu0 0.0
      %4772 = vmatprep.subr.mxu0 0.0
      %4773 = vmatpush1.msra.mxu0 0.0
      %4774 = vmatprep.subr.mxu0 0.0
      %4775 = vmatpush1.msra.mxu0 0.0
      %4776 = vmatprep.subr.mxu0 0.0
      %4777 = vmatpush1.msra.mxu0 0.0
      %4778 = vmatprep.subr.mxu0 0.0
      %4779 = vmatpush1.msra.mxu0 0.0
      %4780 = vmatprep.subr.mxu0 0.0
      %4781 = vmatpush1.msra.mxu0 0.0
      %4782 = vmatprep.subr.mxu0 0.0
      %4783 = vmatpush1.msra.mxu0 0.0
      %4784 = vmatprep.subr.mxu0 0.0
      %4785 = vmatpush1.msra.mxu0 0.0
      %4786 = vmatprep.subr.mxu0 0.0
      %4787 = vmatpush1.msra.mxu0 0.0
      %4788 = vmatprep.subr.mxu0 0.0
      %4789 = vmatpush1.msra.mxu0 0.0
      %4790 = vmatprep.subr.mxu0 0.0
      %4791 = vmatpush1.msra.mxu0 0.0
      %4792 = vmatprep.subr.mxu0 0.0
      %4793 = vmatpush1.msra.mxu0 0.0
      %4794 = vmatprep.subr.mxu0 0.0
      %4795 = vmatpush1.msra.mxu0 0.0
      %4796 = vmatprep.subr.mxu0 0.0
      %4797 = vmatpush1.msra.mxu0 0.0
      %4798 = vmatprep.mubr.f32.mxu0 0.0
      %4799 = vmatmul.mubr.f32.gmra.mrb[0].mxu0 %v4726
      %v4800 = vpop.f32.mrb[0].mxu0
      %v4801 = vadd.f32 0.0, %v4800
      %v4802 = vpop.f32.mrb[0].mxu0
      %v4803 = vadd.f32 0.0, %v4802
      %4804 = vdwg.mxu0
      %v4807 = vcombine.low %v4801, %v4803
      %v4809 = vunpack.c.l.s4 1966171168
      %v4810 = vunpack.c.0.s8 %v4809
      %v4811 = vlaneseq
      %v4812 = vshrl.u32 %v4811, 7
      %v4813 = vsub.s32 %v4810, %v4812
      %v4814 = vrot.slane %v4807, %v4813
      %v4816 = vunpack.c.l.s4 1966171168
      %v4817 = vunpack.c.0.s8 %v4816
      %v4818 = vlaneseq
      %v4819 = vshrl.u32 %v4818, 7
      %v4820 = vsub.s32 %v4817, %v4819
      %v4821 = vrot.slane %v4814, %v4820
      %v4823 = vadd.f32 %v4693, %v4821
      %s4824 = scalar_lea.vmem %s8, 3120
      %v4825 = vld [vmem:[%s4824] sm:$0xff]
      %v4826 = vld [vmem:[%s4824 + $0x8] sm:$0xff]
      %v4827 = vld [vmem:[%s4824 + $0x10] sm:$0xff]
      %v4828 = vld [vmem:[%s4824 + $0x18] sm:$0xff]
      %v4829 = vld [vmem:[%s4824 + $0x20] sm:$0xff]
      %v4830 = vld [vmem:[%s4824 + $0x28] sm:$0xff]
      %v4831 = vld [vmem:[%s4824 + $0x30] sm:$0xff]
      %v4832 = vld [vmem:[%s4824 + $0x38] sm:$0xff]
      %v4833 = vld [vmem:[%s4824 + $0x40] sm:$0xff]
      %v4834 = vld [vmem:[%s4824 + $0x48] sm:$0xff]
      %v4835 = vld [vmem:[%s4824 + $0x50] sm:$0xff]
      %v4836 = vld [vmem:[%s4824 + $0x58] sm:$0xff]
      %v4837 = vld [vmem:[%s4824 + $0x60] sm:$0xff]
      %v4838 = vld [vmem:[%s4824 + $0x68] sm:$0xff]
      %v4839 = vld [vmem:[%s4824 + $0x70] sm:$0xff]
      %v4840 = vld [vmem:[%s4824 + $0x78] sm:$0xff]
      %v4841 = vld [vmem:[%s4824 + $0x80] sm:$0xff]
      %v4842 = vld [vmem:[%s4824 + $0x88] sm:$0xff]
      %v4843 = vld [vmem:[%s4824 + $0x90] sm:$0xff]
      %v4844 = vld [vmem:[%s4824 + $0x98] sm:$0xff]
      %v4845 = vld [vmem:[%s4824 + $0xa0] sm:$0xff]
      %v4846 = vld [vmem:[%s4824 + $0xa8] sm:$0xff]
      %v4847 = vld [vmem:[%s4824 + $0xb0] sm:$0xff]
      %v4848 = vld [vmem:[%s4824 + $0xb8] sm:$0xff]
      %v4849 = vld [vmem:[%s4824 + $0xc0] sm:$0xff]
      %v4850 = vld [vmem:[%s4824 + $0xc8] sm:$0xff]
      %v4851 = vld [vmem:[%s4824 + $0xd0] sm:$0xff]
      %v4852 = vld [vmem:[%s4824 + $0xd8] sm:$0xff]
      %v4853 = vld [vmem:[%s4824 + $0xe0] sm:$0x3f]
      %v4854 = vld [vmem:[%s4824 + $0xe8] sm:$0x3f]
      %v4855 = vrot.slane %v3129, 5
      %v4856 = vsel %vm3163, %v4855, 0
      %v4859 = vsel %vm3167, %v4853, 0
      %v4862 = vsel %vm3167, %v4854, 0
      %4864 = vmatprep.subr.mxu0 %v4826
      %4865 = vmatpush1.msra.mxu0 %v4825
      %4866 = vmatprep.subr.mxu0 %v4828
      %4867 = vmatpush1.msra.mxu0 %v4827
      %4868 = vmatprep.subr.mxu0 %v4830
      %4869 = vmatpush1.msra.mxu0 %v4829
      %4870 = vmatprep.subr.mxu0 %v4832
      %4871 = vmatpush1.msra.mxu0 %v4831
      %4872 = vmatprep.subr.mxu0 %v4834
      %4873 = vmatpush1.msra.mxu0 %v4833
      %4874 = vmatprep.subr.mxu0 %v4836
      %4875 = vmatpush1.msra.mxu0 %v4835
      %4876 = vmatprep.subr.mxu0 %v4838
      %4877 = vmatpush1.msra.mxu0 %v4837
      %4878 = vmatprep.subr.mxu0 %v4840
      %4879 = vmatpush1.msra.mxu0 %v4839
      %4880 = vmatprep.subr.mxu0 %v4842
      %4881 = vmatpush1.msra.mxu0 %v4841
      %4882 = vmatprep.subr.mxu0 %v4844
      %4883 = vmatpush1.msra.mxu0 %v4843
      %4884 = vmatprep.subr.mxu0 %v4846
      %4885 = vmatpush1.msra.mxu0 %v4845
      %4886 = vmatprep.subr.mxu0 %v4848
      %4887 = vmatpush1.msra.mxu0 %v4847
      %4888 = vmatprep.subr.mxu0 %v4850
      %4889 = vmatpush1.msra.mxu0 %v4849
      %4890 = vmatprep.subr.mxu0 %v4852
      %4891 = vmatpush1.msra.mxu0 %v4851
      %4892 = vmatprep.subr.mxu0 %v4862
      %4893 = vmatpush1.msra.mxu0 %v4859
      %4894 = vmatprep.subr.mxu0 0.0
      %4895 = vmatpush1.msra.mxu0 0.0
      %4896 = vmatprep.subr.mxu0 0.0
      %4897 = vmatpush1.msra.mxu0 0.0
      %4898 = vmatprep.subr.mxu0 0.0
      %4899 = vmatpush1.msra.mxu0 0.0
      %4900 = vmatprep.subr.mxu0 0.0
      %4901 = vmatpush1.msra.mxu0 0.0
      %4902 = vmatprep.subr.mxu0 0.0
      %4903 = vmatpush1.msra.mxu0 0.0
      %4904 = vmatprep.subr.mxu0 0.0
      %4905 = vmatpush1.msra.mxu0 0.0
      %4906 = vmatprep.subr.mxu0 0.0
      %4907 = vmatpush1.msra.mxu0 0.0
      %4908 = vmatprep.subr.mxu0 0.0
      %4909 = vmatpush1.msra.mxu0 0.0
      %4910 = vmatprep.subr.mxu0 0.0
      %4911 = vmatpush1.msra.mxu0 0.0
      %4912 = vmatprep.subr.mxu0 0.0
      %4913 = vmatpush1.msra.mxu0 0.0
      %4914 = vmatprep.subr.mxu0 0.0
      %4915 = vmatpush1.msra.mxu0 0.0
      %4916 = vmatprep.subr.mxu0 0.0
      %4917 = vmatpush1.msra.mxu0 0.0
      %4918 = vmatprep.subr.mxu0 0.0
      %4919 = vmatpush1.msra.mxu0 0.0
      %4920 = vmatprep.subr.mxu0 0.0
      %4921 = vmatpush1.msra.mxu0 0.0
      %4922 = vmatprep.subr.mxu0 0.0
      %4923 = vmatpush1.msra.mxu0 0.0
      %4924 = vmatprep.subr.mxu0 0.0
      %4925 = vmatpush1.msra.mxu0 0.0
      %4926 = vmatprep.subr.mxu0 0.0
      %4927 = vmatpush1.msra.mxu0 0.0
      %4928 = vmatprep.mubr.f32.mxu0 0.0
      %4929 = vmatmul.mubr.f32.gmra.mrb[0].mxu0 %v4856
      %v4930 = vpop.f32.mrb[0].mxu0
      %v4931 = vadd.f32 0.0, %v4930
      %v4932 = vpop.f32.mrb[0].mxu0
      %v4933 = vadd.f32 0.0, %v4932
      %4934 = vdwg.mxu0
      %v4937 = vcombine.low %v4931, %v4933
      %v4939 = vunpack.c.l.s4 1966171168
      %v4940 = vunpack.c.0.s8 %v4939
      %v4941 = vlaneseq
      %v4942 = vshrl.u32 %v4941, 7
      %v4943 = vsub.s32 %v4940, %v4942
      %v4944 = vrot.slane %v4937, %v4943
      %v4946 = vunpack.c.l.s4 1966171168
      %v4947 = vunpack.c.0.s8 %v4946
      %v4948 = vlaneseq
      %v4949 = vshrl.u32 %v4948, 7
      %v4950 = vsub.s32 %v4947, %v4949
      %v4951 = vrot.slane %v4944, %v4950
      %v4953 = vadd.f32 %v4823, %v4951
      %s4954 = scalar_lea.vmem %s8, 3360
      %v4955 = vld [vmem:[%s4954] sm:$0xff]
      %v4956 = vld [vmem:[%s4954 + $0x8] sm:$0xff]
      %v4957 = vld [vmem:[%s4954 + $0x10] sm:$0xff]
      %v4958 = vld [vmem:[%s4954 + $0x18] sm:$0xff]
      %v4959 = vld [vmem:[%s4954 + $0x20] sm:$0xff]
      %v4960 = vld [vmem:[%s4954 + $0x28] sm:$0xff]
      %v4961 = vld [vmem:[%s4954 + $0x30] sm:$0xff]
      %v4962 = vld [vmem:[%s4954 + $0x38] sm:$0xff]
      %v4963 = vld [vmem:[%s4954 + $0x40] sm:$0xff]
      %v4964 = vld [vmem:[%s4954 + $0x48] sm:$0xff]
      %v4965 = vld [vmem:[%s4954 + $0x50] sm:$0xff]
      %v4966 = vld [vmem:[%s4954 + $0x58] sm:$0xff]
      %v4967 = vld [vmem:[%s4954 + $0x60] sm:$0xff]
      %v4968 = vld [vmem:[%s4954 + $0x68] sm:$0xff]
      %v4969 = vld [vmem:[%s4954 + $0x70] sm:$0xff]
      %v4970 = vld [vmem:[%s4954 + $0x78] sm:$0xff]
      %v4971 = vld [vmem:[%s4954 + $0x80] sm:$0xff]
      %v4972 = vld [vmem:[%s4954 + $0x88] sm:$0xff]
      %v4973 = vld [vmem:[%s4954 + $0x90] sm:$0xff]
      %v4974 = vld [vmem:[%s4954 + $0x98] sm:$0xff]
      %v4975 = vld [vmem:[%s4954 + $0xa0] sm:$0xff]
      %v4976 = vld [vmem:[%s4954 + $0xa8] sm:$0xff]
      %v4977 = vld [vmem:[%s4954 + $0xb0] sm:$0xff]
      %v4978 = vld [vmem:[%s4954 + $0xb8] sm:$0xff]
      %v4979 = vld [vmem:[%s4954 + $0xc0] sm:$0xff]
      %v4980 = vld [vmem:[%s4954 + $0xc8] sm:$0xff]
      %v4981 = vld [vmem:[%s4954 + $0xd0] sm:$0xff]
      %v4982 = vld [vmem:[%s4954 + $0xd8] sm:$0xff]
      %v4983 = vld [vmem:[%s4954 + $0xe0] sm:$0x3f]
      %v4984 = vld [vmem:[%s4954 + $0xe8] sm:$0x3f]
      %v4985 = vrot.slane %v3129, 6
      %v4986 = vsel %vm3163, %v4985, 0
      %v4989 = vsel %vm3167, %v4983, 0
      %v4992 = vsel %vm3167, %v4984, 0
      %4994 = vmatprep.subr.mxu0 %v4956
      %4995 = vmatpush1.msra.mxu0 %v4955
      %4996 = vmatprep.subr.mxu0 %v4958
      %4997 = vmatpush1.msra.mxu0 %v4957
      %4998 = vmatprep.subr.mxu0 %v4960
      %4999 = vmatpush1.msra.mxu0 %v4959
      %5000 = vmatprep.subr.mxu0 %v4962
      %5001 = vmatpush1.msra.mxu0 %v4961
      %5002 = vmatprep.subr.mxu0 %v4964
      %5003 = vmatpush1.msra.mxu0 %v4963
      %5004 = vmatprep.subr.mxu0 %v4966
      %5005 = vmatpush1.msra.mxu0 %v4965
      %5006 = vmatprep.subr.mxu0 %v4968
      %5007 = vmatpush1.msra.mxu0 %v4967
      %5008 = vmatprep.subr.mxu0 %v4970
      %5009 = vmatpush1.msra.mxu0 %v4969
      %5010 = vmatprep.subr.mxu0 %v4972
      %5011 = vmatpush1.msra.mxu0 %v4971
      %5012 = vmatprep.subr.mxu0 %v4974
      %5013 = vmatpush1.msra.mxu0 %v4973
      %5014 = vmatprep.subr.mxu0 %v4976
      %5015 = vmatpush1.msra.mxu0 %v4975
      %5016 = vmatprep.subr.mxu0 %v4978
      %5017 = vmatpush1.msra.mxu0 %v4977
      %5018 = vmatprep.subr.mxu0 %v4980
      %5019 = vmatpush1.msra.mxu0 %v4979
      %5020 = vmatprep.subr.mxu0 %v4982
      %5021 = vmatpush1.msra.mxu0 %v4981
      %5022 = vmatprep.subr.mxu0 %v4992
      %5023 = vmatpush1.msra.mxu0 %v4989
      %5024 = vmatprep.subr.mxu0 0.0
      %5025 = vmatpush1.msra.mxu0 0.0
      %5026 = vmatprep.subr.mxu0 0.0
      %5027 = vmatpush1.msra.mxu0 0.0
      %5028 = vmatprep.subr.mxu0 0.0
      %5029 = vmatpush1.msra.mxu0 0.0
      %5030 = vmatprep.subr.mxu0 0.0
      %5031 = vmatpush1.msra.mxu0 0.0
      %5032 = vmatprep.subr.mxu0 0.0
      %5033 = vmatpush1.msra.mxu0 0.0
      %5034 = vmatprep.subr.mxu0 0.0
      %5035 = vmatpush1.msra.mxu0 0.0
      %5036 = vmatprep.subr.mxu0 0.0
      %5037 = vmatpush1.msra.mxu0 0.0
      %5038 = vmatprep.subr.mxu0 0.0
      %5039 = vmatpush1.msra.mxu0 0.0
      %5040 = vmatprep.subr.mxu0 0.0
      %5041 = vmatpush1.msra.mxu0 0.0
      %5042 = vmatprep.subr.mxu0 0.0
      %5043 = vmatpush1.msra.mxu0 0.0
      %5044 = vmatprep.subr.mxu0 0.0
      %5045 = vmatpush1.msra.mxu0 0.0
      %5046 = vmatprep.subr.mxu0 0.0
      %5047 = vmatpush1.msra.mxu0 0.0
      %5048 = vmatprep.subr.mxu0 0.0
      %5049 = vmatpush1.msra.mxu0 0.0
      %5050 = vmatprep.subr.mxu0 0.0
      %5051 = vmatpush1.msra.mxu0 0.0
      %5052 = vmatprep.subr.mxu0 0.0
      %5053 = vmatpush1.msra.mxu0 0.0
      %5054 = vmatprep.subr.mxu0 0.0
      %5055 = vmatpush1.msra.mxu0 0.0
      %5056 = vmatprep.subr.mxu0 0.0
      %5057 = vmatpush1.msra.mxu0 0.0
      %5058 = vmatprep.mubr.f32.mxu0 0.0
      %5059 = vmatmul.mubr.f32.gmra.mrb[0].mxu0 %v4986
      %v5060 = vpop.f32.mrb[0].mxu0
      %v5061 = vadd.f32 0.0, %v5060
      %v5062 = vpop.f32.mrb[0].mxu0
      %v5063 = vadd.f32 0.0, %v5062
      %5064 = vdwg.mxu0
      %v5067 = vcombine.low %v5061, %v5063
      %v5069 = vunpack.c.l.s4 1966171168
      %v5070 = vunpack.c.0.s8 %v5069
      %v5071 = vlaneseq
      %v5072 = vshrl.u32 %v5071, 7
      %v5073 = vsub.s32 %v5070, %v5072
      %v5074 = vrot.slane %v5067, %v5073
      %v5076 = vunpack.c.l.s4 1966171168
      %v5077 = vunpack.c.0.s8 %v5076
      %v5078 = vlaneseq
      %v5079 = vshrl.u32 %v5078, 7
      %v5080 = vsub.s32 %v5077, %v5079
      %v5081 = vrot.slane %v5074, %v5080
      %v5083 = vadd.f32 %v4953, %v5081
      %s5084 = scalar_lea.vmem %s8, 3600
      %v5085 = vld [vmem:[%s5084] sm:$0xff]
      %v5086 = vld [vmem:[%s5084 + $0x8] sm:$0xff]
      %v5087 = vld [vmem:[%s5084 + $0x10] sm:$0xff]
      %v5088 = vld [vmem:[%s5084 + $0x18] sm:$0xff]
      %v5089 = vld [vmem:[%s5084 + $0x20] sm:$0xff]
      %v5090 = vld [vmem:[%s5084 + $0x28] sm:$0xff]
      %v5091 = vld [vmem:[%s5084 + $0x30] sm:$0xff]
      %v5092 = vld [vmem:[%s5084 + $0x38] sm:$0xff]
      %v5093 = vld [vmem:[%s5084 + $0x40] sm:$0xff]
      %v5094 = vld [vmem:[%s5084 + $0x48] sm:$0xff]
      %v5095 = vld [vmem:[%s5084 + $0x50] sm:$0xff]
      %v5096 = vld [vmem:[%s5084 + $0x58] sm:$0xff]
      %v5097 = vld [vmem:[%s5084 + $0x60] sm:$0xff]
      %v5098 = vld [vmem:[%s5084 + $0x68] sm:$0xff]
      %v5099 = vld [vmem:[%s5084 + $0x70] sm:$0xff]
      %v5100 = vld [vmem:[%s5084 + $0x78] sm:$0xff]
      %v5101 = vld [vmem:[%s5084 + $0x80] sm:$0xff]
      %v5102 = vld [vmem:[%s5084 + $0x88] sm:$0xff]
      %v5103 = vld [vmem:[%s5084 + $0x90] sm:$0xff]
      %v5104 = vld [vmem:[%s5084 + $0x98] sm:$0xff]
      %v5105 = vld [vmem:[%s5084 + $0xa0] sm:$0xff]
      %v5106 = vld [vmem:[%s5084 + $0xa8] sm:$0xff]
      %v5107 = vld [vmem:[%s5084 + $0xb0] sm:$0xff]
      %v5108 = vld [vmem:[%s5084 + $0xb8] sm:$0xff]
      %v5109 = vld [vmem:[%s5084 + $0xc0] sm:$0xff]
      %v5110 = vld [vmem:[%s5084 + $0xc8] sm:$0xff]
      %v5111 = vld [vmem:[%s5084 + $0xd0] sm:$0xff]
      %v5112 = vld [vmem:[%s5084 + $0xd8] sm:$0xff]
      %v5113 = vld [vmem:[%s5084 + $0xe0] sm:$0x3f]
      %v5114 = vld [vmem:[%s5084 + $0xe8] sm:$0x3f]
      %v5115 = vrot.slane %v3129, 7
      %v5116 = vsel %vm3163, %v5115, 0
      %v5119 = vsel %vm3167, %v5113, 0
      %v5122 = vsel %vm3167, %v5114, 0
      %5124 = vmatprep.subr.mxu0 %v5086
      %5125 = vmatpush1.msra.mxu0 %v5085
      %5126 = vmatprep.subr.mxu0 %v5088
      %5127 = vmatpush1.msra.mxu0 %v5087
      %5128 = vmatprep.subr.mxu0 %v5090
      %5129 = vmatpush1.msra.mxu0 %v5089
      %5130 = vmatprep.subr.mxu0 %v5092
      %5131 = vmatpush1.msra.mxu0 %v5091
      %5132 = vmatprep.subr.mxu0 %v5094
      %5133 = vmatpush1.msra.mxu0 %v5093
      %5134 = vmatprep.subr.mxu0 %v5096
      %5135 = vmatpush1.msra.mxu0 %v5095
      %5136 = vmatprep.subr.mxu0 %v5098
      %5137 = vmatpush1.msra.mxu0 %v5097
      %5138 = vmatprep.subr.mxu0 %v5100
      %5139 = vmatpush1.msra.mxu0 %v5099
      %5140 = vmatprep.subr.mxu0 %v5102
      %5141 = vmatpush1.msra.mxu0 %v5101
      %5142 = vmatprep.subr.mxu0 %v5104
      %5143 = vmatpush1.msra.mxu0 %v5103
      %5144 = vmatprep.subr.mxu0 %v5106
      %5145 = vmatpush1.msra.mxu0 %v5105
      %5146 = vmatprep.subr.mxu0 %v5108
      %5147 = vmatpush1.msra.mxu0 %v5107
      %5148 = vmatprep.subr.mxu0 %v5110
      %5149 = vmatpush1.msra.mxu0 %v5109
      %5150 = vmatprep.subr.mxu0 %v5112
      %5151 = vmatpush1.msra.mxu0 %v5111
      %5152 = vmatprep.subr.mxu0 %v5122
      %5153 = vmatpush1.msra.mxu0 %v5119
      %5154 = vmatprep.subr.mxu0 0.0
      %5155 = vmatpush1.msra.mxu0 0.0
      %5156 = vmatprep.subr.mxu0 0.0
      %5157 = vmatpush1.msra.mxu0 0.0
      %5158 = vmatprep.subr.mxu0 0.0
      %5159 = vmatpush1.msra.mxu0 0.0
      %5160 = vmatprep.subr.mxu0 0.0
      %5161 = vmatpush1.msra.mxu0 0.0
      %5162 = vmatprep.subr.mxu0 0.0
      %5163 = vmatpush1.msra.mxu0 0.0
      %5164 = vmatprep.subr.mxu0 0.0
      %5165 = vmatpush1.msra.mxu0 0.0
      %5166 = vmatprep.subr.mxu0 0.0
      %5167 = vmatpush1.msra.mxu0 0.0
      %5168 = vmatprep.subr.mxu0 0.0
      %5169 = vmatpush1.msra.mxu0 0.0
      %5170 = vmatprep.subr.mxu0 0.0
      %5171 = vmatpush1.msra.mxu0 0.0
      %5172 = vmatprep.subr.mxu0 0.0
      %5173 = vmatpush1.msra.mxu0 0.0
      %5174 = vmatprep.subr.mxu0 0.0
      %5175 = vmatpush1.msra.mxu0 0.0
      %5176 = vmatprep.subr.mxu0 0.0
      %5177 = vmatpush1.msra.mxu0 0.0
      %5178 = vmatprep.subr.mxu0 0.0
      %5179 = vmatpush1.msra.mxu0 0.0
      %5180 = vmatprep.subr.mxu0 0.0
      %5181 = vmatpush1.msra.mxu0 0.0
      %5182 = vmatprep.subr.mxu0 0.0
      %5183 = vmatpush1.msra.mxu0 0.0
      %5184 = vmatprep.subr.mxu0 0.0
      %5185 = vmatpush1.msra.mxu0 0.0
      %5186 = vmatprep.subr.mxu0 0.0
      %5187 = vmatpush1.msra.mxu0 0.0
      %5188 = vmatprep.mubr.f32.mxu0 0.0
      %5189 = vmatmul.mubr.f32.gmra.mrb[0].mxu0 %v5116
      %v5190 = vpop.f32.mrb[0].mxu0
      %v5191 = vadd.f32 0.0, %v5190
      %v5192 = vpop.f32.mrb[0].mxu0
      %v5193 = vadd.f32 0.0, %v5192
      %5194 = vdwg.mxu0
      %v5197 = vcombine.low %v5191, %v5193
      %v5199 = vunpack.c.l.s4 1966171168
      %v5200 = vunpack.c.0.s8 %v5199
      %v5201 = vlaneseq
      %v5202 = vshrl.u32 %v5201, 7
      %v5203 = vsub.s32 %v5200, %v5202
      %v5204 = vrot.slane %v5197, %v5203
      %v5206 = vunpack.c.l.s4 1966171168
      %v5207 = vunpack.c.0.s8 %v5206
      %v5208 = vlaneseq
      %v5209 = vshrl.u32 %v5208, 7
      %v5210 = vsub.s32 %v5207, %v5209
      %v5211 = vrot.slane %v5204, %v5210
      %v5213 = vadd.f32 %v5083, %v5211
      %s5214 = scalar_lea.vmem %s8, 3840
      %v5215 = vld [vmem:[%s5214] sm:$0xff]
      %v5216 = vld [vmem:[%s5214 + $0x8] sm:$0xff]
      %v5217 = vld [vmem:[%s5214 + $0x10] sm:$0xff]
      %v5218 = vld [vmem:[%s5214 + $0x18] sm:$0xff]
      %v5219 = vld [vmem:[%s5214 + $0x20] sm:$0xff]
      %v5220 = vld [vmem:[%s5214 + $0x28] sm:$0xff]
      %v5221 = vld [vmem:[%s5214 + $0x30] sm:$0xff]
      %v5222 = vld [vmem:[%s5214 + $0x38] sm:$0xff]
      %v5223 = vld [vmem:[%s5214 + $0x40] sm:$0xff]
      %v5224 = vld [vmem:[%s5214 + $0x48] sm:$0xff]
      %v5225 = vld [vmem:[%s5214 + $0x50] sm:$0xff]
      %v5226 = vld [vmem:[%s5214 + $0x58] sm:$0xff]
      %v5227 = vld [vmem:[%s5214 + $0x60] sm:$0xff]
      %v5228 = vld [vmem:[%s5214 + $0x68] sm:$0xff]
      %v5229 = vld [vmem:[%s5214 + $0x70] sm:$0xff]
      %v5230 = vld [vmem:[%s5214 + $0x78] sm:$0xff]
      %v5231 = vld [vmem:[%s5214 + $0x80] sm:$0xff]
      %v5232 = vld [vmem:[%s5214 + $0x88] sm:$0xff]
      %v5233 = vld [vmem:[%s5214 + $0x90] sm:$0xff]
      %v5234 = vld [vmem:[%s5214 + $0x98] sm:$0xff]
      %v5235 = vld [vmem:[%s5214 + $0xa0] sm:$0xff]
      %v5236 = vld [vmem:[%s5214 + $0xa8] sm:$0xff]
      %v5237 = vld [vmem:[%s5214 + $0xb0] sm:$0xff]
      %v5238 = vld [vmem:[%s5214 + $0xb8] sm:$0xff]
      %v5239 = vld [vmem:[%s5214 + $0xc0] sm:$0xff]
      %v5240 = vld [vmem:[%s5214 + $0xc8] sm:$0xff]
      %v5241 = vld [vmem:[%s5214 + $0xd0] sm:$0xff]
      %v5242 = vld [vmem:[%s5214 + $0xd8] sm:$0xff]
      %v5243 = vld [vmem:[%s5214 + $0xe0] sm:$0x3f]
      %v5244 = vld [vmem:[%s5214 + $0xe8] sm:$0x3f]
      %v5246 = vsel %vm3163, %v3130, 0
      %v5249 = vsel %vm3167, %v5243, 0
      %v5252 = vsel %vm3167, %v5244, 0
      %5254 = vmatprep.subr.mxu0 %v5216
      %5255 = vmatpush1.msra.mxu0 %v5215
      %5256 = vmatprep.subr.mxu0 %v5218
      %5257 = vmatpush1.msra.mxu0 %v5217
      %5258 = vmatprep.subr.mxu0 %v5220
      %5259 = vmatpush1.msra.mxu0 %v5219
      %5260 = vmatprep.subr.mxu0 %v5222
      %5261 = vmatpush1.msra.mxu0 %v5221
      %5262 = vmatprep.subr.mxu0 %v5224
      %5263 = vmatpush1.msra.mxu0 %v5223
      %5264 = vmatprep.subr.mxu0 %v5226
      %5265 = vmatpush1.msra.mxu0 %v5225
      %5266 = vmatprep.subr.mxu0 %v5228
      %5267 = vmatpush1.msra.mxu0 %v5227
      %5268 = vmatprep.subr.mxu0 %v5230
      %5269 = vmatpush1.msra.mxu0 %v5229
      %5270 = vmatprep.subr.mxu0 %v5232
      %5271 = vmatpush1.msra.mxu0 %v5231
      %5272 = vmatprep.subr.mxu0 %v5234
      %5273 = vmatpush1.msra.mxu0 %v5233
      %5274 = vmatprep.subr.mxu0 %v5236
      %5275 = vmatpush1.msra.mxu0 %v5235
      %5276 = vmatprep.subr.mxu0 %v5238
      %5277 = vmatpush1.msra.mxu0 %v5237
      %5278 = vmatprep.subr.mxu0 %v5240
      %5279 = vmatpush1.msra.mxu0 %v5239
      %5280 = vmatprep.subr.mxu0 %v5242
      %5281 = vmatpush1.msra.mxu0 %v5241
      %5282 = vmatprep.subr.mxu0 %v5252
      %5283 = vmatpush1.msra.mxu0 %v5249
      %5284 = vmatprep.subr.mxu0 0.0
      %5285 = vmatpush1.msra.mxu0 0.0
      %5286 = vmatprep.subr.mxu0 0.0
      %5287 = vmatpush1.msra.mxu0 0.0
      %5288 = vmatprep.subr.mxu0 0.0
      %5289 = vmatpush1.msra.mxu0 0.0
      %5290 = vmatprep.subr.mxu0 0.0
      %5291 = vmatpush1.msra.mxu0 0.0
      %5292 = vmatprep.subr.mxu0 0.0
      %5293 = vmatpush1.msra.mxu0 0.0
      %5294 = vmatprep.subr.mxu0 0.0
      %5295 = vmatpush1.msra.mxu0 0.0
      %5296 = vmatprep.subr.mxu0 0.0
      %5297 = vmatpush1.msra.mxu0 0.0
      %5298 = vmatprep.subr.mxu0 0.0
      %5299 = vmatpush1.msra.mxu0 0.0
      %5300 = vmatprep.subr.mxu0 0.0
      %5301 = vmatpush1.msra.mxu0 0.0
      %5302 = vmatprep.subr.mxu0 0.0
      %5303 = vmatpush1.msra.mxu0 0.0
      %5304 = vmatprep.subr.mxu0 0.0
      %5305 = vmatpush1.msra.mxu0 0.0
      %5306 = vmatprep.subr.mxu0 0.0
      %5307 = vmatpush1.msra.mxu0 0.0
      %5308 = vmatprep.subr.mxu0 0.0
      %5309 = vmatpush1.msra.mxu0 0.0
      %5310 = vmatprep.subr.mxu0 0.0
      %5311 = vmatpush1.msra.mxu0 0.0
      %5312 = vmatprep.subr.mxu0 0.0
      %5313 = vmatpush1.msra.mxu0 0.0
      %5314 = vmatprep.subr.mxu0 0.0
      %5315 = vmatpush1.msra.mxu0 0.0
      %5316 = vmatprep.subr.mxu0 0.0
      %5317 = vmatpush1.msra.mxu0 0.0
      %5318 = vmatprep.mubr.f32.mxu0 0.0
      %5319 = vmatmul.mubr.f32.gmra.mrb[0].mxu0 %v5246
      %v5320 = vpop.f32.mrb[0].mxu0
      %v5321 = vadd.f32 0.0, %v5320
      %v5322 = vpop.f32.mrb[0].mxu0
      %v5323 = vadd.f32 0.0, %v5322
      %5324 = vdwg.mxu0
      %v5327 = vcombine.low %v5321, %v5323
      %v5329 = vunpack.c.l.s4 1966171168
      %v5330 = vunpack.c.0.s8 %v5329
      %v5331 = vlaneseq
      %v5332 = vshrl.u32 %v5331, 7
      %v5333 = vsub.s32 %v5330, %v5332
      %v5334 = vrot.slane %v5327, %v5333
      %v5336 = vunpack.c.l.s4 1966171168
      %v5337 = vunpack.c.0.s8 %v5336
      %v5338 = vlaneseq
      %v5339 = vshrl.u32 %v5338, 7
      %v5340 = vsub.s32 %v5337, %v5339
      %v5341 = vrot.slane %v5334, %v5340
      %v5343 = vadd.f32 %v5213, %v5341
      %s5344 = scalar_lea.vmem %s8, 4080
      %v5345 = vld [vmem:[%s5344] sm:$0xff]
      %v5346 = vld [vmem:[%s5344 + $0x8] sm:$0xff]
      %v5347 = vld [vmem:[%s5344 + $0x10] sm:$0xff]
      %v5348 = vld [vmem:[%s5344 + $0x18] sm:$0xff]
      %v5349 = vld [vmem:[%s5344 + $0x20] sm:$0xff]
      %v5350 = vld [vmem:[%s5344 + $0x28] sm:$0xff]
      %v5351 = vld [vmem:[%s5344 + $0x30] sm:$0xff]
      %v5352 = vld [vmem:[%s5344 + $0x38] sm:$0xff]
      %v5353 = vld [vmem:[%s5344 + $0x40] sm:$0xff]
      %v5354 = vld [vmem:[%s5344 + $0x48] sm:$0xff]
      %v5355 = vld [vmem:[%s5344 + $0x50] sm:$0xff]
      %v5356 = vld [vmem:[%s5344 + $0x58] sm:$0xff]
      %v5357 = vld [vmem:[%s5344 + $0x60] sm:$0xff]
      %v5358 = vld [vmem:[%s5344 + $0x68] sm:$0xff]
      %v5359 = vld [vmem:[%s5344 + $0x70] sm:$0xff]
      %v5360 = vld [vmem:[%s5344 + $0x78] sm:$0xff]
      %v5361 = vld [vmem:[%s5344 + $0x80] sm:$0xff]
      %v5362 = vld [vmem:[%s5344 + $0x88] sm:$0xff]
      %v5363 = vld [vmem:[%s5344 + $0x90] sm:$0xff]
      %v5364 = vld [vmem:[%s5344 + $0x98] sm:$0xff]
      %v5365 = vld [vmem:[%s5344 + $0xa0] sm:$0xff]
      %v5366 = vld [vmem:[%s5344 + $0xa8] sm:$0xff]
      %v5367 = vld [vmem:[%s5344 + $0xb0] sm:$0xff]
      %v5368 = vld [vmem:[%s5344 + $0xb8] sm:$0xff]
      %v5369 = vld [vmem:[%s5344 + $0xc0] sm:$0xff]
      %v5370 = vld [vmem:[%s5344 + $0xc8] sm:$0xff]
      %v5371 = vld [vmem:[%s5344 + $0xd0] sm:$0xff]
      %v5372 = vld [vmem:[%s5344 + $0xd8] sm:$0xff]
      %v5373 = vld [vmem:[%s5344 + $0xe0] sm:$0x3f]
      %v5374 = vld [vmem:[%s5344 + $0xe8] sm:$0x3f]
      %v5375 = vrot.slane %v3130, 1
      %v5376 = vsel %vm3163, %v5375, 0
      %v5379 = vsel %vm3167, %v5373, 0
      %v5382 = vsel %vm3167, %v5374, 0
      %5384 = vmatprep.subr.mxu0 %v5346
      %5385 = vmatpush1.msra.mxu0 %v5345
      %5386 = vmatprep.subr.mxu0 %v5348
      %5387 = vmatpush1.msra.mxu0 %v5347
      %5388 = vmatprep.subr.mxu0 %v5350
      %5389 = vmatpush1.msra.mxu0 %v5349
      %5390 = vmatprep.subr.mxu0 %v5352
      %5391 = vmatpush1.msra.mxu0 %v5351
      %5392 = vmatprep.subr.mxu0 %v5354
      %5393 = vmatpush1.msra.mxu0 %v5353
      %5394 = vmatprep.subr.mxu0 %v5356
      %5395 = vmatpush1.msra.mxu0 %v5355
      %5396 = vmatprep.subr.mxu0 %v5358
      %5397 = vmatpush1.msra.mxu0 %v5357
      %5398 = vmatprep.subr.mxu0 %v5360
      %5399 = vmatpush1.msra.mxu0 %v5359
      %5400 = vmatprep.subr.mxu0 %v5362
      %5401 = vmatpush1.msra.mxu0 %v5361
      %5402 = vmatprep.subr.mxu0 %v5364
      %5403 = vmatpush1.msra.mxu0 %v5363
      %5404 = vmatprep.subr.mxu0 %v5366
      %5405 = vmatpush1.msra.mxu0 %v5365
      %5406 = vmatprep.subr.mxu0 %v5368
      %5407 = vmatpush1.msra.mxu0 %v5367
      %5408 = vmatprep.subr.mxu0 %v5370
      %5409 = vmatpush1.msra.mxu0 %v5369
      %5410 = vmatprep.subr.mxu0 %v5372
      %5411 = vmatpush1.msra.mxu0 %v5371
      %5412 = vmatprep.subr.mxu0 %v5382
      %5413 = vmatpush1.msra.mxu0 %v5379
      %5414 = vmatprep.subr.mxu0 0.0
      %5415 = vmatpush1.msra.mxu0 0.0
      %5416 = vmatprep.subr.mxu0 0.0
      %5417 = vmatpush1.msra.mxu0 0.0
      %5418 = vmatprep.subr.mxu0 0.0
      %5419 = vmatpush1.msra.mxu0 0.0
      %5420 = vmatprep.subr.mxu0 0.0
      %5421 = vmatpush1.msra.mxu0 0.0
      %5422 = vmatprep.subr.mxu0 0.0
      %5423 = vmatpush1.msra.mxu0 0.0
      %5424 = vmatprep.subr.mxu0 0.0
      %5425 = vmatpush1.msra.mxu0 0.0
      %5426 = vmatprep.subr.mxu0 0.0
      %5427 = vmatpush1.msra.mxu0 0.0
      %5428 = vmatprep.subr.mxu0 0.0
      %5429 = vmatpush1.msra.mxu0 0.0
      %5430 = vmatprep.subr.mxu0 0.0
      %5431 = vmatpush1.msra.mxu0 0.0
      %5432 = vmatprep.subr.mxu0 0.0
      %5433 = vmatpush1.msra.mxu0 0.0
      %5434 = vmatprep.subr.mxu0 0.0
      %5435 = vmatpush1.msra.mxu0 0.0
      %5436 = vmatprep.subr.mxu0 0.0
      %5437 = vmatpush1.msra.mxu0 0.0
      %5438 = vmatprep.subr.mxu0 0.0
      %5439 = vmatpush1.msra.mxu0 0.0
      %5440 = vmatprep.subr.mxu0 0.0
      %5441 = vmatpush1.msra.mxu0 0.0
      %5442 = vmatprep.subr.mxu0 0.0
      %5443 = vmatpush1.msra.mxu0 0.0
      %5444 = vmatprep.subr.mxu0 0.0
      %5445 = vmatpush1.msra.mxu0 0.0
      %5446 = vmatprep.subr.mxu0 0.0
      %5447 = vmatpush1.msra.mxu0 0.0
      %5448 = vmatprep.mubr.f32.mxu0 0.0
      %5449 = vmatmul.mubr.f32.gmra.mrb[0].mxu0 %v5376
      %v5450 = vpop.f32.mrb[0].mxu0
      %v5451 = vadd.f32 0.0, %v5450
      %v5452 = vpop.f32.mrb[0].mxu0
      %v5453 = vadd.f32 0.0, %v5452
      %5454 = vdwg.mxu0
      %v5457 = vcombine.low %v5451, %v5453
      %v5459 = vunpack.c.l.s4 1966171168
      %v5460 = vunpack.c.0.s8 %v5459
      %v5461 = vlaneseq
      %v5462 = vshrl.u32 %v5461, 7
      %v5463 = vsub.s32 %v5460, %v5462
      %v5464 = vrot.slane %v5457, %v5463
      %v5466 = vunpack.c.l.s4 1966171168
      %v5467 = vunpack.c.0.s8 %v5466
      %v5468 = vlaneseq
      %v5469 = vshrl.u32 %v5468, 7
      %v5470 = vsub.s32 %v5467, %v5469
      %v5471 = vrot.slane %v5464, %v5470
      %v5473 = vadd.f32 %v5343, %v5471
      %s5474 = scalar_lea.vmem %s8, 4320
      %v5475 = vld [vmem:[%s5474] sm:$0xff]
      %v5476 = vld [vmem:[%s5474 + $0x8] sm:$0xff]
      %v5477 = vld [vmem:[%s5474 + $0x10] sm:$0xff]
      %v5478 = vld [vmem:[%s5474 + $0x18] sm:$0xff]
      %v5479 = vld [vmem:[%s5474 + $0x20] sm:$0xff]
      %v5480 = vld [vmem:[%s5474 + $0x28] sm:$0xff]
      %v5481 = vld [vmem:[%s5474 + $0x30] sm:$0xff]
      %v5482 = vld [vmem:[%s5474 + $0x38] sm:$0xff]
      %v5483 = vld [vmem:[%s5474 + $0x40] sm:$0xff]
      %v5484 = vld [vmem:[%s5474 + $0x48] sm:$0xff]
      %v5485 = vld [vmem:[%s5474 + $0x50] sm:$0xff]
      %v5486 = vld [vmem:[%s5474 + $0x58] sm:$0xff]
      %v5487 = vld [vmem:[%s5474 + $0x60] sm:$0xff]
      %v5488 = vld [vmem:[%s5474 + $0x68] sm:$0xff]
      %v5489 = vld [vmem:[%s5474 + $0x70] sm:$0xff]
      %v5490 = vld [vmem:[%s5474 + $0x78] sm:$0xff]
      %v5491 = vld [vmem:[%s5474 + $0x80] sm:$0xff]
      %v5492 = vld [vmem:[%s5474 + $0x88] sm:$0xff]
      %v5493 = vld [vmem:[%s5474 + $0x90] sm:$0xff]
      %v5494 = vld [vmem:[%s5474 + $0x98] sm:$0xff]
      %v5495 = vld [vmem:[%s5474 + $0xa0] sm:$0xff]
      %v5496 = vld [vmem:[%s5474 + $0xa8] sm:$0xff]
      %v5497 = vld [vmem:[%s5474 + $0xb0] sm:$0xff]
      %v5498 = vld [vmem:[%s5474 + $0xb8] sm:$0xff]
      %v5499 = vld [vmem:[%s5474 + $0xc0] sm:$0xff]
      %v5500 = vld [vmem:[%s5474 + $0xc8] sm:$0xff]
      %v5501 = vld [vmem:[%s5474 + $0xd0] sm:$0xff]
      %v5502 = vld [vmem:[%s5474 + $0xd8] sm:$0xff]
      %v5503 = vld [vmem:[%s5474 + $0xe0] sm:$0x3f]
      %v5504 = vld [vmem:[%s5474 + $0xe8] sm:$0x3f]
      %v5505 = vrot.slane %v3130, 2
      %v5506 = vsel %vm3163, %v5505, 0
      %v5509 = vsel %vm3167, %v5503, 0
      %v5512 = vsel %vm3167, %v5504, 0
      %5514 = vmatprep.subr.mxu0 %v5476
      %5515 = vmatpush1.msra.mxu0 %v5475
      %5516 = vmatprep.subr.mxu0 %v5478
      %5517 = vmatpush1.msra.mxu0 %v5477
      %5518 = vmatprep.subr.mxu0 %v5480
      %5519 = vmatpush1.msra.mxu0 %v5479
      %5520 = vmatprep.subr.mxu0 %v5482
      %5521 = vmatpush1.msra.mxu0 %v5481
      %5522 = vmatprep.subr.mxu0 %v5484
      %5523 = vmatpush1.msra.mxu0 %v5483
      %5524 = vmatprep.subr.mxu0 %v5486
      %5525 = vmatpush1.msra.mxu0 %v5485
      %5526 = vmatprep.subr.mxu0 %v5488
      %5527 = vmatpush1.msra.mxu0 %v5487
      %5528 = vmatprep.subr.mxu0 %v5490
      %5529 = vmatpush1.msra.mxu0 %v5489
      %5530 = vmatprep.subr.mxu0 %v5492
      %5531 = vmatpush1.msra.mxu0 %v5491
      %5532 = vmatprep.subr.mxu0 %v5494
      %5533 = vmatpush1.msra.mxu0 %v5493
      %5534 = vmatprep.subr.mxu0 %v5496
      %5535 = vmatpush1.msra.mxu0 %v5495
      %5536 = vmatprep.subr.mxu0 %v5498
      %5537 = vmatpush1.msra.mxu0 %v5497
      %5538 = vmatprep.subr.mxu0 %v5500
      %5539 = vmatpush1.msra.mxu0 %v5499
      %5540 = vmatprep.subr.mxu0 %v5502
      %5541 = vmatpush1.msra.mxu0 %v5501
      %5542 = vmatprep.subr.mxu0 %v5512
      %5543 = vmatpush1.msra.mxu0 %v5509
      %5544 = vmatprep.subr.mxu0 0.0
      %5545 = vmatpush1.msra.mxu0 0.0
      %5546 = vmatprep.subr.mxu0 0.0
      %5547 = vmatpush1.msra.mxu0 0.0
      %5548 = vmatprep.subr.mxu0 0.0
      %5549 = vmatpush1.msra.mxu0 0.0
      %5550 = vmatprep.subr.mxu0 0.0
      %5551 = vmatpush1.msra.mxu0 0.0
      %5552 = vmatprep.subr.mxu0 0.0
      %5553 = vmatpush1.msra.mxu0 0.0
      %5554 = vmatprep.subr.mxu0 0.0
      %5555 = vmatpush1.msra.mxu0 0.0
      %5556 = vmatprep.subr.mxu0 0.0
      %5557 = vmatpush1.msra.mxu0 0.0
      %5558 = vmatprep.subr.mxu0 0.0
      %5559 = vmatpush1.msra.mxu0 0.0
      %5560 = vmatprep.subr.mxu0 0.0
      %5561 = vmatpush1.msra.mxu0 0.0
      %5562 = vmatprep.subr.mxu0 0.0
      %5563 = vmatpush1.msra.mxu0 0.0
      %5564 = vmatprep.subr.mxu0 0.0
      %5565 = vmatpush1.msra.mxu0 0.0
      %5566 = vmatprep.subr.mxu0 0.0
      %5567 = vmatpush1.msra.mxu0 0.0
      %5568 = vmatprep.subr.mxu0 0.0
      %5569 = vmatpush1.msra.mxu0 0.0
      %5570 = vmatprep.subr.mxu0 0.0
      %5571 = vmatpush1.msra.mxu0 0.0
      %5572 = vmatprep.subr.mxu0 0.0
      %5573 = vmatpush1.msra.mxu0 0.0
      %5574 = vmatprep.subr.mxu0 0.0
      %5575 = vmatpush1.msra.mxu0 0.0
      %5576 = vmatprep.subr.mxu0 0.0
      %5577 = vmatpush1.msra.mxu0 0.0
      %5578 = vmatprep.mubr.f32.mxu0 0.0
      %5579 = vmatmul.mubr.f32.gmra.mrb[0].mxu0 %v5506
      %v5580 = vpop.f32.mrb[0].mxu0
      %v5581 = vadd.f32 0.0, %v5580
      %v5582 = vpop.f32.mrb[0].mxu0
      %v5583 = vadd.f32 0.0, %v5582
      %5584 = vdwg.mxu0
      %v5587 = vcombine.low %v5581, %v5583
      %v5589 = vunpack.c.l.s4 1966171168
      %v5590 = vunpack.c.0.s8 %v5589
      %v5591 = vlaneseq
      %v5592 = vshrl.u32 %v5591, 7
      %v5593 = vsub.s32 %v5590, %v5592
      %v5594 = vrot.slane %v5587, %v5593
      %v5596 = vunpack.c.l.s4 1966171168
      %v5597 = vunpack.c.0.s8 %v5596
      %v5598 = vlaneseq
      %v5599 = vshrl.u32 %v5598, 7
      %v5600 = vsub.s32 %v5597, %v5599
      %v5601 = vrot.slane %v5594, %v5600
      %v5603 = vadd.f32 %v5473, %v5601
      %s5604 = scalar_lea.vmem %s8, 4560
      %v5605 = vld [vmem:[%s5604] sm:$0xff]
      %v5606 = vld [vmem:[%s5604 + $0x8] sm:$0xff]
      %v5607 = vld [vmem:[%s5604 + $0x10] sm:$0xff]
      %v5608 = vld [vmem:[%s5604 + $0x18] sm:$0xff]
      %v5609 = vld [vmem:[%s5604 + $0x20] sm:$0xff]
      %v5610 = vld [vmem:[%s5604 + $0x28] sm:$0xff]
      %v5611 = vld [vmem:[%s5604 + $0x30] sm:$0xff]
      %v5612 = vld [vmem:[%s5604 + $0x38] sm:$0xff]
      %v5613 = vld [vmem:[%s5604 + $0x40] sm:$0xff]
      %v5614 = vld [vmem:[%s5604 + $0x48] sm:$0xff]
      %v5615 = vld [vmem:[%s5604 + $0x50] sm:$0xff]
      %v5616 = vld [vmem:[%s5604 + $0x58] sm:$0xff]
      %v5617 = vld [vmem:[%s5604 + $0x60] sm:$0xff]
      %v5618 = vld [vmem:[%s5604 + $0x68] sm:$0xff]
      %v5619 = vld [vmem:[%s5604 + $0x70] sm:$0xff]
      %v5620 = vld [vmem:[%s5604 + $0x78] sm:$0xff]
      %v5621 = vld [vmem:[%s5604 + $0x80] sm:$0xff]
      %v5622 = vld [vmem:[%s5604 + $0x88] sm:$0xff]
      %v5623 = vld [vmem:[%s5604 + $0x90] sm:$0xff]
      %v5624 = vld [vmem:[%s5604 + $0x98] sm:$0xff]
      %v5625 = vld [vmem:[%s5604 + $0xa0] sm:$0xff]
      %v5626 = vld [vmem:[%s5604 + $0xa8] sm:$0xff]
      %v5627 = vld [vmem:[%s5604 + $0xb0] sm:$0xff]
      %v5628 = vld [vmem:[%s5604 + $0xb8] sm:$0xff]
      %v5629 = vld [vmem:[%s5604 + $0xc0] sm:$0xff]
      %v5630 = vld [vmem:[%s5604 + $0xc8] sm:$0xff]
      %v5631 = vld [vmem:[%s5604 + $0xd0] sm:$0xff]
      %v5632 = vld [vmem:[%s5604 + $0xd8] sm:$0xff]
      %v5633 = vld [vmem:[%s5604 + $0xe0] sm:$0x3f]
      %v5634 = vld [vmem:[%s5604 + $0xe8] sm:$0x3f]
      %v5635 = vrot.slane %v3130, 3
      %v5636 = vsel %vm3163, %v5635, 0
      %v5639 = vsel %vm3167, %v5633, 0
      %v5642 = vsel %vm3167, %v5634, 0
      %5644 = vmatprep.subr.mxu0 %v5606
      %5645 = vmatpush1.msra.mxu0 %v5605
      %5646 = vmatprep.subr.mxu0 %v5608
      %5647 = vmatpush1.msra.mxu0 %v5607
      %5648 = vmatprep.subr.mxu0 %v5610
      %5649 = vmatpush1.msra.mxu0 %v5609
      %5650 = vmatprep.subr.mxu0 %v5612
      %5651 = vmatpush1.msra.mxu0 %v5611
      %5652 = vmatprep.subr.mxu0 %v5614
      %5653 = vmatpush1.msra.mxu0 %v5613
      %5654 = vmatprep.subr.mxu0 %v5616
      %5655 = vmatpush1.msra.mxu0 %v5615
      %5656 = vmatprep.subr.mxu0 %v5618
      %5657 = vmatpush1.msra.mxu0 %v5617
      %5658 = vmatprep.subr.mxu0 %v5620
      %5659 = vmatpush1.msra.mxu0 %v5619
      %5660 = vmatprep.subr.mxu0 %v5622
      %5661 = vmatpush1.msra.mxu0 %v5621
      %5662 = vmatprep.subr.mxu0 %v5624
      %5663 = vmatpush1.msra.mxu0 %v5623
      %5664 = vmatprep.subr.mxu0 %v5626
      %5665 = vmatpush1.msra.mxu0 %v5625
      %5666 = vmatprep.subr.mxu0 %v5628
      %5667 = vmatpush1.msra.mxu0 %v5627
      %5668 = vmatprep.subr.mxu0 %v5630
      %5669 = vmatpush1.msra.mxu0 %v5629
      %5670 = vmatprep.subr.mxu0 %v5632
      %5671 = vmatpush1.msra.mxu0 %v5631
      %5672 = vmatprep.subr.mxu0 %v5642
      %5673 = vmatpush1.msra.mxu0 %v5639
      %5674 = vmatprep.subr.mxu0 0.0
      %5675 = vmatpush1.msra.mxu0 0.0
      %5676 = vmatprep.subr.mxu0 0.0
      %5677 = vmatpush1.msra.mxu0 0.0
      %5678 = vmatprep.subr.mxu0 0.0
      %5679 = vmatpush1.msra.mxu0 0.0
      %5680 = vmatprep.subr.mxu0 0.0
      %5681 = vmatpush1.msra.mxu0 0.0
      %5682 = vmatprep.subr.mxu0 0.0
      %5683 = vmatpush1.msra.mxu0 0.0
      %5684 = vmatprep.subr.mxu0 0.0
      %5685 = vmatpush1.msra.mxu0 0.0
      %5686 = vmatprep.subr.mxu0 0.0
      %5687 = vmatpush1.msra.mxu0 0.0
      %5688 = vmatprep.subr.mxu0 0.0
      %5689 = vmatpush1.msra.mxu0 0.0
      %5690 = vmatprep.subr.mxu0 0.0
      %5691 = vmatpush1.msra.mxu0 0.0
      %5692 = vmatprep.subr.mxu0 0.0
      %5693 = vmatpush1.msra.mxu0 0.0
      %5694 = vmatprep.subr.mxu0 0.0
      %5695 = vmatpush1.msra.mxu0 0.0
      %5696 = vmatprep.subr.mxu0 0.0
      %5697 = vmatpush1.msra.mxu0 0.0
      %5698 = vmatprep.subr.mxu0 0.0
      %5699 = vmatpush1.msra.mxu0 0.0
      %5700 = vmatprep.subr.mxu0 0.0
      %5701 = vmatpush1.msra.mxu0 0.0
      %5702 = vmatprep.subr.mxu0 0.0
      %5703 = vmatpush1.msra.mxu0 0.0
      %5704 = vmatprep.subr.mxu0 0.0
      %5705 = vmatpush1.msra.mxu0 0.0
      %5706 = vmatprep.subr.mxu0 0.0
      %5707 = vmatpush1.msra.mxu0 0.0
      %5708 = vmatprep.mubr.f32.mxu0 0.0
      %5709 = vmatmul.mubr.f32.gmra.mrb[0].mxu0 %v5636
      %v5710 = vpop.f32.mrb[0].mxu0
      %v5711 = vadd.f32 0.0, %v5710
      %v5712 = vpop.f32.mrb[0].mxu0
      %v5713 = vadd.f32 0.0, %v5712
      %5714 = vdwg.mxu0
      %v5717 = vcombine.low %v5711, %v5713
      %v5719 = vunpack.c.l.s4 1966171168
      %v5720 = vunpack.c.0.s8 %v5719
      %v5721 = vlaneseq
      %v5722 = vshrl.u32 %v5721, 7
      %v5723 = vsub.s32 %v5720, %v5722
      %v5724 = vrot.slane %v5717, %v5723
      %v5726 = vunpack.c.l.s4 1966171168
      %v5727 = vunpack.c.0.s8 %v5726
      %v5728 = vlaneseq
      %v5729 = vshrl.u32 %v5728, 7
      %v5730 = vsub.s32 %v5727, %v5729
      %v5731 = vrot.slane %v5724, %v5730
      %v5733 = vadd.f32 %v5603, %v5731
      %s5734 = scalar_lea.vmem %s8, 4800
      %v5735 = vld [vmem:[%s5734] sm:$0xff]
      %v5736 = vld [vmem:[%s5734 + $0x8] sm:$0xff]
      %v5737 = vld [vmem:[%s5734 + $0x10] sm:$0xff]
      %v5738 = vld [vmem:[%s5734 + $0x18] sm:$0xff]
      %v5739 = vld [vmem:[%s5734 + $0x20] sm:$0xff]
      %v5740 = vld [vmem:[%s5734 + $0x28] sm:$0xff]
      %v5741 = vld [vmem:[%s5734 + $0x30] sm:$0xff]
      %v5742 = vld [vmem:[%s5734 + $0x38] sm:$0xff]
      %v5743 = vld [vmem:[%s5734 + $0x40] sm:$0xff]
      %v5744 = vld [vmem:[%s5734 + $0x48] sm:$0xff]
      %v5745 = vld [vmem:[%s5734 + $0x50] sm:$0xff]
      %v5746 = vld [vmem:[%s5734 + $0x58] sm:$0xff]
      %v5747 = vld [vmem:[%s5734 + $0x60] sm:$0xff]
      %v5748 = vld [vmem:[%s5734 + $0x68] sm:$0xff]
      %v5749 = vld [vmem:[%s5734 + $0x70] sm:$0xff]
      %v5750 = vld [vmem:[%s5734 + $0x78] sm:$0xff]
      %v5751 = vld [vmem:[%s5734 + $0x80] sm:$0xff]
      %v5752 = vld [vmem:[%s5734 + $0x88] sm:$0xff]
      %v5753 = vld [vmem:[%s5734 + $0x90] sm:$0xff]
      %v5754 = vld [vmem:[%s5734 + $0x98] sm:$0xff]
      %v5755 = vld [vmem:[%s5734 + $0xa0] sm:$0xff]
      %v5756 = vld [vmem:[%s5734 + $0xa8] sm:$0xff]
      %v5757 = vld [vmem:[%s5734 + $0xb0] sm:$0xff]
      %v5758 = vld [vmem:[%s5734 + $0xb8] sm:$0xff]
      %v5759 = vld [vmem:[%s5734 + $0xc0] sm:$0xff]
      %v5760 = vld [vmem:[%s5734 + $0xc8] sm:$0xff]
      %v5761 = vld [vmem:[%s5734 + $0xd0] sm:$0xff]
      %v5762 = vld [vmem:[%s5734 + $0xd8] sm:$0xff]
      %v5763 = vld [vmem:[%s5734 + $0xe0] sm:$0x3f]
      %v5764 = vld [vmem:[%s5734 + $0xe8] sm:$0x3f]
      %v5765 = vrot.slane %v3130, 4
      %v5766 = vsel %vm3163, %v5765, 0
      %v5769 = vsel %vm3167, %v5763, 0
      %v5772 = vsel %vm3167, %v5764, 0
      %5774 = vmatprep.subr.mxu0 %v5736
      %5775 = vmatpush1.msra.mxu0 %v5735
      %5776 = vmatprep.subr.mxu0 %v5738
      %5777 = vmatpush1.msra.mxu0 %v5737
      %5778 = vmatprep.subr.mxu0 %v5740
      %5779 = vmatpush1.msra.mxu0 %v5739
      %5780 = vmatprep.subr.mxu0 %v5742
      %5781 = vmatpush1.msra.mxu0 %v5741
      %5782 = vmatprep.subr.mxu0 %v5744
      %5783 = vmatpush1.msra.mxu0 %v5743
      %5784 = vmatprep.subr.mxu0 %v5746
      %5785 = vmatpush1.msra.mxu0 %v5745
      %5786 = vmatprep.subr.mxu0 %v5748
      %5787 = vmatpush1.msra.mxu0 %v5747
      %5788 = vmatprep.subr.mxu0 %v5750
      %5789 = vmatpush1.msra.mxu0 %v5749
      %5790 = vmatprep.subr.mxu0 %v5752
      %5791 = vmatpush1.msra.mxu0 %v5751
      %5792 = vmatprep.subr.mxu0 %v5754
      %5793 = vmatpush1.msra.mxu0 %v5753
      %5794 = vmatprep.subr.mxu0 %v5756
      %5795 = vmatpush1.msra.mxu0 %v5755
      %5796 = vmatprep.subr.mxu0 %v5758
      %5797 = vmatpush1.msra.mxu0 %v5757
      %5798 = vmatprep.subr.mxu0 %v5760
      %5799 = vmatpush1.msra.mxu0 %v5759
      %5800 = vmatprep.subr.mxu0 %v5762
      %5801 = vmatpush1.msra.mxu0 %v5761
      %5802 = vmatprep.subr.mxu0 %v5772
      %5803 = vmatpush1.msra.mxu0 %v5769
      %5804 = vmatprep.subr.mxu0 0.0
      %5805 = vmatpush1.msra.mxu0 0.0
      %5806 = vmatprep.subr.mxu0 0.0
      %5807 = vmatpush1.msra.mxu0 0.0
      %5808 = vmatprep.subr.mxu0 0.0
      %5809 = vmatpush1.msra.mxu0 0.0
      %5810 = vmatprep.subr.mxu0 0.0
      %5811 = vmatpush1.msra.mxu0 0.0
      %5812 = vmatprep.subr.mxu0 0.0
      %5813 = vmatpush1.msra.mxu0 0.0
      %5814 = vmatprep.subr.mxu0 0.0
      %5815 = vmatpush1.msra.mxu0 0.0
      %5816 = vmatprep.subr.mxu0 0.0
      %5817 = vmatpush1.msra.mxu0 0.0
      %5818 = vmatprep.subr.mxu0 0.0
      %5819 = vmatpush1.msra.mxu0 0.0
      %5820 = vmatprep.subr.mxu0 0.0
      %5821 = vmatpush1.msra.mxu0 0.0
      %5822 = vmatprep.subr.mxu0 0.0
      %5823 = vmatpush1.msra.mxu0 0.0
      %5824 = vmatprep.subr.mxu0 0.0
      %5825 = vmatpush1.msra.mxu0 0.0
      %5826 = vmatprep.subr.mxu0 0.0
      %5827 = vmatpush1.msra.mxu0 0.0
      %5828 = vmatprep.subr.mxu0 0.0
      %5829 = vmatpush1.msra.mxu0 0.0
      %5830 = vmatprep.subr.mxu0 0.0
      %5831 = vmatpush1.msra.mxu0 0.0
      %5832 = vmatprep.subr.mxu0 0.0
      %5833 = vmatpush1.msra.mxu0 0.0
      %5834 = vmatprep.subr.mxu0 0.0
      %5835 = vmatpush1.msra.mxu0 0.0
      %5836 = vmatprep.subr.mxu0 0.0
      %5837 = vmatpush1.msra.mxu0 0.0
      %5838 = vmatprep.mubr.f32.mxu0 0.0
      %5839 = vmatmul.mubr.f32.gmra.mrb[0].mxu0 %v5766
      %v5840 = vpop.f32.mrb[0].mxu0
      %v5841 = vadd.f32 0.0, %v5840
      %v5842 = vpop.f32.mrb[0].mxu0
      %v5843 = vadd.f32 0.0, %v5842
      %5844 = vdwg.mxu0
      %v5847 = vcombine.low %v5841, %v5843
      %v5849 = vunpack.c.l.s4 1966171168
      %v5850 = vunpack.c.0.s8 %v5849
      %v5851 = vlaneseq
      %v5852 = vshrl.u32 %v5851, 7
      %v5853 = vsub.s32 %v5850, %v5852
      %v5854 = vrot.slane %v5847, %v5853
      %v5856 = vunpack.c.l.s4 1966171168
      %v5857 = vunpack.c.0.s8 %v5856
      %v5858 = vlaneseq
      %v5859 = vshrl.u32 %v5858, 7
      %v5860 = vsub.s32 %v5857, %v5859
      %v5861 = vrot.slane %v5854, %v5860
      %v5863 = vadd.f32 %v5733, %v5861
      %s5864 = scalar_lea.vmem %s8, 5040
      %v5865 = vld [vmem:[%s5864] sm:$0xff]
      %v5866 = vld [vmem:[%s5864 + $0x8] sm:$0xff]
      %v5867 = vld [vmem:[%s5864 + $0x10] sm:$0xff]
      %v5868 = vld [vmem:[%s5864 + $0x18] sm:$0xff]
      %v5869 = vld [vmem:[%s5864 + $0x20] sm:$0xff]
      %v5870 = vld [vmem:[%s5864 + $0x28] sm:$0xff]
      %v5871 = vld [vmem:[%s5864 + $0x30] sm:$0xff]
      %v5872 = vld [vmem:[%s5864 + $0x38] sm:$0xff]
      %v5873 = vld [vmem:[%s5864 + $0x40] sm:$0xff]
      %v5874 = vld [vmem:[%s5864 + $0x48] sm:$0xff]
      %v5875 = vld [vmem:[%s5864 + $0x50] sm:$0xff]
      %v5876 = vld [vmem:[%s5864 + $0x58] sm:$0xff]
      %v5877 = vld [vmem:[%s5864 + $0x60] sm:$0xff]
      %v5878 = vld [vmem:[%s5864 + $0x68] sm:$0xff]
      %v5879 = vld [vmem:[%s5864 + $0x70] sm:$0xff]
      %v5880 = vld [vmem:[%s5864 + $0x78] sm:$0xff]
      %v5881 = vld [vmem:[%s5864 + $0x80] sm:$0xff]
      %v5882 = vld [vmem:[%s5864 + $0x88] sm:$0xff]
      %v5883 = vld [vmem:[%s5864 + $0x90] sm:$0xff]
      %v5884 = vld [vmem:[%s5864 + $0x98] sm:$0xff]
      %v5885 = vld [vmem:[%s5864 + $0xa0] sm:$0xff]
      %v5886 = vld [vmem:[%s5864 + $0xa8] sm:$0xff]
      %v5887 = vld [vmem:[%s5864 + $0xb0] sm:$0xff]
      %v5888 = vld [vmem:[%s5864 + $0xb8] sm:$0xff]
      %v5889 = vld [vmem:[%s5864 + $0xc0] sm:$0xff]
      %v5890 = vld [vmem:[%s5864 + $0xc8] sm:$0xff]
      %v5891 = vld [vmem:[%s5864 + $0xd0] sm:$0xff]
      %v5892 = vld [vmem:[%s5864 + $0xd8] sm:$0xff]
      %v5893 = vld [vmem:[%s5864 + $0xe0] sm:$0x3f]
      %v5894 = vld [vmem:[%s5864 + $0xe8] sm:$0x3f]
      %v5895 = vrot.slane %v3130, 5
      %v5896 = vsel %vm3163, %v5895, 0
      %v5899 = vsel %vm3167, %v5893, 0
      %v5902 = vsel %vm3167, %v5894, 0
      %5904 = vmatprep.subr.mxu0 %v5866
      %5905 = vmatpush1.msra.mxu0 %v5865
      %5906 = vmatprep.subr.mxu0 %v5868
      %5907 = vmatpush1.msra.mxu0 %v5867
      %5908 = vmatprep.subr.mxu0 %v5870
      %5909 = vmatpush1.msra.mxu0 %v5869
      %5910 = vmatprep.subr.mxu0 %v5872
      %5911 = vmatpush1.msra.mxu0 %v5871
      %5912 = vmatprep.subr.mxu0 %v5874
      %5913 = vmatpush1.msra.mxu0 %v5873
      %5914 = vmatprep.subr.mxu0 %v5876
      %5915 = vmatpush1.msra.mxu0 %v5875
      %5916 = vmatprep.subr.mxu0 %v5878
      %5917 = vmatpush1.msra.mxu0 %v5877
      %5918 = vmatprep.subr.mxu0 %v5880
      %5919 = vmatpush1.msra.mxu0 %v5879
      %5920 = vmatprep.subr.mxu0 %v5882
      %5921 = vmatpush1.msra.mxu0 %v5881
      %5922 = vmatprep.subr.mxu0 %v5884
      %5923 = vmatpush1.msra.mxu0 %v5883
      %5924 = vmatprep.subr.mxu0 %v5886
      %5925 = vmatpush1.msra.mxu0 %v5885
      %5926 = vmatprep.subr.mxu0 %v5888
      %5927 = vmatpush1.msra.mxu0 %v5887
      %5928 = vmatprep.subr.mxu0 %v5890
      %5929 = vmatpush1.msra.mxu0 %v5889
      %5930 = vmatprep.subr.mxu0 %v5892
      %5931 = vmatpush1.msra.mxu0 %v5891
      %5932 = vmatprep.subr.mxu0 %v5902
      %5933 = vmatpush1.msra.mxu0 %v5899
      %5934 = vmatprep.subr.mxu0 0.0
      %5935 = vmatpush1.msra.mxu0 0.0
      %5936 = vmatprep.subr.mxu0 0.0
      %5937 = vmatpush1.msra.mxu0 0.0
      %5938 = vmatprep.subr.mxu0 0.0
      %5939 = vmatpush1.msra.mxu0 0.0
      %5940 = vmatprep.subr.mxu0 0.0
      %5941 = vmatpush1.msra.mxu0 0.0
      %5942 = vmatprep.subr.mxu0 0.0
      %5943 = vmatpush1.msra.mxu0 0.0
      %5944 = vmatprep.subr.mxu0 0.0
      %5945 = vmatpush1.msra.mxu0 0.0
      %5946 = vmatprep.subr.mxu0 0.0
      %5947 = vmatpush1.msra.mxu0 0.0
      %5948 = vmatprep.subr.mxu0 0.0
      %5949 = vmatpush1.msra.mxu0 0.0
      %5950 = vmatprep.subr.mxu0 0.0
      %5951 = vmatpush1.msra.mxu0 0.0
      %5952 = vmatprep.subr.mxu0 0.0
      %5953 = vmatpush1.msra.mxu0 0.0
      %5954 = vmatprep.subr.mxu0 0.0
      %5955 = vmatpush1.msra.mxu0 0.0
      %5956 = vmatprep.subr.mxu0 0.0
      %5957 = vmatpush1.msra.mxu0 0.0
      %5958 = vmatprep.subr.mxu0 0.0
      %5959 = vmatpush1.msra.mxu0 0.0
      %5960 = vmatprep.subr.mxu0 0.0
      %5961 = vmatpush1.msra.mxu0 0.0
      %5962 = vmatprep.subr.mxu0 0.0
      %5963 = vmatpush1.msra.mxu0 0.0
      %5964 = vmatprep.subr.mxu0 0.0
      %5965 = vmatpush1.msra.mxu0 0.0
      %5966 = vmatprep.subr.mxu0 0.0
      %5967 = vmatpush1.msra.mxu0 0.0
      %5968 = vmatprep.mubr.f32.mxu0 0.0
      %5969 = vmatmul.mubr.f32.gmra.mrb[0].mxu0 %v5896
      %v5970 = vpop.f32.mrb[0].mxu0
      %v5971 = vadd.f32 0.0, %v5970
      %v5972 = vpop.f32.mrb[0].mxu0
      %v5973 = vadd.f32 0.0, %v5972
      %5974 = vdwg.mxu0
      %v5977 = vcombine.low %v5971, %v5973
      %v5979 = vunpack.c.l.s4 1966171168
      %v5980 = vunpack.c.0.s8 %v5979
      %v5981 = vlaneseq
      %v5982 = vshrl.u32 %v5981, 7
      %v5983 = vsub.s32 %v5980, %v5982
      %v5984 = vrot.slane %v5977, %v5983
      %v5986 = vunpack.c.l.s4 1966171168
      %v5987 = vunpack.c.0.s8 %v5986
      %v5988 = vlaneseq
      %v5989 = vshrl.u32 %v5988, 7
      %v5990 = vsub.s32 %v5987, %v5989
      %v5991 = vrot.slane %v5984, %v5990
      %v5993 = vadd.f32 %v5863, %v5991
      %s5994 = scalar_lea.vmem %s8, 5280
      %v5995 = vld [vmem:[%s5994] sm:$0xff]
      %v5996 = vld [vmem:[%s5994 + $0x8] sm:$0xff]
      %v5997 = vld [vmem:[%s5994 + $0x10] sm:$0xff]
      %v5998 = vld [vmem:[%s5994 + $0x18] sm:$0xff]
      %v5999 = vld [vmem:[%s5994 + $0x20] sm:$0xff]
      %v6000 = vld [vmem:[%s5994 + $0x28] sm:$0xff]
      %v6001 = vld [vmem:[%s5994 + $0x30] sm:$0xff]
      %v6002 = vld [vmem:[%s5994 + $0x38] sm:$0xff]
      %v6003 = vld [vmem:[%s5994 + $0x40] sm:$0xff]
      %v6004 = vld [vmem:[%s5994 + $0x48] sm:$0xff]
      %v6005 = vld [vmem:[%s5994 + $0x50] sm:$0xff]
      %v6006 = vld [vmem:[%s5994 + $0x58] sm:$0xff]
      %v6007 = vld [vmem:[%s5994 + $0x60] sm:$0xff]
      %v6008 = vld [vmem:[%s5994 + $0x68] sm:$0xff]
      %v6009 = vld [vmem:[%s5994 + $0x70] sm:$0xff]
      %v6010 = vld [vmem:[%s5994 + $0x78] sm:$0xff]
      %v6011 = vld [vmem:[%s5994 + $0x80] sm:$0xff]
      %v6012 = vld [vmem:[%s5994 + $0x88] sm:$0xff]
      %v6013 = vld [vmem:[%s5994 + $0x90] sm:$0xff]
      %v6014 = vld [vmem:[%s5994 + $0x98] sm:$0xff]
      %v6015 = vld [vmem:[%s5994 + $0xa0] sm:$0xff]
      %v6016 = vld [vmem:[%s5994 + $0xa8] sm:$0xff]
      %v6017 = vld [vmem:[%s5994 + $0xb0] sm:$0xff]
      %v6018 = vld [vmem:[%s5994 + $0xb8] sm:$0xff]
      %v6019 = vld [vmem:[%s5994 + $0xc0] sm:$0xff]
      %v6020 = vld [vmem:[%s5994 + $0xc8] sm:$0xff]
      %v6021 = vld [vmem:[%s5994 + $0xd0] sm:$0xff]
      %v6022 = vld [vmem:[%s5994 + $0xd8] sm:$0xff]
      %v6023 = vld [vmem:[%s5994 + $0xe0] sm:$0x3f]
      %v6024 = vld [vmem:[%s5994 + $0xe8] sm:$0x3f]
      %v6025 = vrot.slane %v3130, 6
      %v6026 = vsel %vm3163, %v6025, 0
      %v6029 = vsel %vm3167, %v6023, 0
      %v6032 = vsel %vm3167, %v6024, 0
      %6034 = vmatprep.subr.mxu0 %v5996
      %6035 = vmatpush1.msra.mxu0 %v5995
      %6036 = vmatprep.subr.mxu0 %v5998
      %6037 = vmatpush1.msra.mxu0 %v5997
      %6038 = vmatprep.subr.mxu0 %v6000
      %6039 = vmatpush1.msra.mxu0 %v5999
      %6040 = vmatprep.subr.mxu0 %v6002
      %6041 = vmatpush1.msra.mxu0 %v6001
      %6042 = vmatprep.subr.mxu0 %v6004
      %6043 = vmatpush1.msra.mxu0 %v6003
      %6044 = vmatprep.subr.mxu0 %v6006
      %6045 = vmatpush1.msra.mxu0 %v6005
      %6046 = vmatprep.subr.mxu0 %v6008
      %6047 = vmatpush1.msra.mxu0 %v6007
      %6048 = vmatprep.subr.mxu0 %v6010
      %6049 = vmatpush1.msra.mxu0 %v6009
      %6050 = vmatprep.subr.mxu0 %v6012
      %6051 = vmatpush1.msra.mxu0 %v6011
      %6052 = vmatprep.subr.mxu0 %v6014
      %6053 = vmatpush1.msra.mxu0 %v6013
      %6054 = vmatprep.subr.mxu0 %v6016
      %6055 = vmatpush1.msra.mxu0 %v6015
      %6056 = vmatprep.subr.mxu0 %v6018
      %6057 = vmatpush1.msra.mxu0 %v6017
      %6058 = vmatprep.subr.mxu0 %v6020
      %6059 = vmatpush1.msra.mxu0 %v6019
      %6060 = vmatprep.subr.mxu0 %v6022
      %6061 = vmatpush1.msra.mxu0 %v6021
      %6062 = vmatprep.subr.mxu0 %v6032
      %6063 = vmatpush1.msra.mxu0 %v6029
      %6064 = vmatprep.subr.mxu0 0.0
      %6065 = vmatpush1.msra.mxu0 0.0
      %6066 = vmatprep.subr.mxu0 0.0
      %6067 = vmatpush1.msra.mxu0 0.0
      %6068 = vmatprep.subr.mxu0 0.0
      %6069 = vmatpush1.msra.mxu0 0.0
      %6070 = vmatprep.subr.mxu0 0.0
      %6071 = vmatpush1.msra.mxu0 0.0
      %6072 = vmatprep.subr.mxu0 0.0
      %6073 = vmatpush1.msra.mxu0 0.0
      %6074 = vmatprep.subr.mxu0 0.0
      %6075 = vmatpush1.msra.mxu0 0.0
      %6076 = vmatprep.subr.mxu0 0.0
      %6077 = vmatpush1.msra.mxu0 0.0
      %6078 = vmatprep.subr.mxu0 0.0
      %6079 = vmatpush1.msra.mxu0 0.0
      %6080 = vmatprep.subr.mxu0 0.0
      %6081 = vmatpush1.msra.mxu0 0.0
      %6082 = vmatprep.subr.mxu0 0.0
      %6083 = vmatpush1.msra.mxu0 0.0
      %6084 = vmatprep.subr.mxu0 0.0
      %6085 = vmatpush1.msra.mxu0 0.0
      %6086 = vmatprep.subr.mxu0 0.0
      %6087 = vmatpush1.msra.mxu0 0.0
      %6088 = vmatprep.subr.mxu0 0.0
      %6089 = vmatpush1.msra.mxu0 0.0
      %6090 = vmatprep.subr.mxu0 0.0
      %6091 = vmatpush1.msra.mxu0 0.0
      %6092 = vmatprep.subr.mxu0 0.0
      %6093 = vmatpush1.msra.mxu0 0.0
      %6094 = vmatprep.subr.mxu0 0.0
      %6095 = vmatpush1.msra.mxu0 0.0
      %6096 = vmatprep.subr.mxu0 0.0
      %6097 = vmatpush1.msra.mxu0 0.0
      %6098 = vmatprep.mubr.f32.mxu0 0.0
      %6099 = vmatmul.mubr.f32.gmra.mrb[0].mxu0 %v6026
      %v6100 = vpop.f32.mrb[0].mxu0
      %v6101 = vadd.f32 0.0, %v6100
      %v6102 = vpop.f32.mrb[0].mxu0
      %v6103 = vadd.f32 0.0, %v6102
      %6104 = vdwg.mxu0
      %v6107 = vcombine.low %v6101, %v6103
      %v6109 = vunpack.c.l.s4 1966171168
      %v6110 = vunpack.c.0.s8 %v6109
      %v6111 = vlaneseq
      %v6112 = vshrl.u32 %v6111, 7
      %v6113 = vsub.s32 %v6110, %v6112
      %v6114 = vrot.slane %v6107, %v6113
      %v6116 = vunpack.c.l.s4 1966171168
      %v6117 = vunpack.c.0.s8 %v6116
      %v6118 = vlaneseq
      %v6119 = vshrl.u32 %v6118, 7
      %v6120 = vsub.s32 %v6117, %v6119
      %v6121 = vrot.slane %v6114, %v6120
      %v6123 = vadd.f32 %v5993, %v6121
      %s6124 = scalar_lea.vmem %s8, 5520
      %v6125 = vld [vmem:[%s6124] sm:$0xff]
      %v6126 = vld [vmem:[%s6124 + $0x8] sm:$0xff]
      %v6127 = vld [vmem:[%s6124 + $0x10] sm:$0xff]
      %v6128 = vld [vmem:[%s6124 + $0x18] sm:$0xff]
      %v6129 = vld [vmem:[%s6124 + $0x20] sm:$0xff]
      %v6130 = vld [vmem:[%s6124 + $0x28] sm:$0xff]
      %v6131 = vld [vmem:[%s6124 + $0x30] sm:$0xff]
      %v6132 = vld [vmem:[%s6124 + $0x38] sm:$0xff]
      %v6133 = vld [vmem:[%s6124 + $0x40] sm:$0xff]
      %v6134 = vld [vmem:[%s6124 + $0x48] sm:$0xff]
      %v6135 = vld [vmem:[%s6124 + $0x50] sm:$0xff]
      %v6136 = vld [vmem:[%s6124 + $0x58] sm:$0xff]
      %v6137 = vld [vmem:[%s6124 + $0x60] sm:$0xff]
      %v6138 = vld [vmem:[%s6124 + $0x68] sm:$0xff]
      %v6139 = vld [vmem:[%s6124 + $0x70] sm:$0xff]
      %v6140 = vld [vmem:[%s6124 + $0x78] sm:$0xff]
      %v6141 = vld [vmem:[%s6124 + $0x80] sm:$0xff]
      %v6142 = vld [vmem:[%s6124 + $0x88] sm:$0xff]
      %v6143 = vld [vmem:[%s6124 + $0x90] sm:$0xff]
      %v6144 = vld [vmem:[%s6124 + $0x98] sm:$0xff]
      %v6145 = vld [vmem:[%s6124 + $0xa0] sm:$0xff]
      %v6146 = vld [vmem:[%s6124 + $0xa8] sm:$0xff]
      %v6147 = vld [vmem:[%s6124 + $0xb0] sm:$0xff]
      %v6148 = vld [vmem:[%s6124 + $0xb8] sm:$0xff]
      %v6149 = vld [vmem:[%s6124 + $0xc0] sm:$0xff]
      %v6150 = vld [vmem:[%s6124 + $0xc8] sm:$0xff]
      %v6151 = vld [vmem:[%s6124 + $0xd0] sm:$0xff]
      %v6152 = vld [vmem:[%s6124 + $0xd8] sm:$0xff]
      %v6153 = vld [vmem:[%s6124 + $0xe0] sm:$0x3f]
      %v6154 = vld [vmem:[%s6124 + $0xe8] sm:$0x3f]
      %v6155 = vrot.slane %v3130, 7
      %v6156 = vsel %vm3163, %v6155, 0
      %v6159 = vsel %vm3167, %v6153, 0
      %v6162 = vsel %vm3167, %v6154, 0
      %6164 = vmatprep.subr.mxu0 %v6126
      %6165 = vmatpush1.msra.mxu0 %v6125
      %6166 = vmatprep.subr.mxu0 %v6128
      %6167 = vmatpush1.msra.mxu0 %v6127
      %6168 = vmatprep.subr.mxu0 %v6130
      %6169 = vmatpush1.msra.mxu0 %v6129
      %6170 = vmatprep.subr.mxu0 %v6132
      %6171 = vmatpush1.msra.mxu0 %v6131
      %6172 = vmatprep.subr.mxu0 %v6134
      %6173 = vmatpush1.msra.mxu0 %v6133
      %6174 = vmatprep.subr.mxu0 %v6136
      %6175 = vmatpush1.msra.mxu0 %v6135
      %6176 = vmatprep.subr.mxu0 %v6138
      %6177 = vmatpush1.msra.mxu0 %v6137
      %6178 = vmatprep.subr.mxu0 %v6140
      %6179 = vmatpush1.msra.mxu0 %v6139
      %6180 = vmatprep.subr.mxu0 %v6142
      %6181 = vmatpush1.msra.mxu0 %v6141
      %6182 = vmatprep.subr.mxu0 %v6144
      %6183 = vmatpush1.msra.mxu0 %v6143
      %6184 = vmatprep.subr.mxu0 %v6146
      %6185 = vmatpush1.msra.mxu0 %v6145
      %6186 = vmatprep.subr.mxu0 %v6148
      %6187 = vmatpush1.msra.mxu0 %v6147
      %6188 = vmatprep.subr.mxu0 %v6150
      %6189 = vmatpush1.msra.mxu0 %v6149
      %6190 = vmatprep.subr.mxu0 %v6152
      %6191 = vmatpush1.msra.mxu0 %v6151
      %6192 = vmatprep.subr.mxu0 %v6162
      %6193 = vmatpush1.msra.mxu0 %v6159
      %6194 = vmatprep.subr.mxu0 0.0
      %6195 = vmatpush1.msra.mxu0 0.0
      %6196 = vmatprep.subr.mxu0 0.0
      %6197 = vmatpush1.msra.mxu0 0.0
      %6198 = vmatprep.subr.mxu0 0.0
      %6199 = vmatpush1.msra.mxu0 0.0
      %6200 = vmatprep.subr.mxu0 0.0
      %6201 = vmatpush1.msra.mxu0 0.0
      %6202 = vmatprep.subr.mxu0 0.0
      %6203 = vmatpush1.msra.mxu0 0.0
      %6204 = vmatprep.subr.mxu0 0.0
      %6205 = vmatpush1.msra.mxu0 0.0
      %6206 = vmatprep.subr.mxu0 0.0
      %6207 = vmatpush1.msra.mxu0 0.0
      %6208 = vmatprep.subr.mxu0 0.0
      %6209 = vmatpush1.msra.mxu0 0.0
      %6210 = vmatprep.subr.mxu0 0.0
      %6211 = vmatpush1.msra.mxu0 0.0
      %6212 = vmatprep.subr.mxu0 0.0
      %6213 = vmatpush1.msra.mxu0 0.0
      %6214 = vmatprep.subr.mxu0 0.0
      %6215 = vmatpush1.msra.mxu0 0.0
      %6216 = vmatprep.subr.mxu0 0.0
      %6217 = vmatpush1.msra.mxu0 0.0
      %6218 = vmatprep.subr.mxu0 0.0
      %6219 = vmatpush1.msra.mxu0 0.0
      %6220 = vmatprep.subr.mxu0 0.0
      %6221 = vmatpush1.msra.mxu0 0.0
      %6222 = vmatprep.subr.mxu0 0.0
      %6223 = vmatpush1.msra.mxu0 0.0
      %6224 = vmatprep.subr.mxu0 0.0
      %6225 = vmatpush1.msra.mxu0 0.0
      %6226 = vmatprep.subr.mxu0 0.0
      %6227 = vmatpush1.msra.mxu0 0.0
      %6228 = vmatprep.mubr.f32.mxu0 0.0
      %6229 = vmatmul.mubr.f32.gmra.mrb[0].mxu0 %v6156
      %v6230 = vpop.f32.mrb[0].mxu0
      %v6231 = vadd.f32 0.0, %v6230
      %v6232 = vpop.f32.mrb[0].mxu0
      %v6233 = vadd.f32 0.0, %v6232
      %6234 = vdwg.mxu0
      %v6237 = vcombine.low %v6231, %v6233
      %v6239 = vunpack.c.l.s4 1966171168
      %v6240 = vunpack.c.0.s8 %v6239
      %v6241 = vlaneseq
      %v6242 = vshrl.u32 %v6241, 7
      %v6243 = vsub.s32 %v6240, %v6242
      %v6244 = vrot.slane %v6237, %v6243
      %v6246 = vunpack.c.l.s4 1966171168
      %v6247 = vunpack.c.0.s8 %v6246
      %v6248 = vlaneseq
      %v6249 = vshrl.u32 %v6248, 7
      %v6250 = vsub.s32 %v6247, %v6249
      %v6251 = vrot.slane %v6244, %v6250
      %v6253 = vadd.f32 %v6123, %v6251
      %s6254 = scalar_lea.vmem %s8, 5760
      %v6255 = vld [vmem:[%s6254] sm:$0xff]
      %v6256 = vld [vmem:[%s6254 + $0x8] sm:$0xff]
      %v6257 = vld [vmem:[%s6254 + $0x10] sm:$0xff]
      %v6258 = vld [vmem:[%s6254 + $0x18] sm:$0xff]
      %v6259 = vld [vmem:[%s6254 + $0x20] sm:$0xff]
      %v6260 = vld [vmem:[%s6254 + $0x28] sm:$0xff]
      %v6261 = vld [vmem:[%s6254 + $0x30] sm:$0xff]
      %v6262 = vld [vmem:[%s6254 + $0x38] sm:$0xff]
      %v6263 = vld [vmem:[%s6254 + $0x40] sm:$0xff]
      %v6264 = vld [vmem:[%s6254 + $0x48] sm:$0xff]
      %v6265 = vld [vmem:[%s6254 + $0x50] sm:$0xff]
      %v6266 = vld [vmem:[%s6254 + $0x58] sm:$0xff]
      %v6267 = vld [vmem:[%s6254 + $0x60] sm:$0xff]
      %v6268 = vld [vmem:[%s6254 + $0x68] sm:$0xff]
      %v6269 = vld [vmem:[%s6254 + $0x70] sm:$0xff]
      %v6270 = vld [vmem:[%s6254 + $0x78] sm:$0xff]
      %v6271 = vld [vmem:[%s6254 + $0x80] sm:$0xff]
      %v6272 = vld [vmem:[%s6254 + $0x88] sm:$0xff]
      %v6273 = vld [vmem:[%s6254 + $0x90] sm:$0xff]
      %v6274 = vld [vmem:[%s6254 + $0x98] sm:$0xff]
      %v6275 = vld [vmem:[%s6254 + $0xa0] sm:$0xff]
      %v6276 = vld [vmem:[%s6254 + $0xa8] sm:$0xff]
      %v6277 = vld [vmem:[%s6254 + $0xb0] sm:$0xff]
      %v6278 = vld [vmem:[%s6254 + $0xb8] sm:$0xff]
      %v6279 = vld [vmem:[%s6254 + $0xc0] sm:$0xff]
      %v6280 = vld [vmem:[%s6254 + $0xc8] sm:$0xff]
      %v6281 = vld [vmem:[%s6254 + $0xd0] sm:$0xff]
      %v6282 = vld [vmem:[%s6254 + $0xd8] sm:$0xff]
      %v6283 = vld [vmem:[%s6254 + $0xe0] sm:$0x3f]
      %v6284 = vld [vmem:[%s6254 + $0xe8] sm:$0x3f]
      %v6286 = vsel %vm3163, %v3131, 0
      %v6289 = vsel %vm3167, %v6283, 0
      %v6292 = vsel %vm3167, %v6284, 0
      %6294 = vmatprep.subr.mxu0 %v6256
      %6295 = vmatpush1.msra.mxu0 %v6255
      %6296 = vmatprep.subr.mxu0 %v6258
      %6297 = vmatpush1.msra.mxu0 %v6257
      %6298 = vmatprep.subr.mxu0 %v6260
      %6299 = vmatpush1.msra.mxu0 %v6259
      %6300 = vmatprep.subr.mxu0 %v6262
      %6301 = vmatpush1.msra.mxu0 %v6261
      %6302 = vmatprep.subr.mxu0 %v6264
      %6303 = vmatpush1.msra.mxu0 %v6263
      %6304 = vmatprep.subr.mxu0 %v6266
      %6305 = vmatpush1.msra.mxu0 %v6265
      %6306 = vmatprep.subr.mxu0 %v6268
      %6307 = vmatpush1.msra.mxu0 %v6267
      %6308 = vmatprep.subr.mxu0 %v6270
      %6309 = vmatpush1.msra.mxu0 %v6269
      %6310 = vmatprep.subr.mxu0 %v6272
      %6311 = vmatpush1.msra.mxu0 %v6271
      %6312 = vmatprep.subr.mxu0 %v6274
      %6313 = vmatpush1.msra.mxu0 %v6273
      %6314 = vmatprep.subr.mxu0 %v6276
      %6315 = vmatpush1.msra.mxu0 %v6275
      %6316 = vmatprep.subr.mxu0 %v6278
      %6317 = vmatpush1.msra.mxu0 %v6277
      %6318 = vmatprep.subr.mxu0 %v6280
      %6319 = vmatpush1.msra.mxu0 %v6279
      %6320 = vmatprep.subr.mxu0 %v6282
      %6321 = vmatpush1.msra.mxu0 %v6281
      %6322 = vmatprep.subr.mxu0 %v6292
      %6323 = vmatpush1.msra.mxu0 %v6289
      %6324 = vmatprep.subr.mxu0 0.0
      %6325 = vmatpush1.msra.mxu0 0.0
      %6326 = vmatprep.subr.mxu0 0.0
      %6327 = vmatpush1.msra.mxu0 0.0
      %6328 = vmatprep.subr.mxu0 0.0
      %6329 = vmatpush1.msra.mxu0 0.0
      %6330 = vmatprep.subr.mxu0 0.0
      %6331 = vmatpush1.msra.mxu0 0.0
      %6332 = vmatprep.subr.mxu0 0.0
      %6333 = vmatpush1.msra.mxu0 0.0
      %6334 = vmatprep.subr.mxu0 0.0
      %6335 = vmatpush1.msra.mxu0 0.0
      %6336 = vmatprep.subr.mxu0 0.0
      %6337 = vmatpush1.msra.mxu0 0.0
      %6338 = vmatprep.subr.mxu0 0.0
      %6339 = vmatpush1.msra.mxu0 0.0
      %6340 = vmatprep.subr.mxu0 0.0
      %6341 = vmatpush1.msra.mxu0 0.0
      %6342 = vmatprep.subr.mxu0 0.0
      %6343 = vmatpush1.msra.mxu0 0.0
      %6344 = vmatprep.subr.mxu0 0.0
      %6345 = vmatpush1.msra.mxu0 0.0
      %6346 = vmatprep.subr.mxu0 0.0
      %6347 = vmatpush1.msra.mxu0 0.0
      %6348 = vmatprep.subr.mxu0 0.0
      %6349 = vmatpush1.msra.mxu0 0.0
      %6350 = vmatprep.subr.mxu0 0.0
      %6351 = vmatpush1.msra.mxu0 0.0
      %6352 = vmatprep.subr.mxu0 0.0
      %6353 = vmatpush1.msra.mxu0 0.0
      %6354 = vmatprep.subr.mxu0 0.0
      %6355 = vmatpush1.msra.mxu0 0.0
      %6356 = vmatprep.subr.mxu0 0.0
      %6357 = vmatpush1.msra.mxu0 0.0
      %6358 = vmatprep.mubr.f32.mxu0 0.0
      %6359 = vmatmul.mubr.f32.gmra.mrb[0].mxu0 %v6286
      %v6360 = vpop.f32.mrb[0].mxu0
      %v6361 = vadd.f32 0.0, %v6360
      %v6362 = vpop.f32.mrb[0].mxu0
      %v6363 = vadd.f32 0.0, %v6362
      %6364 = vdwg.mxu0
      %v6367 = vcombine.low %v6361, %v6363
      %v6369 = vunpack.c.l.s4 1966171168
      %v6370 = vunpack.c.0.s8 %v6369
      %v6371 = vlaneseq
      %v6372 = vshrl.u32 %v6371, 7
      %v6373 = vsub.s32 %v6370, %v6372
      %v6374 = vrot.slane %v6367, %v6373
      %v6376 = vunpack.c.l.s4 1966171168
      %v6377 = vunpack.c.0.s8 %v6376
      %v6378 = vlaneseq
      %v6379 = vshrl.u32 %v6378, 7
      %v6380 = vsub.s32 %v6377, %v6379
      %v6381 = vrot.slane %v6374, %v6380
      %v6383 = vadd.f32 %v6253, %v6381
      %s6384 = scalar_lea.vmem %s8, 6000
      %v6385 = vld [vmem:[%s6384] sm:$0xff]
      %v6386 = vld [vmem:[%s6384 + $0x8] sm:$0xff]
      %v6387 = vld [vmem:[%s6384 + $0x10] sm:$0xff]
      %v6388 = vld [vmem:[%s6384 + $0x18] sm:$0xff]
      %v6389 = vld [vmem:[%s6384 + $0x20] sm:$0xff]
      %v6390 = vld [vmem:[%s6384 + $0x28] sm:$0xff]
      %v6391 = vld [vmem:[%s6384 + $0x30] sm:$0xff]
      %v6392 = vld [vmem:[%s6384 + $0x38] sm:$0xff]
      %v6393 = vld [vmem:[%s6384 + $0x40] sm:$0xff]
      %v6394 = vld [vmem:[%s6384 + $0x48] sm:$0xff]
      %v6395 = vld [vmem:[%s6384 + $0x50] sm:$0xff]
      %v6396 = vld [vmem:[%s6384 + $0x58] sm:$0xff]
      %v6397 = vld [vmem:[%s6384 + $0x60] sm:$0xff]
      %v6398 = vld [vmem:[%s6384 + $0x68] sm:$0xff]
      %v6399 = vld [vmem:[%s6384 + $0x70] sm:$0xff]
      %v6400 = vld [vmem:[%s6384 + $0x78] sm:$0xff]
      %v6401 = vld [vmem:[%s6384 + $0x80] sm:$0xff]
      %v6402 = vld [vmem:[%s6384 + $0x88] sm:$0xff]
      %v6403 = vld [vmem:[%s6384 + $0x90] sm:$0xff]
      %v6404 = vld [vmem:[%s6384 + $0x98] sm:$0xff]
      %v6405 = vld [vmem:[%s6384 + $0xa0] sm:$0xff]
      %v6406 = vld [vmem:[%s6384 + $0xa8] sm:$0xff]
      %v6407 = vld [vmem:[%s6384 + $0xb0] sm:$0xff]
      %v6408 = vld [vmem:[%s6384 + $0xb8] sm:$0xff]
      %v6409 = vld [vmem:[%s6384 + $0xc0] sm:$0xff]
      %v6410 = vld [vmem:[%s6384 + $0xc8] sm:$0xff]
      %v6411 = vld [vmem:[%s6384 + $0xd0] sm:$0xff]
      %v6412 = vld [vmem:[%s6384 + $0xd8] sm:$0xff]
      %v6413 = vld [vmem:[%s6384 + $0xe0] sm:$0x3f]
      %v6414 = vld [vmem:[%s6384 + $0xe8] sm:$0x3f]
      %v6415 = vrot.slane %v3131, 1
      %v6416 = vsel %vm3163, %v6415, 0
      %v6419 = vsel %vm3167, %v6413, 0
      %v6422 = vsel %vm3167, %v6414, 0
      %6424 = vmatprep.subr.mxu0 %v6386
      %6425 = vmatpush1.msra.mxu0 %v6385
      %6426 = vmatprep.subr.mxu0 %v6388
      %6427 = vmatpush1.msra.mxu0 %v6387
      %6428 = vmatprep.subr.mxu0 %v6390
      %6429 = vmatpush1.msra.mxu0 %v6389
      %6430 = vmatprep.subr.mxu0 %v6392
      %6431 = vmatpush1.msra.mxu0 %v6391
      %6432 = vmatprep.subr.mxu0 %v6394
      %6433 = vmatpush1.msra.mxu0 %v6393
      %6434 = vmatprep.subr.mxu0 %v6396
      %6435 = vmatpush1.msra.mxu0 %v6395
      %6436 = vmatprep.subr.mxu0 %v6398
      %6437 = vmatpush1.msra.mxu0 %v6397
      %6438 = vmatprep.subr.mxu0 %v6400
      %6439 = vmatpush1.msra.mxu0 %v6399
      %6440 = vmatprep.subr.mxu0 %v6402
      %6441 = vmatpush1.msra.mxu0 %v6401
      %6442 = vmatprep.subr.mxu0 %v6404
      %6443 = vmatpush1.msra.mxu0 %v6403
      %6444 = vmatprep.subr.mxu0 %v6406
      %6445 = vmatpush1.msra.mxu0 %v6405
      %6446 = vmatprep.subr.mxu0 %v6408
      %6447 = vmatpush1.msra.mxu0 %v6407
      %6448 = vmatprep.subr.mxu0 %v6410
      %6449 = vmatpush1.msra.mxu0 %v6409
      %6450 = vmatprep.subr.mxu0 %v6412
      %6451 = vmatpush1.msra.mxu0 %v6411
      %6452 = vmatprep.subr.mxu0 %v6422
      %6453 = vmatpush1.msra.mxu0 %v6419
      %6454 = vmatprep.subr.mxu0 0.0
      %6455 = vmatpush1.msra.mxu0 0.0
      %6456 = vmatprep.subr.mxu0 0.0
      %6457 = vmatpush1.msra.mxu0 0.0
      %6458 = vmatprep.subr.mxu0 0.0
      %6459 = vmatpush1.msra.mxu0 0.0
      %6460 = vmatprep.subr.mxu0 0.0
      %6461 = vmatpush1.msra.mxu0 0.0
      %6462 = vmatprep.subr.mxu0 0.0
      %6463 = vmatpush1.msra.mxu0 0.0
      %6464 = vmatprep.subr.mxu0 0.0
      %6465 = vmatpush1.msra.mxu0 0.0
      %6466 = vmatprep.subr.mxu0 0.0
      %6467 = vmatpush1.msra.mxu0 0.0
      %6468 = vmatprep.subr.mxu0 0.0
      %6469 = vmatpush1.msra.mxu0 0.0
      %6470 = vmatprep.subr.mxu0 0.0
      %6471 = vmatpush1.msra.mxu0 0.0
      %6472 = vmatprep.subr.mxu0 0.0
      %6473 = vmatpush1.msra.mxu0 0.0
      %6474 = vmatprep.subr.mxu0 0.0
      %6475 = vmatpush1.msra.mxu0 0.0
      %6476 = vmatprep.subr.mxu0 0.0
      %6477 = vmatpush1.msra.mxu0 0.0
      %6478 = vmatprep.subr.mxu0 0.0
      %6479 = vmatpush1.msra.mxu0 0.0
      %6480 = vmatprep.subr.mxu0 0.0
      %6481 = vmatpush1.msra.mxu0 0.0
      %6482 = vmatprep.subr.mxu0 0.0
      %6483 = vmatpush1.msra.mxu0 0.0
      %6484 = vmatprep.subr.mxu0 0.0
      %6485 = vmatpush1.msra.mxu0 0.0
      %6486 = vmatprep.subr.mxu0 0.0
      %6487 = vmatpush1.msra.mxu0 0.0
      %6488 = vmatprep.mubr.f32.mxu0 0.0
      %6489 = vmatmul.mubr.f32.gmra.mrb[0].mxu0 %v6416
      %v6490 = vpop.f32.mrb[0].mxu0
      %v6491 = vadd.f32 0.0, %v6490
      %v6492 = vpop.f32.mrb[0].mxu0
      %v6493 = vadd.f32 0.0, %v6492
      %6494 = vdwg.mxu0
      %v6497 = vcombine.low %v6491, %v6493
      %v6499 = vunpack.c.l.s4 1966171168
      %v6500 = vunpack.c.0.s8 %v6499
      %v6501 = vlaneseq
      %v6502 = vshrl.u32 %v6501, 7
      %v6503 = vsub.s32 %v6500, %v6502
      %v6504 = vrot.slane %v6497, %v6503
      %v6506 = vunpack.c.l.s4 1966171168
      %v6507 = vunpack.c.0.s8 %v6506
      %v6508 = vlaneseq
      %v6509 = vshrl.u32 %v6508, 7
      %v6510 = vsub.s32 %v6507, %v6509
      %v6511 = vrot.slane %v6504, %v6510
      %v6513 = vadd.f32 %v6383, %v6511
      %s6514 = scalar_lea.vmem %s8, 6240
      %v6515 = vld [vmem:[%s6514] sm:$0xff]
      %v6516 = vld [vmem:[%s6514 + $0x8] sm:$0xff]
      %v6517 = vld [vmem:[%s6514 + $0x10] sm:$0xff]
      %v6518 = vld [vmem:[%s6514 + $0x18] sm:$0xff]
      %v6519 = vld [vmem:[%s6514 + $0x20] sm:$0xff]
      %v6520 = vld [vmem:[%s6514 + $0x28] sm:$0xff]
      %v6521 = vld [vmem:[%s6514 + $0x30] sm:$0xff]
      %v6522 = vld [vmem:[%s6514 + $0x38] sm:$0xff]
      %v6523 = vld [vmem:[%s6514 + $0x40] sm:$0xff]
      %v6524 = vld [vmem:[%s6514 + $0x48] sm:$0xff]
      %v6525 = vld [vmem:[%s6514 + $0x50] sm:$0xff]
      %v6526 = vld [vmem:[%s6514 + $0x58] sm:$0xff]
      %v6527 = vld [vmem:[%s6514 + $0x60] sm:$0xff]
      %v6528 = vld [vmem:[%s6514 + $0x68] sm:$0xff]
      %v6529 = vld [vmem:[%s6514 + $0x70] sm:$0xff]
      %v6530 = vld [vmem:[%s6514 + $0x78] sm:$0xff]
      %v6531 = vld [vmem:[%s6514 + $0x80] sm:$0xff]
      %v6532 = vld [vmem:[%s6514 + $0x88] sm:$0xff]
      %v6533 = vld [vmem:[%s6514 + $0x90] sm:$0xff]
      %v6534 = vld [vmem:[%s6514 + $0x98] sm:$0xff]
      %v6535 = vld [vmem:[%s6514 + $0xa0] sm:$0xff]
      %v6536 = vld [vmem:[%s6514 + $0xa8] sm:$0xff]
      %v6537 = vld [vmem:[%s6514 + $0xb0] sm:$0xff]
      %v6538 = vld [vmem:[%s6514 + $0xb8] sm:$0xff]
      %v6539 = vld [vmem:[%s6514 + $0xc0] sm:$0xff]
      %v6540 = vld [vmem:[%s6514 + $0xc8] sm:$0xff]
      %v6541 = vld [vmem:[%s6514 + $0xd0] sm:$0xff]
      %v6542 = vld [vmem:[%s6514 + $0xd8] sm:$0xff]
      %v6543 = vld [vmem:[%s6514 + $0xe0] sm:$0x3f]
      %v6544 = vld [vmem:[%s6514 + $0xe8] sm:$0x3f]
      %v6545 = vrot.slane %v3131, 2
      %v6546 = vsel %vm3163, %v6545, 0
      %v6549 = vsel %vm3167, %v6543, 0
      %v6552 = vsel %vm3167, %v6544, 0
      %6554 = vmatprep.subr.mxu0 %v6516
      %6555 = vmatpush1.msra.mxu0 %v6515
      %6556 = vmatprep.subr.mxu0 %v6518
      %6557 = vmatpush1.msra.mxu0 %v6517
      %6558 = vmatprep.subr.mxu0 %v6520
      %6559 = vmatpush1.msra.mxu0 %v6519
      %6560 = vmatprep.subr.mxu0 %v6522
      %6561 = vmatpush1.msra.mxu0 %v6521
      %6562 = vmatprep.subr.mxu0 %v6524
      %6563 = vmatpush1.msra.mxu0 %v6523
      %6564 = vmatprep.subr.mxu0 %v6526
      %6565 = vmatpush1.msra.mxu0 %v6525
      %6566 = vmatprep.subr.mxu0 %v6528
      %6567 = vmatpush1.msra.mxu0 %v6527
      %6568 = vmatprep.subr.mxu0 %v6530
      %6569 = vmatpush1.msra.mxu0 %v6529
      %6570 = vmatprep.subr.mxu0 %v6532
      %6571 = vmatpush1.msra.mxu0 %v6531
      %6572 = vmatprep.subr.mxu0 %v6534
      %6573 = vmatpush1.msra.mxu0 %v6533
      %6574 = vmatprep.subr.mxu0 %v6536
      %6575 = vmatpush1.msra.mxu0 %v6535
      %6576 = vmatprep.subr.mxu0 %v6538
      %6577 = vmatpush1.msra.mxu0 %v6537
      %6578 = vmatprep.subr.mxu0 %v6540
      %6579 = vmatpush1.msra.mxu0 %v6539
      %6580 = vmatprep.subr.mxu0 %v6542
      %6581 = vmatpush1.msra.mxu0 %v6541
      %6582 = vmatprep.subr.mxu0 %v6552
      %6583 = vmatpush1.msra.mxu0 %v6549
      %6584 = vmatprep.subr.mxu0 0.0
      %6585 = vmatpush1.msra.mxu0 0.0
      %6586 = vmatprep.subr.mxu0 0.0
      %6587 = vmatpush1.msra.mxu0 0.0
      %6588 = vmatprep.subr.mxu0 0.0
      %6589 = vmatpush1.msra.mxu0 0.0
      %6590 = vmatprep.subr.mxu0 0.0
      %6591 = vmatpush1.msra.mxu0 0.0
      %6592 = vmatprep.subr.mxu0 0.0
      %6593 = vmatpush1.msra.mxu0 0.0
      %6594 = vmatprep.subr.mxu0 0.0
      %6595 = vmatpush1.msra.mxu0 0.0
      %6596 = vmatprep.subr.mxu0 0.0
      %6597 = vmatpush1.msra.mxu0 0.0
      %6598 = vmatprep.subr.mxu0 0.0
      %6599 = vmatpush1.msra.mxu0 0.0
      %6600 = vmatprep.subr.mxu0 0.0
      %6601 = vmatpush1.msra.mxu0 0.0
      %6602 = vmatprep.subr.mxu0 0.0
      %6603 = vmatpush1.msra.mxu0 0.0
      %6604 = vmatprep.subr.mxu0 0.0
      %6605 = vmatpush1.msra.mxu0 0.0
      %6606 = vmatprep.subr.mxu0 0.0
      %6607 = vmatpush1.msra.mxu0 0.0
      %6608 = vmatprep.subr.mxu0 0.0
      %6609 = vmatpush1.msra.mxu0 0.0
      %6610 = vmatprep.subr.mxu0 0.0
      %6611 = vmatpush1.msra.mxu0 0.0
      %6612 = vmatprep.subr.mxu0 0.0
      %6613 = vmatpush1.msra.mxu0 0.0
      %6614 = vmatprep.subr.mxu0 0.0
      %6615 = vmatpush1.msra.mxu0 0.0
      %6616 = vmatprep.subr.mxu0 0.0
      %6617 = vmatpush1.msra.mxu0 0.0
      %6618 = vmatprep.mubr.f32.mxu0 0.0
      %6619 = vmatmul.mubr.f32.gmra.mrb[0].mxu0 %v6546
      %v6620 = vpop.f32.mrb[0].mxu0
      %v6621 = vadd.f32 0.0, %v6620
      %v6622 = vpop.f32.mrb[0].mxu0
      %v6623 = vadd.f32 0.0, %v6622
      %6624 = vdwg.mxu0
      %v6627 = vcombine.low %v6621, %v6623
      %v6629 = vunpack.c.l.s4 1966171168
      %v6630 = vunpack.c.0.s8 %v6629
      %v6631 = vlaneseq
      %v6632 = vshrl.u32 %v6631, 7
      %v6633 = vsub.s32 %v6630, %v6632
      %v6634 = vrot.slane %v6627, %v6633
      %v6636 = vunpack.c.l.s4 1966171168
      %v6637 = vunpack.c.0.s8 %v6636
      %v6638 = vlaneseq
      %v6639 = vshrl.u32 %v6638, 7
      %v6640 = vsub.s32 %v6637, %v6639
      %v6641 = vrot.slane %v6634, %v6640
      %v6643 = vadd.f32 %v6513, %v6641
      %s6644 = scalar_lea.vmem %s8, 6480
      %v6645 = vld [vmem:[%s6644] sm:$0xff]
      %v6646 = vld [vmem:[%s6644 + $0x8] sm:$0xff]
      %v6647 = vld [vmem:[%s6644 + $0x10] sm:$0xff]
      %v6648 = vld [vmem:[%s6644 + $0x18] sm:$0xff]
      %v6649 = vld [vmem:[%s6644 + $0x20] sm:$0xff]
      %v6650 = vld [vmem:[%s6644 + $0x28] sm:$0xff]
      %v6651 = vld [vmem:[%s6644 + $0x30] sm:$0xff]
      %v6652 = vld [vmem:[%s6644 + $0x38] sm:$0xff]
      %v6653 = vld [vmem:[%s6644 + $0x40] sm:$0xff]
      %v6654 = vld [vmem:[%s6644 + $0x48] sm:$0xff]
      %v6655 = vld [vmem:[%s6644 + $0x50] sm:$0xff]
      %v6656 = vld [vmem:[%s6644 + $0x58] sm:$0xff]
      %v6657 = vld [vmem:[%s6644 + $0x60] sm:$0xff]
      %v6658 = vld [vmem:[%s6644 + $0x68] sm:$0xff]
      %v6659 = vld [vmem:[%s6644 + $0x70] sm:$0xff]
      %v6660 = vld [vmem:[%s6644 + $0x78] sm:$0xff]
      %v6661 = vld [vmem:[%s6644 + $0x80] sm:$0xff]
      %v6662 = vld [vmem:[%s6644 + $0x88] sm:$0xff]
      %v6663 = vld [vmem:[%s6644 + $0x90] sm:$0xff]
      %v6664 = vld [vmem:[%s6644 + $0x98] sm:$0xff]
      %v6665 = vld [vmem:[%s6644 + $0xa0] sm:$0xff]
      %v6666 = vld [vmem:[%s6644 + $0xa8] sm:$0xff]
      %v6667 = vld [vmem:[%s6644 + $0xb0] sm:$0xff]
      %v6668 = vld [vmem:[%s6644 + $0xb8] sm:$0xff]
      %v6669 = vld [vmem:[%s6644 + $0xc0] sm:$0xff]
      %v6670 = vld [vmem:[%s6644 + $0xc8] sm:$0xff]
      %v6671 = vld [vmem:[%s6644 + $0xd0] sm:$0xff]
      %v6672 = vld [vmem:[%s6644 + $0xd8] sm:$0xff]
      %v6673 = vld [vmem:[%s6644 + $0xe0] sm:$0x3f]
      %v6674 = vld [vmem:[%s6644 + $0xe8] sm:$0x3f]
      %v6675 = vrot.slane %v3131, 3
      %v6676 = vsel %vm3163, %v6675, 0
      %v6679 = vsel %vm3167, %v6673, 0
      %v6682 = vsel %vm3167, %v6674, 0
      %6684 = vmatprep.subr.mxu0 %v6646
      %6685 = vmatpush1.msra.mxu0 %v6645
      %6686 = vmatprep.subr.mxu0 %v6648
      %6687 = vmatpush1.msra.mxu0 %v6647
      %6688 = vmatprep.subr.mxu0 %v6650
      %6689 = vmatpush1.msra.mxu0 %v6649
      %6690 = vmatprep.subr.mxu0 %v6652
      %6691 = vmatpush1.msra.mxu0 %v6651
      %6692 = vmatprep.subr.mxu0 %v6654
      %6693 = vmatpush1.msra.mxu0 %v6653
      %6694 = vmatprep.subr.mxu0 %v6656
      %6695 = vmatpush1.msra.mxu0 %v6655
      %6696 = vmatprep.subr.mxu0 %v6658
      %6697 = vmatpush1.msra.mxu0 %v6657
      %6698 = vmatprep.subr.mxu0 %v6660
      %6699 = vmatpush1.msra.mxu0 %v6659
      %6700 = vmatprep.subr.mxu0 %v6662
      %6701 = vmatpush1.msra.mxu0 %v6661
      %6702 = vmatprep.subr.mxu0 %v6664
      %6703 = vmatpush1.msra.mxu0 %v6663
      %6704 = vmatprep.subr.mxu0 %v6666
      %6705 = vmatpush1.msra.mxu0 %v6665
      %6706 = vmatprep.subr.mxu0 %v6668
      %6707 = vmatpush1.msra.mxu0 %v6667
      %6708 = vmatprep.subr.mxu0 %v6670
      %6709 = vmatpush1.msra.mxu0 %v6669
      %6710 = vmatprep.subr.mxu0 %v6672
      %6711 = vmatpush1.msra.mxu0 %v6671
      %6712 = vmatprep.subr.mxu0 %v6682
      %6713 = vmatpush1.msra.mxu0 %v6679
      %6714 = vmatprep.subr.mxu0 0.0
      %6715 = vmatpush1.msra.mxu0 0.0
      %6716 = vmatprep.subr.mxu0 0.0
      %6717 = vmatpush1.msra.mxu0 0.0
      %6718 = vmatprep.subr.mxu0 0.0
      %6719 = vmatpush1.msra.mxu0 0.0
      %6720 = vmatprep.subr.mxu0 0.0
      %6721 = vmatpush1.msra.mxu0 0.0
      %6722 = vmatprep.subr.mxu0 0.0
      %6723 = vmatpush1.msra.mxu0 0.0
      %6724 = vmatprep.subr.mxu0 0.0
      %6725 = vmatpush1.msra.mxu0 0.0
      %6726 = vmatprep.subr.mxu0 0.0
      %6727 = vmatpush1.msra.mxu0 0.0
      %6728 = vmatprep.subr.mxu0 0.0
      %6729 = vmatpush1.msra.mxu0 0.0
      %6730 = vmatprep.subr.mxu0 0.0
      %6731 = vmatpush1.msra.mxu0 0.0
      %6732 = vmatprep.subr.mxu0 0.0
      %6733 = vmatpush1.msra.mxu0 0.0
      %6734 = vmatprep.subr.mxu0 0.0
      %6735 = vmatpush1.msra.mxu0 0.0
      %6736 = vmatprep.subr.mxu0 0.0
      %6737 = vmatpush1.msra.mxu0 0.0
      %6738 = vmatprep.subr.mxu0 0.0
      %6739 = vmatpush1.msra.mxu0 0.0
      %6740 = vmatprep.subr.mxu0 0.0
      %6741 = vmatpush1.msra.mxu0 0.0
      %6742 = vmatprep.subr.mxu0 0.0
      %6743 = vmatpush1.msra.mxu0 0.0
      %6744 = vmatprep.subr.mxu0 0.0
      %6745 = vmatpush1.msra.mxu0 0.0
      %6746 = vmatprep.subr.mxu0 0.0
      %6747 = vmatpush1.msra.mxu0 0.0
      %6748 = vmatprep.mubr.f32.mxu0 0.0
      %6749 = vmatmul.mubr.f32.gmra.mrb[0].mxu0 %v6676
      %v6750 = vpop.f32.mrb[0].mxu0
      %v6751 = vadd.f32 0.0, %v6750
      %v6752 = vpop.f32.mrb[0].mxu0
      %v6753 = vadd.f32 0.0, %v6752
      %6754 = vdwg.mxu0
      %v6757 = vcombine.low %v6751, %v6753
      %v6759 = vunpack.c.l.s4 1966171168
      %v6760 = vunpack.c.0.s8 %v6759
      %v6761 = vlaneseq
      %v6762 = vshrl.u32 %v6761, 7
      %v6763 = vsub.s32 %v6760, %v6762
      %v6764 = vrot.slane %v6757, %v6763
      %v6766 = vunpack.c.l.s4 1966171168
      %v6767 = vunpack.c.0.s8 %v6766
      %v6768 = vlaneseq
      %v6769 = vshrl.u32 %v6768, 7
      %v6770 = vsub.s32 %v6767, %v6769
      %v6771 = vrot.slane %v6764, %v6770
      %v6773 = vadd.f32 %v6643, %v6771
      %s6774 = scalar_lea.vmem %s8, 6720
      %v6775 = vld [vmem:[%s6774] sm:$0xff]
      %v6776 = vld [vmem:[%s6774 + $0x8] sm:$0xff]
      %v6777 = vld [vmem:[%s6774 + $0x10] sm:$0xff]
      %v6778 = vld [vmem:[%s6774 + $0x18] sm:$0xff]
      %v6779 = vld [vmem:[%s6774 + $0x20] sm:$0xff]
      %v6780 = vld [vmem:[%s6774 + $0x28] sm:$0xff]
      %v6781 = vld [vmem:[%s6774 + $0x30] sm:$0xff]
      %v6782 = vld [vmem:[%s6774 + $0x38] sm:$0xff]
      %v6783 = vld [vmem:[%s6774 + $0x40] sm:$0xff]
      %v6784 = vld [vmem:[%s6774 + $0x48] sm:$0xff]
      %v6785 = vld [vmem:[%s6774 + $0x50] sm:$0xff]
      %v6786 = vld [vmem:[%s6774 + $0x58] sm:$0xff]
      %v6787 = vld [vmem:[%s6774 + $0x60] sm:$0xff]
      %v6788 = vld [vmem:[%s6774 + $0x68] sm:$0xff]
      %v6789 = vld [vmem:[%s6774 + $0x70] sm:$0xff]
      %v6790 = vld [vmem:[%s6774 + $0x78] sm:$0xff]
      %v6791 = vld [vmem:[%s6774 + $0x80] sm:$0xff]
      %v6792 = vld [vmem:[%s6774 + $0x88] sm:$0xff]
      %v6793 = vld [vmem:[%s6774 + $0x90] sm:$0xff]
      %v6794 = vld [vmem:[%s6774 + $0x98] sm:$0xff]
      %v6795 = vld [vmem:[%s6774 + $0xa0] sm:$0xff]
      %v6796 = vld [vmem:[%s6774 + $0xa8] sm:$0xff]
      %v6797 = vld [vmem:[%s6774 + $0xb0] sm:$0xff]
      %v6798 = vld [vmem:[%s6774 + $0xb8] sm:$0xff]
      %v6799 = vld [vmem:[%s6774 + $0xc0] sm:$0xff]
      %v6800 = vld [vmem:[%s6774 + $0xc8] sm:$0xff]
      %v6801 = vld [vmem:[%s6774 + $0xd0] sm:$0xff]
      %v6802 = vld [vmem:[%s6774 + $0xd8] sm:$0xff]
      %v6803 = vld [vmem:[%s6774 + $0xe0] sm:$0x3f]
      %v6804 = vld [vmem:[%s6774 + $0xe8] sm:$0x3f]
      %v6805 = vrot.slane %v3131, 4
      %v6806 = vsel %vm3163, %v6805, 0
      %v6809 = vsel %vm3167, %v6803, 0
      %v6812 = vsel %vm3167, %v6804, 0
      %6814 = vmatprep.subr.mxu0 %v6776
      %6815 = vmatpush1.msra.mxu0 %v6775
      %6816 = vmatprep.subr.mxu0 %v6778
      %6817 = vmatpush1.msra.mxu0 %v6777
      %6818 = vmatprep.subr.mxu0 %v6780
      %6819 = vmatpush1.msra.mxu0 %v6779
      %6820 = vmatprep.subr.mxu0 %v6782
      %6821 = vmatpush1.msra.mxu0 %v6781
      %6822 = vmatprep.subr.mxu0 %v6784
      %6823 = vmatpush1.msra.mxu0 %v6783
      %6824 = vmatprep.subr.mxu0 %v6786
      %6825 = vmatpush1.msra.mxu0 %v6785
      %6826 = vmatprep.subr.mxu0 %v6788
      %6827 = vmatpush1.msra.mxu0 %v6787
      %6828 = vmatprep.subr.mxu0 %v6790
      %6829 = vmatpush1.msra.mxu0 %v6789
      %6830 = vmatprep.subr.mxu0 %v6792
      %6831 = vmatpush1.msra.mxu0 %v6791
      %6832 = vmatprep.subr.mxu0 %v6794
      %6833 = vmatpush1.msra.mxu0 %v6793
      %6834 = vmatprep.subr.mxu0 %v6796
      %6835 = vmatpush1.msra.mxu0 %v6795
      %6836 = vmatprep.subr.mxu0 %v6798
      %6837 = vmatpush1.msra.mxu0 %v6797
      %6838 = vmatprep.subr.mxu0 %v6800
      %6839 = vmatpush1.msra.mxu0 %v6799
      %6840 = vmatprep.subr.mxu0 %v6802
      %6841 = vmatpush1.msra.mxu0 %v6801
      %6842 = vmatprep.subr.mxu0 %v6812
      %6843 = vmatpush1.msra.mxu0 %v6809
      %6844 = vmatprep.subr.mxu0 0.0
      %6845 = vmatpush1.msra.mxu0 0.0
      %6846 = vmatprep.subr.mxu0 0.0
      %6847 = vmatpush1.msra.mxu0 0.0
      %6848 = vmatprep.subr.mxu0 0.0
      %6849 = vmatpush1.msra.mxu0 0.0
      %6850 = vmatprep.subr.mxu0 0.0
      %6851 = vmatpush1.msra.mxu0 0.0
      %6852 = vmatprep.subr.mxu0 0.0
      %6853 = vmatpush1.msra.mxu0 0.0
      %6854 = vmatprep.subr.mxu0 0.0
      %6855 = vmatpush1.msra.mxu0 0.0
      %6856 = vmatprep.subr.mxu0 0.0
      %6857 = vmatpush1.msra.mxu0 0.0
      %6858 = vmatprep.subr.mxu0 0.0
      %6859 = vmatpush1.msra.mxu0 0.0
      %6860 = vmatprep.subr.mxu0 0.0
      %6861 = vmatpush1.msra.mxu0 0.0
      %6862 = vmatprep.subr.mxu0 0.0
      %6863 = vmatpush1.msra.mxu0 0.0
      %6864 = vmatprep.subr.mxu0 0.0
      %6865 = vmatpush1.msra.mxu0 0.0
      %6866 = vmatprep.subr.mxu0 0.0
      %6867 = vmatpush1.msra.mxu0 0.0
      %6868 = vmatprep.subr.mxu0 0.0
      %6869 = vmatpush1.msra.mxu0 0.0
      %6870 = vmatprep.subr.mxu0 0.0
      %6871 = vmatpush1.msra.mxu0 0.0
      %6872 = vmatprep.subr.mxu0 0.0
      %6873 = vmatpush1.msra.mxu0 0.0
      %6874 = vmatprep.subr.mxu0 0.0
      %6875 = vmatpush1.msra.mxu0 0.0
      %6876 = vmatprep.subr.mxu0 0.0
      %6877 = vmatpush1.msra.mxu0 0.0
      %6878 = vmatprep.mubr.f32.mxu0 0.0
      %6879 = vmatmul.mubr.f32.gmra.mrb[0].mxu0 %v6806
      %v6880 = vpop.f32.mrb[0].mxu0
      %v6881 = vadd.f32 0.0, %v6880
      %v6882 = vpop.f32.mrb[0].mxu0
      %v6883 = vadd.f32 0.0, %v6882
      %6884 = vdwg.mxu0
      %v6887 = vcombine.low %v6881, %v6883
      %v6889 = vunpack.c.l.s4 1966171168
      %v6890 = vunpack.c.0.s8 %v6889
      %v6891 = vlaneseq
      %v6892 = vshrl.u32 %v6891, 7
      %v6893 = vsub.s32 %v6890, %v6892
      %v6894 = vrot.slane %v6887, %v6893
      %v6896 = vunpack.c.l.s4 1966171168
      %v6897 = vunpack.c.0.s8 %v6896
      %v6898 = vlaneseq
      %v6899 = vshrl.u32 %v6898, 7
      %v6900 = vsub.s32 %v6897, %v6899
      %v6901 = vrot.slane %v6894, %v6900
      %v6903 = vadd.f32 %v6773, %v6901
      %s6904 = scalar_lea.vmem %s8, 6960
      %v6905 = vld [vmem:[%s6904] sm:$0xff]
      %v6906 = vld [vmem:[%s6904 + $0x8] sm:$0xff]
      %v6907 = vld [vmem:[%s6904 + $0x10] sm:$0xff]
      %v6908 = vld [vmem:[%s6904 + $0x18] sm:$0xff]
      %v6909 = vld [vmem:[%s6904 + $0x20] sm:$0xff]
      %v6910 = vld [vmem:[%s6904 + $0x28] sm:$0xff]
      %v6911 = vld [vmem:[%s6904 + $0x30] sm:$0xff]
      %v6912 = vld [vmem:[%s6904 + $0x38] sm:$0xff]
      %v6913 = vld [vmem:[%s6904 + $0x40] sm:$0xff]
      %v6914 = vld [vmem:[%s6904 + $0x48] sm:$0xff]
      %v6915 = vld [vmem:[%s6904 + $0x50] sm:$0xff]
      %v6916 = vld [vmem:[%s6904 + $0x58] sm:$0xff]
      %v6917 = vld [vmem:[%s6904 + $0x60] sm:$0xff]
      %v6918 = vld [vmem:[%s6904 + $0x68] sm:$0xff]
      %v6919 = vld [vmem:[%s6904 + $0x70] sm:$0xff]
      %v6920 = vld [vmem:[%s6904 + $0x78] sm:$0xff]
      %v6921 = vld [vmem:[%s6904 + $0x80] sm:$0xff]
      %v6922 = vld [vmem:[%s6904 + $0x88] sm:$0xff]
      %v6923 = vld [vmem:[%s6904 + $0x90] sm:$0xff]
      %v6924 = vld [vmem:[%s6904 + $0x98] sm:$0xff]
      %v6925 = vld [vmem:[%s6904 + $0xa0] sm:$0xff]
      %v6926 = vld [vmem:[%s6904 + $0xa8] sm:$0xff]
      %v6927 = vld [vmem:[%s6904 + $0xb0] sm:$0xff]
      %v6928 = vld [vmem:[%s6904 + $0xb8] sm:$0xff]
      %v6929 = vld [vmem:[%s6904 + $0xc0] sm:$0xff]
      %v6930 = vld [vmem:[%s6904 + $0xc8] sm:$0xff]
      %v6931 = vld [vmem:[%s6904 + $0xd0] sm:$0xff]
      %v6932 = vld [vmem:[%s6904 + $0xd8] sm:$0xff]
      %v6933 = vld [vmem:[%s6904 + $0xe0] sm:$0x3f]
      %v6934 = vld [vmem:[%s6904 + $0xe8] sm:$0x3f]
      %v6935 = vrot.slane %v3131, 5
      %v6936 = vsel %vm3163, %v6935, 0
      %v6939 = vsel %vm3167, %v6933, 0
      %v6942 = vsel %vm3167, %v6934, 0
      %6944 = vmatprep.subr.mxu0 %v6906
      %6945 = vmatpush1.msra.mxu0 %v6905
      %6946 = vmatprep.subr.mxu0 %v6908
      %6947 = vmatpush1.msra.mxu0 %v6907
      %6948 = vmatprep.subr.mxu0 %v6910
      %6949 = vmatpush1.msra.mxu0 %v6909
      %6950 = vmatprep.subr.mxu0 %v6912
      %6951 = vmatpush1.msra.mxu0 %v6911
      %6952 = vmatprep.subr.mxu0 %v6914
      %6953 = vmatpush1.msra.mxu0 %v6913
      %6954 = vmatprep.subr.mxu0 %v6916
      %6955 = vmatpush1.msra.mxu0 %v6915
      %6956 = vmatprep.subr.mxu0 %v6918
      %6957 = vmatpush1.msra.mxu0 %v6917
      %6958 = vmatprep.subr.mxu0 %v6920
      %6959 = vmatpush1.msra.mxu0 %v6919
      %6960 = vmatprep.subr.mxu0 %v6922
      %6961 = vmatpush1.msra.mxu0 %v6921
      %6962 = vmatprep.subr.mxu0 %v6924
      %6963 = vmatpush1.msra.mxu0 %v6923
      %6964 = vmatprep.subr.mxu0 %v6926
      %6965 = vmatpush1.msra.mxu0 %v6925
      %6966 = vmatprep.subr.mxu0 %v6928
      %6967 = vmatpush1.msra.mxu0 %v6927
      %6968 = vmatprep.subr.mxu0 %v6930
      %6969 = vmatpush1.msra.mxu0 %v6929
      %6970 = vmatprep.subr.mxu0 %v6932
      %6971 = vmatpush1.msra.mxu0 %v6931
      %6972 = vmatprep.subr.mxu0 %v6942
      %6973 = vmatpush1.msra.mxu0 %v6939
      %6974 = vmatprep.subr.mxu0 0.0
      %6975 = vmatpush1.msra.mxu0 0.0
      %6976 = vmatprep.subr.mxu0 0.0
      %6977 = vmatpush1.msra.mxu0 0.0
      %6978 = vmatprep.subr.mxu0 0.0
      %6979 = vmatpush1.msra.mxu0 0.0
      %6980 = vmatprep.subr.mxu0 0.0
      %6981 = vmatpush1.msra.mxu0 0.0
      %6982 = vmatprep.subr.mxu0 0.0
      %6983 = vmatpush1.msra.mxu0 0.0
      %6984 = vmatprep.subr.mxu0 0.0
      %6985 = vmatpush1.msra.mxu0 0.0
      %6986 = vmatprep.subr.mxu0 0.0
      %6987 = vmatpush1.msra.mxu0 0.0
      %6988 = vmatprep.subr.mxu0 0.0
      %6989 = vmatpush1.msra.mxu0 0.0
      %6990 = vmatprep.subr.mxu0 0.0
      %6991 = vmatpush1.msra.mxu0 0.0
      %6992 = vmatprep.subr.mxu0 0.0
      %6993 = vmatpush1.msra.mxu0 0.0
      %6994 = vmatprep.subr.mxu0 0.0
      %6995 = vmatpush1.msra.mxu0 0.0
      %6996 = vmatprep.subr.mxu0 0.0
      %6997 = vmatpush1.msra.mxu0 0.0
      %6998 = vmatprep.subr.mxu0 0.0
      %6999 = vmatpush1.msra.mxu0 0.0
      %7000 = vmatprep.subr.mxu0 0.0
      %7001 = vmatpush1.msra.mxu0 0.0
      %7002 = vmatprep.subr.mxu0 0.0
      %7003 = vmatpush1.msra.mxu0 0.0
      %7004 = vmatprep.subr.mxu0 0.0
      %7005 = vmatpush1.msra.mxu0 0.0
      %7006 = vmatprep.subr.mxu0 0.0
      %7007 = vmatpush1.msra.mxu0 0.0
      %7008 = vmatprep.mubr.f32.mxu0 0.0
      %7009 = vmatmul.mubr.f32.gmra.mrb[0].mxu0 %v6936
      %v7010 = vpop.f32.mrb[0].mxu0
      %v7011 = vadd.f32 0.0, %v7010
      %v7012 = vpop.f32.mrb[0].mxu0
      %v7013 = vadd.f32 0.0, %v7012
      %7014 = vdwg.mxu0
      %v7017 = vcombine.low %v7011, %v7013
      %v7019 = vunpack.c.l.s4 1966171168
      %v7020 = vunpack.c.0.s8 %v7019
      %v7021 = vlaneseq
      %v7022 = vshrl.u32 %v7021, 7
      %v7023 = vsub.s32 %v7020, %v7022
      %v7024 = vrot.slane %v7017, %v7023
      %v7026 = vunpack.c.l.s4 1966171168
      %v7027 = vunpack.c.0.s8 %v7026
      %v7028 = vlaneseq
      %v7029 = vshrl.u32 %v7028, 7
      %v7030 = vsub.s32 %v7027, %v7029
      %v7031 = vrot.slane %v7024, %v7030
      %v7033 = vadd.f32 %v6903, %v7031
      %s7034 = scalar_lea.vmem %s8, 7200
      %v7035 = vld [vmem:[%s7034] sm:$0xff]
      %v7036 = vld [vmem:[%s7034 + $0x8] sm:$0xff]
      %v7037 = vld [vmem:[%s7034 + $0x10] sm:$0xff]
      %v7038 = vld [vmem:[%s7034 + $0x18] sm:$0xff]
      %v7039 = vld [vmem:[%s7034 + $0x20] sm:$0xff]
      %v7040 = vld [vmem:[%s7034 + $0x28] sm:$0xff]
      %v7041 = vld [vmem:[%s7034 + $0x30] sm:$0xff]
      %v7042 = vld [vmem:[%s7034 + $0x38] sm:$0xff]
      %v7043 = vld [vmem:[%s7034 + $0x40] sm:$0xff]
      %v7044 = vld [vmem:[%s7034 + $0x48] sm:$0xff]
      %v7045 = vld [vmem:[%s7034 + $0x50] sm:$0xff]
      %v7046 = vld [vmem:[%s7034 + $0x58] sm:$0xff]
      %v7047 = vld [vmem:[%s7034 + $0x60] sm:$0xff]
      %v7048 = vld [vmem:[%s7034 + $0x68] sm:$0xff]
      %v7049 = vld [vmem:[%s7034 + $0x70] sm:$0xff]
      %v7050 = vld [vmem:[%s7034 + $0x78] sm:$0xff]
      %v7051 = vld [vmem:[%s7034 + $0x80] sm:$0xff]
      %v7052 = vld [vmem:[%s7034 + $0x88] sm:$0xff]
      %v7053 = vld [vmem:[%s7034 + $0x90] sm:$0xff]
      %v7054 = vld [vmem:[%s7034 + $0x98] sm:$0xff]
      %v7055 = vld [vmem:[%s7034 + $0xa0] sm:$0xff]
      %v7056 = vld [vmem:[%s7034 + $0xa8] sm:$0xff]
      %v7057 = vld [vmem:[%s7034 + $0xb0] sm:$0xff]
      %v7058 = vld [vmem:[%s7034 + $0xb8] sm:$0xff]
      %v7059 = vld [vmem:[%s7034 + $0xc0] sm:$0xff]
      %v7060 = vld [vmem:[%s7034 + $0xc8] sm:$0xff]
      %v7061 = vld [vmem:[%s7034 + $0xd0] sm:$0xff]
      %v7062 = vld [vmem:[%s7034 + $0xd8] sm:$0xff]
      %v7063 = vld [vmem:[%s7034 + $0xe0] sm:$0x3f]
      %v7064 = vld [vmem:[%s7034 + $0xe8] sm:$0x3f]
      %v7065 = vrot.slane %v3131, 6
      %v7066 = vsel %vm3163, %v7065, 0
      %v7069 = vsel %vm3167, %v7063, 0
      %v7072 = vsel %vm3167, %v7064, 0
      %7074 = vmatprep.subr.mxu0 %v7036
      %7075 = vmatpush1.msra.mxu0 %v7035
      %7076 = vmatprep.subr.mxu0 %v7038
      %7077 = vmatpush1.msra.mxu0 %v7037
      %7078 = vmatprep.subr.mxu0 %v7040
      %7079 = vmatpush1.msra.mxu0 %v7039
      %7080 = vmatprep.subr.mxu0 %v7042
      %7081 = vmatpush1.msra.mxu0 %v7041
      %7082 = vmatprep.subr.mxu0 %v7044
      %7083 = vmatpush1.msra.mxu0 %v7043
      %7084 = vmatprep.subr.mxu0 %v7046
      %7085 = vmatpush1.msra.mxu0 %v7045
      %7086 = vmatprep.subr.mxu0 %v7048
      %7087 = vmatpush1.msra.mxu0 %v7047
      %7088 = vmatprep.subr.mxu0 %v7050
      %7089 = vmatpush1.msra.mxu0 %v7049
      %7090 = vmatprep.subr.mxu0 %v7052
      %7091 = vmatpush1.msra.mxu0 %v7051
      %7092 = vmatprep.subr.mxu0 %v7054
      %7093 = vmatpush1.msra.mxu0 %v7053
      %7094 = vmatprep.subr.mxu0 %v7056
      %7095 = vmatpush1.msra.mxu0 %v7055
      %7096 = vmatprep.subr.mxu0 %v7058
      %7097 = vmatpush1.msra.mxu0 %v7057
      %7098 = vmatprep.subr.mxu0 %v7060
      %7099 = vmatpush1.msra.mxu0 %v7059
      %7100 = vmatprep.subr.mxu0 %v7062
      %7101 = vmatpush1.msra.mxu0 %v7061
      %7102 = vmatprep.subr.mxu0 %v7072
      %7103 = vmatpush1.msra.mxu0 %v7069
      %7104 = vmatprep.subr.mxu0 0.0
      %7105 = vmatpush1.msra.mxu0 0.0
      %7106 = vmatprep.subr.mxu0 0.0
      %7107 = vmatpush1.msra.mxu0 0.0
      %7108 = vmatprep.subr.mxu0 0.0
      %7109 = vmatpush1.msra.mxu0 0.0
      %7110 = vmatprep.subr.mxu0 0.0
      %7111 = vmatpush1.msra.mxu0 0.0
      %7112 = vmatprep.subr.mxu0 0.0
      %7113 = vmatpush1.msra.mxu0 0.0
      %7114 = vmatprep.subr.mxu0 0.0
      %7115 = vmatpush1.msra.mxu0 0.0
      %7116 = vmatprep.subr.mxu0 0.0
      %7117 = vmatpush1.msra.mxu0 0.0
      %7118 = vmatprep.subr.mxu0 0.0
      %7119 = vmatpush1.msra.mxu0 0.0
      %7120 = vmatprep.subr.mxu0 0.0
      %7121 = vmatpush1.msra.mxu0 0.0
      %7122 = vmatprep.subr.mxu0 0.0
      %7123 = vmatpush1.msra.mxu0 0.0
      %7124 = vmatprep.subr.mxu0 0.0
      %7125 = vmatpush1.msra.mxu0 0.0
      %7126 = vmatprep.subr.mxu0 0.0
      %7127 = vmatpush1.msra.mxu0 0.0
      %7128 = vmatprep.subr.mxu0 0.0
      %7129 = vmatpush1.msra.mxu0 0.0
      %7130 = vmatprep.subr.mxu0 0.0
      %7131 = vmatpush1.msra.mxu0 0.0
      %7132 = vmatprep.subr.mxu0 0.0
      %7133 = vmatpush1.msra.mxu0 0.0
      %7134 = vmatprep.subr.mxu0 0.0
      %7135 = vmatpush1.msra.mxu0 0.0
      %7136 = vmatprep.subr.mxu0 0.0
      %7137 = vmatpush1.msra.mxu0 0.0
      %7138 = vmatprep.mubr.f32.mxu0 0.0
      %7139 = vmatmul.mubr.f32.gmra.mrb[0].mxu0 %v7066
      %v7140 = vpop.f32.mrb[0].mxu0
      %v7141 = vadd.f32 0.0, %v7140
      %v7142 = vpop.f32.mrb[0].mxu0
      %v7143 = vadd.f32 0.0, %v7142
      %7144 = vdwg.mxu0
      %v7147 = vcombine.low %v7141, %v7143
      %v7149 = vunpack.c.l.s4 1966171168
      %v7150 = vunpack.c.0.s8 %v7149
      %v7151 = vlaneseq
      %v7152 = vshrl.u32 %v7151, 7
      %v7153 = vsub.s32 %v7150, %v7152
      %v7154 = vrot.slane %v7147, %v7153
      %v7156 = vunpack.c.l.s4 1966171168
      %v7157 = vunpack.c.0.s8 %v7156
      %v7158 = vlaneseq
      %v7159 = vshrl.u32 %v7158, 7
      %v7160 = vsub.s32 %v7157, %v7159
      %v7161 = vrot.slane %v7154, %v7160
      %v7163 = vadd.f32 %v7033, %v7161
      %s7164 = scalar_lea.vmem %s8, 7440
      %v7165 = vld [vmem:[%s7164] sm:$0xff]
      %v7166 = vld [vmem:[%s7164 + $0x8] sm:$0xff]
      %v7167 = vld [vmem:[%s7164 + $0x10] sm:$0xff]
      %v7168 = vld [vmem:[%s7164 + $0x18] sm:$0xff]
      %v7169 = vld [vmem:[%s7164 + $0x20] sm:$0xff]
      %v7170 = vld [vmem:[%s7164 + $0x28] sm:$0xff]
      %v7171 = vld [vmem:[%s7164 + $0x30] sm:$0xff]
      %v7172 = vld [vmem:[%s7164 + $0x38] sm:$0xff]
      %v7173 = vld [vmem:[%s7164 + $0x40] sm:$0xff]
      %v7174 = vld [vmem:[%s7164 + $0x48] sm:$0xff]
      %v7175 = vld [vmem:[%s7164 + $0x50] sm:$0xff]
      %v7176 = vld [vmem:[%s7164 + $0x58] sm:$0xff]
      %v7177 = vld [vmem:[%s7164 + $0x60] sm:$0xff]
      %v7178 = vld [vmem:[%s7164 + $0x68] sm:$0xff]
      %v7179 = vld [vmem:[%s7164 + $0x70] sm:$0xff]
      %v7180 = vld [vmem:[%s7164 + $0x78] sm:$0xff]
      %v7181 = vld [vmem:[%s7164 + $0x80] sm:$0xff]
      %v7182 = vld [vmem:[%s7164 + $0x88] sm:$0xff]
      %v7183 = vld [vmem:[%s7164 + $0x90] sm:$0xff]
      %v7184 = vld [vmem:[%s7164 + $0x98] sm:$0xff]
      %v7185 = vld [vmem:[%s7164 + $0xa0] sm:$0xff]
      %v7186 = vld [vmem:[%s7164 + $0xa8] sm:$0xff]
      %v7187 = vld [vmem:[%s7164 + $0xb0] sm:$0xff]
      %v7188 = vld [vmem:[%s7164 + $0xb8] sm:$0xff]
      %v7189 = vld [vmem:[%s7164 + $0xc0] sm:$0xff]
      %v7190 = vld [vmem:[%s7164 + $0xc8] sm:$0xff]
      %v7191 = vld [vmem:[%s7164 + $0xd0] sm:$0xff]
      %v7192 = vld [vmem:[%s7164 + $0xd8] sm:$0xff]
      %v7193 = vld [vmem:[%s7164 + $0xe0] sm:$0x3f]
      %v7194 = vld [vmem:[%s7164 + $0xe8] sm:$0x3f]
      %v7195 = vrot.slane %v3131, 7
      %v7196 = vsel %vm3163, %v7195, 0
      %v7199 = vsel %vm3167, %v7193, 0
      %v7202 = vsel %vm3167, %v7194, 0
      %7204 = vmatprep.subr.mxu0 %v7166
      %7205 = vmatpush1.msra.mxu0 %v7165
      %7206 = vmatprep.subr.mxu0 %v7168
      %7207 = vmatpush1.msra.mxu0 %v7167
      %7208 = vmatprep.subr.mxu0 %v7170
      %7209 = vmatpush1.msra.mxu0 %v7169
      %7210 = vmatprep.subr.mxu0 %v7172
      %7211 = vmatpush1.msra.mxu0 %v7171
      %7212 = vmatprep.subr.mxu0 %v7174
      %7213 = vmatpush1.msra.mxu0 %v7173
      %7214 = vmatprep.subr.mxu0 %v7176
      %7215 = vmatpush1.msra.mxu0 %v7175
      %7216 = vmatprep.subr.mxu0 %v7178
      %7217 = vmatpush1.msra.mxu0 %v7177
      %7218 = vmatprep.subr.mxu0 %v7180
      %7219 = vmatpush1.msra.mxu0 %v7179
      %7220 = vmatprep.subr.mxu0 %v7182
      %7221 = vmatpush1.msra.mxu0 %v7181
      %7222 = vmatprep.subr.mxu0 %v7184
      %7223 = vmatpush1.msra.mxu0 %v7183
      %7224 = vmatprep.subr.mxu0 %v7186
      %7225 = vmatpush1.msra.mxu0 %v7185
      %7226 = vmatprep.subr.mxu0 %v7188
      %7227 = vmatpush1.msra.mxu0 %v7187
      %7228 = vmatprep.subr.mxu0 %v7190
      %7229 = vmatpush1.msra.mxu0 %v7189
      %7230 = vmatprep.subr.mxu0 %v7192
      %7231 = vmatpush1.msra.mxu0 %v7191
      %7232 = vmatprep.subr.mxu0 %v7202
      %7233 = vmatpush1.msra.mxu0 %v7199
      %7234 = vmatprep.subr.mxu0 0.0
      %7235 = vmatpush1.msra.mxu0 0.0
      %7236 = vmatprep.subr.mxu0 0.0
      %7237 = vmatpush1.msra.mxu0 0.0
      %7238 = vmatprep.subr.mxu0 0.0
      %7239 = vmatpush1.msra.mxu0 0.0
      %7240 = vmatprep.subr.mxu0 0.0
      %7241 = vmatpush1.msra.mxu0 0.0
      %7242 = vmatprep.subr.mxu0 0.0
      %7243 = vmatpush1.msra.mxu0 0.0
      %7244 = vmatprep.subr.mxu0 0.0
      %7245 = vmatpush1.msra.mxu0 0.0
      %7246 = vmatprep.subr.mxu0 0.0
      %7247 = vmatpush1.msra.mxu0 0.0
      %7248 = vmatprep.subr.mxu0 0.0
      %7249 = vmatpush1.msra.mxu0 0.0
      %7250 = vmatprep.subr.mxu0 0.0
      %7251 = vmatpush1.msra.mxu0 0.0
      %7252 = vmatprep.subr.mxu0 0.0
      %7253 = vmatpush1.msra.mxu0 0.0
      %7254 = vmatprep.subr.mxu0 0.0
      %7255 = vmatpush1.msra.mxu0 0.0
      %7256 = vmatprep.subr.mxu0 0.0
      %7257 = vmatpush1.msra.mxu0 0.0
      %7258 = vmatprep.subr.mxu0 0.0
      %7259 = vmatpush1.msra.mxu0 0.0
      %7260 = vmatprep.subr.mxu0 0.0
      %7261 = vmatpush1.msra.mxu0 0.0
      %7262 = vmatprep.subr.mxu0 0.0
      %7263 = vmatpush1.msra.mxu0 0.0
      %7264 = vmatprep.subr.mxu0 0.0
      %7265 = vmatpush1.msra.mxu0 0.0
      %7266 = vmatprep.subr.mxu0 0.0
      %7267 = vmatpush1.msra.mxu0 0.0
      %7268 = vmatprep.mubr.f32.mxu0 0.0
      %7269 = vmatmul.mubr.f32.gmra.mrb[0].mxu0 %v7196
      %v7270 = vpop.f32.mrb[0].mxu0
      %v7271 = vadd.f32 0.0, %v7270
      %v7272 = vpop.f32.mrb[0].mxu0
      %v7273 = vadd.f32 0.0, %v7272
      %7274 = vdwg.mxu0
      %v7277 = vcombine.low %v7271, %v7273
      %v7279 = vunpack.c.l.s4 1966171168
      %v7280 = vunpack.c.0.s8 %v7279
      %v7281 = vlaneseq
      %v7282 = vshrl.u32 %v7281, 7
      %v7283 = vsub.s32 %v7280, %v7282
      %v7284 = vrot.slane %v7277, %v7283
      %v7286 = vunpack.c.l.s4 1966171168
      %v7287 = vunpack.c.0.s8 %v7286
      %v7288 = vlaneseq
      %v7289 = vshrl.u32 %v7288, 7
      %v7290 = vsub.s32 %v7287, %v7289
      %v7291 = vrot.slane %v7284, %v7290
      %v7293 = vadd.f32 %v7163, %v7291
      %vm7294 = vcmp.gt.f32.partialorder %v7293, 0.0
      %v7295 = vmul.f32 %v7293, 0.2
      %v7296 = vsel %vm7294, %v7293, %v7295
      %v7297 = vld [vmem:[%s10] sm:$0x3]
      %v7298 = vmul.f32 %v7296, %v7297
      %v7300 = vlaneseq
      %v7301 = vshrl.u32 %v7300, 7
      %v7302 = vsub.s32 0, %v7301
      %v7303 = vrot.slane %v7298, %v7302
      %v7304 = vlaneseq
      %v7305 = vshrl.u32 %v7304, 7
      %v7306 = vsub.s32 1, %v7305
      %v7307 = vrot.slane %v7298, %v7306
      %vm7310 = vcmask 1040384
      %v7311 = vsel %vm7310, %v7303, 0.0
      %v7312 = vsel %vm7310, %v7307, 0.0
      %v7313 = vadd.f32 %v7311, %v7312
      %7314 = vadd.xlane.f32.xlu0 %v7313
      %v7315 = vpop.xlane.xlu0 %7314
      %v7316 = vld [vmem:[#allocation2] sm:$0x1]
      %v7317 = vadd.f32 %v7315, %v7316
      %v7318 = vsub.f32 0.0, %v7317
      %v7319 = vmul.f32 %v7318, 1.442695
      %v7320 = vpow.pop %v7319
      %v7321 = vadd.f32 %v7320, 1.0
      %v7322 = vrcp.pop %v7321
      %v7323 = vmul.f32 1.0, %v7322
      %vm7324 = vcmask 0
      %7325 = vst.msk [vmem:[%s411] sm:$0x1] %vm7324, %v7323
      %p7326 = scmp.lt.s32.totalorder %s25, 1
      %s7327 = scalar_select %p7326, %s25, 1
      %s7328 = scalar_lea.vmem %s12, %s7327
      // Predicated region
      $region69: #{causal_conv_discriminator.1} parent=67 // pred_check
        %p7329 = pneg %p300
      $region70: #{causal_conv_discriminator.1} parent=67 // pred_check_branch
        %7331 = sbr.rel (%p7329) target = $region72
      $region71: #{causal_conv_discriminator.1} parent=67 // pred_region
        _
      $region72: #{causal_conv_discriminator.1} parent=67 // pred_fallthru
        _
    $region68: #{causal_conv_discriminator.1} parent=5 // pred_fallthru
      _
    %p7332 = scmp.le.s32.totalorder 2, %s20
    // Predicated region
    $region73: #{causal_conv_discriminator.1} parent=5 // pred_check
      %p7333 = pneg %p7332
    $region74: #{causal_conv_discriminator.1} parent=5 // pred_check_branch
      %7335 = sbr.rel (%p7333) target = $region76
    $region75: #{causal_conv_discriminator.1} parent=5 // pred_region
      %s7336 = ssub.s32 %s20, 2
      // Predicated region
      $region77: #{causal_conv_discriminator.1} parent=75 // pred_check
        %p7337 = pneg %p306
      $region78: #{causal_conv_discriminator.1} parent=75 // pred_check_branch
        %7339 = sbr.rel (%p7337) target = $region80
      $region79: #{causal_conv_discriminator.1} parent=75 // pred_region
        %p7340 = scmp.lt.s32.totalorder %s26, 1
        %s7341 = scalar_select %p7340, %s26, 1
        %s7342 = scalar_lea.vmem %s12, %s7341
      $region80: #{causal_conv_discriminator.1} parent=75 // pred_fallthru
        _
    $region76: #{causal_conv_discriminator.1} parent=5 // pred_fallthru
      _
  $region6: #{causal_conv_discriminator.1} parent=0 // loop_footer
    %s24 = sadd.s32 1, %s20
  $region7: #{causal_conv_discriminator.1} parent=0 // loop_footer_branch
    %19 = sbr.rel target = $region3
  $region8: #{causal_conv_discriminator.1} parent=0 // loop_exit
    _

</llo_original>
